<compile_context>
chip_gen: v7x
topology: tpu7x:2x2x1
jax: 0.10.0
libtpu: 0.0.40
codegen_flags: <defaults>
</compile_context>

<pallas_src>
import functools

import jax
import jax.numpy as jnp
from jax.experimental import pallas as pl
from jax.experimental.pallas import tpu as pltpu

VMEM_SPEC = pl.BlockSpec(memory_space=pltpu.MemorySpace.VMEM)
EPS = 1e-10
NEG_BIG = -1e30
TEMPORAL_LAYER = 4


# --------------------------- Pallas kernels ---------------------------------

def _apply_act(y, act):
    if act == "relu":
        return jnp.maximum(y, 0.0)
    if act == "leaky":                       # LeakyReLU(0.2)
        return jnp.where(y >= 0.0, y, 0.2 * y)
    return y


def _mlp2_kernel(x_ref, w1_ref, b1_ref, w2_ref, b2_ref, o_ref, *, act1, act2):
    h = jnp.dot(x_ref[...], w1_ref[...],
                preferred_element_type=jnp.float32) + b1_ref[...]
    h = _apply_act(h, act1)
    y = jnp.dot(h, w2_ref[...],
                preferred_element_type=jnp.float32) + b2_ref[...]
    o_ref[...] = _apply_act(y, act2)


def mlp2(x2, p, act1, act2):
    """Fused 2-layer MLP: act2(act1(x@w1+b1)@w2+b2)."""
    n = x2.shape[0]
    dh = p["l1"]["w"].shape[1]
    dout = p["l2"]["w"].shape[1]
    return pl.pallas_call(
        functools.partial(_mlp2_kernel, act1=act1, act2=act2),
        out_shape=jax.ShapeDtypeStruct((n, dout), jnp.float32),
        in_specs=[VMEM_SPEC] * 5,
        out_specs=VMEM_SPEC,
    )(x2, p["l1"]["w"], p["l1"]["b"].reshape(1, dh),
      p["l2"]["w"], p["l2"]["b"].reshape(1, dout))


def _mlp2_proj_kernel(x_ref, w1_ref, b1_ref, w2_ref, b2_ref, pw_ref, pb_ref,
                      y_ref, p_ref, *, n_proj):
    # _MultiLayerPercep (Linear -> LeakyReLU(0.2) -> Linear), fused with the
    # LSTM layer-0 input projection of the first n_proj rows of its output
    # (hoisted out of the serial recurrence as one big lane-dense [*, 4D]
    # MXU matmul).
    h = jnp.dot(x_ref[...], w1_ref[...],
                preferred_element_type=jnp.float32) + b1_ref[...]
    h = jnp.where(h >= 0.0, h, 0.2 * h)
    y = jnp.dot(h, w2_ref[...],
                preferred_element_type=jnp.float32) + b2_ref[...]
    y_ref[...] = y
    p_ref[...] = jnp.dot(y[:n_proj], pw_ref[...],
                         preferred_element_type=jnp.float32) + pb_ref[...]


def mlp2_with_proj(x2, p, pw, pb, n_proj):
    n = x2.shape[0]
    dh = p["l1"]["w"].shape[1]
    dout = p["l2"]["w"].shape[1]
    dp = pw.shape[1]
    return pl.pallas_call(
        functools.partial(_mlp2_proj_kernel, n_proj=n_proj),
        out_shape=(jax.ShapeDtypeStruct((n, dout), jnp.float32),
                   jax.ShapeDtypeStruct((n_proj, dp), jnp.float32)),
        in_specs=[VMEM_SPEC] * 7,
        out_specs=(VMEM_SPEC, VMEM_SPEC),
    )(x2, p["l1"]["w"], p["l1"]["b"].reshape(1, dh),
      p["l2"]["w"], p["l2"]["b"].reshape(1, dout), pw, pb)


def _att_kernel(a_ref, b_ref, m_ref, wk_ref, bk_ref, s1a_ref, s1bw_ref,
                s1b_ref, s2w_ref, s2b_ref, aw_ref, ab_ref, o_ref,
                *, n_groups, group_len, values_from_wa, eps):
    # One fused kernel per attention branch:
    #   wa = wK(a), wb = wK(b)
    #   score  = MLP(cat([wa, wb]))                   (2D -> D -> 1, leaky 0.2)
    #   alpha  = exp(score)*mask / (group_sum + eps)  (max-stabilised)
    #   out    = ReLU(Linear(sum_L alpha * values))
    # Group (length-L) sums use an in-kernel [n, n*L] indicator matmul built
    # from 2-D iota -> no reshapes, no extra HBM input.
    a = a_ref[...]                                       # [nL, D]
    b = b_ref[...]
    wk = wk_ref[...]
    bk = bk_ref[...]
    wa = jnp.dot(a, wk, preferred_element_type=jnp.float32) + bk
    wb = jnp.dot(b, wk, preferred_element_type=jnp.float32) + bk
    hid = (jnp.dot(wa, s1a_ref[...], preferred_element_type=jnp.float32)
           + jnp.dot(wb, s1bw_ref[...], preferred_element_type=jnp.float32)
           + s1b_ref[...])
    hid = jnp.where(hid >= 0.0, hid, 0.2 * hid)
    s = jnp.sum(hid * s2w_ref[...], axis=1, keepdims=True) + s2b_ref[...]  # [nL,1]
    mask = m_ref[...]                                                       # [nL,1]
    ms = jnp.where(mask > 0.0, s, NEG_BIG)
    mx = jnp.maximum(jnp.max(ms, axis=0, keepdims=True), 0.0)               # [1,1]
    w_un = jnp.exp(ms - mx) * mask                                          # [nL,1]
    v = wa if values_from_wa else a

    nl = n_groups * group_len
    row = jax.lax.broadcasted_iota(jnp.int32, (n_groups, nl), 0)
    col = jax.lax.broadcasted_iota(jnp.int32, (n_groups, nl), 1)
    lo = row * group_len
    gt = ((col >= lo) & (col < lo + group_len)).astype(jnp.float32)         # [n, nL]

    num = jnp.dot(gt, w_un * v, preferred_element_type=jnp.float32)         # [n, D]
    den = jnp.dot(gt, w_un, preferred_element_type=jnp.float32)             # [n, 1]
    att = num * pl.reciprocal(den + eps, approx=True)
    out = jnp.dot(att, aw_ref[...],
                  preferred_element_type=jnp.float32) + ab_ref[...]
    o_ref[...] = jnp.maximum(out, 0.0)


def fused_attention(a, b, mask, wk_p, att_p, agg_p, *, values_from_wa):
    """a, b: [n, L, D]; mask: [n, L] -> [n, D]."""
    n, L, D = a.shape
    a2 = a.reshape(n * L, D)
    b2 = b.reshape(n * L, D)
    m2 = mask.reshape(n * L, 1)
    s1w = att_p["l1"]["w"]                                       # [2D, D]
    return pl.pallas_call(
        functools.partial(_att_kernel, n_groups=n, group_len=L,
                          values_from_wa=values_from_wa, eps=EPS),
        out_shape=jax.ShapeDtypeStruct((n, D), jnp.float32),
        in_specs=[VMEM_SPEC] * 12,
        out_specs=VMEM_SPEC,
    )(a2, b2, m2,
      wk_p["w"], wk_p["b"].reshape(1, D),
      s1w[:D], s1w[D:], att_p["l1"]["b"].reshape(1, D),
      att_p["l2"]["w"].reshape(1, D), att_p["l2"]["b"].reshape(1, 1),
      agg_p["w"], agg_p["b"].reshape(1, D))


def _lstm3_kernel(xp_a_ref, xp_b_ref, x_c_ref, h0_ref, c0_ref,
                  wih_ref, whh_ref, b_ref,
                  oa_ref, ob_ref, oc_ref,
                  ha, ca, hb, cb, hc, cc,
                  *, n_layers, d, b0, t_a, t_b, t_c, rep_a, rep_b, rep_c):
    # Runs the three stacked-LSTM recurrences of the model in one launch.
    #   xp_a : [t_a, b0*rep_a, 4D]  pre-projected layer-0 input (x@Wih0 + b0)
    #   xp_b : [t_b, b0*rep_b, 4D]  pre-projected layer-0 input
    #   x_c  : [t_c, b0*rep_c, D]   raw input (projected in-kernel)
    #   h0/c0: [L, b0, D]           broadcast to the batched rows in-kernel
    #   wih/whh : [L, D, 4D]; b: [L, 1, 4D]   gates fused as [i|f|g|o]
    wih = [wih_ref[l] for l in range(n_layers)]
    whh = [whh_ref[l] for l in range(n_layers)]
    bias = [b_ref[l] for l in range(n_layers)]

    def cell(gates, c_prev):
        i_g = jax.nn.sigmoid(gates[:, 0:d])
        f_g = jax.nn.sigmoid(gates[:, d:2 * d])
        g_g = jnp.tanh(gates[:, 2 * d:3 * d])
        o_g = jax.nn.sigmoid(gates[:, 3 * d:4 * d])
        c_new = f_g * c_prev + i_g * g_g
        h_new = o_g * jnp.tanh(c_new)
        return h_new, c_new

    def init_state(h_scr, c_scr, rep):
        if rep == 1:
            h_scr[...] = h0_ref[...]
            c_scr[...] = c0_ref[...]
        else:
            for l in range(n_layers):
                for bb in range(b0):
                    h_scr[l, bb * rep:(bb + 1) * rep, :] = jnp.broadcast_to(
                        h0_ref[l, bb:bb + 1, :], (rep, d))
                    c_scr[l, bb * rep:(bb + 1) * rep, :] = jnp.broadcast_to(
                        c0_ref[l, bb:bb + 1, :], (rep, d))

    def run(in_ref, out_ref, h_scr, c_scr, seq_len, rep, project):
        init_state(h_scr, c_scr, rep)

        @pl.loop(0, seq_len)
        def _(t):
            xin = in_ref[t]
            if project:   # layer-0 input projection for the raw-input sequence
                g0 = jnp.dot(xin, wih[0],
                             preferred_element_type=jnp.float32) + bias[0]
            else:         # already projected (hoisted into the g_v kernel)
                g0 = xin
            gates = g0 + jnp.dot(h_scr[0], whh[0],
                                 preferred_element_type=jnp.float32)
            h_new, c_new = cell(gates, c_scr[0])
            h_scr[0] = h_new
            c_scr[0] = c_new
            inp = h_new
            for l in range(1, n_layers):
                gates = (jnp.dot(inp, wih[l], preferred_element_type=jnp.float32)
                         + jnp.dot(h_scr[l], whh[l],
                                   preferred_element_type=jnp.float32)
                         + bias[l])
                h_new, c_new = cell(gates, c_scr[l])
                h_scr[l] = h_new
                c_scr[l] = c_new
                inp = h_new

        out_ref[...] = h_scr[n_layers - 1]

    run(xp_a_ref, oa_ref, ha, ca, t_a, rep_a, False)
    run(xp_b_ref, ob_ref, hb, cb, t_b, rep_b, False)
    run(x_c_ref, oc_ref, hc, cc, t_c, rep_c, True)


def lstm3(xp_a, xp_b, x_c, h0, c0, wih, whh, b, *, rep_a, rep_b, rep_c):
    """Three stacked LSTMs in one kernel; returns the top-layer final h of each."""
    t_a, bf_a, four_d = xp_a.shape
    t_b, bf_b, _ = xp_b.shape
    t_c, bf_c, _ = x_c.shape
    L, B0, D = h0.shape
    assert four_d == 4 * D and x_c.shape[2] == D
    assert bf_a == B0 * rep_a and bf_b == B0 * rep_b and bf_c == B0 * rep_c
    kernel = functools.partial(_lstm3_kernel, n_layers=L, d=D, b0=B0,
                               t_a=t_a, t_b=t_b, t_c=t_c,
                               rep_a=rep_a, rep_b=rep_b, rep_c=rep_c)
    return pl.pallas_call(
        kernel,
        out_shape=(jax.ShapeDtypeStruct((bf_a, D), jnp.float32),
                   jax.ShapeDtypeStruct((bf_b, D), jnp.float32),
                   jax.ShapeDtypeStruct((bf_c, D), jnp.float32)),
        in_specs=[VMEM_SPEC] * 8,
        out_specs=(VMEM_SPEC, VMEM_SPEC, VMEM_SPEC),
        scratch_shapes=[pltpu.VMEM((L, bf_a, D), jnp.float32),
                        pltpu.VMEM((L, bf_a, D), jnp.float32),
                        pltpu.VMEM((L, bf_b, D), jnp.float32),
                        pltpu.VMEM((L, bf_b, D), jnp.float32),
                        pltpu.VMEM((L, bf_c, D), jnp.float32),
                        pltpu.VMEM((L, bf_c, D), jnp.float32)],
    )(xp_a, xp_b, x_c, h0, c0, wih, whh, b)


# --------------------------- parameters --------------------------------------

def init_params(key, emb_dim, n_users, n_items, n_rates, batch_size, n_layers):
    cnt = [0]

    def nk():
        cnt[0] += 1
        return jax.random.fold_in(key, cnt[0])

    def lin_p(din, dout):
        return {"w": 0.1 * jax.random.normal(nk(), (din, dout), jnp.float32),
                "b": 0.1 * jax.random.normal(nk(), (dout,), jnp.float32)}

    def mlp_p(din, dout):   # _MultiLayerPercep: Linear -> LeakyReLU(0.2) -> Linear
        return {"l1": lin_p(din, din // 2), "l2": lin_p(din // 2, dout)}

    D = emb_dim
    p = {
        "user_emb": 0.1 * jax.random.normal(nk(), (n_users, D), jnp.float32),
        "item_emb": 0.1 * jax.random.normal(nk(), (n_items, D), jnp.float32),
        "rate_emb": 0.1 * jax.random.normal(nk(), (n_rates, D), jnp.float32),
    }
    for name in ["w1", "w2", "w3", "w6", "w7"]:     # w4/w5 unused in forward
        p[name] = lin_p(D, D)
    p["g_v"] = mlp_p(2 * D, D)
    for name in ["user_items_att", "user_items_att_s1", "user_users_att_s2",
                 "u_user_users_att", "sf_user_users_att", "user_items_att_sf1",
                 "sf_users_att"]:
        p[name] = mlp_p(2 * D, 1)
    for name in ["aggre_items", "aggre_items_s1", "aggre_neigbors_s2",
                 "u_aggre_neigbors", "sf_aggre_neigbors", "aggre_items_sf1",
                 "aggre_sf_neigbors"]:
        p[name] = lin_p(D, D)
    p["combine"] = {"l1": lin_p(5 * D, 3 * D), "l2": lin_p(3 * D, D)}
    # stacked LSTM with fused gates [i|f|g|o]; input dim == hidden dim == D
    p["lstm_wih"] = 0.1 * jax.random.normal(nk(), (n_layers, D, 4 * D), jnp.float32)
    p["lstm_whh"] = 0.1 * jax.random.normal(nk(), (n_layers, D, 4 * D), jnp.float32)
    p["lstm_b"] = 0.1 * jax.random.normal(nk(), (n_layers, 1, 4 * D), jnp.float32)
    p["h0"] = jax.random.normal(nk(), (n_layers, batch_size, D), jnp.float32)
    p["c0"] = jax.random.normal(nk(), (n_layers, batch_size, D), jnp.float32)
    return p


# --------------------------- forward pass ------------------------------------

def user_model_forward(params, uids, u_item_pad, u_user_pad, u_user_item_pad,
                       sf_user_pad, sf_user_item_pad):
    user_emb = params["user_emb"]
    item_emb = params["item_emb"]
    rate_emb = params["rate_emb"]
    D = user_emb.shape[1]
    B = uids.shape[0]
    I = u_item_pad.shape[1]
    U = u_user_pad.shape[1]
    I2 = u_user_item_pad.shape[2]
    F_ = sf_user_pad.shape[1]
    I3 = sf_user_item_pad.shape[2]

    wih, whh, bl = params["lstm_wih"], params["lstm_whh"], params["lstm_b"]
    h0, c0 = params["h0"], params["c0"]

    u_emb = jnp.take(user_emb, uids, axis=0)                        # [B, D]

    # ---- embedding gathers & masks (plain-JAX glue) --------------------------
    q_j = jnp.take(item_emb, u_item_pad[:, :, 0], axis=0)           # [B, I, D]
    e_ij = jnp.take(rate_emb, u_item_pad[:, :, 1], axis=0)
    mask_u = (u_item_pad[:, :, 0] > 0).astype(jnp.float32)          # [B, I]

    q_j_s = jnp.take(item_emb, u_user_item_pad[..., 0], axis=0)     # [B, U, I2, D]
    er_s = jnp.take(rate_emb, u_user_item_pad[..., 1], axis=0)
    mask_s = (u_user_item_pad[..., 0] > 0).astype(jnp.float32)      # [B, U, I2]
    uu_emb = jnp.take(user_emb, u_user_pad, axis=0)                 # [B, U, D]
    mask_su = (u_user_pad > 0).astype(jnp.float32)                  # [B, U]

    q_a_f = jnp.take(item_emb, sf_user_item_pad[..., 0], axis=0)    # [B, F, I3, D]
    er_sf = jnp.take(rate_emb, sf_user_item_pad[..., 1], axis=0)
    mask_sf = (sf_user_item_pad[..., 0] > 0).astype(jnp.float32)    # [B, F, I3]
    sf_u_emb = jnp.take(user_emb, sf_user_pad[:, :, 0], axis=0)     # [B, F, D]
    mask_u_f = (sf_user_pad[:, :, 0] > 0).astype(jnp.float32)       # [B, F]

    # ---- one fused g_v MLP over all three item sets (+ LSTM layer-0 proj) ----
    n1, n2, n3 = B * I, B * U * I2, B * F_ * I3
    g_in = jnp.concatenate([
        jnp.concatenate([q_j, e_ij], axis=2).reshape(n1, 2 * D),
        jnp.concatenate([q_j_s, er_s], axis=3).reshape(n2, 2 * D),
        jnp.concatenate([q_a_f, er_sf], axis=3).reshape(n3, 2 * D)], axis=0)
    g_out, g_proj = mlp2_with_proj(g_in, params["g_v"], wih[0], bl[0], n1 + n2)
    x_ij = g_out[:n1].reshape(B, I, D)
    x_ij_s = g_out[n1:n1 + n2].reshape(B, U, I2, D)
    x_ia_sf = g_out[n1 + n2:].reshape(B, F_, I3, D)

    # ---- masked "user profile" tensors ---------------------------------------
    p_i = mask_u[:, :, None] * u_emb[:, None, :]                    # [B, I, D]
    p_i_s = mask_s[..., None] * uu_emb[:, :, None, :]               # [B, U, I2, D]
    p_i_sf = mask_sf[..., None] * sf_u_emb[:, :, None, :]           # [B, F, I3, D]

    # ---- all three LSTM recurrences in one kernel -----------------------------
    xp_a = jnp.transpose(g_proj[:n1].reshape(B, I, 4 * D), (1, 0, 2))
    xp_b = jnp.transpose(g_proj[n1:n1 + n2].reshape(B * U, I2, 4 * D), (1, 0, 2))
    x_c = jnp.transpose(p_i_sf.reshape(B * F_, I3, D), (1, 0, 2))
    h_iS, h_oS_f, h_sfIL_f = lstm3(xp_a, xp_b, x_c, h0, c0, wih, whh, bl,
                                   rep_a=1, rep_b=U, rep_c=F_)
    h_oS = h_oS_f.reshape(B, U, D)
    h_sfIL = h_sfIL_f.reshape(B, F_, D)

    # ---- interest aggregation ------------------------------------------------
    h_iL = fused_attention(x_ij, p_i, mask_u, params["w1"],
                           params["user_items_att"], params["aggre_items"],
                           values_from_wa=False)                    # [B, D]
    h_iI = h_iL * h_iS                                              # dropout = id

    # ---- social neighbours' items --------------------------------------------
    h_oL = fused_attention(x_ij_s.reshape(B * U, I2, D),
                           p_i_s.reshape(B * U, I2, D),
                           mask_s.reshape(B * U, I2),
                           params["w2"], params["user_items_att_s1"],
                           params["aggre_items_s1"],
                           values_from_wa=False).reshape(B, U, D)
    h_oI = h_oL * h_oS                                              # dropout = id
    h_iN = fused_attention(h_oI, uu_emb, mask_su, params["w3"],
                           params["user_users_att_s2"],
                           params["aggre_neigbors_s2"],
                           values_from_wa=False)                    # [B, D]

    # ---- "sf" neighbours' items -----------------------------------------------
    h_sfIs = fused_attention(x_ia_sf.reshape(B * F_, I3, D),
                             p_i_sf.reshape(B * F_, I3, D),
                             mask_sf.reshape(B * F_, I3),
                             params["w2"], params["user_items_att_sf1"],
                             params["aggre_items_sf1"],
                             values_from_wa=True).reshape(B, F_, D)
    h_sfI = h_sfIL * h_sfIs                                         # dropout = id
    p_u_sf = mask_u_f[..., None] * u_emb[:, None, :]                # [B, F, D]
    h_i_sf = fused_attention(h_sfI, p_u_sf, mask_u_f, params["w3"],
                             params["sf_users_att"],
                             params["aggre_sf_neigbors"],
                             values_from_wa=True)                   # [B, D]

    # ---- direct social neighbours ---------------------------------------------
    p_uf = mask_su[..., None] * u_emb[:, None, :]
    h_su = fused_attention(uu_emb, p_uf, mask_su, params["w6"],
                           params["u_user_users_att"],
                           params["u_aggre_neigbors"],
                           values_from_wa=True)                     # [B, D]

    # ---- direct "sf" neighbours ------------------------------------------------
    p_sf = mask_u_f[..., None] * u_emb[:, None, :]
    h_sf = fused_attention(sf_u_emb, p_sf, mask_u_f, params["w7"],
                           params["sf_user_users_att"],
                           params["sf_aggre_neigbors"],
                           values_from_wa=True)                     # [B, D]

    # ---- combine ---------------------------------------------------------------
    h_cat = jnp.concatenate([h_iI, h_iN, h_i_sf, h_sf, h_su], axis=1)  # [B, 5D]
    return mlp2(h_cat, params["combine"], act1="relu", act2="relu")    # [B, D]


# --------------------------- demo / main --------------------------------------

if __name__ == "__main__":
    key = jax.random.PRNGKey(0)
    B, D = 2, 32
    I, U, I2, Fu, I3 = 5, 3, 4, 3, 4
    n_users, n_items, n_rates = 10, 12, 6

    params = init_params(key, D, n_users, n_items, n_rates, B, TEMPORAL_LAYER)

    k1, k2, k3, k4, k5, k6, k7, k8 = jax.random.split(
        jax.random.fold_in(key, 999), 8)
    uids = jax.random.randint(k1, (B,), 1, n_users, dtype=jnp.int32)
    u_item_pad = jnp.stack(
        [jax.random.randint(k2, (B, I), 0, n_items, dtype=jnp.int32),
         jax.random.randint(k3, (B, I), 0, n_rates, dtype=jnp.int32)], axis=2)
    u_user_pad = jax.random.randint(k4, (B, U), 0, n_users, dtype=jnp.int32)
    u_user_item_pad = jnp.stack(
        [jax.random.randint(k5, (B, U, I2), 0, n_items, dtype=jnp.int32),
         jax.random.randint(k6, (B, U, I2), 0, n_rates, dtype=jnp.int32)], axis=3)
    sf_user_pad = jnp.stack(
        [jax.random.randint(k7, (B, Fu), 0, n_users, dtype=jnp.int32),
         jnp.zeros((B, Fu), jnp.int32)], axis=2)
    sf_user_item_pad = jnp.stack(
        [jax.random.randint(k8, (B, Fu, I3), 0, n_items, dtype=jnp.int32),
         jax.random.randint(jax.random.fold_in(key, 1000), (B, Fu, I3), 0,
                            n_rates, dtype=jnp.int32)], axis=3)

    fwd = jax.jit(user_model_forward)
    h = fwd(params, uids, u_item_pad, u_user_pad, u_user_item_pad,
            sf_user_pad, sf_user_item_pad)
    h = jax.block_until_ready(h)
    assert h.shape == (B, D) and bool(jnp.all(jnp.isfinite(h)))
    print("KERNEL_OK")
</pallas_src>

<mosaic_0001>
module attributes {stable_mosaic.version = 11 : i64} {
  func.func @_mlp2_proj_kernel(%arg0: memref<58x64xf32, #tpu.memory_space<vmem>>, %arg1: memref<64x32xf32, #tpu.memory_space<vmem>>, %arg2: memref<1x32xf32, #tpu.memory_space<vmem>>, %arg3: memref<32x32xf32, #tpu.memory_space<vmem>>, %arg4: memref<1x32xf32, #tpu.memory_space<vmem>>, %arg5: memref<32x128xf32, #tpu.memory_space<vmem>>, %arg6: memref<1x128xf32, #tpu.memory_space<vmem>>, %arg7: memref<58x32xf32, #tpu.memory_space<vmem>>, %arg8: memref<34x128xf32, #tpu.memory_space<vmem>>) attributes {dimension_semantics = [], scalar_prefetch = 0 : i64, scratch_operands = 0 : i64, tpu.core_type = #tpu.core_type<tc>} {
    %c0 = arith.constant 0 : index
    %c0_0 = arith.constant 0 : index
    %0 = vector.load %arg0[%c0, %c0_0] : memref<58x64xf32, #tpu.memory_space<vmem>>, vector<58x64xf32>
    %c0_1 = arith.constant 0 : index
    %c0_2 = arith.constant 0 : index
    %1 = vector.load %arg1[%c0_1, %c0_2] : memref<64x32xf32, #tpu.memory_space<vmem>>, vector<64x32xf32>
    %cst = arith.constant dense<0.000000e+00> : vector<58x32xf32>
    %2 = tpu.matmul %0, %1, %cst {dimension_numbers = #tpu.dot_dimension_numbers<[1], [0], [0], [1], [0, 0, 1, 1], [], []>} : vector<58x64xf32>, vector<64x32xf32>, vector<58x32xf32> -> vector<58x32xf32>
    %c0_3 = arith.constant 0 : index
    %c0_4 = arith.constant 0 : index
    %3 = vector.load %arg2[%c0_3, %c0_4] : memref<1x32xf32, #tpu.memory_space<vmem>>, vector<1x32xf32>
    %4 = vector.broadcast %3 : vector<1x32xf32> to vector<58x32xf32>
    %5 = arith.addf %2, %4 : vector<58x32xf32>
    %cst_5 = arith.constant 0.000000e+00 : f32
    %6 = vector.broadcast %cst_5 : f32 to vector<58x32xf32>
    %7 = arith.cmpf oge, %5, %6 : vector<58x32xf32>
    %cst_6 = arith.constant 2.000000e-01 : f32
    %8 = vector.broadcast %cst_6 : f32 to vector<58x32xf32>
    %9 = arith.mulf %8, %5 : vector<58x32xf32>
    %10 = arith.select %7, %5, %9 : vector<58x32xi1>, vector<58x32xf32>
    %c0_7 = arith.constant 0 : index
    %c0_8 = arith.constant 0 : index
    %11 = vector.load %arg3[%c0_7, %c0_8] : memref<32x32xf32, #tpu.memory_space<vmem>>, vector<32x32xf32>
    %cst_9 = arith.constant dense<0.000000e+00> : vector<58x32xf32>
    %12 = tpu.matmul %10, %11, %cst_9 {dimension_numbers = #tpu.dot_dimension_numbers<[1], [0], [0], [1], [0, 0, 1, 1], [], []>} : vector<58x32xf32>, vector<32x32xf32>, vector<58x32xf32> -> vector<58x32xf32>
    %c0_10 = arith.constant 0 : index
    %c0_11 = arith.constant 0 : index
    %13 = vector.load %arg4[%c0_10, %c0_11] : memref<1x32xf32, #tpu.memory_space<vmem>>, vector<1x32xf32>
    %14 = vector.broadcast %13 : vector<1x32xf32> to vector<58x32xf32>
    %15 = arith.addf %12, %14 : vector<58x32xf32>
    %c0_12 = arith.constant 0 : index
    %c0_13 = arith.constant 0 : index
    %16 = vector.load %arg7[%c0_12, %c0_13] : memref<58x32xf32, #tpu.memory_space<vmem>>, vector<58x32xf32>
    tpu.vector_store %arg7[%c0_12, %c0_13], %15 {strides = array<i32>} : memref<58x32xf32, #tpu.memory_space<vmem>>, vector<58x32xf32>,
    %17 = vector.extract_strided_slice %15 {offsets = [0, 0], sizes = [34, 32], strides = [1, 1]} : vector<58x32xf32> to vector<34x32xf32>
    %c0_14 = arith.constant 0 : index
    %c0_15 = arith.constant 0 : index
    %18 = vector.load %arg5[%c0_14, %c0_15] : memref<32x128xf32, #tpu.memory_space<vmem>>, vector<32x128xf32>
    %cst_16 = arith.constant dense<0.000000e+00> : vector<34x128xf32>
    %19 = tpu.matmul %17, %18, %cst_16 {dimension_numbers = #tpu.dot_dimension_numbers<[1], [0], [0], [1], [0, 0, 1, 1], [], []>} : vector<34x32xf32>, vector<32x128xf32>, vector<34x128xf32> -> vector<34x128xf32>
    %c0_17 = arith.constant 0 : index
    %c0_18 = arith.constant 0 : index
    %20 = vector.load %arg6[%c0_17, %c0_18] : memref<1x128xf32, #tpu.memory_space<vmem>>, vector<1x128xf32>
    %21 = vector.broadcast %20 : vector<1x128xf32> to vector<34x128xf32>
    %22 = arith.addf %19, %21 : vector<34x128xf32>
    %c0_19 = arith.constant 0 : index
    %c0_20 = arith.constant 0 : index
    %23 = vector.load %arg8[%c0_19, %c0_20] : memref<34x128xf32, #tpu.memory_space<vmem>>, vector<34x128xf32>
    tpu.vector_store %arg8[%c0_19, %c0_20], %22 {strides = array<i32>} : memref<34x128xf32, #tpu.memory_space<vmem>>, vector<34x128xf32>,
    return
  }
}

module attributes {stable_mosaic.version = 11 : i64} {
  func.func @_att_kernel(%arg0: memref<10x32xf32, #tpu.memory_space<vmem>>, %arg1: memref<10x32xf32, #tpu.memory_space<vmem>>, %arg2: memref<10x1xf32, #tpu.memory_space<vmem>>, %arg3: memref<32x32xf32, #tpu.memory_space<vmem>>, %arg4: memref<1x32xf32, #tpu.memory_space<vmem>>, %arg5: memref<32x32xf32, #tpu.memory_space<vmem>>, %arg6: memref<32x32xf32, #tpu.memory_space<vmem>>, %arg7: memref<1x32xf32, #tpu.memory_space<vmem>>, %arg8: memref<1x32xf32, #tpu.memory_space<vmem>>, %arg9: memref<1x1xf32, #tpu.memory_space<vmem>>, %arg10: memref<32x32xf32, #tpu.memory_space<vmem>>, %arg11: memref<1x32xf32, #tpu.memory_space<vmem>>, %arg12: memref<2x32xf32, #tpu.memory_space<vmem>>) attributes {dimension_semantics = [], scalar_prefetch = 0 : i64, scratch_operands = 0 : i64, tpu.core_type = #tpu.core_type<tc>} {
    %c0 = arith.constant 0 : index
    %c0_0 = arith.constant 0 : index
    %0 = vector.load %arg0[%c0, %c0_0] : memref<10x32xf32, #tpu.memory_space<vmem>>, vector<10x32xf32>
    %c0_1 = arith.constant 0 : index
    %c0_2 = arith.constant 0 : index
    %1 = vector.load %arg1[%c0_1, %c0_2] : memref<10x32xf32, #tpu.memory_space<vmem>>, vector<10x32xf32>
    %c0_3 = arith.constant 0 : index
    %c0_4 = arith.constant 0 : index
    %2 = vector.load %arg3[%c0_3, %c0_4] : memref<32x32xf32, #tpu.memory_space<vmem>>, vector<32x32xf32>
    %c0_5 = arith.constant 0 : index
    %c0_6 = arith.constant 0 : index
    %3 = vector.load %arg4[%c0_5, %c0_6] : memref<1x32xf32, #tpu.memory_space<vmem>>, vector<1x32xf32>
    %cst = arith.constant dense<0.000000e+00> : vector<10x32xf32>
    %4 = tpu.matmul %0, %2, %cst {dimension_numbers = #tpu.dot_dimension_numbers<[1], [0], [0], [1], [0, 0, 1, 1], [], []>} : vector<10x32xf32>, vector<32x32xf32>, vector<10x32xf32> -> vector<10x32xf32>
    %5 = vector.broadcast %3 : vector<1x32xf32> to vector<10x32xf32>
    %6 = arith.addf %4, %5 : vector<10x32xf32>
    %cst_7 = arith.constant dense<0.000000e+00> : vector<10x32xf32>
    %7 = tpu.matmul %1, %2, %cst_7 {dimension_numbers = #tpu.dot_dimension_numbers<[1], [0], [0], [1], [0, 0, 1, 1], [], []>} : vector<10x32xf32>, vector<32x32xf32>, vector<10x32xf32> -> vector<10x32xf32>
    %8 = vector.broadcast %3 : vector<1x32xf32> to vector<10x32xf32>
    %9 = arith.addf %7, %8 : vector<10x32xf32>
    %c0_8 = arith.constant 0 : index
    %c0_9 = arith.constant 0 : index
    %10 = vector.load %arg5[%c0_8, %c0_9] : memref<32x32xf32, #tpu.memory_space<vmem>>, vector<32x32xf32>
    %cst_10 = arith.constant dense<0.000000e+00> : vector<10x32xf32>
    %11 = tpu.matmul %6, %10, %cst_10 {dimension_numbers = #tpu.dot_dimension_numbers<[1], [0], [0], [1], [0, 0, 1, 1], [], []>} : vector<10x32xf32>, vector<32x32xf32>, vector<10x32xf32> -> vector<10x32xf32>
    %c0_11 = arith.constant 0 : index
    %c0_12 = arith.constant 0 : index
    %12 = vector.load %arg6[%c0_11, %c0_12] : memref<32x32xf32, #tpu.memory_space<vmem>>, vector<32x32xf32>
    %cst_13 = arith.constant dense<0.000000e+00> : vector<10x32xf32>
    %13 = tpu.matmul %9, %12, %cst_13 {dimension_numbers = #tpu.dot_dimension_numbers<[1], [0], [0], [1], [0, 0, 1, 1], [], []>} : vector<10x32xf32>, vector<32x32xf32>, vector<10x32xf32> -> vector<10x32xf32>
    %14 = arith.addf %11, %13 : vector<10x32xf32>
    %c0_14 = arith.constant 0 : index
    %c0_15 = arith.constant 0 : index
    %15 = vector.load %arg7[%c0_14, %c0_15] : memref<1x32xf32, #tpu.memory_space<vmem>>, vector<1x32xf32>
    %16 = vector.broadcast %15 : vector<1x32xf32> to vector<10x32xf32>
    %17 = arith.addf %14, %16 : vector<10x32xf32>
    %cst_16 = arith.constant 0.000000e+00 : f32
    %18 = vector.broadcast %cst_16 : f32 to vector<10x32xf32>
    %19 = arith.cmpf oge, %17, %18 : vector<10x32xf32>
    %cst_17 = arith.constant 2.000000e-01 : f32
    %20 = vector.broadcast %cst_17 : f32 to vector<10x32xf32>
    %21 = arith.mulf %20, %17 : vector<10x32xf32>
    %22 = arith.select %19, %17, %21 : vector<10x32xi1>, vector<10x32xf32>
    %c0_18 = arith.constant 0 : index
    %c0_19 = arith.constant 0 : index
    %23 = vector.load %arg8[%c0_18, %c0_19] : memref<1x32xf32, #tpu.memory_space<vmem>>, vector<1x32xf32>
    %24 = vector.broadcast %23 : vector<1x32xf32> to vector<10x32xf32>
    %25 = arith.mulf %22, %24 : vector<10x32xf32>
    %cst_20 = arith.constant dense<0.000000e+00> : vector<10xf32>
    %26 = vector.multi_reduction <add>, %25, %cst_20 [1] : vector<10x32xf32> to vector<10xf32>
    %27 = vector.shape_cast %26 : vector<10xf32> to vector<10x1xf32>
    %c0_21 = arith.constant 0 : index
    %c0_22 = arith.constant 0 : index
    %28 = vector.load %arg9[%c0_21, %c0_22] : memref<1x1xf32, #tpu.memory_space<vmem>>, vector<1x1xf32>
    %29 = vector.broadcast %28 : vector<1x1xf32> to vector<10x1xf32>
    %30 = arith.addf %27, %29 : vector<10x1xf32>
    %c0_23 = arith.constant 0 : index
    %c0_24 = arith.constant 0 : index
    %31 = vector.load %arg2[%c0_23, %c0_24] : memref<10x1xf32, #tpu.memory_space<vmem>>, vector<10x1xf32>
    %cst_25 = arith.constant 0.000000e+00 : f32
    %32 = vector.broadcast %cst_25 : f32 to vector<10x1xf32>
    %33 = arith.cmpf ogt, %31, %32 : vector<10x1xf32>
    %cst_26 = arith.constant -1.000000e+30 : f32
    %34 = vector.broadcast %cst_26 : f32 to vector<10x1xf32>
    %35 = arith.select %33, %30, %34 : vector<10x1xi1>, vector<10x1xf32>
    %cst_27 = arith.constant dense<0xFF800000> : vector<1xf32>
    %36 = vector.multi_reduction <maximumf>, %35, %cst_27 [0] : vector<10x1xf32> to vector<1xf32>
    %37 = vector.shape_cast %36 : vector<1xf32> to vector<1x1xf32>
    %cst_28 = arith.constant 0.000000e+00 : f32
    %38 = vector.broadcast %cst_28 : f32 to vector<1x1xf32>
    %39 = arith.maximumf %37, %38 : vector<1x1xf32>
    %40 = vector.broadcast %39 : vector<1x1xf32> to vector<10x1xf32>
    %41 = arith.subf %35, %40 : vector<10x1xf32>
    %42 = math.exp %41 : vector<10x1xf32>
    %43 = arith.mulf %42, %31 : vector<10x1xf32>
    %44 = tpu.iota {dimensions = array<i32: 0>} : vector<2x10xi32>
    %45 = tpu.iota {dimensions = array<i32: 1>} : vector<2x10xi32>
    %c5_i32 = arith.constant 5 : i32
    %46 = vector.broadcast %c5_i32 : i32 to vector<2x10xi32>
    %47 = arith.muli %44, %46 : vector<2x10xi32>
    %48 = arith.cmpi sge, %45, %47 : vector<2x10xi32>
    %c5_i32_29 = arith.constant 5 : i32
    %49 = vector.broadcast %c5_i32_29 : i32 to vector<2x10xi32>
    %50 = arith.addi %47, %49 : vector<2x10xi32>
    %51 = arith.cmpi slt, %45, %50 : vector<2x10xi32>
    %52 = arith.andi %48, %51 : vector<2x10xi1>
    %53 = arith.extui %52 : vector<2x10xi1> to vector<2x10xi32>
    %54 = arith.sitofp %53 : vector<2x10xi32> to vector<2x10xf32>
    %55 = vector.broadcast %43 : vector<10x1xf32> to vector<10x32xf32>
    %56 = arith.mulf %55, %0 : vector<10x32xf32>
    %cst_30 = arith.constant dense<0.000000e+00> : vector<2x32xf32>
    %57 = tpu.matmul %54, %56, %cst_30 {dimension_numbers = #tpu.dot_dimension_numbers<[1], [0], [0], [1], [0, 0, 1, 1], [], []>} : vector<2x10xf32>, vector<10x32xf32>, vector<2x32xf32> -> vector<2x32xf32>
    %cst_31 = arith.constant dense<0.000000e+00> : vector<2x1xf32>
    %58 = tpu.matmul %54, %43, %cst_31 {dimension_numbers = #tpu.dot_dimension_numbers<[1], [0], [0], [1], [0, 0, 1, 1], [], []>} : vector<2x10xf32>, vector<10x1xf32>, vector<2x1xf32> -> vector<2x1xf32>
    %cst_32 = arith.constant 1.000000e-10 : f32
    %59 = vector.broadcast %cst_32 : f32 to vector<2x1xf32>
    %60 = arith.addf %58, %59 : vector<2x1xf32>
    %61 = tpu.reciprocal %60 {approx = true} : vector<2x1xf32> -> vector<2x1xf32>
    %62 = vector.broadcast %61 : vector<2x1xf32> to vector<2x32xf32>
    %63 = arith.mulf %57, %62 : vector<2x32xf32>
    %c0_33 = arith.constant 0 : index
    %c0_34 = arith.constant 0 : index
    %64 = vector.load %arg10[%c0_33, %c0_34] : memref<32x32xf32, #tpu.memory_space<vmem>>, vector<32x32xf32>
    %cst_35 = arith.constant dense<0.000000e+00> : vector<2x32xf32>
    %65 = tpu.matmul %63, %64, %cst_35 {dimension_numbers = #tpu.dot_dimension_numbers<[1], [0], [0], [1], [0, 0, 1, 1], [], []>} : vector<2x32xf32>, vector<32x32xf32>, vector<2x32xf32> -> vector<2x32xf32>
    %c0_36 = arith.constant 0 : index
    %c0_37 = arith.constant 0 : index
    %66 = vector.load %arg11[%c0_36, %c0_37] : memref<1x32xf32, #tpu.memory_space<vmem>>, vector<1x32xf32>
    %67 = vector.broadcast %66 : vector<1x32xf32> to vector<2x32xf32>
    %68 = arith.addf %65, %67 : vector<2x32xf32>
    %cst_38 = arith.constant 0.000000e+00 : f32
    %69 = vector.broadcast %cst_38 : f32 to vector<2x32xf32>
    %70 = arith.maximumf %68, %69 : vector<2x32xf32>
    %c0_39 = arith.constant 0 : index
    %c0_40 = arith.constant 0 : index
    %71 = vector.load %arg12[%c0_39, %c0_40] : memref<2x32xf32, #tpu.memory_space<vmem>>, vector<2x32xf32>
    tpu.vector_store %arg12[%c0_39, %c0_40], %70 {strides = array<i32>} : memref<2x32xf32, #tpu.memory_space<vmem>>, vector<2x32xf32>,
    return
  }
}

module attributes {stable_mosaic.version = 11 : i64} {
  func.func @_att_kernel(%arg0: memref<24x32xf32, #tpu.memory_space<vmem>>, %arg1: memref<24x32xf32, #tpu.memory_space<vmem>>, %arg2: memref<24x1xf32, #tpu.memory_space<vmem>>, %arg3: memref<32x32xf32, #tpu.memory_space<vmem>>, %arg4: memref<1x32xf32, #tpu.memory_space<vmem>>, %arg5: memref<32x32xf32, #tpu.memory_space<vmem>>, %arg6: memref<32x32xf32, #tpu.memory_space<vmem>>, %arg7: memref<1x32xf32, #tpu.memory_space<vmem>>, %arg8: memref<1x32xf32, #tpu.memory_space<vmem>>, %arg9: memref<1x1xf32, #tpu.memory_space<vmem>>, %arg10: memref<32x32xf32, #tpu.memory_space<vmem>>, %arg11: memref<1x32xf32, #tpu.memory_space<vmem>>, %arg12: memref<6x32xf32, #tpu.memory_space<vmem>>) attributes {dimension_semantics = [], scalar_prefetch = 0 : i64, scratch_operands = 0 : i64, tpu.core_type = #tpu.core_type<tc>} {
    %c0 = arith.constant 0 : index
    %c0_0 = arith.constant 0 : index
    %0 = vector.load %arg0[%c0, %c0_0] : memref<24x32xf32, #tpu.memory_space<vmem>>, vector<24x32xf32>
    %c0_1 = arith.constant 0 : index
    %c0_2 = arith.constant 0 : index
    %1 = vector.load %arg1[%c0_1, %c0_2] : memref<24x32xf32, #tpu.memory_space<vmem>>, vector<24x32xf32>
    %c0_3 = arith.constant 0 : index
    %c0_4 = arith.constant 0 : index
    %2 = vector.load %arg3[%c0_3, %c0_4] : memref<32x32xf32, #tpu.memory_space<vmem>>, vector<32x32xf32>
    %c0_5 = arith.constant 0 : index
    %c0_6 = arith.constant 0 : index
    %3 = vector.load %arg4[%c0_5, %c0_6] : memref<1x32xf32, #tpu.memory_space<vmem>>, vector<1x32xf32>
    %cst = arith.constant dense<0.000000e+00> : vector<24x32xf32>
    %4 = tpu.matmul %0, %2, %cst {dimension_numbers = #tpu.dot_dimension_numbers<[1], [0], [0], [1], [0, 0, 1, 1], [], []>} : vector<24x32xf32>, vector<32x32xf32>, vector<24x32xf32> -> vector<24x32xf32>
    %5 = vector.broadcast %3 : vector<1x32xf32> to vector<24x32xf32>
    %6 = arith.addf %4, %5 : vector<24x32xf32>
    %cst_7 = arith.constant dense<0.000000e+00> : vector<24x32xf32>
    %7 = tpu.matmul %1, %2, %cst_7 {dimension_numbers = #tpu.dot_dimension_numbers<[1], [0], [0], [1], [0, 0, 1, 1], [], []>} : vector<24x32xf32>, vector<32x32xf32>, vector<24x32xf32> -> vector<24x32xf32>
    %8 = vector.broadcast %3 : vector<1x32xf32> to vector<24x32xf32>
    %9 = arith.addf %7, %8 : vector<24x32xf32>
    %c0_8 = arith.constant 0 : index
    %c0_9 = arith.constant 0 : index
    %10 = vector.load %arg5[%c0_8, %c0_9] : memref<32x32xf32, #tpu.memory_space<vmem>>, vector<32x32xf32>
    %cst_10 = arith.constant dense<0.000000e+00> : vector<24x32xf32>
    %11 = tpu.matmul %6, %10, %cst_10 {dimension_numbers = #tpu.dot_dimension_numbers<[1], [0], [0], [1], [0, 0, 1, 1], [], []>} : vector<24x32xf32>, vector<32x32xf32>, vector<24x32xf32> -> vector<24x32xf32>
    %c0_11 = arith.constant 0 : index
    %c0_12 = arith.constant 0 : index
    %12 = vector.load %arg6[%c0_11, %c0_12] : memref<32x32xf32, #tpu.memory_space<vmem>>, vector<32x32xf32>
    %cst_13 = arith.constant dense<0.000000e+00> : vector<24x32xf32>
    %13 = tpu.matmul %9, %12, %cst_13 {dimension_numbers = #tpu.dot_dimension_numbers<[1], [0], [0], [1], [0, 0, 1, 1], [], []>} : vector<24x32xf32>, vector<32x32xf32>, vector<24x32xf32> -> vector<24x32xf32>
    %14 = arith.addf %11, %13 : vector<24x32xf32>
    %c0_14 = arith.constant 0 : index
    %c0_15 = arith.constant 0 : index
    %15 = vector.load %arg7[%c0_14, %c0_15] : memref<1x32xf32, #tpu.memory_space<vmem>>, vector<1x32xf32>
    %16 = vector.broadcast %15 : vector<1x32xf32> to vector<24x32xf32>
    %17 = arith.addf %14, %16 : vector<24x32xf32>
    %cst_16 = arith.constant 0.000000e+00 : f32
    %18 = vector.broadcast %cst_16 : f32 to vector<24x32xf32>
    %19 = arith.cmpf oge, %17, %18 : vector<24x32xf32>
    %cst_17 = arith.constant 2.000000e-01 : f32
    %20 = vector.broadcast %cst_17 : f32 to vector<24x32xf32>
    %21 = arith.mulf %20, %17 : vector<24x32xf32>
    %22 = arith.select %19, %17, %21 : vector<24x32xi1>, vector<24x32xf32>
    %c0_18 = arith.constant 0 : index
    %c0_19 = arith.constant 0 : index
    %23 = vector.load %arg8[%c0_18, %c0_19] : memref<1x32xf32, #tpu.memory_space<vmem>>, vector<1x32xf32>
    %24 = vector.broadcast %23 : vector<1x32xf32> to vector<24x32xf32>
    %25 = arith.mulf %22, %24 : vector<24x32xf32>
    %cst_20 = arith.constant dense<0.000000e+00> : vector<24xf32>
    %26 = vector.multi_reduction <add>, %25, %cst_20 [1] : vector<24x32xf32> to vector<24xf32>
    %27 = vector.shape_cast %26 : vector<24xf32> to vector<24x1xf32>
    %c0_21 = arith.constant 0 : index
    %c0_22 = arith.constant 0 : index
    %28 = vector.load %arg9[%c0_21, %c0_22] : memref<1x1xf32, #tpu.memory_space<vmem>>, vector<1x1xf32>
    %29 = vector.broadcast %28 : vector<1x1xf32> to vector<24x1xf32>
    %30 = arith.addf %27, %29 : vector<24x1xf32>
    %c0_23 = arith.constant 0 : index
    %c0_24 = arith.constant 0 : index
    %31 = vector.load %arg2[%c0_23, %c0_24] : memref<24x1xf32, #tpu.memory_space<vmem>>, vector<24x1xf32>
    %cst_25 = arith.constant 0.000000e+00 : f32
    %32 = vector.broadcast %cst_25 : f32 to vector<24x1xf32>
    %33 = arith.cmpf ogt, %31, %32 : vector<24x1xf32>
    %cst_26 = arith.constant -1.000000e+30 : f32
    %34 = vector.broadcast %cst_26 : f32 to vector<24x1xf32>
    %35 = arith.select %33, %30, %34 : vector<24x1xi1>, vector<24x1xf32>
    %cst_27 = arith.constant dense<0xFF800000> : vector<1xf32>
    %36 = vector.multi_reduction <maximumf>, %35, %cst_27 [0] : vector<24x1xf32> to vector<1xf32>
    %37 = vector.shape_cast %36 : vector<1xf32> to vector<1x1xf32>
    %cst_28 = arith.constant 0.000000e+00 : f32
    %38 = vector.broadcast %cst_28 : f32 to vector<1x1xf32>
    %39 = arith.maximumf %37, %38 : vector<1x1xf32>
    %40 = vector.broadcast %39 : vector<1x1xf32> to vector<24x1xf32>
    %41 = arith.subf %35, %40 : vector<24x1xf32>
    %42 = math.exp %41 : vector<24x1xf32>
    %43 = arith.mulf %42, %31 : vector<24x1xf32>
    %44 = tpu.iota {dimensions = array<i32: 0>} : vector<6x24xi32>
    %45 = tpu.iota {dimensions = array<i32: 1>} : vector<6x24xi32>
    %c4_i32 = arith.constant 4 : i32
    %46 = vector.broadcast %c4_i32 : i32 to vector<6x24xi32>
    %47 = arith.muli %44, %46 : vector<6x24xi32>
    %48 = arith.cmpi sge, %45, %47 : vector<6x24xi32>
    %c4_i32_29 = arith.constant 4 : i32
    %49 = vector.broadcast %c4_i32_29 : i32 to vector<6x24xi32>
    %50 = arith.addi %47, %49 : vector<6x24xi32>
    %51 = arith.cmpi slt, %45, %50 : vector<6x24xi32>
    %52 = arith.andi %48, %51 : vector<6x24xi1>
    %53 = arith.extui %52 : vector<6x24xi1> to vector<6x24xi32>
    %54 = arith.sitofp %53 : vector<6x24xi32> to vector<6x24xf32>
    %55 = vector.broadcast %43 : vector<24x1xf32> to vector<24x32xf32>
    %56 = arith.mulf %55, %0 : vector<24x32xf32>
    %cst_30 = arith.constant dense<0.000000e+00> : vector<6x32xf32>
    %57 = tpu.matmul %54, %56, %cst_30 {dimension_numbers = #tpu.dot_dimension_numbers<[1], [0], [0], [1], [0, 0, 1, 1], [], []>} : vector<6x24xf32>, vector<24x32xf32>, vector<6x32xf32> -> vector<6x32xf32>
    %cst_31 = arith.constant dense<0.000000e+00> : vector<6x1xf32>
    %58 = tpu.matmul %54, %43, %cst_31 {dimension_numbers = #tpu.dot_dimension_numbers<[1], [0], [0], [1], [0, 0, 1, 1], [], []>} : vector<6x24xf32>, vector<24x1xf32>, vector<6x1xf32> -> vector<6x1xf32>
    %cst_32 = arith.constant 1.000000e-10 : f32
    %59 = vector.broadcast %cst_32 : f32 to vector<6x1xf32>
    %60 = arith.addf %58, %59 : vector<6x1xf32>
    %61 = tpu.reciprocal %60 {approx = true} : vector<6x1xf32> -> vector<6x1xf32>
    %62 = vector.broadcast %61 : vector<6x1xf32> to vector<6x32xf32>
    %63 = arith.mulf %57, %62 : vector<6x32xf32>
    %c0_33 = arith.constant 0 : index
    %c0_34 = arith.constant 0 : index
    %64 = vector.load %arg10[%c0_33, %c0_34] : memref<32x32xf32, #tpu.memory_space<vmem>>, vector<32x32xf32>
    %cst_35 = arith.constant dense<0.000000e+00> : vector<6x32xf32>
    %65 = tpu.matmul %63, %64, %cst_35 {dimension_numbers = #tpu.dot_dimension_numbers<[1], [0], [0], [1], [0, 0, 1, 1], [], []>} : vector<6x32xf32>, vector<32x32xf32>, vector<6x32xf32> -> vector<6x32xf32>
    %c0_36 = arith.constant 0 : index
    %c0_37 = arith.constant 0 : index
    %66 = vector.load %arg11[%c0_36, %c0_37] : memref<1x32xf32, #tpu.memory_space<vmem>>, vector<1x32xf32>
    %67 = vector.broadcast %66 : vector<1x32xf32> to vector<6x32xf32>
    %68 = arith.addf %65, %67 : vector<6x32xf32>
    %cst_38 = arith.constant 0.000000e+00 : f32
    %69 = vector.broadcast %cst_38 : f32 to vector<6x32xf32>
    %70 = arith.maximumf %68, %69 : vector<6x32xf32>
    %c0_39 = arith.constant 0 : index
    %c0_40 = arith.constant 0 : index
    %71 = vector.load %arg12[%c0_39, %c0_40] : memref<6x32xf32, #tpu.memory_space<vmem>>, vector<6x32xf32>
    tpu.vector_store %arg12[%c0_39, %c0_40], %70 {strides = array<i32>} : memref<6x32xf32, #tpu.memory_space<vmem>>, vector<6x32xf32>,
    return
  }
}

module attributes {stable_mosaic.version = 11 : i64} {
  func.func @_lstm3_kernel(%arg0: memref<5x2x128xf32, #tpu.memory_space<vmem>>, %arg1: memref<4x6x128xf32, #tpu.memory_space<vmem>>, %arg2: memref<4x6x32xf32, #tpu.memory_space<vmem>>, %arg3: memref<4x2x32xf32, #tpu.memory_space<vmem>>, %arg4: memref<4x2x32xf32, #tpu.memory_space<vmem>>, %arg5: memref<4x32x128xf32, #tpu.memory_space<vmem>>, %arg6: memref<4x32x128xf32, #tpu.memory_space<vmem>>, %arg7: memref<4x1x128xf32, #tpu.memory_space<vmem>>, %arg8: memref<2x32xf32, #tpu.memory_space<vmem>>, %arg9: memref<6x32xf32, #tpu.memory_space<vmem>>, %arg10: memref<6x32xf32, #tpu.memory_space<vmem>>, %arg11: memref<4x2x32xf32, #tpu.memory_space<vmem>>, %arg12: memref<4x2x32xf32, #tpu.memory_space<vmem>>, %arg13: memref<4x6x32xf32, #tpu.memory_space<vmem>>, %arg14: memref<4x6x32xf32, #tpu.memory_space<vmem>>, %arg15: memref<4x6x32xf32, #tpu.memory_space<vmem>>, %arg16: memref<4x6x32xf32, #tpu.memory_space<vmem>>) attributes {dimension_semantics = [], scalar_prefetch = 0 : i64, scratch_operands = 6 : i64, tpu.core_type = #tpu.core_type<tc>} {
    %c0 = arith.constant 0 : index
    %c0_0 = arith.constant 0 : index
    %c0_1 = arith.constant 0 : index
    %0 = vector.load %arg5[%c0, %c0_0, %c0_1] : memref<4x32x128xf32, #tpu.memory_space<vmem>>, vector<1x32x128xf32>
    %1 = vector.shape_cast %0 : vector<1x32x128xf32> to vector<32x128xf32>
    %c1 = arith.constant 1 : index
    %c0_2 = arith.constant 0 : index
    %c0_3 = arith.constant 0 : index
    %2 = vector.load %arg5[%c1, %c0_2, %c0_3] : memref<4x32x128xf32, #tpu.memory_space<vmem>>, vector<1x32x128xf32>
    %3 = vector.shape_cast %2 : vector<1x32x128xf32> to vector<32x128xf32>
    %c2 = arith.constant 2 : index
    %c0_4 = arith.constant 0 : index
    %c0_5 = arith.constant 0 : index
    %4 = vector.load %arg5[%c2, %c0_4, %c0_5] : memref<4x32x128xf32, #tpu.memory_space<vmem>>, vector<1x32x128xf32>
    %5 = vector.shape_cast %4 : vector<1x32x128xf32> to vector<32x128xf32>
    %c3 = arith.constant 3 : index
    %c0_6 = arith.constant 0 : index
    %c0_7 = arith.constant 0 : index
    %6 = vector.load %arg5[%c3, %c0_6, %c0_7] : memref<4x32x128xf32, #tpu.memory_space<vmem>>, vector<1x32x128xf32>
    %7 = vector.shape_cast %6 : vector<1x32x128xf32> to vector<32x128xf32>
    %c0_8 = arith.constant 0 : index
    %c0_9 = arith.constant 0 : index
    %c0_10 = arith.constant 0 : index
    %8 = vector.load %arg6[%c0_8, %c0_9, %c0_10] : memref<4x32x128xf32, #tpu.memory_space<vmem>>, vector<1x32x128xf32>
    %9 = vector.shape_cast %8 : vector<1x32x128xf32> to vector<32x128xf32>
    %c1_11 = arith.constant 1 : index
    %c0_12 = arith.constant 0 : index
    %c0_13 = arith.constant 0 : index
    %10 = vector.load %arg6[%c1_11, %c0_12, %c0_13] : memref<4x32x128xf32, #tpu.memory_space<vmem>>, vector<1x32x128xf32>
    %11 = vector.shape_cast %10 : vector<1x32x128xf32> to vector<32x128xf32>
    %c2_14 = arith.constant 2 : index
    %c0_15 = arith.constant 0 : index
    %c0_16 = arith.constant 0 : index
    %12 = vector.load %arg6[%c2_14, %c0_15, %c0_16] : memref<4x32x128xf32, #tpu.memory_space<vmem>>, vector<1x32x128xf32>
    %13 = vector.shape_cast %12 : vector<1x32x128xf32> to vector<32x128xf32>
    %c3_17 = arith.constant 3 : index
    %c0_18 = arith.constant 0 : index
    %c0_19 = arith.constant 0 : index
    %14 = vector.load %arg6[%c3_17, %c0_18, %c0_19] : memref<4x32x128xf32, #tpu.memory_space<vmem>>, vector<1x32x128xf32>
    %15 = vector.shape_cast %14 : vector<1x32x128xf32> to vector<32x128xf32>
    %c0_20 = arith.constant 0 : index
    %c0_21 = arith.constant 0 : index
    %c0_22 = arith.constant 0 : index
    %16 = vector.load %arg7[%c0_20, %c0_21, %c0_22] : memref<4x1x128xf32, #tpu.memory_space<vmem>>, vector<1x1x128xf32>
    %17 = vector.shape_cast %16 : vector<1x1x128xf32> to vector<1x128xf32>
    %c1_23 = arith.constant 1 : index
    %c0_24 = arith.constant 0 : index
    %c0_25 = arith.constant 0 : index
    %18 = vector.load %arg7[%c1_23, %c0_24, %c0_25] : memref<4x1x128xf32, #tpu.memory_space<vmem>>, vector<1x1x128xf32>
    %19 = vector.shape_cast %18 : vector<1x1x128xf32> to vector<1x128xf32>
    %c2_26 = arith.constant 2 : index
    %c0_27 = arith.constant 0 : index
    %c0_28 = arith.constant 0 : index
    %20 = vector.load %arg7[%c2_26, %c0_27, %c0_28] : memref<4x1x128xf32, #tpu.memory_space<vmem>>, vector<1x1x128xf32>
    %21 = vector.shape_cast %20 : vector<1x1x128xf32> to vector<1x128xf32>
    %c3_29 = arith.constant 3 : index
    %c0_30 = arith.constant 0 : index
    %c0_31 = arith.constant 0 : index
    %22 = vector.load %arg7[%c3_29, %c0_30, %c0_31] : memref<4x1x128xf32, #tpu.memory_space<vmem>>, vector<1x1x128xf32>
    %23 = vector.shape_cast %22 : vector<1x1x128xf32> to vector<1x128xf32>
    %c0_32 = arith.constant 0 : index
    %c0_33 = arith.constant 0 : index
    %c0_34 = arith.constant 0 : index
    %24 = vector.load %arg3[%c0_32, %c0_33, %c0_34] : memref<4x2x32xf32, #tpu.memory_space<vmem>>, vector<4x2x32xf32>
    %c0_35 = arith.constant 0 : index
    %c0_36 = arith.constant 0 : index
    %c0_37 = arith.constant 0 : index
    %25 = vector.load %arg11[%c0_35, %c0_36, %c0_37] : memref<4x2x32xf32, #tpu.memory_space<vmem>>, vector<4x2x32xf32>
    tpu.vector_store %arg11[%c0_35, %c0_36, %c0_37], %24 {strides = array<i32>} : memref<4x2x32xf32, #tpu.memory_space<vmem>>, vector<4x2x32xf32>,
    %c0_38 = arith.constant 0 : index
    %c0_39 = arith.constant 0 : index
    %c0_40 = arith.constant 0 : index
    %26 = vector.load %arg4[%c0_38, %c0_39, %c0_40] : memref<4x2x32xf32, #tpu.memory_space<vmem>>, vector<4x2x32xf32>
    %c0_41 = arith.constant 0 : index
    %c0_42 = arith.constant 0 : index
    %c0_43 = arith.constant 0 : index
    %27 = vector.load %arg12[%c0_41, %c0_42, %c0_43] : memref<4x2x32xf32, #tpu.memory_space<vmem>>, vector<4x2x32xf32>
    tpu.vector_store %arg12[%c0_41, %c0_42, %c0_43], %26 {strides = array<i32>} : memref<4x2x32xf32, #tpu.memory_space<vmem>>, vector<4x2x32xf32>,
    %c0_i32 = arith.constant 0 : i32
    %c5_i32 = arith.constant 5 : i32
    %28 = arith.addi %c0_i32, %c5_i32 : i32
    %c1_i32 = arith.constant 1 : i32
    scf.for %arg17 = %c0_i32 to %28 step %c1_i32  : i32 {
      %c1_i32_259 = arith.constant 1 : i32
      %264 = arith.muli %arg17, %c1_i32_259 : i32
      %c0_i32_260 = arith.constant 0 : i32
      %265 = arith.addi %c0_i32_260, %264 : i32
      %266 = arith.index_cast %265 : i32 to index
      %c0_261 = arith.constant 0 : index
      %c0_262 = arith.constant 0 : index
      %267 = vector.load %arg0[%266, %c0_261, %c0_262] : memref<5x2x128xf32, #tpu.memory_space<vmem>>, vector<1x2x128xf32>
      %268 = vector.shape_cast %267 : vector<1x2x128xf32> to vector<2x128xf32>
      %c0_263 = arith.constant 0 : index
      %c0_264 = arith.constant 0 : index
      %c0_265 = arith.constant 0 : index
      %269 = vector.load %arg11[%c0_263, %c0_264, %c0_265] : memref<4x2x32xf32, #tpu.memory_space<vmem>>, vector<1x2x32xf32>
      %270 = vector.shape_cast %269 : vector<1x2x32xf32> to vector<2x32xf32>
      %cst = arith.constant dense<0.000000e+00> : vector<2x128xf32>
      %271 = tpu.matmul %270, %9, %cst {dimension_numbers = #tpu.dot_dimension_numbers<[1], [0], [0], [1], [0, 0, 1, 1], [], []>} : vector<2x32xf32>, vector<32x128xf32>, vector<2x128xf32> -> vector<2x128xf32>
      %272 = arith.addf %268, %271 : vector<2x128xf32>
      %c0_266 = arith.constant 0 : index
      %c0_267 = arith.constant 0 : index
      %c0_268 = arith.constant 0 : index
      %273 = vector.load %arg12[%c0_266, %c0_267, %c0_268] : memref<4x2x32xf32, #tpu.memory_space<vmem>>, vector<1x2x32xf32>
      %274 = vector.shape_cast %273 : vector<1x2x32xf32> to vector<2x32xf32>
      %275 = vector.extract_strided_slice %272 {offsets = [0, 0], sizes = [2, 32], strides = [1, 1]} : vector<2x128xf32> to vector<2x32xf32>
      %276 = arith.negf %275 : vector<2x32xf32>
      %277 = math.exp %276 : vector<2x32xf32>
      %cst_269 = arith.constant 1.000000e+00 : f32
      %278 = vector.broadcast %cst_269 : f32 to vector<2x32xf32>
      %279 = arith.addf %278, %277 : vector<2x32xf32>
      %280 = arith.divf %278, %279 : vector<2x32xf32>
      %281 = vector.extract_strided_slice %272 {offsets = [0, 32], sizes = [2, 32], strides = [1, 1]} : vector<2x128xf32> to vector<2x32xf32>
      %282 = arith.negf %281 : vector<2x32xf32>
      %283 = math.exp %282 : vector<2x32xf32>
      %cst_270 = arith.constant 1.000000e+00 : f32
      %284 = vector.broadcast %cst_270 : f32 to vector<2x32xf32>
      %285 = arith.addf %284, %283 : vector<2x32xf32>
      %286 = arith.divf %284, %285 : vector<2x32xf32>
      %287 = vector.extract_strided_slice %272 {offsets = [0, 64], sizes = [2, 32], strides = [1, 1]} : vector<2x128xf32> to vector<2x32xf32>
      %288 = math.tanh %287 : vector<2x32xf32>
      %289 = vector.extract_strided_slice %272 {offsets = [0, 96], sizes = [2, 32], strides = [1, 1]} : vector<2x128xf32> to vector<2x32xf32>
      %290 = arith.negf %289 : vector<2x32xf32>
      %291 = math.exp %290 : vector<2x32xf32>
      %cst_271 = arith.constant 1.000000e+00 : f32
      %292 = vector.broadcast %cst_271 : f32 to vector<2x32xf32>
      %293 = arith.addf %292, %291 : vector<2x32xf32>
      %294 = arith.divf %292, %293 : vector<2x32xf32>
      %295 = arith.mulf %286, %274 : vector<2x32xf32>
      %296 = arith.mulf %280, %288 : vector<2x32xf32>
      %297 = arith.addf %295, %296 : vector<2x32xf32>
      %298 = math.tanh %297 : vector<2x32xf32>
      %299 = arith.mulf %294, %298 : vector<2x32xf32>
      %c0_272 = arith.constant 0 : index
      %c0_273 = arith.constant 0 : index
      %c0_274 = arith.constant 0 : index
      %300 = vector.load %arg11[%c0_272, %c0_273, %c0_274] : memref<4x2x32xf32, #tpu.memory_space<vmem>>, vector<1x2x32xf32>
      %301 = vector.shape_cast %300 : vector<1x2x32xf32> to vector<2x32xf32>
      %302 = vector.shape_cast %299 : vector<2x32xf32> to vector<1x2x32xf32>
      tpu.vector_store %arg11[%c0_272, %c0_273, %c0_274], %302 {strides = array<i32>} : memref<4x2x32xf32, #tpu.memory_space<vmem>>, vector<1x2x32xf32>,
      %c0_275 = arith.constant 0 : index
      %c0_276 = arith.constant 0 : index
      %c0_277 = arith.constant 0 : index
      %303 = vector.load %arg12[%c0_275, %c0_276, %c0_277] : memref<4x2x32xf32, #tpu.memory_space<vmem>>, vector<1x2x32xf32>
      %304 = vector.shape_cast %303 : vector<1x2x32xf32> to vector<2x32xf32>
      %305 = vector.shape_cast %297 : vector<2x32xf32> to vector<1x2x32xf32>
      tpu.vector_store %arg12[%c0_275, %c0_276, %c0_277], %305 {strides = array<i32>} : memref<4x2x32xf32, #tpu.memory_space<vmem>>, vector<1x2x32xf32>,
      %cst_278 = arith.constant dense<0.000000e+00> : vector<2x128xf32>
      %306 = tpu.matmul %299, %3, %cst_278 {dimension_numbers = #tpu.dot_dimension_numbers<[1], [0], [0], [1], [0, 0, 1, 1], [], []>} : vector<2x32xf32>, vector<32x128xf32>, vector<2x128xf32> -> vector<2x128xf32>
      %c1_279 = arith.constant 1 : index
      %c0_280 = arith.constant 0 : index
      %c0_281 = arith.constant 0 : index
      %307 = vector.load %arg11[%c1_279, %c0_280, %c0_281] : memref<4x2x32xf32, #tpu.memory_space<vmem>>, vector<1x2x32xf32>
      %308 = vector.shape_cast %307 : vector<1x2x32xf32> to vector<2x32xf32>
      %cst_282 = arith.constant dense<0.000000e+00> : vector<2x128xf32>
      %309 = tpu.matmul %308, %11, %cst_282 {dimension_numbers = #tpu.dot_dimension_numbers<[1], [0], [0], [1], [0, 0, 1, 1], [], []>} : vector<2x32xf32>, vector<32x128xf32>, vector<2x128xf32> -> vector<2x128xf32>
      %310 = arith.addf %306, %309 : vector<2x128xf32>
      %311 = vector.broadcast %19 : vector<1x128xf32> to vector<2x128xf32>
      %312 = arith.addf %310, %311 : vector<2x128xf32>
      %c1_283 = arith.constant 1 : index
      %c0_284 = arith.constant 0 : index
      %c0_285 = arith.constant 0 : index
      %313 = vector.load %arg12[%c1_283, %c0_284, %c0_285] : memref<4x2x32xf32, #tpu.memory_space<vmem>>, vector<1x2x32xf32>
      %314 = vector.shape_cast %313 : vector<1x2x32xf32> to vector<2x32xf32>
      %315 = vector.extract_strided_slice %312 {offsets = [0, 0], sizes = [2, 32], strides = [1, 1]} : vector<2x128xf32> to vector<2x32xf32>
      %316 = arith.negf %315 : vector<2x32xf32>
      %317 = math.exp %316 : vector<2x32xf32>
      %cst_286 = arith.constant 1.000000e+00 : f32
      %318 = vector.broadcast %cst_286 : f32 to vector<2x32xf32>
      %319 = arith.addf %318, %317 : vector<2x32xf32>
      %320 = arith.divf %318, %319 : vector<2x32xf32>
      %321 = vector.extract_strided_slice %312 {offsets = [0, 32], sizes = [2, 32], strides = [1, 1]} : vector<2x128xf32> to vector<2x32xf32>
      %322 = arith.negf %321 : vector<2x32xf32>
      %323 = math.exp %322 : vector<2x32xf32>
      %cst_287 = arith.constant 1.000000e+00 : f32
      %324 = vector.broadcast %cst_287 : f32 to vector<2x32xf32>
      %325 = arith.addf %324, %323 : vector<2x32xf32>
      %326 = arith.divf %324, %325 : vector<2x32xf32>
      %327 = vector.extract_strided_slice %312 {offsets = [0, 64], sizes = [2, 32], strides = [1, 1]} : vector<2x128xf32> to vector<2x32xf32>
      %328 = math.tanh %327 : vector<2x32xf32>
      %329 = vector.extract_strided_slice %312 {offsets = [0, 96], sizes = [2, 32], strides = [1, 1]} : vector<2x128xf32> to vector<2x32xf32>
      %330 = arith.negf %329 : vector<2x32xf32>
      %331 = math.exp %330 : vector<2x32xf32>
      %cst_288 = arith.constant 1.000000e+00 : f32
      %332 = vector.broadcast %cst_288 : f32 to vector<2x32xf32>
      %333 = arith.addf %332, %331 : vector<2x32xf32>
      %334 = arith.divf %332, %333 : vector<2x32xf32>
      %335 = arith.mulf %326, %314 : vector<2x32xf32>
      %336 = arith.mulf %320, %328 : vector<2x32xf32>
      %337 = arith.addf %335, %336 : vector<2x32xf32>
      %338 = math.tanh %337 : vector<2x32xf32>
      %339 = arith.mulf %334, %338 : vector<2x32xf32>
      %c1_289 = arith.constant 1 : index
      %c0_290 = arith.constant 0 : index
      %c0_291 = arith.constant 0 : index
      %340 = vector.load %arg11[%c1_289, %c0_290, %c0_291] : memref<4x2x32xf32, #tpu.memory_space<vmem>>, vector<1x2x32xf32>
      %341 = vector.shape_cast %340 : vector<1x2x32xf32> to vector<2x32xf32>
      %342 = vector.shape_cast %339 : vector<2x32xf32> to vector<1x2x32xf32>
      tpu.vector_store %arg11[%c1_289, %c0_290, %c0_291], %342 {strides = array<i32>} : memref<4x2x32xf32, #tpu.memory_space<vmem>>, vector<1x2x32xf32>,
      %c1_292 = arith.constant 1 : index
      %c0_293 = arith.constant 0 : index
      %c0_294 = arith.constant 0 : index
      %343 = vector.load %arg12[%c1_292, %c0_293, %c0_294] : memref<4x2x32xf32, #tpu.memory_space<vmem>>, vector<1x2x32xf32>
      %344 = vector.shape_cast %343 : vector<1x2x32xf32> to vector<2x32xf32>
      %345 = vector.shape_cast %337 : vector<2x32xf32> to vector<1x2x32xf32>
      tpu.vector_store %arg12[%c1_292, %c0_293, %c0_294], %345 {strides = array<i32>} : memref<4x2x32xf32, #tpu.memory_space<vmem>>, vector<1x2x32xf32>,
      %cst_295 = arith.constant dense<0.000000e+00> : vector<2x128xf32>
      %346 = tpu.matmul %339, %5, %cst_295 {dimension_numbers = #tpu.dot_dimension_numbers<[1], [0], [0], [1], [0, 0, 1, 1], [], []>} : vector<2x32xf32>, vector<32x128xf32>, vector<2x128xf32> -> vector<2x128xf32>
      %c2_296 = arith.constant 2 : index
      %c0_297 = arith.constant 0 : index
      %c0_298 = arith.constant 0 : index
      %347 = vector.load %arg11[%c2_296, %c0_297, %c0_298] : memref<4x2x32xf32, #tpu.memory_space<vmem>>, vector<1x2x32xf32>
      %348 = vector.shape_cast %347 : vector<1x2x32xf32> to vector<2x32xf32>
      %cst_299 = arith.constant dense<0.000000e+00> : vector<2x128xf32>
      %349 = tpu.matmul %348, %13, %cst_299 {dimension_numbers = #tpu.dot_dimension_numbers<[1], [0], [0], [1], [0, 0, 1, 1], [], []>} : vector<2x32xf32>, vector<32x128xf32>, vector<2x128xf32> -> vector<2x128xf32>
      %350 = arith.addf %346, %349 : vector<2x128xf32>
      %351 = vector.broadcast %21 : vector<1x128xf32> to vector<2x128xf32>
      %352 = arith.addf %350, %351 : vector<2x128xf32>
      %c2_300 = arith.constant 2 : index
      %c0_301 = arith.constant 0 : index
      %c0_302 = arith.constant 0 : index
      %353 = vector.load %arg12[%c2_300, %c0_301, %c0_302] : memref<4x2x32xf32, #tpu.memory_space<vmem>>, vector<1x2x32xf32>
      %354 = vector.shape_cast %353 : vector<1x2x32xf32> to vector<2x32xf32>
      %355 = vector.extract_strided_slice %352 {offsets = [0, 0], sizes = [2, 32], strides = [1, 1]} : vector<2x128xf32> to vector<2x32xf32>
      %356 = arith.negf %355 : vector<2x32xf32>
      %357 = math.exp %356 : vector<2x32xf32>
      %cst_303 = arith.constant 1.000000e+00 : f32
      %358 = vector.broadcast %cst_303 : f32 to vector<2x32xf32>
      %359 = arith.addf %358, %357 : vector<2x32xf32>
      %360 = arith.divf %358, %359 : vector<2x32xf32>
      %361 = vector.extract_strided_slice %352 {offsets = [0, 32], sizes = [2, 32], strides = [1, 1]} : vector<2x128xf32> to vector<2x32xf32>
      %362 = arith.negf %361 : vector<2x32xf32>
      %363 = math.exp %362 : vector<2x32xf32>
      %cst_304 = arith.constant 1.000000e+00 : f32
      %364 = vector.broadcast %cst_304 : f32 to vector<2x32xf32>
      %365 = arith.addf %364, %363 : vector<2x32xf32>
      %366 = arith.divf %364, %365 : vector<2x32xf32>
      %367 = vector.extract_strided_slice %352 {offsets = [0, 64], sizes = [2, 32], strides = [1, 1]} : vector<2x128xf32> to vector<2x32xf32>
      %368 = math.tanh %367 : vector<2x32xf32>
      %369 = vector.extract_strided_slice %352 {offsets = [0, 96], sizes = [2, 32], strides = [1, 1]} : vector<2x128xf32> to vector<2x32xf32>
      %370 = arith.negf %369 : vector<2x32xf32>
      %371 = math.exp %370 : vector<2x32xf32>
      %cst_305 = arith.constant 1.000000e+00 : f32
      %372 = vector.broadcast %cst_305 : f32 to vector<2x32xf32>
      %373 = arith.addf %372, %371 : vector<2x32xf32>
      %374 = arith.divf %372, %373 : vector<2x32xf32>
      %375 = arith.mulf %366, %354 : vector<2x32xf32>
      %376 = arith.mulf %360, %368 : vector<2x32xf32>
      %377 = arith.addf %375, %376 : vector<2x32xf32>
      %378 = math.tanh %377 : vector<2x32xf32>
      %379 = arith.mulf %374, %378 : vector<2x32xf32>
      %c2_306 = arith.constant 2 : index
      %c0_307 = arith.constant 0 : index
      %c0_308 = arith.constant 0 : index
      %380 = vector.load %arg11[%c2_306, %c0_307, %c0_308] : memref<4x2x32xf32, #tpu.memory_space<vmem>>, vector<1x2x32xf32>
      %381 = vector.shape_cast %380 : vector<1x2x32xf32> to vector<2x32xf32>
      %382 = vector.shape_cast %379 : vector<2x32xf32> to vector<1x2x32xf32>
      tpu.vector_store %arg11[%c2_306, %c0_307, %c0_308], %382 {strides = array<i32>} : memref<4x2x32xf32, #tpu.memory_space<vmem>>, vector<1x2x32xf32>,
      %c2_309 = arith.constant 2 : index
      %c0_310 = arith.constant 0 : index
      %c0_311 = arith.constant 0 : index
      %383 = vector.load %arg12[%c2_309, %c0_310, %c0_311] : memref<4x2x32xf32, #tpu.memory_space<vmem>>, vector<1x2x32xf32>
      %384 = vector.shape_cast %383 : vector<1x2x32xf32> to vector<2x32xf32>
      %385 = vector.shape_cast %377 : vector<2x32xf32> to vector<1x2x32xf32>
      tpu.vector_store %arg12[%c2_309, %c0_310, %c0_311], %385 {strides = array<i32>} : memref<4x2x32xf32, #tpu.memory_space<vmem>>, vector<1x2x32xf32>,
      %cst_312 = arith.constant dense<0.000000e+00> : vector<2x128xf32>
      %386 = tpu.matmul %379, %7, %cst_312 {dimension_numbers = #tpu.dot_dimension_numbers<[1], [0], [0], [1], [0, 0, 1, 1], [], []>} : vector<2x32xf32>, vector<32x128xf32>, vector<2x128xf32> -> vector<2x128xf32>
      %c3_313 = arith.constant 3 : index
      %c0_314 = arith.constant 0 : index
      %c0_315 = arith.constant 0 : index
      %387 = vector.load %arg11[%c3_313, %c0_314, %c0_315] : memref<4x2x32xf32, #tpu.memory_space<vmem>>, vector<1x2x32xf32>
      %388 = vector.shape_cast %387 : vector<1x2x32xf32> to vector<2x32xf32>
      %cst_316 = arith.constant dense<0.000000e+00> : vector<2x128xf32>
      %389 = tpu.matmul %388, %15, %cst_316 {dimension_numbers = #tpu.dot_dimension_numbers<[1], [0], [0], [1], [0, 0, 1, 1], [], []>} : vector<2x32xf32>, vector<32x128xf32>, vector<2x128xf32> -> vector<2x128xf32>
      %390 = arith.addf %386, %389 : vector<2x128xf32>
      %391 = vector.broadcast %23 : vector<1x128xf32> to vector<2x128xf32>
      %392 = arith.addf %390, %391 : vector<2x128xf32>
      %c3_317 = arith.constant 3 : index
      %c0_318 = arith.constant 0 : index
      %c0_319 = arith.constant 0 : index
      %393 = vector.load %arg12[%c3_317, %c0_318, %c0_319] : memref<4x2x32xf32, #tpu.memory_space<vmem>>, vector<1x2x32xf32>
      %394 = vector.shape_cast %393 : vector<1x2x32xf32> to vector<2x32xf32>
      %395 = vector.extract_strided_slice %392 {offsets = [0, 0], sizes = [2, 32], strides = [1, 1]} : vector<2x128xf32> to vector<2x32xf32>
      %396 = arith.negf %395 : vector<2x32xf32>
      %397 = math.exp %396 : vector<2x32xf32>
      %cst_320 = arith.constant 1.000000e+00 : f32
      %398 = vector.broadcast %cst_320 : f32 to vector<2x32xf32>
      %399 = arith.addf %398, %397 : vector<2x32xf32>
      %400 = arith.divf %398, %399 : vector<2x32xf32>
      %401 = vector.extract_strided_slice %392 {offsets = [0, 32], sizes = [2, 32], strides = [1, 1]} : vector<2x128xf32> to vector<2x32xf32>
      %402 = arith.negf %401 : vector<2x32xf32>
      %403 = math.exp %402 : vector<2x32xf32>
      %cst_321 = arith.constant 1.000000e+00 : f32
      %404 = vector.broadcast %cst_321 : f32 to vector<2x32xf32>
      %405 = arith.addf %404, %403 : vector<2x32xf32>
      %406 = arith.divf %404, %405 : vector<2x32xf32>
      %407 = vector.extract_strided_slice %392 {offsets = [0, 64], sizes = [2, 32], strides = [1, 1]} : vector<2x128xf32> to vector<2x32xf32>
      %408 = math.tanh %407 : vector<2x32xf32>
      %409 = vector.extract_strided_slice %392 {offsets = [0, 96], sizes = [2, 32], strides = [1, 1]} : vector<2x128xf32> to vector<2x32xf32>
      %410 = arith.negf %409 : vector<2x32xf32>
      %411 = math.exp %410 : vector<2x32xf32>
      %cst_322 = arith.constant 1.000000e+00 : f32
      %412 = vector.broadcast %cst_322 : f32 to vector<2x32xf32>
      %413 = arith.addf %412, %411 : vector<2x32xf32>
      %414 = arith.divf %412, %413 : vector<2x32xf32>
      %415 = arith.mulf %406, %394 : vector<2x32xf32>
      %416 = arith.mulf %400, %408 : vector<2x32xf32>
      %417 = arith.addf %415, %416 : vector<2x32xf32>
      %418 = math.tanh %417 : vector<2x32xf32>
      %419 = arith.mulf %414, %418 : vector<2x32xf32>
      %c3_323 = arith.constant 3 : index
      %c0_324 = arith.constant 0 : index
      %c0_325 = arith.constant 0 : index
      %420 = vector.load %arg11[%c3_323, %c0_324, %c0_325] : memref<4x2x32xf32, #tpu.memory_space<vmem>>, vector<1x2x32xf32>
      %421 = vector.shape_cast %420 : vector<1x2x32xf32> to vector<2x32xf32>
      %422 = vector.shape_cast %419 : vector<2x32xf32> to vector<1x2x32xf32>
      tpu.vector_store %arg11[%c3_323, %c0_324, %c0_325], %422 {strides = array<i32>} : memref<4x2x32xf32, #tpu.memory_space<vmem>>, vector<1x2x32xf32>,
      %c3_326 = arith.constant 3 : index
      %c0_327 = arith.constant 0 : index
      %c0_328 = arith.constant 0 : index
      %423 = vector.load %arg12[%c3_326, %c0_327, %c0_328] : memref<4x2x32xf32, #tpu.memory_space<vmem>>, vector<1x2x32xf32>
      %424 = vector.shape_cast %423 : vector<1x2x32xf32> to vector<2x32xf32>
      %425 = vector.shape_cast %417 : vector<2x32xf32> to vector<1x2x32xf32>
      tpu.vector_store %arg12[%c3_326, %c0_327, %c0_328], %425 {strides = array<i32>} : memref<4x2x32xf32, #tpu.memory_space<vmem>>, vector<1x2x32xf32>,
    }
    %c5_i32_44 = arith.constant 5 : i32
    %c3_45 = arith.constant 3 : index
    %c0_46 = arith.constant 0 : index
    %c0_47 = arith.constant 0 : index
    %29 = vector.load %arg11[%c3_45, %c0_46, %c0_47] : memref<4x2x32xf32, #tpu.memory_space<vmem>>, vector<1x2x32xf32>
    %30 = vector.shape_cast %29 : vector<1x2x32xf32> to vector<2x32xf32>
    %c0_48 = arith.constant 0 : index
    %c0_49 = arith.constant 0 : index
    %31 = vector.load %arg8[%c0_48, %c0_49] : memref<2x32xf32, #tpu.memory_space<vmem>>, vector<2x32xf32>
    tpu.vector_store %arg8[%c0_48, %c0_49], %30 {strides = array<i32>} : memref<2x32xf32, #tpu.memory_space<vmem>>, vector<2x32xf32>,
    %c0_50 = arith.constant 0 : index
    %c0_51 = arith.constant 0 : index
    %c0_52 = arith.constant 0 : index
    %32 = vector.load %arg3[%c0_50, %c0_51, %c0_52] : memref<4x2x32xf32, #tpu.memory_space<vmem>>, vector<1x1x32xf32>
    %33 = vector.shape_cast %32 : vector<1x1x32xf32> to vector<1x32xf32>
    %34 = vector.shape_cast %33 : vector<1x32xf32> to vector<1x32xf32>
    %35 = vector.broadcast %34 : vector<1x32xf32> to vector<3x32xf32>
    %c0_53 = arith.constant 0 : index
    %c0_54 = arith.constant 0 : index
    %c0_55 = arith.constant 0 : index
    %36 = vector.load %arg13[%c0_53, %c0_54, %c0_55] : memref<4x6x32xf32, #tpu.memory_space<vmem>>, vector<1x3x32xf32>
    %37 = vector.shape_cast %36 : vector<1x3x32xf32> to vector<3x32xf32>
    %38 = vector.shape_cast %35 : vector<3x32xf32> to vector<1x3x32xf32>
    tpu.vector_store %arg13[%c0_53, %c0_54, %c0_55], %38 {strides = array<i32>} : memref<4x6x32xf32, #tpu.memory_space<vmem>>, vector<1x3x32xf32>,
    %c0_56 = arith.constant 0 : index
    %c0_57 = arith.constant 0 : index
    %c0_58 = arith.constant 0 : index
    %39 = vector.load %arg4[%c0_56, %c0_57, %c0_58] : memref<4x2x32xf32, #tpu.memory_space<vmem>>, vector<1x1x32xf32>
    %40 = vector.shape_cast %39 : vector<1x1x32xf32> to vector<1x32xf32>
    %41 = vector.shape_cast %40 : vector<1x32xf32> to vector<1x32xf32>
    %42 = vector.broadcast %41 : vector<1x32xf32> to vector<3x32xf32>
    %c0_59 = arith.constant 0 : index
    %c0_60 = arith.constant 0 : index
    %c0_61 = arith.constant 0 : index
    %43 = vector.load %arg14[%c0_59, %c0_60, %c0_61] : memref<4x6x32xf32, #tpu.memory_space<vmem>>, vector<1x3x32xf32>
    %44 = vector.shape_cast %43 : vector<1x3x32xf32> to vector<3x32xf32>
    %45 = vector.shape_cast %42 : vector<3x32xf32> to vector<1x3x32xf32>
    tpu.vector_store %arg14[%c0_59, %c0_60, %c0_61], %45 {strides = array<i32>} : memref<4x6x32xf32, #tpu.memory_space<vmem>>, vector<1x3x32xf32>,
    %c0_62 = arith.constant 0 : index
    %c1_63 = arith.constant 1 : index
    %c0_64 = arith.constant 0 : index
    %46 = vector.load %arg3[%c0_62, %c1_63, %c0_64] : memref<4x2x32xf32, #tpu.memory_space<vmem>>, vector<1x1x32xf32>
    %47 = vector.shape_cast %46 : vector<1x1x32xf32> to vector<1x32xf32>
    %48 = vector.shape_cast %47 : vector<1x32xf32> to vector<1x32xf32>
    %49 = vector.broadcast %48 : vector<1x32xf32> to vector<3x32xf32>
    %c0_65 = arith.constant 0 : index
    %c3_66 = arith.constant 3 : index
    %c0_67 = arith.constant 0 : index
    %50 = vector.load %arg13[%c0_65, %c3_66, %c0_67] : memref<4x6x32xf32, #tpu.memory_space<vmem>>, vector<1x3x32xf32>
    %51 = vector.shape_cast %50 : vector<1x3x32xf32> to vector<3x32xf32>
    %52 = vector.shape_cast %49 : vector<3x32xf32> to vector<1x3x32xf32>
    tpu.vector_store %arg13[%c0_65, %c3_66, %c0_67], %52 {strides = array<i32>} : memref<4x6x32xf32, #tpu.memory_space<vmem>>, vector<1x3x32xf32>,
    %c0_68 = arith.constant 0 : index
    %c1_69 = arith.constant 1 : index
    %c0_70 = arith.constant 0 : index
    %53 = vector.load %arg4[%c0_68, %c1_69, %c0_70] : memref<4x2x32xf32, #tpu.memory_space<vmem>>, vector<1x1x32xf32>
    %54 = vector.shape_cast %53 : vector<1x1x32xf32> to vector<1x32xf32>
    %55 = vector.shape_cast %54 : vector<1x32xf32> to vector<1x32xf32>
    %56 = vector.broadcast %55 : vector<1x32xf32> to vector<3x32xf32>
    %c0_71 = arith.constant 0 : index
    %c3_72 = arith.constant 3 : index
    %c0_73 = arith.constant 0 : index
    %57 = vector.load %arg14[%c0_71, %c3_72, %c0_73] : memref<4x6x32xf32, #tpu.memory_space<vmem>>, vector<1x3x32xf32>
    %58 = vector.shape_cast %57 : vector<1x3x32xf32> to vector<3x32xf32>
    %59 = vector.shape_cast %56 : vector<3x32xf32> to vector<1x3x32xf32>
    tpu.vector_store %arg14[%c0_71, %c3_72, %c0_73], %59 {strides = array<i32>} : memref<4x6x32xf32, #tpu.memory_space<vmem>>, vector<1x3x32xf32>,
    %c1_74 = arith.constant 1 : index
    %c0_75 = arith.constant 0 : index
    %c0_76 = arith.constant 0 : index
    %60 = vector.load %arg3[%c1_74, %c0_75, %c0_76] : memref<4x2x32xf32, #tpu.memory_space<vmem>>, vector<1x1x32xf32>
    %61 = vector.shape_cast %60 : vector<1x1x32xf32> to vector<1x32xf32>
    %62 = vector.shape_cast %61 : vector<1x32xf32> to vector<1x32xf32>
    %63 = vector.broadcast %62 : vector<1x32xf32> to vector<3x32xf32>
    %c1_77 = arith.constant 1 : index
    %c0_78 = arith.constant 0 : index
    %c0_79 = arith.constant 0 : index
    %64 = vector.load %arg13[%c1_77, %c0_78, %c0_79] : memref<4x6x32xf32, #tpu.memory_space<vmem>>, vector<1x3x32xf32>
    %65 = vector.shape_cast %64 : vector<1x3x32xf32> to vector<3x32xf32>
    %66 = vector.shape_cast %63 : vector<3x32xf32> to vector<1x3x32xf32>
    tpu.vector_store %arg13[%c1_77, %c0_78, %c0_79], %66 {strides = array<i32>} : memref<4x6x32xf32, #tpu.memory_space<vmem>>, vector<1x3x32xf32>,
    %c1_80 = arith.constant 1 : index
    %c0_81 = arith.constant 0 : index
    %c0_82 = arith.constant 0 : index
    %67 = vector.load %arg4[%c1_80, %c0_81, %c0_82] : memref<4x2x32xf32, #tpu.memory_space<vmem>>, vector<1x1x32xf32>
    %68 = vector.shape_cast %67 : vector<1x1x32xf32> to vector<1x32xf32>
    %69 = vector.shape_cast %68 : vector<1x32xf32> to vector<1x32xf32>
    %70 = vector.broadcast %69 : vector<1x32xf32> to vector<3x32xf32>
    %c1_83 = arith.constant 1 : index
    %c0_84 = arith.constant 0 : index
    %c0_85 = arith.constant 0 : index
    %71 = vector.load %arg14[%c1_83, %c0_84, %c0_85] : memref<4x6x32xf32, #tpu.memory_space<vmem>>, vector<1x3x32xf32>
    %72 = vector.shape_cast %71 : vector<1x3x32xf32> to vector<3x32xf32>
    %73 = vector.shape_cast %70 : vector<3x32xf32> to vector<1x3x32xf32>
    tpu.vector_store %arg14[%c1_83, %c0_84, %c0_85], %73 {strides = array<i32>} : memref<4x6x32xf32, #tpu.memory_space<vmem>>, vector<1x3x32xf32>,
    %c1_86 = arith.constant 1 : index
    %c1_87 = arith.constant 1 : index
    %c0_88 = arith.constant 0 : index
    %74 = vector.load %arg3[%c1_86, %c1_87, %c0_88] : memref<4x2x32xf32, #tpu.memory_space<vmem>>, vector<1x1x32xf32>
    %75 = vector.shape_cast %74 : vector<1x1x32xf32> to vector<1x32xf32>
    %76 = vector.shape_cast %75 : vector<1x32xf32> to vector<1x32xf32>
    %77 = vector.broadcast %76 : vector<1x32xf32> to vector<3x32xf32>
    %c1_89 = arith.constant 1 : index
    %c3_90 = arith.constant 3 : index
    %c0_91 = arith.constant 0 : index
    %78 = vector.load %arg13[%c1_89, %c3_90, %c0_91] : memref<4x6x32xf32, #tpu.memory_space<vmem>>, vector<1x3x32xf32>
    %79 = vector.shape_cast %78 : vector<1x3x32xf32> to vector<3x32xf32>
    %80 = vector.shape_cast %77 : vector<3x32xf32> to vector<1x3x32xf32>
    tpu.vector_store %arg13[%c1_89, %c3_90, %c0_91], %80 {strides = array<i32>} : memref<4x6x32xf32, #tpu.memory_space<vmem>>, vector<1x3x32xf32>,
    %c1_92 = arith.constant 1 : index
    %c1_93 = arith.constant 1 : index
    %c0_94 = arith.constant 0 : index
    %81 = vector.load %arg4[%c1_92, %c1_93, %c0_94] : memref<4x2x32xf32, #tpu.memory_space<vmem>>, vector<1x1x32xf32>
    %82 = vector.shape_cast %81 : vector<1x1x32xf32> to vector<1x32xf32>
    %83 = vector.shape_cast %82 : vector<1x32xf32> to vector<1x32xf32>
    %84 = vector.broadcast %83 : vector<1x32xf32> to vector<3x32xf32>
    %c1_95 = arith.constant 1 : index
    %c3_96 = arith.constant 3 : index
    %c0_97 = arith.constant 0 : index
    %85 = vector.load %arg14[%c1_95, %c3_96, %c0_97] : memref<4x6x32xf32, #tpu.memory_space<vmem>>, vector<1x3x32xf32>
    %86 = vector.shape_cast %85 : vector<1x3x32xf32> to vector<3x32xf32>
    %87 = vector.shape_cast %84 : vector<3x32xf32> to vector<1x3x32xf32>
    tpu.vector_store %arg14[%c1_95, %c3_96, %c0_97], %87 {strides = array<i32>} : memref<4x6x32xf32, #tpu.memory_space<vmem>>, vector<1x3x32xf32>,
    %c2_98 = arith.constant 2 : index
    %c0_99 = arith.constant 0 : index
    %c0_100 = arith.constant 0 : index
    %88 = vector.load %arg3[%c2_98, %c0_99, %c0_100] : memref<4x2x32xf32, #tpu.memory_space<vmem>>, vector<1x1x32xf32>
    %89 = vector.shape_cast %88 : vector<1x1x32xf32> to vector<1x32xf32>
    %90 = vector.shape_cast %89 : vector<1x32xf32> to vector<1x32xf32>
    %91 = vector.broadcast %90 : vector<1x32xf32> to vector<3x32xf32>
    %c2_101 = arith.constant 2 : index
    %c0_102 = arith.constant 0 : index
    %c0_103 = arith.constant 0 : index
    %92 = vector.load %arg13[%c2_101, %c0_102, %c0_103] : memref<4x6x32xf32, #tpu.memory_space<vmem>>, vector<1x3x32xf32>
    %93 = vector.shape_cast %92 : vector<1x3x32xf32> to vector<3x32xf32>
    %94 = vector.shape_cast %91 : vector<3x32xf32> to vector<1x3x32xf32>
    tpu.vector_store %arg13[%c2_101, %c0_102, %c0_103], %94 {strides = array<i32>} : memref<4x6x32xf32, #tpu.memory_space<vmem>>, vector<1x3x32xf32>,
    %c2_104 = arith.constant 2 : index
    %c0_105 = arith.constant 0 : index
    %c0_106 = arith.constant 0 : index
    %95 = vector.load %arg4[%c2_104, %c0_105, %c0_106] : memref<4x2x32xf32, #tpu.memory_space<vmem>>, vector<1x1x32xf32>
    %96 = vector.shape_cast %95 : vector<1x1x32xf32> to vector<1x32xf32>
    %97 = vector.shape_cast %96 : vector<1x32xf32> to vector<1x32xf32>
    %98 = vector.broadcast %97 : vector<1x32xf32> to vector<3x32xf32>
    %c2_107 = arith.constant 2 : index
    %c0_108 = arith.constant 0 : index
    %c0_109 = arith.constant 0 : index
    %99 = vector.load %arg14[%c2_107, %c0_108, %c0_109] : memref<4x6x32xf32, #tpu.memory_space<vmem>>, vector<1x3x32xf32>
    %100 = vector.shape_cast %99 : vector<1x3x32xf32> to vector<3x32xf32>
    %101 = vector.shape_cast %98 : vector<3x32xf32> to vector<1x3x32xf32>
    tpu.vector_store %arg14[%c2_107, %c0_108, %c0_109], %101 {strides = array<i32>} : memref<4x6x32xf32, #tpu.memory_space<vmem>>, vector<1x3x32xf32>,
    %c2_110 = arith.constant 2 : index
    %c1_111 = arith.constant 1 : index
    %c0_112 = arith.constant 0 : index
    %102 = vector.load %arg3[%c2_110, %c1_111, %c0_112] : memref<4x2x32xf32, #tpu.memory_space<vmem>>, vector<1x1x32xf32>
    %103 = vector.shape_cast %102 : vector<1x1x32xf32> to vector<1x32xf32>
    %104 = vector.shape_cast %103 : vector<1x32xf32> to vector<1x32xf32>
    %105 = vector.broadcast %104 : vector<1x32xf32> to vector<3x32xf32>
    %c2_113 = arith.constant 2 : index
    %c3_114 = arith.constant 3 : index
    %c0_115 = arith.constant 0 : index
    %106 = vector.load %arg13[%c2_113, %c3_114, %c0_115] : memref<4x6x32xf32, #tpu.memory_space<vmem>>, vector<1x3x32xf32>
    %107 = vector.shape_cast %106 : vector<1x3x32xf32> to vector<3x32xf32>
    %108 = vector.shape_cast %105 : vector<3x32xf32> to vector<1x3x32xf32>
    tpu.vector_store %arg13[%c2_113, %c3_114, %c0_115], %108 {strides = array<i32>} : memref<4x6x32xf32, #tpu.memory_space<vmem>>, vector<1x3x32xf32>,
    %c2_116 = arith.constant 2 : index
    %c1_117 = arith.constant 1 : index
    %c0_118 = arith.constant 0 : index
    %109 = vector.load %arg4[%c2_116, %c1_117, %c0_118] : memref<4x2x32xf32, #tpu.memory_space<vmem>>, vector<1x1x32xf32>
    %110 = vector.shape_cast %109 : vector<1x1x32xf32> to vector<1x32xf32>
    %111 = vector.shape_cast %110 : vector<1x32xf32> to vector<1x32xf32>
    %112 = vector.broadcast %111 : vector<1x32xf32> to vector<3x32xf32>
    %c2_119 = arith.constant 2 : index
    %c3_120 = arith.constant 3 : index
    %c0_121 = arith.constant 0 : index
    %113 = vector.load %arg14[%c2_119, %c3_120, %c0_121] : memref<4x6x32xf32, #tpu.memory_space<vmem>>, vector<1x3x32xf32>
    %114 = vector.shape_cast %113 : vector<1x3x32xf32> to vector<3x32xf32>
    %115 = vector.shape_cast %112 : vector<3x32xf32> to vector<1x3x32xf32>
    tpu.vector_store %arg14[%c2_119, %c3_120, %c0_121], %115 {strides = array<i32>} : memref<4x6x32xf32, #tpu.memory_space<vmem>>, vector<1x3x32xf32>,
    %c3_122 = arith.constant 3 : index
    %c0_123 = arith.constant 0 : index
    %c0_124 = arith.constant 0 : index
    %116 = vector.load %arg3[%c3_122, %c0_123, %c0_124] : memref<4x2x32xf32, #tpu.memory_space<vmem>>, vector<1x1x32xf32>
    %117 = vector.shape_cast %116 : vector<1x1x32xf32> to vector<1x32xf32>
    %118 = vector.shape_cast %117 : vector<1x32xf32> to vector<1x32xf32>
    %119 = vector.broadcast %118 : vector<1x32xf32> to vector<3x32xf32>
    %c3_125 = arith.constant 3 : index
    %c0_126 = arith.constant 0 : index
    %c0_127 = arith.constant 0 : index
    %120 = vector.load %arg13[%c3_125, %c0_126, %c0_127] : memref<4x6x32xf32, #tpu.memory_space<vmem>>, vector<1x3x32xf32>
    %121 = vector.shape_cast %120 : vector<1x3x32xf32> to vector<3x32xf32>
    %122 = vector.shape_cast %119 : vector<3x32xf32> to vector<1x3x32xf32>
    tpu.vector_store %arg13[%c3_125, %c0_126, %c0_127], %122 {strides = array<i32>} : memref<4x6x32xf32, #tpu.memory_space<vmem>>, vector<1x3x32xf32>,
    %c3_128 = arith.constant 3 : index
    %c0_129 = arith.constant 0 : index
    %c0_130 = arith.constant 0 : index
    %123 = vector.load %arg4[%c3_128, %c0_129, %c0_130] : memref<4x2x32xf32, #tpu.memory_space<vmem>>, vector<1x1x32xf32>
    %124 = vector.shape_cast %123 : vector<1x1x32xf32> to vector<1x32xf32>
    %125 = vector.shape_cast %124 : vector<1x32xf32> to vector<1x32xf32>
    %126 = vector.broadcast %125 : vector<1x32xf32> to vector<3x32xf32>
    %c3_131 = arith.constant 3 : index
    %c0_132 = arith.constant 0 : index
    %c0_133 = arith.constant 0 : index
    %127 = vector.load %arg14[%c3_131, %c0_132, %c0_133] : memref<4x6x32xf32, #tpu.memory_space<vmem>>, vector<1x3x32xf32>
    %128 = vector.shape_cast %127 : vector<1x3x32xf32> to vector<3x32xf32>
    %129 = vector.shape_cast %126 : vector<3x32xf32> to vector<1x3x32xf32>
    tpu.vector_store %arg14[%c3_131, %c0_132, %c0_133], %129 {strides = array<i32>} : memref<4x6x32xf32, #tpu.memory_space<vmem>>, vector<1x3x32xf32>,
    %c3_134 = arith.constant 3 : index
    %c1_135 = arith.constant 1 : index
    %c0_136 = arith.constant 0 : index
    %130 = vector.load %arg3[%c3_134, %c1_135, %c0_136] : memref<4x2x32xf32, #tpu.memory_space<vmem>>, vector<1x1x32xf32>
    %131 = vector.shape_cast %130 : vector<1x1x32xf32> to vector<1x32xf32>
    %132 = vector.shape_cast %131 : vector<1x32xf32> to vector<1x32xf32>
    %133 = vector.broadcast %132 : vector<1x32xf32> to vector<3x32xf32>
    %c3_137 = arith.constant 3 : index
    %c3_138 = arith.constant 3 : index
    %c0_139 = arith.constant 0 : index
    %134 = vector.load %arg13[%c3_137, %c3_138, %c0_139] : memref<4x6x32xf32, #tpu.memory_space<vmem>>, vector<1x3x32xf32>
    %135 = vector.shape_cast %134 : vector<1x3x32xf32> to vector<3x32xf32>
    %136 = vector.shape_cast %133 : vector<3x32xf32> to vector<1x3x32xf32>
    tpu.vector_store %arg13[%c3_137, %c3_138, %c0_139], %136 {strides = array<i32>} : memref<4x6x32xf32, #tpu.memory_space<vmem>>, vector<1x3x32xf32>,
    %c3_140 = arith.constant 3 : index
    %c1_141 = arith.constant 1 : index
    %c0_142 = arith.constant 0 : index
    %137 = vector.load %arg4[%c3_140, %c1_141, %c0_142] : memref<4x2x32xf32, #tpu.memory_space<vmem>>, vector<1x1x32xf32>
    %138 = vector.shape_cast %137 : vector<1x1x32xf32> to vector<1x32xf32>
    %139 = vector.shape_cast %138 : vector<1x32xf32> to vector<1x32xf32>
    %140 = vector.broadcast %139 : vector<1x32xf32> to vector<3x32xf32>
    %c3_143 = arith.constant 3 : index
    %c3_144 = arith.constant 3 : index
    %c0_145 = arith.constant 0 : index
    %141 = vector.load %arg14[%c3_143, %c3_144, %c0_145] : memref<4x6x32xf32, #tpu.memory_space<vmem>>, vector<1x3x32xf32>
    %142 = vector.shape_cast %141 : vector<1x3x32xf32> to vector<3x32xf32>
    %143 = vector.shape_cast %140 : vector<3x32xf32> to vector<1x3x32xf32>
    tpu.vector_store %arg14[%c3_143, %c3_144, %c0_145], %143 {strides = array<i32>} : memref<4x6x32xf32, #tpu.memory_space<vmem>>, vector<1x3x32xf32>,
    %c0_i32_146 = arith.constant 0 : i32
    %c4_i32 = arith.constant 4 : i32
    %144 = arith.addi %c0_i32_146, %c4_i32 : i32
    %c1_i32_147 = arith.constant 1 : i32
    scf.for %arg17 = %c0_i32_146 to %144 step %c1_i32_147  : i32 {
      %c1_i32_259 = arith.constant 1 : i32
      %264 = arith.muli %arg17, %c1_i32_259 : i32
      %c0_i32_260 = arith.constant 0 : i32
      %265 = arith.addi %c0_i32_260, %264 : i32
      %266 = arith.index_cast %265 : i32 to index
      %c0_261 = arith.constant 0 : index
      %c0_262 = arith.constant 0 : index
      %267 = vector.load %arg1[%266, %c0_261, %c0_262] : memref<4x6x128xf32, #tpu.memory_space<vmem>>, vector<1x6x128xf32>
      %268 = vector.shape_cast %267 : vector<1x6x128xf32> to vector<6x128xf32>
      %c0_263 = arith.constant 0 : index
      %c0_264 = arith.constant 0 : index
      %c0_265 = arith.constant 0 : index
      %269 = vector.load %arg13[%c0_263, %c0_264, %c0_265] : memref<4x6x32xf32, #tpu.memory_space<vmem>>, vector<1x6x32xf32>
      %270 = vector.shape_cast %269 : vector<1x6x32xf32> to vector<6x32xf32>
      %cst = arith.constant dense<0.000000e+00> : vector<6x128xf32>
      %271 = tpu.matmul %270, %9, %cst {dimension_numbers = #tpu.dot_dimension_numbers<[1], [0], [0], [1], [0, 0, 1, 1], [], []>} : vector<6x32xf32>, vector<32x128xf32>, vector<6x128xf32> -> vector<6x128xf32>
      %272 = arith.addf %268, %271 : vector<6x128xf32>
      %c0_266 = arith.constant 0 : index
      %c0_267 = arith.constant 0 : index
      %c0_268 = arith.constant 0 : index
      %273 = vector.load %arg14[%c0_266, %c0_267, %c0_268] : memref<4x6x32xf32, #tpu.memory_space<vmem>>, vector<1x6x32xf32>
      %274 = vector.shape_cast %273 : vector<1x6x32xf32> to vector<6x32xf32>
      %275 = vector.extract_strided_slice %272 {offsets = [0, 0], sizes = [6, 32], strides = [1, 1]} : vector<6x128xf32> to vector<6x32xf32>
      %276 = arith.negf %275 : vector<6x32xf32>
      %277 = math.exp %276 : vector<6x32xf32>
      %cst_269 = arith.constant 1.000000e+00 : f32
      %278 = vector.broadcast %cst_269 : f32 to vector<6x32xf32>
      %279 = arith.addf %278, %277 : vector<6x32xf32>
      %280 = arith.divf %278, %279 : vector<6x32xf32>
      %281 = vector.extract_strided_slice %272 {offsets = [0, 32], sizes = [6, 32], strides = [1, 1]} : vector<6x128xf32> to vector<6x32xf32>
      %282 = arith.negf %281 : vector<6x32xf32>
      %283 = math.exp %282 : vector<6x32xf32>
      %cst_270 = arith.constant 1.000000e+00 : f32
      %284 = vector.broadcast %cst_270 : f32 to vector<6x32xf32>
      %285 = arith.addf %284, %283 : vector<6x32xf32>
      %286 = arith.divf %284, %285 : vector<6x32xf32>
      %287 = vector.extract_strided_slice %272 {offsets = [0, 64], sizes = [6, 32], strides = [1, 1]} : vector<6x128xf32> to vector<6x32xf32>
      %288 = math.tanh %287 : vector<6x32xf32>
      %289 = vector.extract_strided_slice %272 {offsets = [0, 96], sizes = [6, 32], strides = [1, 1]} : vector<6x128xf32> to vector<6x32xf32>
      %290 = arith.negf %289 : vector<6x32xf32>
      %291 = math.exp %290 : vector<6x32xf32>
      %cst_271 = arith.constant 1.000000e+00 : f32
      %292 = vector.broadcast %cst_271 : f32 to vector<6x32xf32>
      %293 = arith.addf %292, %291 : vector<6x32xf32>
      %294 = arith.divf %292, %293 : vector<6x32xf32>
      %295 = arith.mulf %286, %274 : vector<6x32xf32>
      %296 = arith.mulf %280, %288 : vector<6x32xf32>
      %297 = arith.addf %295, %296 : vector<6x32xf32>
      %298 = math.tanh %297 : vector<6x32xf32>
      %299 = arith.mulf %294, %298 : vector<6x32xf32>
      %c0_272 = arith.constant 0 : index
      %c0_273 = arith.constant 0 : index
      %c0_274 = arith.constant 0 : index
      %300 = vector.load %arg13[%c0_272, %c0_273, %c0_274] : memref<4x6x32xf32, #tpu.memory_space<vmem>>, vector<1x6x32xf32>
      %301 = vector.shape_cast %300 : vector<1x6x32xf32> to vector<6x32xf32>
      %302 = vector.shape_cast %299 : vector<6x32xf32> to vector<1x6x32xf32>
      tpu.vector_store %arg13[%c0_272, %c0_273, %c0_274], %302 {strides = array<i32>} : memref<4x6x32xf32, #tpu.memory_space<vmem>>, vector<1x6x32xf32>,
      %c0_275 = arith.constant 0 : index
      %c0_276 = arith.constant 0 : index
      %c0_277 = arith.constant 0 : index
      %303 = vector.load %arg14[%c0_275, %c0_276, %c0_277] : memref<4x6x32xf32, #tpu.memory_space<vmem>>, vector<1x6x32xf32>
      %304 = vector.shape_cast %303 : vector<1x6x32xf32> to vector<6x32xf32>
      %305 = vector.shape_cast %297 : vector<6x32xf32> to vector<1x6x32xf32>
      tpu.vector_store %arg14[%c0_275, %c0_276, %c0_277], %305 {strides = array<i32>} : memref<4x6x32xf32, #tpu.memory_space<vmem>>, vector<1x6x32xf32>,
      %cst_278 = arith.constant dense<0.000000e+00> : vector<6x128xf32>
      %306 = tpu.matmul %299, %3, %cst_278 {dimension_numbers = #tpu.dot_dimension_numbers<[1], [0], [0], [1], [0, 0, 1, 1], [], []>} : vector<6x32xf32>, vector<32x128xf32>, vector<6x128xf32> -> vector<6x128xf32>
      %c1_279 = arith.constant 1 : index
      %c0_280 = arith.constant 0 : index
      %c0_281 = arith.constant 0 : index
      %307 = vector.load %arg13[%c1_279, %c0_280, %c0_281] : memref<4x6x32xf32, #tpu.memory_space<vmem>>, vector<1x6x32xf32>
      %308 = vector.shape_cast %307 : vector<1x6x32xf32> to vector<6x32xf32>
      %cst_282 = arith.constant dense<0.000000e+00> : vector<6x128xf32>
      %309 = tpu.matmul %308, %11, %cst_282 {dimension_numbers = #tpu.dot_dimension_numbers<[1], [0], [0], [1], [0, 0, 1, 1], [], []>} : vector<6x32xf32>, vector<32x128xf32>, vector<6x128xf32> -> vector<6x128xf32>
      %310 = arith.addf %306, %309 : vector<6x128xf32>
      %311 = vector.broadcast %19 : vector<1x128xf32> to vector<6x128xf32>
      %312 = arith.addf %310, %311 : vector<6x128xf32>
      %c1_283 = arith.constant 1 : index
      %c0_284 = arith.constant 0 : index
      %c0_285 = arith.constant 0 : index
      %313 = vector.load %arg14[%c1_283, %c0_284, %c0_285] : memref<4x6x32xf32, #tpu.memory_space<vmem>>, vector<1x6x32xf32>
      %314 = vector.shape_cast %313 : vector<1x6x32xf32> to vector<6x32xf32>
      %315 = vector.extract_strided_slice %312 {offsets = [0, 0], sizes = [6, 32], strides = [1, 1]} : vector<6x128xf32> to vector<6x32xf32>
      %316 = arith.negf %315 : vector<6x32xf32>
      %317 = math.exp %316 : vector<6x32xf32>
      %cst_286 = arith.constant 1.000000e+00 : f32
      %318 = vector.broadcast %cst_286 : f32 to vector<6x32xf32>
      %319 = arith.addf %318, %317 : vector<6x32xf32>
      %320 = arith.divf %318, %319 : vector<6x32xf32>
      %321 = vector.extract_strided_slice %312 {offsets = [0, 32], sizes = [6, 32], strides = [1, 1]} : vector<6x128xf32> to vector<6x32xf32>
      %322 = arith.negf %321 : vector<6x32xf32>
      %323 = math.exp %322 : vector<6x32xf32>
      %cst_287 = arith.constant 1.000000e+00 : f32
      %324 = vector.broadcast %cst_287 : f32 to vector<6x32xf32>
      %325 = arith.addf %324, %323 : vector<6x32xf32>
      %326 = arith.divf %324, %325 : vector<6x32xf32>
      %327 = vector.extract_strided_slice %312 {offsets = [0, 64], sizes = [6, 32], strides = [1, 1]} : vector<6x128xf32> to vector<6x32xf32>
      %328 = math.tanh %327 : vector<6x32xf32>
      %329 = vector.extract_strided_slice %312 {offsets = [0, 96], sizes = [6, 32], strides = [1, 1]} : vector<6x128xf32> to vector<6x32xf32>
      %330 = arith.negf %329 : vector<6x32xf32>
      %331 = math.exp %330 : vector<6x32xf32>
      %cst_288 = arith.constant 1.000000e+00 : f32
      %332 = vector.broadcast %cst_288 : f32 to vector<6x32xf32>
      %333 = arith.addf %332, %331 : vector<6x32xf32>
      %334 = arith.divf %332, %333 : vector<6x32xf32>
      %335 = arith.mulf %326, %314 : vector<6x32xf32>
      %336 = arith.mulf %320, %328 : vector<6x32xf32>
      %337 = arith.addf %335, %336 : vector<6x32xf32>
      %338 = math.tanh %337 : vector<6x32xf32>
      %339 = arith.mulf %334, %338 : vector<6x32xf32>
      %c1_289 = arith.constant 1 : index
      %c0_290 = arith.constant 0 : index
      %c0_291 = arith.constant 0 : index
      %340 = vector.load %arg13[%c1_289, %c0_290, %c0_291] : memref<4x6x32xf32, #tpu.memory_space<vmem>>, vector<1x6x32xf32>
      %341 = vector.shape_cast %340 : vector<1x6x32xf32> to vector<6x32xf32>
      %342 = vector.shape_cast %339 : vector<6x32xf32> to vector<1x6x32xf32>
      tpu.vector_store %arg13[%c1_289, %c0_290, %c0_291], %342 {strides = array<i32>} : memref<4x6x32xf32, #tpu.memory_space<vmem>>, vector<1x6x32xf32>,
      %c1_292 = arith.constant 1 : index
      %c0_293 = arith.constant 0 : index
      %c0_294 = arith.constant 0 : index
      %343 = vector.load %arg14[%c1_292, %c0_293, %c0_294] : memref<4x6x32xf32, #tpu.memory_space<vmem>>, vector<1x6x32xf32>
      %344 = vector.shape_cast %343 : vector<1x6x32xf32> to vector<6x32xf32>
      %345 = vector.shape_cast %337 : vector<6x32xf32> to vector<1x6x32xf32>
      tpu.vector_store %arg14[%c1_292, %c0_293, %c0_294], %345 {strides = array<i32>} : memref<4x6x32xf32, #tpu.memory_space<vmem>>, vector<1x6x32xf32>,
      %cst_295 = arith.constant dense<0.000000e+00> : vector<6x128xf32>
      %346 = tpu.matmul %339, %5, %cst_295 {dimension_numbers = #tpu.dot_dimension_numbers<[1], [0], [0], [1], [0, 0, 1, 1], [], []>} : vector<6x32xf32>, vector<32x128xf32>, vector<6x128xf32> -> vector<6x128xf32>
      %c2_296 = arith.constant 2 : index
      %c0_297 = arith.constant 0 : index
      %c0_298 = arith.constant 0 : index
      %347 = vector.load %arg13[%c2_296, %c0_297, %c0_298] : memref<4x6x32xf32, #tpu.memory_space<vmem>>, vector<1x6x32xf32>
      %348 = vector.shape_cast %347 : vector<1x6x32xf32> to vector<6x32xf32>
      %cst_299 = arith.constant dense<0.000000e+00> : vector<6x128xf32>
      %349 = tpu.matmul %348, %13, %cst_299 {dimension_numbers = #tpu.dot_dimension_numbers<[1], [0], [0], [1], [0, 0, 1, 1], [], []>} : vector<6x32xf32>, vector<32x128xf32>, vector<6x128xf32> -> vector<6x128xf32>
      %350 = arith.addf %346, %349 : vector<6x128xf32>
      %351 = vector.broadcast %21 : vector<1x128xf32> to vector<6x128xf32>
      %352 = arith.addf %350, %351 : vector<6x128xf32>
      %c2_300 = arith.constant 2 : index
      %c0_301 = arith.constant 0 : index
      %c0_302 = arith.constant 0 : index
      %353 = vector.load %arg14[%c2_300, %c0_301, %c0_302] : memref<4x6x32xf32, #tpu.memory_space<vmem>>, vector<1x6x32xf32>
      %354 = vector.shape_cast %353 : vector<1x6x32xf32> to vector<6x32xf32>
      %355 = vector.extract_strided_slice %352 {offsets = [0, 0], sizes = [6, 32], strides = [1, 1]} : vector<6x128xf32> to vector<6x32xf32>
      %356 = arith.negf %355 : vector<6x32xf32>
      %357 = math.exp %356 : vector<6x32xf32>
      %cst_303 = arith.constant 1.000000e+00 : f32
      %358 = vector.broadcast %cst_303 : f32 to vector<6x32xf32>
      %359 = arith.addf %358, %357 : vector<6x32xf32>
      %360 = arith.divf %358, %359 : vector<6x32xf32>
      %361 = vector.extract_strided_slice %352 {offsets = [0, 32], sizes = [6, 32], strides = [1, 1]} : vector<6x128xf32> to vector<6x32xf32>
      %362 = arith.negf %361 : vector<6x32xf32>
      %363 = math.exp %362 : vector<6x32xf32>
      %cst_304 = arith.constant 1.000000e+00 : f32
      %364 = vector.broadcast %cst_304 : f32 to vector<6x32xf32>
      %365 = arith.addf %364, %363 : vector<6x32xf32>
      %366 = arith.divf %364, %365 : vector<6x32xf32>
      %367 = vector.extract_strided_slice %352 {offsets = [0, 64], sizes = [6, 32], strides = [1, 1]} : vector<6x128xf32> to vector<6x32xf32>
      %368 = math.tanh %367 : vector<6x32xf32>
      %369 = vector.extract_strided_slice %352 {offsets = [0, 96], sizes = [6, 32], strides = [1, 1]} : vector<6x128xf32> to vector<6x32xf32>
      %370 = arith.negf %369 : vector<6x32xf32>
      %371 = math.exp %370 : vector<6x32xf32>
      %cst_305 = arith.constant 1.000000e+00 : f32
      %372 = vector.broadcast %cst_305 : f32 to vector<6x32xf32>
      %373 = arith.addf %372, %371 : vector<6x32xf32>
      %374 = arith.divf %372, %373 : vector<6x32xf32>
      %375 = arith.mulf %366, %354 : vector<6x32xf32>
      %376 = arith.mulf %360, %368 : vector<6x32xf32>
      %377 = arith.addf %375, %376 : vector<6x32xf32>
      %378 = math.tanh %377 : vector<6x32xf32>
      %379 = arith.mulf %374, %378 : vector<6x32xf32>
      %c2_306 = arith.constant 2 : index
      %c0_307 = arith.constant 0 : index
      %c0_308 = arith.constant 0 : index
      %380 = vector.load %arg13[%c2_306, %c0_307, %c0_308] : memref<4x6x32xf32, #tpu.memory_space<vmem>>, vector<1x6x32xf32>
      %381 = vector.shape_cast %380 : vector<1x6x32xf32> to vector<6x32xf32>
      %382 = vector.shape_cast %379 : vector<6x32xf32> to vector<1x6x32xf32>
      tpu.vector_store %arg13[%c2_306, %c0_307, %c0_308], %382 {strides = array<i32>} : memref<4x6x32xf32, #tpu.memory_space<vmem>>, vector<1x6x32xf32>,
      %c2_309 = arith.constant 2 : index
      %c0_310 = arith.constant 0 : index
      %c0_311 = arith.constant 0 : index
      %383 = vector.load %arg14[%c2_309, %c0_310, %c0_311] : memref<4x6x32xf32, #tpu.memory_space<vmem>>, vector<1x6x32xf32>
      %384 = vector.shape_cast %383 : vector<1x6x32xf32> to vector<6x32xf32>
      %385 = vector.shape_cast %377 : vector<6x32xf32> to vector<1x6x32xf32>
      tpu.vector_store %arg14[%c2_309, %c0_310, %c0_311], %385 {strides = array<i32>} : memref<4x6x32xf32, #tpu.memory_space<vmem>>, vector<1x6x32xf32>,
      %cst_312 = arith.constant dense<0.000000e+00> : vector<6x128xf32>
      %386 = tpu.matmul %379, %7, %cst_312 {dimension_numbers = #tpu.dot_dimension_numbers<[1], [0], [0], [1], [0, 0, 1, 1], [], []>} : vector<6x32xf32>, vector<32x128xf32>, vector<6x128xf32> -> vector<6x128xf32>
      %c3_313 = arith.constant 3 : index
      %c0_314 = arith.constant 0 : index
      %c0_315 = arith.constant 0 : index
      %387 = vector.load %arg13[%c3_313, %c0_314, %c0_315] : memref<4x6x32xf32, #tpu.memory_space<vmem>>, vector<1x6x32xf32>
      %388 = vector.shape_cast %387 : vector<1x6x32xf32> to vector<6x32xf32>
      %cst_316 = arith.constant dense<0.000000e+00> : vector<6x128xf32>
      %389 = tpu.matmul %388, %15, %cst_316 {dimension_numbers = #tpu.dot_dimension_numbers<[1], [0], [0], [1], [0, 0, 1, 1], [], []>} : vector<6x32xf32>, vector<32x128xf32>, vector<6x128xf32> -> vector<6x128xf32>
      %390 = arith.addf %386, %389 : vector<6x128xf32>
      %391 = vector.broadcast %23 : vector<1x128xf32> to vector<6x128xf32>
      %392 = arith.addf %390, %391 : vector<6x128xf32>
      %c3_317 = arith.constant 3 : index
      %c0_318 = arith.constant 0 : index
      %c0_319 = arith.constant 0 : index
      %393 = vector.load %arg14[%c3_317, %c0_318, %c0_319] : memref<4x6x32xf32, #tpu.memory_space<vmem>>, vector<1x6x32xf32>
      %394 = vector.shape_cast %393 : vector<1x6x32xf32> to vector<6x32xf32>
      %395 = vector.extract_strided_slice %392 {offsets = [0, 0], sizes = [6, 32], strides = [1, 1]} : vector<6x128xf32> to vector<6x32xf32>
      %396 = arith.negf %395 : vector<6x32xf32>
      %397 = math.exp %396 : vector<6x32xf32>
      %cst_320 = arith.constant 1.000000e+00 : f32
      %398 = vector.broadcast %cst_320 : f32 to vector<6x32xf32>
      %399 = arith.addf %398, %397 : vector<6x32xf32>
      %400 = arith.divf %398, %399 : vector<6x32xf32>
      %401 = vector.extract_strided_slice %392 {offsets = [0, 32], sizes = [6, 32], strides = [1, 1]} : vector<6x128xf32> to vector<6x32xf32>
      %402 = arith.negf %401 : vector<6x32xf32>
      %403 = math.exp %402 : vector<6x32xf32>
      %cst_321 = arith.constant 1.000000e+00 : f32
      %404 = vector.broadcast %cst_321 : f32 to vector<6x32xf32>
      %405 = arith.addf %404, %403 : vector<6x32xf32>
      %406 = arith.divf %404, %405 : vector<6x32xf32>
      %407 = vector.extract_strided_slice %392 {offsets = [0, 64], sizes = [6, 32], strides = [1, 1]} : vector<6x128xf32> to vector<6x32xf32>
      %408 = math.tanh %407 : vector<6x32xf32>
      %409 = vector.extract_strided_slice %392 {offsets = [0, 96], sizes = [6, 32], strides = [1, 1]} : vector<6x128xf32> to vector<6x32xf32>
      %410 = arith.negf %409 : vector<6x32xf32>
      %411 = math.exp %410 : vector<6x32xf32>
      %cst_322 = arith.constant 1.000000e+00 : f32
      %412 = vector.broadcast %cst_322 : f32 to vector<6x32xf32>
      %413 = arith.addf %412, %411 : vector<6x32xf32>
      %414 = arith.divf %412, %413 : vector<6x32xf32>
      %415 = arith.mulf %406, %394 : vector<6x32xf32>
      %416 = arith.mulf %400, %408 : vector<6x32xf32>
      %417 = arith.addf %415, %416 : vector<6x32xf32>
      %418 = math.tanh %417 : vector<6x32xf32>
      %419 = arith.mulf %414, %418 : vector<6x32xf32>
      %c3_323 = arith.constant 3 : index
      %c0_324 = arith.constant 0 : index
      %c0_325 = arith.constant 0 : index
      %420 = vector.load %arg13[%c3_323, %c0_324, %c0_325] : memref<4x6x32xf32, #tpu.memory_space<vmem>>, vector<1x6x32xf32>
      %421 = vector.shape_cast %420 : vector<1x6x32xf32> to vector<6x32xf32>
      %422 = vector.shape_cast %419 : vector<6x32xf32> to vector<1x6x32xf32>
      tpu.vector_store %arg13[%c3_323, %c0_324, %c0_325], %422 {strides = array<i32>} : memref<4x6x32xf32, #tpu.memory_space<vmem>>, vector<1x6x32xf32>,
      %c3_326 = arith.constant 3 : index
      %c0_327 = arith.constant 0 : index
      %c0_328 = arith.constant 0 : index
      %423 = vector.load %arg14[%c3_326, %c0_327, %c0_328] : memref<4x6x32xf32, #tpu.memory_space<vmem>>, vector<1x6x32xf32>
      %424 = vector.shape_cast %423 : vector<1x6x32xf32> to vector<6x32xf32>
      %425 = vector.shape_cast %417 : vector<6x32xf32> to vector<1x6x32xf32>
      tpu.vector_store %arg14[%c3_326, %c0_327, %c0_328], %425 {strides = array<i32>} : memref<4x6x32xf32, #tpu.memory_space<vmem>>, vector<1x6x32xf32>,
    }
    %c4_i32_148 = arith.constant 4 : i32
    %c3_149 = arith.constant 3 : index
    %c0_150 = arith.constant 0 : index
    %c0_151 = arith.constant 0 : index
    %145 = vector.load %arg13[%c3_149, %c0_150, %c0_151] : memref<4x6x32xf32, #tpu.memory_space<vmem>>, vector<1x6x32xf32>
    %146 = vector.shape_cast %145 : vector<1x6x32xf32> to vector<6x32xf32>
    %c0_152 = arith.constant 0 : index
    %c0_153 = arith.constant 0 : index
    %147 = vector.load %arg9[%c0_152, %c0_153] : memref<6x32xf32, #tpu.memory_space<vmem>>, vector<6x32xf32>
    tpu.vector_store %arg9[%c0_152, %c0_153], %146 {strides = array<i32>} : memref<6x32xf32, #tpu.memory_space<vmem>>, vector<6x32xf32>,
    %c0_154 = arith.constant 0 : index
    %c0_155 = arith.constant 0 : index
    %c0_156 = arith.constant 0 : index
    %148 = vector.load %arg3[%c0_154, %c0_155, %c0_156] : memref<4x2x32xf32, #tpu.memory_space<vmem>>, vector<1x1x32xf32>
    %149 = vector.shape_cast %148 : vector<1x1x32xf32> to vector<1x32xf32>
    %150 = vector.shape_cast %149 : vector<1x32xf32> to vector<1x32xf32>
    %151 = vector.broadcast %150 : vector<1x32xf32> to vector<3x32xf32>
    %c0_157 = arith.constant 0 : index
    %c0_158 = arith.constant 0 : index
    %c0_159 = arith.constant 0 : index
    %152 = vector.load %arg15[%c0_157, %c0_158, %c0_159] : memref<4x6x32xf32, #tpu.memory_space<vmem>>, vector<1x3x32xf32>
    %153 = vector.shape_cast %152 : vector<1x3x32xf32> to vector<3x32xf32>
    %154 = vector.shape_cast %151 : vector<3x32xf32> to vector<1x3x32xf32>
    tpu.vector_store %arg15[%c0_157, %c0_158, %c0_159], %154 {strides = array<i32>} : memref<4x6x32xf32, #tpu.memory_space<vmem>>, vector<1x3x32xf32>,
    %c0_160 = arith.constant 0 : index
    %c0_161 = arith.constant 0 : index
    %c0_162 = arith.constant 0 : index
    %155 = vector.load %arg4[%c0_160, %c0_161, %c0_162] : memref<4x2x32xf32, #tpu.memory_space<vmem>>, vector<1x1x32xf32>
    %156 = vector.shape_cast %155 : vector<1x1x32xf32> to vector<1x32xf32>
    %157 = vector.shape_cast %156 : vector<1x32xf32> to vector<1x32xf32>
    %158 = vector.broadcast %157 : vector<1x32xf32> to vector<3x32xf32>
    %c0_163 = arith.constant 0 : index
    %c0_164 = arith.constant 0 : index
    %c0_165 = arith.constant 0 : index
    %159 = vector.load %arg16[%c0_163, %c0_164, %c0_165] : memref<4x6x32xf32, #tpu.memory_space<vmem>>, vector<1x3x32xf32>
    %160 = vector.shape_cast %159 : vector<1x3x32xf32> to vector<3x32xf32>
    %161 = vector.shape_cast %158 : vector<3x32xf32> to vector<1x3x32xf32>
    tpu.vector_store %arg16[%c0_163, %c0_164, %c0_165], %161 {strides = array<i32>} : memref<4x6x32xf32, #tpu.memory_space<vmem>>, vector<1x3x32xf32>,
    %c0_166 = arith.constant 0 : index
    %c1_167 = arith.constant 1 : index
    %c0_168 = arith.constant 0 : index
    %162 = vector.load %arg3[%c0_166, %c1_167, %c0_168] : memref<4x2x32xf32, #tpu.memory_space<vmem>>, vector<1x1x32xf32>
    %163 = vector.shape_cast %162 : vector<1x1x32xf32> to vector<1x32xf32>
    %164 = vector.shape_cast %163 : vector<1x32xf32> to vector<1x32xf32>
    %165 = vector.broadcast %164 : vector<1x32xf32> to vector<3x32xf32>
    %c0_169 = arith.constant 0 : index
    %c3_170 = arith.constant 3 : index
    %c0_171 = arith.constant 0 : index
    %166 = vector.load %arg15[%c0_169, %c3_170, %c0_171] : memref<4x6x32xf32, #tpu.memory_space<vmem>>, vector<1x3x32xf32>
    %167 = vector.shape_cast %166 : vector<1x3x32xf32> to vector<3x32xf32>
    %168 = vector.shape_cast %165 : vector<3x32xf32> to vector<1x3x32xf32>
    tpu.vector_store %arg15[%c0_169, %c3_170, %c0_171], %168 {strides = array<i32>} : memref<4x6x32xf32, #tpu.memory_space<vmem>>, vector<1x3x32xf32>,
    %c0_172 = arith.constant 0 : index
    %c1_173 = arith.constant 1 : index
    %c0_174 = arith.constant 0 : index
    %169 = vector.load %arg4[%c0_172, %c1_173, %c0_174] : memref<4x2x32xf32, #tpu.memory_space<vmem>>, vector<1x1x32xf32>
    %170 = vector.shape_cast %169 : vector<1x1x32xf32> to vector<1x32xf32>
    %171 = vector.shape_cast %170 : vector<1x32xf32> to vector<1x32xf32>
    %172 = vector.broadcast %171 : vector<1x32xf32> to vector<3x32xf32>
    %c0_175 = arith.constant 0 : index
    %c3_176 = arith.constant 3 : index
    %c0_177 = arith.constant 0 : index
    %173 = vector.load %arg16[%c0_175, %c3_176, %c0_177] : memref<4x6x32xf32, #tpu.memory_space<vmem>>, vector<1x3x32xf32>
    %174 = vector.shape_cast %173 : vector<1x3x32xf32> to vector<3x32xf32>
    %175 = vector.shape_cast %172 : vector<3x32xf32> to vector<1x3x32xf32>
    tpu.vector_store %arg16[%c0_175, %c3_176, %c0_177], %175 {strides = array<i32>} : memref<4x6x32xf32, #tpu.memory_space<vmem>>, vector<1x3x32xf32>,
    %c1_178 = arith.constant 1 : index
    %c0_179 = arith.constant 0 : index
    %c0_180 = arith.constant 0 : index
    %176 = vector.load %arg3[%c1_178, %c0_179, %c0_180] : memref<4x2x32xf32, #tpu.memory_space<vmem>>, vector<1x1x32xf32>
    %177 = vector.shape_cast %176 : vector<1x1x32xf32> to vector<1x32xf32>
    %178 = vector.shape_cast %177 : vector<1x32xf32> to vector<1x32xf32>
    %179 = vector.broadcast %178 : vector<1x32xf32> to vector<3x32xf32>
    %c1_181 = arith.constant 1 : index
    %c0_182 = arith.constant 0 : index
    %c0_183 = arith.constant 0 : index
    %180 = vector.load %arg15[%c1_181, %c0_182, %c0_183] : memref<4x6x32xf32, #tpu.memory_space<vmem>>, vector<1x3x32xf32>
    %181 = vector.shape_cast %180 : vector<1x3x32xf32> to vector<3x32xf32>
    %182 = vector.shape_cast %179 : vector<3x32xf32> to vector<1x3x32xf32>
    tpu.vector_store %arg15[%c1_181, %c0_182, %c0_183], %182 {strides = array<i32>} : memref<4x6x32xf32, #tpu.memory_space<vmem>>, vector<1x3x32xf32>,
    %c1_184 = arith.constant 1 : index
    %c0_185 = arith.constant 0 : index
    %c0_186 = arith.constant 0 : index
    %183 = vector.load %arg4[%c1_184, %c0_185, %c0_186] : memref<4x2x32xf32, #tpu.memory_space<vmem>>, vector<1x1x32xf32>
    %184 = vector.shape_cast %183 : vector<1x1x32xf32> to vector<1x32xf32>
    %185 = vector.shape_cast %184 : vector<1x32xf32> to vector<1x32xf32>
    %186 = vector.broadcast %185 : vector<1x32xf32> to vector<3x32xf32>
    %c1_187 = arith.constant 1 : index
    %c0_188 = arith.constant 0 : index
    %c0_189 = arith.constant 0 : index
    %187 = vector.load %arg16[%c1_187, %c0_188, %c0_189] : memref<4x6x32xf32, #tpu.memory_space<vmem>>, vector<1x3x32xf32>
    %188 = vector.shape_cast %187 : vector<1x3x32xf32> to vector<3x32xf32>
    %189 = vector.shape_cast %186 : vector<3x32xf32> to vector<1x3x32xf32>
    tpu.vector_store %arg16[%c1_187, %c0_188, %c0_189], %189 {strides = array<i32>} : memref<4x6x32xf32, #tpu.memory_space<vmem>>, vector<1x3x32xf32>,
    %c1_190 = arith.constant 1 : index
    %c1_191 = arith.constant 1 : index
    %c0_192 = arith.constant 0 : index
    %190 = vector.load %arg3[%c1_190, %c1_191, %c0_192] : memref<4x2x32xf32, #tpu.memory_space<vmem>>, vector<1x1x32xf32>
    %191 = vector.shape_cast %190 : vector<1x1x32xf32> to vector<1x32xf32>
    %192 = vector.shape_cast %191 : vector<1x32xf32> to vector<1x32xf32>
    %193 = vector.broadcast %192 : vector<1x32xf32> to vector<3x32xf32>
    %c1_193 = arith.constant 1 : index
    %c3_194 = arith.constant 3 : index
    %c0_195 = arith.constant 0 : index
    %194 = vector.load %arg15[%c1_193, %c3_194, %c0_195] : memref<4x6x32xf32, #tpu.memory_space<vmem>>, vector<1x3x32xf32>
    %195 = vector.shape_cast %194 : vector<1x3x32xf32> to vector<3x32xf32>
    %196 = vector.shape_cast %193 : vector<3x32xf32> to vector<1x3x32xf32>
    tpu.vector_store %arg15[%c1_193, %c3_194, %c0_195], %196 {strides = array<i32>} : memref<4x6x32xf32, #tpu.memory_space<vmem>>, vector<1x3x32xf32>,
    %c1_196 = arith.constant 1 : index
    %c1_197 = arith.constant 1 : index
    %c0_198 = arith.constant 0 : index
    %197 = vector.load %arg4[%c1_196, %c1_197, %c0_198] : memref<4x2x32xf32, #tpu.memory_space<vmem>>, vector<1x1x32xf32>
    %198 = vector.shape_cast %197 : vector<1x1x32xf32> to vector<1x32xf32>
    %199 = vector.shape_cast %198 : vector<1x32xf32> to vector<1x32xf32>
    %200 = vector.broadcast %199 : vector<1x32xf32> to vector<3x32xf32>
    %c1_199 = arith.constant 1 : index
    %c3_200 = arith.constant 3 : index
    %c0_201 = arith.constant 0 : index
    %201 = vector.load %arg16[%c1_199, %c3_200, %c0_201] : memref<4x6x32xf32, #tpu.memory_space<vmem>>, vector<1x3x32xf32>
    %202 = vector.shape_cast %201 : vector<1x3x32xf32> to vector<3x32xf32>
    %203 = vector.shape_cast %200 : vector<3x32xf32> to vector<1x3x32xf32>
    tpu.vector_store %arg16[%c1_199, %c3_200, %c0_201], %203 {strides = array<i32>} : memref<4x6x32xf32, #tpu.memory_space<vmem>>, vector<1x3x32xf32>,
    %c2_202 = arith.constant 2 : index
    %c0_203 = arith.constant 0 : index
    %c0_204 = arith.constant 0 : index
    %204 = vector.load %arg3[%c2_202, %c0_203, %c0_204] : memref<4x2x32xf32, #tpu.memory_space<vmem>>, vector<1x1x32xf32>
    %205 = vector.shape_cast %204 : vector<1x1x32xf32> to vector<1x32xf32>
    %206 = vector.shape_cast %205 : vector<1x32xf32> to vector<1x32xf32>
    %207 = vector.broadcast %206 : vector<1x32xf32> to vector<3x32xf32>
    %c2_205 = arith.constant 2 : index
    %c0_206 = arith.constant 0 : index
    %c0_207 = arith.constant 0 : index
    %208 = vector.load %arg15[%c2_205, %c0_206, %c0_207] : memref<4x6x32xf32, #tpu.memory_space<vmem>>, vector<1x3x32xf32>
    %209 = vector.shape_cast %208 : vector<1x3x32xf32> to vector<3x32xf32>
    %210 = vector.shape_cast %207 : vector<3x32xf32> to vector<1x3x32xf32>
    tpu.vector_store %arg15[%c2_205, %c0_206, %c0_207], %210 {strides = array<i32>} : memref<4x6x32xf32, #tpu.memory_space<vmem>>, vector<1x3x32xf32>,
    %c2_208 = arith.constant 2 : index
    %c0_209 = arith.constant 0 : index
    %c0_210 = arith.constant 0 : index
    %211 = vector.load %arg4[%c2_208, %c0_209, %c0_210] : memref<4x2x32xf32, #tpu.memory_space<vmem>>, vector<1x1x32xf32>
    %212 = vector.shape_cast %211 : vector<1x1x32xf32> to vector<1x32xf32>
    %213 = vector.shape_cast %212 : vector<1x32xf32> to vector<1x32xf32>
    %214 = vector.broadcast %213 : vector<1x32xf32> to vector<3x32xf32>
    %c2_211 = arith.constant 2 : index
    %c0_212 = arith.constant 0 : index
    %c0_213 = arith.constant 0 : index
    %215 = vector.load %arg16[%c2_211, %c0_212, %c0_213] : memref<4x6x32xf32, #tpu.memory_space<vmem>>, vector<1x3x32xf32>
    %216 = vector.shape_cast %215 : vector<1x3x32xf32> to vector<3x32xf32>
    %217 = vector.shape_cast %214 : vector<3x32xf32> to vector<1x3x32xf32>
    tpu.vector_store %arg16[%c2_211, %c0_212, %c0_213], %217 {strides = array<i32>} : memref<4x6x32xf32, #tpu.memory_space<vmem>>, vector<1x3x32xf32>,
    %c2_214 = arith.constant 2 : index
    %c1_215 = arith.constant 1 : index
    %c0_216 = arith.constant 0 : index
    %218 = vector.load %arg3[%c2_214, %c1_215, %c0_216] : memref<4x2x32xf32, #tpu.memory_space<vmem>>, vector<1x1x32xf32>
    %219 = vector.shape_cast %218 : vector<1x1x32xf32> to vector<1x32xf32>
    %220 = vector.shape_cast %219 : vector<1x32xf32> to vector<1x32xf32>
    %221 = vector.broadcast %220 : vector<1x32xf32> to vector<3x32xf32>
    %c2_217 = arith.constant 2 : index
    %c3_218 = arith.constant 3 : index
    %c0_219 = arith.constant 0 : index
    %222 = vector.load %arg15[%c2_217, %c3_218, %c0_219] : memref<4x6x32xf32, #tpu.memory_space<vmem>>, vector<1x3x32xf32>
    %223 = vector.shape_cast %222 : vector<1x3x32xf32> to vector<3x32xf32>
    %224 = vector.shape_cast %221 : vector<3x32xf32> to vector<1x3x32xf32>
    tpu.vector_store %arg15[%c2_217, %c3_218, %c0_219], %224 {strides = array<i32>} : memref<4x6x32xf32, #tpu.memory_space<vmem>>, vector<1x3x32xf32>,
    %c2_220 = arith.constant 2 : index
    %c1_221 = arith.constant 1 : index
    %c0_222 = arith.constant 0 : index
    %225 = vector.load %arg4[%c2_220, %c1_221, %c0_222] : memref<4x2x32xf32, #tpu.memory_space<vmem>>, vector<1x1x32xf32>
    %226 = vector.shape_cast %225 : vector<1x1x32xf32> to vector<1x32xf32>
    %227 = vector.shape_cast %226 : vector<1x32xf32> to vector<1x32xf32>
    %228 = vector.broadcast %227 : vector<1x32xf32> to vector<3x32xf32>
    %c2_223 = arith.constant 2 : index
    %c3_224 = arith.constant 3 : index
    %c0_225 = arith.constant 0 : index
    %229 = vector.load %arg16[%c2_223, %c3_224, %c0_225] : memref<4x6x32xf32, #tpu.memory_space<vmem>>, vector<1x3x32xf32>
    %230 = vector.shape_cast %229 : vector<1x3x32xf32> to vector<3x32xf32>
    %231 = vector.shape_cast %228 : vector<3x32xf32> to vector<1x3x32xf32>
    tpu.vector_store %arg16[%c2_223, %c3_224, %c0_225], %231 {strides = array<i32>} : memref<4x6x32xf32, #tpu.memory_space<vmem>>, vector<1x3x32xf32>,
    %c3_226 = arith.constant 3 : index
    %c0_227 = arith.constant 0 : index
    %c0_228 = arith.constant 0 : index
    %232 = vector.load %arg3[%c3_226, %c0_227, %c0_228] : memref<4x2x32xf32, #tpu.memory_space<vmem>>, vector<1x1x32xf32>
    %233 = vector.shape_cast %232 : vector<1x1x32xf32> to vector<1x32xf32>
    %234 = vector.shape_cast %233 : vector<1x32xf32> to vector<1x32xf32>
    %235 = vector.broadcast %234 : vector<1x32xf32> to vector<3x32xf32>
    %c3_229 = arith.constant 3 : index
    %c0_230 = arith.constant 0 : index
    %c0_231 = arith.constant 0 : index
    %236 = vector.load %arg15[%c3_229, %c0_230, %c0_231] : memref<4x6x32xf32, #tpu.memory_space<vmem>>, vector<1x3x32xf32>
    %237 = vector.shape_cast %236 : vector<1x3x32xf32> to vector<3x32xf32>
    %238 = vector.shape_cast %235 : vector<3x32xf32> to vector<1x3x32xf32>
    tpu.vector_store %arg15[%c3_229, %c0_230, %c0_231], %238 {strides = array<i32>} : memref<4x6x32xf32, #tpu.memory_space<vmem>>, vector<1x3x32xf32>,
    %c3_232 = arith.constant 3 : index
    %c0_233 = arith.constant 0 : index
    %c0_234 = arith.constant 0 : index
    %239 = vector.load %arg4[%c3_232, %c0_233, %c0_234] : memref<4x2x32xf32, #tpu.memory_space<vmem>>, vector<1x1x32xf32>
    %240 = vector.shape_cast %239 : vector<1x1x32xf32> to vector<1x32xf32>
    %241 = vector.shape_cast %240 : vector<1x32xf32> to vector<1x32xf32>
    %242 = vector.broadcast %241 : vector<1x32xf32> to vector<3x32xf32>
    %c3_235 = arith.constant 3 : index
    %c0_236 = arith.constant 0 : index
    %c0_237 = arith.constant 0 : index
    %243 = vector.load %arg16[%c3_235, %c0_236, %c0_237] : memref<4x6x32xf32, #tpu.memory_space<vmem>>, vector<1x3x32xf32>
    %244 = vector.shape_cast %243 : vector<1x3x32xf32> to vector<3x32xf32>
    %245 = vector.shape_cast %242 : vector<3x32xf32> to vector<1x3x32xf32>
    tpu.vector_store %arg16[%c3_235, %c0_236, %c0_237], %245 {strides = array<i32>} : memref<4x6x32xf32, #tpu.memory_space<vmem>>, vector<1x3x32xf32>,
    %c3_238 = arith.constant 3 : index
    %c1_239 = arith.constant 1 : index
    %c0_240 = arith.constant 0 : index
    %246 = vector.load %arg3[%c3_238, %c1_239, %c0_240] : memref<4x2x32xf32, #tpu.memory_space<vmem>>, vector<1x1x32xf32>
    %247 = vector.shape_cast %246 : vector<1x1x32xf32> to vector<1x32xf32>
    %248 = vector.shape_cast %247 : vector<1x32xf32> to vector<1x32xf32>
    %249 = vector.broadcast %248 : vector<1x32xf32> to vector<3x32xf32>
    %c3_241 = arith.constant 3 : index
    %c3_242 = arith.constant 3 : index
    %c0_243 = arith.constant 0 : index
    %250 = vector.load %arg15[%c3_241, %c3_242, %c0_243] : memref<4x6x32xf32, #tpu.memory_space<vmem>>, vector<1x3x32xf32>
    %251 = vector.shape_cast %250 : vector<1x3x32xf32> to vector<3x32xf32>
    %252 = vector.shape_cast %249 : vector<3x32xf32> to vector<1x3x32xf32>
    tpu.vector_store %arg15[%c3_241, %c3_242, %c0_243], %252 {strides = array<i32>} : memref<4x6x32xf32, #tpu.memory_space<vmem>>, vector<1x3x32xf32>,
    %c3_244 = arith.constant 3 : index
    %c1_245 = arith.constant 1 : index
    %c0_246 = arith.constant 0 : index
    %253 = vector.load %arg4[%c3_244, %c1_245, %c0_246] : memref<4x2x32xf32, #tpu.memory_space<vmem>>, vector<1x1x32xf32>
    %254 = vector.shape_cast %253 : vector<1x1x32xf32> to vector<1x32xf32>
    %255 = vector.shape_cast %254 : vector<1x32xf32> to vector<1x32xf32>
    %256 = vector.broadcast %255 : vector<1x32xf32> to vector<3x32xf32>
    %c3_247 = arith.constant 3 : index
    %c3_248 = arith.constant 3 : index
    %c0_249 = arith.constant 0 : index
    %257 = vector.load %arg16[%c3_247, %c3_248, %c0_249] : memref<4x6x32xf32, #tpu.memory_space<vmem>>, vector<1x3x32xf32>
    %258 = vector.shape_cast %257 : vector<1x3x32xf32> to vector<3x32xf32>
    %259 = vector.shape_cast %256 : vector<3x32xf32> to vector<1x3x32xf32>
    tpu.vector_store %arg16[%c3_247, %c3_248, %c0_249], %259 {strides = array<i32>} : memref<4x6x32xf32, #tpu.memory_space<vmem>>, vector<1x3x32xf32>,
    %c0_i32_250 = arith.constant 0 : i32
    %c4_i32_251 = arith.constant 4 : i32
    %260 = arith.addi %c0_i32_250, %c4_i32_251 : i32
    %c1_i32_252 = arith.constant 1 : i32
    scf.for %arg17 = %c0_i32_250 to %260 step %c1_i32_252  : i32 {
      %c1_i32_259 = arith.constant 1 : i32
      %264 = arith.muli %arg17, %c1_i32_259 : i32
      %c0_i32_260 = arith.constant 0 : i32
      %265 = arith.addi %c0_i32_260, %264 : i32
      %266 = arith.index_cast %265 : i32 to index
      %c0_261 = arith.constant 0 : index
      %c0_262 = arith.constant 0 : index
      %267 = vector.load %arg2[%266, %c0_261, %c0_262] : memref<4x6x32xf32, #tpu.memory_space<vmem>>, vector<1x6x32xf32>
      %268 = vector.shape_cast %267 : vector<1x6x32xf32> to vector<6x32xf32>
      %cst = arith.constant dense<0.000000e+00> : vector<6x128xf32>
      %269 = tpu.matmul %268, %1, %cst {dimension_numbers = #tpu.dot_dimension_numbers<[1], [0], [0], [1], [0, 0, 1, 1], [], []>} : vector<6x32xf32>, vector<32x128xf32>, vector<6x128xf32> -> vector<6x128xf32>
      %270 = vector.broadcast %17 : vector<1x128xf32> to vector<6x128xf32>
      %271 = arith.addf %269, %270 : vector<6x128xf32>
      %c0_263 = arith.constant 0 : index
      %c0_264 = arith.constant 0 : index
      %c0_265 = arith.constant 0 : index
      %272 = vector.load %arg15[%c0_263, %c0_264, %c0_265] : memref<4x6x32xf32, #tpu.memory_space<vmem>>, vector<1x6x32xf32>
      %273 = vector.shape_cast %272 : vector<1x6x32xf32> to vector<6x32xf32>
      %cst_266 = arith.constant dense<0.000000e+00> : vector<6x128xf32>
      %274 = tpu.matmul %273, %9, %cst_266 {dimension_numbers = #tpu.dot_dimension_numbers<[1], [0], [0], [1], [0, 0, 1, 1], [], []>} : vector<6x32xf32>, vector<32x128xf32>, vector<6x128xf32> -> vector<6x128xf32>
      %275 = arith.addf %271, %274 : vector<6x128xf32>
      %c0_267 = arith.constant 0 : index
      %c0_268 = arith.constant 0 : index
      %c0_269 = arith.constant 0 : index
      %276 = vector.load %arg16[%c0_267, %c0_268, %c0_269] : memref<4x6x32xf32, #tpu.memory_space<vmem>>, vector<1x6x32xf32>
      %277 = vector.shape_cast %276 : vector<1x6x32xf32> to vector<6x32xf32>
      %278 = vector.extract_strided_slice %275 {offsets = [0, 0], sizes = [6, 32], strides = [1, 1]} : vector<6x128xf32> to vector<6x32xf32>
      %279 = arith.negf %278 : vector<6x32xf32>
      %280 = math.exp %279 : vector<6x32xf32>
      %cst_270 = arith.constant 1.000000e+00 : f32
      %281 = vector.broadcast %cst_270 : f32 to vector<6x32xf32>
      %282 = arith.addf %281, %280 : vector<6x32xf32>
      %283 = arith.divf %281, %282 : vector<6x32xf32>
      %284 = vector.extract_strided_slice %275 {offsets = [0, 32], sizes = [6, 32], strides = [1, 1]} : vector<6x128xf32> to vector<6x32xf32>
      %285 = arith.negf %284 : vector<6x32xf32>
      %286 = math.exp %285 : vector<6x32xf32>
      %cst_271 = arith.constant 1.000000e+00 : f32
      %287 = vector.broadcast %cst_271 : f32 to vector<6x32xf32>
      %288 = arith.addf %287, %286 : vector<6x32xf32>
      %289 = arith.divf %287, %288 : vector<6x32xf32>
      %290 = vector.extract_strided_slice %275 {offsets = [0, 64], sizes = [6, 32], strides = [1, 1]} : vector<6x128xf32> to vector<6x32xf32>
      %291 = math.tanh %290 : vector<6x32xf32>
      %292 = vector.extract_strided_slice %275 {offsets = [0, 96], sizes = [6, 32], strides = [1, 1]} : vector<6x128xf32> to vector<6x32xf32>
      %293 = arith.negf %292 : vector<6x32xf32>
      %294 = math.exp %293 : vector<6x32xf32>
      %cst_272 = arith.constant 1.000000e+00 : f32
      %295 = vector.broadcast %cst_272 : f32 to vector<6x32xf32>
      %296 = arith.addf %295, %294 : vector<6x32xf32>
      %297 = arith.divf %295, %296 : vector<6x32xf32>
      %298 = arith.mulf %289, %277 : vector<6x32xf32>
      %299 = arith.mulf %283, %291 : vector<6x32xf32>
      %300 = arith.addf %298, %299 : vector<6x32xf32>
      %301 = math.tanh %300 : vector<6x32xf32>
      %302 = arith.mulf %297, %301 : vector<6x32xf32>
      %c0_273 = arith.constant 0 : index
      %c0_274 = arith.constant 0 : index
      %c0_275 = arith.constant 0 : index
      %303 = vector.load %arg15[%c0_273, %c0_274, %c0_275] : memref<4x6x32xf32, #tpu.memory_space<vmem>>, vector<1x6x32xf32>
      %304 = vector.shape_cast %303 : vector<1x6x32xf32> to vector<6x32xf32>
      %305 = vector.shape_cast %302 : vector<6x32xf32> to vector<1x6x32xf32>
      tpu.vector_store %arg15[%c0_273, %c0_274, %c0_275], %305 {strides = array<i32>} : memref<4x6x32xf32, #tpu.memory_space<vmem>>, vector<1x6x32xf32>,
      %c0_276 = arith.constant 0 : index
      %c0_277 = arith.constant 0 : index
      %c0_278 = arith.constant 0 : index
      %306 = vector.load %arg16[%c0_276, %c0_277, %c0_278] : memref<4x6x32xf32, #tpu.memory_space<vmem>>, vector<1x6x32xf32>
      %307 = vector.shape_cast %306 : vector<1x6x32xf32> to vector<6x32xf32>
      %308 = vector.shape_cast %300 : vector<6x32xf32> to vector<1x6x32xf32>
      tpu.vector_store %arg16[%c0_276, %c0_277, %c0_278], %308 {strides = array<i32>} : memref<4x6x32xf32, #tpu.memory_space<vmem>>, vector<1x6x32xf32>,
      %cst_279 = arith.constant dense<0.000000e+00> : vector<6x128xf32>
      %309 = tpu.matmul %302, %3, %cst_279 {dimension_numbers = #tpu.dot_dimension_numbers<[1], [0], [0], [1], [0, 0, 1, 1], [], []>} : vector<6x32xf32>, vector<32x128xf32>, vector<6x128xf32> -> vector<6x128xf32>
      %c1_280 = arith.constant 1 : index
      %c0_281 = arith.constant 0 : index
      %c0_282 = arith.constant 0 : index
      %310 = vector.load %arg15[%c1_280, %c0_281, %c0_282] : memref<4x6x32xf32, #tpu.memory_space<vmem>>, vector<1x6x32xf32>
      %311 = vector.shape_cast %310 : vector<1x6x32xf32> to vector<6x32xf32>
      %cst_283 = arith.constant dense<0.000000e+00> : vector<6x128xf32>
      %312 = tpu.matmul %311, %11, %cst_283 {dimension_numbers = #tpu.dot_dimension_numbers<[1], [0], [0], [1], [0, 0, 1, 1], [], []>} : vector<6x32xf32>, vector<32x128xf32>, vector<6x128xf32> -> vector<6x128xf32>
      %313 = arith.addf %309, %312 : vector<6x128xf32>
      %314 = vector.broadcast %19 : vector<1x128xf32> to vector<6x128xf32>
      %315 = arith.addf %313, %314 : vector<6x128xf32>
      %c1_284 = arith.constant 1 : index
      %c0_285 = arith.constant 0 : index
      %c0_286 = arith.constant 0 : index
      %316 = vector.load %arg16[%c1_284, %c0_285, %c0_286] : memref<4x6x32xf32, #tpu.memory_space<vmem>>, vector<1x6x32xf32>
      %317 = vector.shape_cast %316 : vector<1x6x32xf32> to vector<6x32xf32>
      %318 = vector.extract_strided_slice %315 {offsets = [0, 0], sizes = [6, 32], strides = [1, 1]} : vector<6x128xf32> to vector<6x32xf32>
      %319 = arith.negf %318 : vector<6x32xf32>
      %320 = math.exp %319 : vector<6x32xf32>
      %cst_287 = arith.constant 1.000000e+00 : f32
      %321 = vector.broadcast %cst_287 : f32 to vector<6x32xf32>
      %322 = arith.addf %321, %320 : vector<6x32xf32>
      %323 = arith.divf %321, %322 : vector<6x32xf32>
      %324 = vector.extract_strided_slice %315 {offsets = [0, 32], sizes = [6, 32], strides = [1, 1]} : vector<6x128xf32> to vector<6x32xf32>
      %325 = arith.negf %324 : vector<6x32xf32>
      %326 = math.exp %325 : vector<6x32xf32>
      %cst_288 = arith.constant 1.000000e+00 : f32
      %327 = vector.broadcast %cst_288 : f32 to vector<6x32xf32>
      %328 = arith.addf %327, %326 : vector<6x32xf32>
      %329 = arith.divf %327, %328 : vector<6x32xf32>
      %330 = vector.extract_strided_slice %315 {offsets = [0, 64], sizes = [6, 32], strides = [1, 1]} : vector<6x128xf32> to vector<6x32xf32>
      %331 = math.tanh %330 : vector<6x32xf32>
      %332 = vector.extract_strided_slice %315 {offsets = [0, 96], sizes = [6, 32], strides = [1, 1]} : vector<6x128xf32> to vector<6x32xf32>
      %333 = arith.negf %332 : vector<6x32xf32>
      %334 = math.exp %333 : vector<6x32xf32>
      %cst_289 = arith.constant 1.000000e+00 : f32
      %335 = vector.broadcast %cst_289 : f32 to vector<6x32xf32>
      %336 = arith.addf %335, %334 : vector<6x32xf32>
      %337 = arith.divf %335, %336 : vector<6x32xf32>
      %338 = arith.mulf %329, %317 : vector<6x32xf32>
      %339 = arith.mulf %323, %331 : vector<6x32xf32>
      %340 = arith.addf %338, %339 : vector<6x32xf32>
      %341 = math.tanh %340 : vector<6x32xf32>
      %342 = arith.mulf %337, %341 : vector<6x32xf32>
      %c1_290 = arith.constant 1 : index
      %c0_291 = arith.constant 0 : index
      %c0_292 = arith.constant 0 : index
      %343 = vector.load %arg15[%c1_290, %c0_291, %c0_292] : memref<4x6x32xf32, #tpu.memory_space<vmem>>, vector<1x6x32xf32>
      %344 = vector.shape_cast %343 : vector<1x6x32xf32> to vector<6x32xf32>
      %345 = vector.shape_cast %342 : vector<6x32xf32> to vector<1x6x32xf32>
      tpu.vector_store %arg15[%c1_290, %c0_291, %c0_292], %345 {strides = array<i32>} : memref<4x6x32xf32, #tpu.memory_space<vmem>>, vector<1x6x32xf32>,
      %c1_293 = arith.constant 1 : index
      %c0_294 = arith.constant 0 : index
      %c0_295 = arith.constant 0 : index
      %346 = vector.load %arg16[%c1_293, %c0_294, %c0_295] : memref<4x6x32xf32, #tpu.memory_space<vmem>>, vector<1x6x32xf32>
      %347 = vector.shape_cast %346 : vector<1x6x32xf32> to vector<6x32xf32>
      %348 = vector.shape_cast %340 : vector<6x32xf32> to vector<1x6x32xf32>
      tpu.vector_store %arg16[%c1_293, %c0_294, %c0_295], %348 {strides = array<i32>} : memref<4x6x32xf32, #tpu.memory_space<vmem>>, vector<1x6x32xf32>,
      %cst_296 = arith.constant dense<0.000000e+00> : vector<6x128xf32>
      %349 = tpu.matmul %342, %5, %cst_296 {dimension_numbers = #tpu.dot_dimension_numbers<[1], [0], [0], [1], [0, 0, 1, 1], [], []>} : vector<6x32xf32>, vector<32x128xf32>, vector<6x128xf32> -> vector<6x128xf32>
      %c2_297 = arith.constant 2 : index
      %c0_298 = arith.constant 0 : index
      %c0_299 = arith.constant 0 : index
      %350 = vector.load %arg15[%c2_297, %c0_298, %c0_299] : memref<4x6x32xf32, #tpu.memory_space<vmem>>, vector<1x6x32xf32>
      %351 = vector.shape_cast %350 : vector<1x6x32xf32> to vector<6x32xf32>
      %cst_300 = arith.constant dense<0.000000e+00> : vector<6x128xf32>
      %352 = tpu.matmul %351, %13, %cst_300 {dimension_numbers = #tpu.dot_dimension_numbers<[1], [0], [0], [1], [0, 0, 1, 1], [], []>} : vector<6x32xf32>, vector<32x128xf32>, vector<6x128xf32> -> vector<6x128xf32>
      %353 = arith.addf %349, %352 : vector<6x128xf32>
      %354 = vector.broadcast %21 : vector<1x128xf32> to vector<6x128xf32>
      %355 = arith.addf %353, %354 : vector<6x128xf32>
      %c2_301 = arith.constant 2 : index
      %c0_302 = arith.constant 0 : index
      %c0_303 = arith.constant 0 : index
      %356 = vector.load %arg16[%c2_301, %c0_302, %c0_303] : memref<4x6x32xf32, #tpu.memory_space<vmem>>, vector<1x6x32xf32>
      %357 = vector.shape_cast %356 : vector<1x6x32xf32> to vector<6x32xf32>
      %358 = vector.extract_strided_slice %355 {offsets = [0, 0], sizes = [6, 32], strides = [1, 1]} : vector<6x128xf32> to vector<6x32xf32>
      %359 = arith.negf %358 : vector<6x32xf32>
      %360 = math.exp %359 : vector<6x32xf32>
      %cst_304 = arith.constant 1.000000e+00 : f32
      %361 = vector.broadcast %cst_304 : f32 to vector<6x32xf32>
      %362 = arith.addf %361, %360 : vector<6x32xf32>
      %363 = arith.divf %361, %362 : vector<6x32xf32>
      %364 = vector.extract_strided_slice %355 {offsets = [0, 32], sizes = [6, 32], strides = [1, 1]} : vector<6x128xf32> to vector<6x32xf32>
      %365 = arith.negf %364 : vector<6x32xf32>
      %366 = math.exp %365 : vector<6x32xf32>
      %cst_305 = arith.constant 1.000000e+00 : f32
      %367 = vector.broadcast %cst_305 : f32 to vector<6x32xf32>
      %368 = arith.addf %367, %366 : vector<6x32xf32>
      %369 = arith.divf %367, %368 : vector<6x32xf32>
      %370 = vector.extract_strided_slice %355 {offsets = [0, 64], sizes = [6, 32], strides = [1, 1]} : vector<6x128xf32> to vector<6x32xf32>
      %371 = math.tanh %370 : vector<6x32xf32>
      %372 = vector.extract_strided_slice %355 {offsets = [0, 96], sizes = [6, 32], strides = [1, 1]} : vector<6x128xf32> to vector<6x32xf32>
      %373 = arith.negf %372 : vector<6x32xf32>
      %374 = math.exp %373 : vector<6x32xf32>
      %cst_306 = arith.constant 1.000000e+00 : f32
      %375 = vector.broadcast %cst_306 : f32 to vector<6x32xf32>
      %376 = arith.addf %375, %374 : vector<6x32xf32>
      %377 = arith.divf %375, %376 : vector<6x32xf32>
      %378 = arith.mulf %369, %357 : vector<6x32xf32>
      %379 = arith.mulf %363, %371 : vector<6x32xf32>
      %380 = arith.addf %378, %379 : vector<6x32xf32>
      %381 = math.tanh %380 : vector<6x32xf32>
      %382 = arith.mulf %377, %381 : vector<6x32xf32>
      %c2_307 = arith.constant 2 : index
      %c0_308 = arith.constant 0 : index
      %c0_309 = arith.constant 0 : index
      %383 = vector.load %arg15[%c2_307, %c0_308, %c0_309] : memref<4x6x32xf32, #tpu.memory_space<vmem>>, vector<1x6x32xf32>
      %384 = vector.shape_cast %383 : vector<1x6x32xf32> to vector<6x32xf32>
      %385 = vector.shape_cast %382 : vector<6x32xf32> to vector<1x6x32xf32>
      tpu.vector_store %arg15[%c2_307, %c0_308, %c0_309], %385 {strides = array<i32>} : memref<4x6x32xf32, #tpu.memory_space<vmem>>, vector<1x6x32xf32>,
      %c2_310 = arith.constant 2 : index
      %c0_311 = arith.constant 0 : index
      %c0_312 = arith.constant 0 : index
      %386 = vector.load %arg16[%c2_310, %c0_311, %c0_312] : memref<4x6x32xf32, #tpu.memory_space<vmem>>, vector<1x6x32xf32>
      %387 = vector.shape_cast %386 : vector<1x6x32xf32> to vector<6x32xf32>
      %388 = vector.shape_cast %380 : vector<6x32xf32> to vector<1x6x32xf32>
      tpu.vector_store %arg16[%c2_310, %c0_311, %c0_312], %388 {strides = array<i32>} : memref<4x6x32xf32, #tpu.memory_space<vmem>>, vector<1x6x32xf32>,
      %cst_313 = arith.constant dense<0.000000e+00> : vector<6x128xf32>
      %389 = tpu.matmul %382, %7, %cst_313 {dimension_numbers = #tpu.dot_dimension_numbers<[1], [0], [0], [1], [0, 0, 1, 1], [], []>} : vector<6x32xf32>, vector<32x128xf32>, vector<6x128xf32> -> vector<6x128xf32>
      %c3_314 = arith.constant 3 : index
      %c0_315 = arith.constant 0 : index
      %c0_316 = arith.constant 0 : index
      %390 = vector.load %arg15[%c3_314, %c0_315, %c0_316] : memref<4x6x32xf32, #tpu.memory_space<vmem>>, vector<1x6x32xf32>
      %391 = vector.shape_cast %390 : vector<1x6x32xf32> to vector<6x32xf32>
      %cst_317 = arith.constant dense<0.000000e+00> : vector<6x128xf32>
      %392 = tpu.matmul %391, %15, %cst_317 {dimension_numbers = #tpu.dot_dimension_numbers<[1], [0], [0], [1], [0, 0, 1, 1], [], []>} : vector<6x32xf32>, vector<32x128xf32>, vector<6x128xf32> -> vector<6x128xf32>
      %393 = arith.addf %389, %392 : vector<6x128xf32>
      %394 = vector.broadcast %23 : vector<1x128xf32> to vector<6x128xf32>
      %395 = arith.addf %393, %394 : vector<6x128xf32>
      %c3_318 = arith.constant 3 : index
      %c0_319 = arith.constant 0 : index
      %c0_320 = arith.constant 0 : index
      %396 = vector.load %arg16[%c3_318, %c0_319, %c0_320] : memref<4x6x32xf32, #tpu.memory_space<vmem>>, vector<1x6x32xf32>
      %397 = vector.shape_cast %396 : vector<1x6x32xf32> to vector<6x32xf32>
      %398 = vector.extract_strided_slice %395 {offsets = [0, 0], sizes = [6, 32], strides = [1, 1]} : vector<6x128xf32> to vector<6x32xf32>
      %399 = arith.negf %398 : vector<6x32xf32>
      %400 = math.exp %399 : vector<6x32xf32>
      %cst_321 = arith.constant 1.000000e+00 : f32
      %401 = vector.broadcast %cst_321 : f32 to vector<6x32xf32>
      %402 = arith.addf %401, %400 : vector<6x32xf32>
      %403 = arith.divf %401, %402 : vector<6x32xf32>
      %404 = vector.extract_strided_slice %395 {offsets = [0, 32], sizes = [6, 32], strides = [1, 1]} : vector<6x128xf32> to vector<6x32xf32>
      %405 = arith.negf %404 : vector<6x32xf32>
      %406 = math.exp %405 : vector<6x32xf32>
      %cst_322 = arith.constant 1.000000e+00 : f32
      %407 = vector.broadcast %cst_322 : f32 to vector<6x32xf32>
      %408 = arith.addf %407, %406 : vector<6x32xf32>
      %409 = arith.divf %407, %408 : vector<6x32xf32>
      %410 = vector.extract_strided_slice %395 {offsets = [0, 64], sizes = [6, 32], strides = [1, 1]} : vector<6x128xf32> to vector<6x32xf32>
      %411 = math.tanh %410 : vector<6x32xf32>
      %412 = vector.extract_strided_slice %395 {offsets = [0, 96], sizes = [6, 32], strides = [1, 1]} : vector<6x128xf32> to vector<6x32xf32>
      %413 = arith.negf %412 : vector<6x32xf32>
      %414 = math.exp %413 : vector<6x32xf32>
      %cst_323 = arith.constant 1.000000e+00 : f32
      %415 = vector.broadcast %cst_323 : f32 to vector<6x32xf32>
      %416 = arith.addf %415, %414 : vector<6x32xf32>
      %417 = arith.divf %415, %416 : vector<6x32xf32>
      %418 = arith.mulf %409, %397 : vector<6x32xf32>
      %419 = arith.mulf %403, %411 : vector<6x32xf32>
      %420 = arith.addf %418, %419 : vector<6x32xf32>
      %421 = math.tanh %420 : vector<6x32xf32>
      %422 = arith.mulf %417, %421 : vector<6x32xf32>
      %c3_324 = arith.constant 3 : index
      %c0_325 = arith.constant 0 : index
      %c0_326 = arith.constant 0 : index
      %423 = vector.load %arg15[%c3_324, %c0_325, %c0_326] : memref<4x6x32xf32, #tpu.memory_space<vmem>>, vector<1x6x32xf32>
      %424 = vector.shape_cast %423 : vector<1x6x32xf32> to vector<6x32xf32>
      %425 = vector.shape_cast %422 : vector<6x32xf32> to vector<1x6x32xf32>
      tpu.vector_store %arg15[%c3_324, %c0_325, %c0_326], %425 {strides = array<i32>} : memref<4x6x32xf32, #tpu.memory_space<vmem>>, vector<1x6x32xf32>,
      %c3_327 = arith.constant 3 : index
      %c0_328 = arith.constant 0 : index
      %c0_329 = arith.constant 0 : index
      %426 = vector.load %arg16[%c3_327, %c0_328, %c0_329] : memref<4x6x32xf32, #tpu.memory_space<vmem>>, vector<1x6x32xf32>
      %427 = vector.shape_cast %426 : vector<1x6x32xf32> to vector<6x32xf32>
      %428 = vector.shape_cast %420 : vector<6x32xf32> to vector<1x6x32xf32>
      tpu.vector_store %arg16[%c3_327, %c0_328, %c0_329], %428 {strides = array<i32>} : memref<4x6x32xf32, #tpu.memory_space<vmem>>, vector<1x6x32xf32>,
    }
    %c4_i32_253 = arith.constant 4 : i32
    %c3_254 = arith.constant 3 : index
    %c0_255 = arith.constant 0 : index
    %c0_256 = arith.constant 0 : index
    %261 = vector.load %arg15[%c3_254, %c0_255, %c0_256] : memref<4x6x32xf32, #tpu.memory_space<vmem>>, vector<1x6x32xf32>
    %262 = vector.shape_cast %261 : vector<1x6x32xf32> to vector<6x32xf32>
    %c0_257 = arith.constant 0 : index
    %c0_258 = arith.constant 0 : index
    %263 = vector.load %arg10[%c0_257, %c0_258] : memref<6x32xf32, #tpu.memory_space<vmem>>, vector<6x32xf32>
    tpu.vector_store %arg10[%c0_257, %c0_258], %262 {strides = array<i32>} : memref<6x32xf32, #tpu.memory_space<vmem>>, vector<6x32xf32>,
    return
  }
}

module attributes {stable_mosaic.version = 11 : i64} {
  func.func @_att_kernel(%arg0: memref<6x32xf32, #tpu.memory_space<vmem>>, %arg1: memref<6x32xf32, #tpu.memory_space<vmem>>, %arg2: memref<6x1xf32, #tpu.memory_space<vmem>>, %arg3: memref<32x32xf32, #tpu.memory_space<vmem>>, %arg4: memref<1x32xf32, #tpu.memory_space<vmem>>, %arg5: memref<32x32xf32, #tpu.memory_space<vmem>>, %arg6: memref<32x32xf32, #tpu.memory_space<vmem>>, %arg7: memref<1x32xf32, #tpu.memory_space<vmem>>, %arg8: memref<1x32xf32, #tpu.memory_space<vmem>>, %arg9: memref<1x1xf32, #tpu.memory_space<vmem>>, %arg10: memref<32x32xf32, #tpu.memory_space<vmem>>, %arg11: memref<1x32xf32, #tpu.memory_space<vmem>>, %arg12: memref<2x32xf32, #tpu.memory_space<vmem>>) attributes {dimension_semantics = [], scalar_prefetch = 0 : i64, scratch_operands = 0 : i64, tpu.core_type = #tpu.core_type<tc>} {
    %c0 = arith.constant 0 : index
    %c0_0 = arith.constant 0 : index
    %0 = vector.load %arg0[%c0, %c0_0] : memref<6x32xf32, #tpu.memory_space<vmem>>, vector<6x32xf32>
    %c0_1 = arith.constant 0 : index
    %c0_2 = arith.constant 0 : index
    %1 = vector.load %arg1[%c0_1, %c0_2] : memref<6x32xf32, #tpu.memory_space<vmem>>, vector<6x32xf32>
    %c0_3 = arith.constant 0 : index
    %c0_4 = arith.constant 0 : index
    %2 = vector.load %arg3[%c0_3, %c0_4] : memref<32x32xf32, #tpu.memory_space<vmem>>, vector<32x32xf32>
    %c0_5 = arith.constant 0 : index
    %c0_6 = arith.constant 0 : index
    %3 = vector.load %arg4[%c0_5, %c0_6] : memref<1x32xf32, #tpu.memory_space<vmem>>, vector<1x32xf32>
    %cst = arith.constant dense<0.000000e+00> : vector<6x32xf32>
    %4 = tpu.matmul %0, %2, %cst {dimension_numbers = #tpu.dot_dimension_numbers<[1], [0], [0], [1], [0, 0, 1, 1], [], []>} : vector<6x32xf32>, vector<32x32xf32>, vector<6x32xf32> -> vector<6x32xf32>
    %5 = vector.broadcast %3 : vector<1x32xf32> to vector<6x32xf32>
    %6 = arith.addf %4, %5 : vector<6x32xf32>
    %cst_7 = arith.constant dense<0.000000e+00> : vector<6x32xf32>
    %7 = tpu.matmul %1, %2, %cst_7 {dimension_numbers = #tpu.dot_dimension_numbers<[1], [0], [0], [1], [0, 0, 1, 1], [], []>} : vector<6x32xf32>, vector<32x32xf32>, vector<6x32xf32> -> vector<6x32xf32>
    %8 = vector.broadcast %3 : vector<1x32xf32> to vector<6x32xf32>
    %9 = arith.addf %7, %8 : vector<6x32xf32>
    %c0_8 = arith.constant 0 : index
    %c0_9 = arith.constant 0 : index
    %10 = vector.load %arg5[%c0_8, %c0_9] : memref<32x32xf32, #tpu.memory_space<vmem>>, vector<32x32xf32>
    %cst_10 = arith.constant dense<0.000000e+00> : vector<6x32xf32>
    %11 = tpu.matmul %6, %10, %cst_10 {dimension_numbers = #tpu.dot_dimension_numbers<[1], [0], [0], [1], [0, 0, 1, 1], [], []>} : vector<6x32xf32>, vector<32x32xf32>, vector<6x32xf32> -> vector<6x32xf32>
    %c0_11 = arith.constant 0 : index
    %c0_12 = arith.constant 0 : index
    %12 = vector.load %arg6[%c0_11, %c0_12] : memref<32x32xf32, #tpu.memory_space<vmem>>, vector<32x32xf32>
    %cst_13 = arith.constant dense<0.000000e+00> : vector<6x32xf32>
    %13 = tpu.matmul %9, %12, %cst_13 {dimension_numbers = #tpu.dot_dimension_numbers<[1], [0], [0], [1], [0, 0, 1, 1], [], []>} : vector<6x32xf32>, vector<32x32xf32>, vector<6x32xf32> -> vector<6x32xf32>
    %14 = arith.addf %11, %13 : vector<6x32xf32>
    %c0_14 = arith.constant 0 : index
    %c0_15 = arith.constant 0 : index
    %15 = vector.load %arg7[%c0_14, %c0_15] : memref<1x32xf32, #tpu.memory_space<vmem>>, vector<1x32xf32>
    %16 = vector.broadcast %15 : vector<1x32xf32> to vector<6x32xf32>
    %17 = arith.addf %14, %16 : vector<6x32xf32>
    %cst_16 = arith.constant 0.000000e+00 : f32
    %18 = vector.broadcast %cst_16 : f32 to vector<6x32xf32>
    %19 = arith.cmpf oge, %17, %18 : vector<6x32xf32>
    %cst_17 = arith.constant 2.000000e-01 : f32
    %20 = vector.broadcast %cst_17 : f32 to vector<6x32xf32>
    %21 = arith.mulf %20, %17 : vector<6x32xf32>
    %22 = arith.select %19, %17, %21 : vector<6x32xi1>, vector<6x32xf32>
    %c0_18 = arith.constant 0 : index
    %c0_19 = arith.constant 0 : index
    %23 = vector.load %arg8[%c0_18, %c0_19] : memref<1x32xf32, #tpu.memory_space<vmem>>, vector<1x32xf32>
    %24 = vector.broadcast %23 : vector<1x32xf32> to vector<6x32xf32>
    %25 = arith.mulf %22, %24 : vector<6x32xf32>
    %cst_20 = arith.constant dense<0.000000e+00> : vector<6xf32>
    %26 = vector.multi_reduction <add>, %25, %cst_20 [1] : vector<6x32xf32> to vector<6xf32>
    %27 = vector.shape_cast %26 : vector<6xf32> to vector<6x1xf32>
    %c0_21 = arith.constant 0 : index
    %c0_22 = arith.constant 0 : index
    %28 = vector.load %arg9[%c0_21, %c0_22] : memref<1x1xf32, #tpu.memory_space<vmem>>, vector<1x1xf32>
    %29 = vector.broadcast %28 : vector<1x1xf32> to vector<6x1xf32>
    %30 = arith.addf %27, %29 : vector<6x1xf32>
    %c0_23 = arith.constant 0 : index
    %c0_24 = arith.constant 0 : index
    %31 = vector.load %arg2[%c0_23, %c0_24] : memref<6x1xf32, #tpu.memory_space<vmem>>, vector<6x1xf32>
    %cst_25 = arith.constant 0.000000e+00 : f32
    %32 = vector.broadcast %cst_25 : f32 to vector<6x1xf32>
    %33 = arith.cmpf ogt, %31, %32 : vector<6x1xf32>
    %cst_26 = arith.constant -1.000000e+30 : f32
    %34 = vector.broadcast %cst_26 : f32 to vector<6x1xf32>
    %35 = arith.select %33, %30, %34 : vector<6x1xi1>, vector<6x1xf32>
    %cst_27 = arith.constant dense<0xFF800000> : vector<1xf32>
    %36 = vector.multi_reduction <maximumf>, %35, %cst_27 [0] : vector<6x1xf32> to vector<1xf32>
    %37 = vector.shape_cast %36 : vector<1xf32> to vector<1x1xf32>
    %cst_28 = arith.constant 0.000000e+00 : f32
    %38 = vector.broadcast %cst_28 : f32 to vector<1x1xf32>
    %39 = arith.maximumf %37, %38 : vector<1x1xf32>
    %40 = vector.broadcast %39 : vector<1x1xf32> to vector<6x1xf32>
    %41 = arith.subf %35, %40 : vector<6x1xf32>
    %42 = math.exp %41 : vector<6x1xf32>
    %43 = arith.mulf %42, %31 : vector<6x1xf32>
    %44 = tpu.iota {dimensions = array<i32: 0>} : vector<2x6xi32>
    %45 = tpu.iota {dimensions = array<i32: 1>} : vector<2x6xi32>
    %c3_i32 = arith.constant 3 : i32
    %46 = vector.broadcast %c3_i32 : i32 to vector<2x6xi32>
    %47 = arith.muli %44, %46 : vector<2x6xi32>
    %48 = arith.cmpi sge, %45, %47 : vector<2x6xi32>
    %c3_i32_29 = arith.constant 3 : i32
    %49 = vector.broadcast %c3_i32_29 : i32 to vector<2x6xi32>
    %50 = arith.addi %47, %49 : vector<2x6xi32>
    %51 = arith.cmpi slt, %45, %50 : vector<2x6xi32>
    %52 = arith.andi %48, %51 : vector<2x6xi1>
    %53 = arith.extui %52 : vector<2x6xi1> to vector<2x6xi32>
    %54 = arith.sitofp %53 : vector<2x6xi32> to vector<2x6xf32>
    %55 = vector.broadcast %43 : vector<6x1xf32> to vector<6x32xf32>
    %56 = arith.mulf %55, %0 : vector<6x32xf32>
    %cst_30 = arith.constant dense<0.000000e+00> : vector<2x32xf32>
    %57 = tpu.matmul %54, %56, %cst_30 {dimension_numbers = #tpu.dot_dimension_numbers<[1], [0], [0], [1], [0, 0, 1, 1], [], []>} : vector<2x6xf32>, vector<6x32xf32>, vector<2x32xf32> -> vector<2x32xf32>
    %cst_31 = arith.constant dense<0.000000e+00> : vector<2x1xf32>
    %58 = tpu.matmul %54, %43, %cst_31 {dimension_numbers = #tpu.dot_dimension_numbers<[1], [0], [0], [1], [0, 0, 1, 1], [], []>} : vector<2x6xf32>, vector<6x1xf32>, vector<2x1xf32> -> vector<2x1xf32>
    %cst_32 = arith.constant 1.000000e-10 : f32
    %59 = vector.broadcast %cst_32 : f32 to vector<2x1xf32>
    %60 = arith.addf %58, %59 : vector<2x1xf32>
    %61 = tpu.reciprocal %60 {approx = true} : vector<2x1xf32> -> vector<2x1xf32>
    %62 = vector.broadcast %61 : vector<2x1xf32> to vector<2x32xf32>
    %63 = arith.mulf %57, %62 : vector<2x32xf32>
    %c0_33 = arith.constant 0 : index
    %c0_34 = arith.constant 0 : index
    %64 = vector.load %arg10[%c0_33, %c0_34] : memref<32x32xf32, #tpu.memory_space<vmem>>, vector<32x32xf32>
    %cst_35 = arith.constant dense<0.000000e+00> : vector<2x32xf32>
    %65 = tpu.matmul %63, %64, %cst_35 {dimension_numbers = #tpu.dot_dimension_numbers<[1], [0], [0], [1], [0, 0, 1, 1], [], []>} : vector<2x32xf32>, vector<32x32xf32>, vector<2x32xf32> -> vector<2x32xf32>
    %c0_36 = arith.constant 0 : index
    %c0_37 = arith.constant 0 : index
    %66 = vector.load %arg11[%c0_36, %c0_37] : memref<1x32xf32, #tpu.memory_space<vmem>>, vector<1x32xf32>
    %67 = vector.broadcast %66 : vector<1x32xf32> to vector<2x32xf32>
    %68 = arith.addf %65, %67 : vector<2x32xf32>
    %cst_38 = arith.constant 0.000000e+00 : f32
    %69 = vector.broadcast %cst_38 : f32 to vector<2x32xf32>
    %70 = arith.maximumf %68, %69 : vector<2x32xf32>
    %c0_39 = arith.constant 0 : index
    %c0_40 = arith.constant 0 : index
    %71 = vector.load %arg12[%c0_39, %c0_40] : memref<2x32xf32, #tpu.memory_space<vmem>>, vector<2x32xf32>
    tpu.vector_store %arg12[%c0_39, %c0_40], %70 {strides = array<i32>} : memref<2x32xf32, #tpu.memory_space<vmem>>, vector<2x32xf32>,
    return
  }
}

module attributes {stable_mosaic.version = 11 : i64} {
  func.func @_att_kernel(%arg0: memref<24x32xf32, #tpu.memory_space<vmem>>, %arg1: memref<24x32xf32, #tpu.memory_space<vmem>>, %arg2: memref<24x1xf32, #tpu.memory_space<vmem>>, %arg3: memref<32x32xf32, #tpu.memory_space<vmem>>, %arg4: memref<1x32xf32, #tpu.memory_space<vmem>>, %arg5: memref<32x32xf32, #tpu.memory_space<vmem>>, %arg6: memref<32x32xf32, #tpu.memory_space<vmem>>, %arg7: memref<1x32xf32, #tpu.memory_space<vmem>>, %arg8: memref<1x32xf32, #tpu.memory_space<vmem>>, %arg9: memref<1x1xf32, #tpu.memory_space<vmem>>, %arg10: memref<32x32xf32, #tpu.memory_space<vmem>>, %arg11: memref<1x32xf32, #tpu.memory_space<vmem>>, %arg12: memref<6x32xf32, #tpu.memory_space<vmem>>) attributes {dimension_semantics = [], scalar_prefetch = 0 : i64, scratch_operands = 0 : i64, tpu.core_type = #tpu.core_type<tc>} {
    %c0 = arith.constant 0 : index
    %c0_0 = arith.constant 0 : index
    %0 = vector.load %arg0[%c0, %c0_0] : memref<24x32xf32, #tpu.memory_space<vmem>>, vector<24x32xf32>
    %c0_1 = arith.constant 0 : index
    %c0_2 = arith.constant 0 : index
    %1 = vector.load %arg1[%c0_1, %c0_2] : memref<24x32xf32, #tpu.memory_space<vmem>>, vector<24x32xf32>
    %c0_3 = arith.constant 0 : index
    %c0_4 = arith.constant 0 : index
    %2 = vector.load %arg3[%c0_3, %c0_4] : memref<32x32xf32, #tpu.memory_space<vmem>>, vector<32x32xf32>
    %c0_5 = arith.constant 0 : index
    %c0_6 = arith.constant 0 : index
    %3 = vector.load %arg4[%c0_5, %c0_6] : memref<1x32xf32, #tpu.memory_space<vmem>>, vector<1x32xf32>
    %cst = arith.constant dense<0.000000e+00> : vector<24x32xf32>
    %4 = tpu.matmul %0, %2, %cst {dimension_numbers = #tpu.dot_dimension_numbers<[1], [0], [0], [1], [0, 0, 1, 1], [], []>} : vector<24x32xf32>, vector<32x32xf32>, vector<24x32xf32> -> vector<24x32xf32>
    %5 = vector.broadcast %3 : vector<1x32xf32> to vector<24x32xf32>
    %6 = arith.addf %4, %5 : vector<24x32xf32>
    %cst_7 = arith.constant dense<0.000000e+00> : vector<24x32xf32>
    %7 = tpu.matmul %1, %2, %cst_7 {dimension_numbers = #tpu.dot_dimension_numbers<[1], [0], [0], [1], [0, 0, 1, 1], [], []>} : vector<24x32xf32>, vector<32x32xf32>, vector<24x32xf32> -> vector<24x32xf32>
    %8 = vector.broadcast %3 : vector<1x32xf32> to vector<24x32xf32>
    %9 = arith.addf %7, %8 : vector<24x32xf32>
    %c0_8 = arith.constant 0 : index
    %c0_9 = arith.constant 0 : index
    %10 = vector.load %arg5[%c0_8, %c0_9] : memref<32x32xf32, #tpu.memory_space<vmem>>, vector<32x32xf32>
    %cst_10 = arith.constant dense<0.000000e+00> : vector<24x32xf32>
    %11 = tpu.matmul %6, %10, %cst_10 {dimension_numbers = #tpu.dot_dimension_numbers<[1], [0], [0], [1], [0, 0, 1, 1], [], []>} : vector<24x32xf32>, vector<32x32xf32>, vector<24x32xf32> -> vector<24x32xf32>
    %c0_11 = arith.constant 0 : index
    %c0_12 = arith.constant 0 : index
    %12 = vector.load %arg6[%c0_11, %c0_12] : memref<32x32xf32, #tpu.memory_space<vmem>>, vector<32x32xf32>
    %cst_13 = arith.constant dense<0.000000e+00> : vector<24x32xf32>
    %13 = tpu.matmul %9, %12, %cst_13 {dimension_numbers = #tpu.dot_dimension_numbers<[1], [0], [0], [1], [0, 0, 1, 1], [], []>} : vector<24x32xf32>, vector<32x32xf32>, vector<24x32xf32> -> vector<24x32xf32>
    %14 = arith.addf %11, %13 : vector<24x32xf32>
    %c0_14 = arith.constant 0 : index
    %c0_15 = arith.constant 0 : index
    %15 = vector.load %arg7[%c0_14, %c0_15] : memref<1x32xf32, #tpu.memory_space<vmem>>, vector<1x32xf32>
    %16 = vector.broadcast %15 : vector<1x32xf32> to vector<24x32xf32>
    %17 = arith.addf %14, %16 : vector<24x32xf32>
    %cst_16 = arith.constant 0.000000e+00 : f32
    %18 = vector.broadcast %cst_16 : f32 to vector<24x32xf32>
    %19 = arith.cmpf oge, %17, %18 : vector<24x32xf32>
    %cst_17 = arith.constant 2.000000e-01 : f32
    %20 = vector.broadcast %cst_17 : f32 to vector<24x32xf32>
    %21 = arith.mulf %20, %17 : vector<24x32xf32>
    %22 = arith.select %19, %17, %21 : vector<24x32xi1>, vector<24x32xf32>
    %c0_18 = arith.constant 0 : index
    %c0_19 = arith.constant 0 : index
    %23 = vector.load %arg8[%c0_18, %c0_19] : memref<1x32xf32, #tpu.memory_space<vmem>>, vector<1x32xf32>
    %24 = vector.broadcast %23 : vector<1x32xf32> to vector<24x32xf32>
    %25 = arith.mulf %22, %24 : vector<24x32xf32>
    %cst_20 = arith.constant dense<0.000000e+00> : vector<24xf32>
    %26 = vector.multi_reduction <add>, %25, %cst_20 [1] : vector<24x32xf32> to vector<24xf32>
    %27 = vector.shape_cast %26 : vector<24xf32> to vector<24x1xf32>
    %c0_21 = arith.constant 0 : index
    %c0_22 = arith.constant 0 : index
    %28 = vector.load %arg9[%c0_21, %c0_22] : memref<1x1xf32, #tpu.memory_space<vmem>>, vector<1x1xf32>
    %29 = vector.broadcast %28 : vector<1x1xf32> to vector<24x1xf32>
    %30 = arith.addf %27, %29 : vector<24x1xf32>
    %c0_23 = arith.constant 0 : index
    %c0_24 = arith.constant 0 : index
    %31 = vector.load %arg2[%c0_23, %c0_24] : memref<24x1xf32, #tpu.memory_space<vmem>>, vector<24x1xf32>
    %cst_25 = arith.constant 0.000000e+00 : f32
    %32 = vector.broadcast %cst_25 : f32 to vector<24x1xf32>
    %33 = arith.cmpf ogt, %31, %32 : vector<24x1xf32>
    %cst_26 = arith.constant -1.000000e+30 : f32
    %34 = vector.broadcast %cst_26 : f32 to vector<24x1xf32>
    %35 = arith.select %33, %30, %34 : vector<24x1xi1>, vector<24x1xf32>
    %cst_27 = arith.constant dense<0xFF800000> : vector<1xf32>
    %36 = vector.multi_reduction <maximumf>, %35, %cst_27 [0] : vector<24x1xf32> to vector<1xf32>
    %37 = vector.shape_cast %36 : vector<1xf32> to vector<1x1xf32>
    %cst_28 = arith.constant 0.000000e+00 : f32
    %38 = vector.broadcast %cst_28 : f32 to vector<1x1xf32>
    %39 = arith.maximumf %37, %38 : vector<1x1xf32>
    %40 = vector.broadcast %39 : vector<1x1xf32> to vector<24x1xf32>
    %41 = arith.subf %35, %40 : vector<24x1xf32>
    %42 = math.exp %41 : vector<24x1xf32>
    %43 = arith.mulf %42, %31 : vector<24x1xf32>
    %44 = tpu.iota {dimensions = array<i32: 0>} : vector<6x24xi32>
    %45 = tpu.iota {dimensions = array<i32: 1>} : vector<6x24xi32>
    %c4_i32 = arith.constant 4 : i32
    %46 = vector.broadcast %c4_i32 : i32 to vector<6x24xi32>
    %47 = arith.muli %44, %46 : vector<6x24xi32>
    %48 = arith.cmpi sge, %45, %47 : vector<6x24xi32>
    %c4_i32_29 = arith.constant 4 : i32
    %49 = vector.broadcast %c4_i32_29 : i32 to vector<6x24xi32>
    %50 = arith.addi %47, %49 : vector<6x24xi32>
    %51 = arith.cmpi slt, %45, %50 : vector<6x24xi32>
    %52 = arith.andi %48, %51 : vector<6x24xi1>
    %53 = arith.extui %52 : vector<6x24xi1> to vector<6x24xi32>
    %54 = arith.sitofp %53 : vector<6x24xi32> to vector<6x24xf32>
    %55 = vector.broadcast %43 : vector<24x1xf32> to vector<24x32xf32>
    %56 = arith.mulf %55, %6 : vector<24x32xf32>
    %cst_30 = arith.constant dense<0.000000e+00> : vector<6x32xf32>
    %57 = tpu.matmul %54, %56, %cst_30 {dimension_numbers = #tpu.dot_dimension_numbers<[1], [0], [0], [1], [0, 0, 1, 1], [], []>} : vector<6x24xf32>, vector<24x32xf32>, vector<6x32xf32> -> vector<6x32xf32>
    %cst_31 = arith.constant dense<0.000000e+00> : vector<6x1xf32>
    %58 = tpu.matmul %54, %43, %cst_31 {dimension_numbers = #tpu.dot_dimension_numbers<[1], [0], [0], [1], [0, 0, 1, 1], [], []>} : vector<6x24xf32>, vector<24x1xf32>, vector<6x1xf32> -> vector<6x1xf32>
    %cst_32 = arith.constant 1.000000e-10 : f32
    %59 = vector.broadcast %cst_32 : f32 to vector<6x1xf32>
    %60 = arith.addf %58, %59 : vector<6x1xf32>
    %61 = tpu.reciprocal %60 {approx = true} : vector<6x1xf32> -> vector<6x1xf32>
    %62 = vector.broadcast %61 : vector<6x1xf32> to vector<6x32xf32>
    %63 = arith.mulf %57, %62 : vector<6x32xf32>
    %c0_33 = arith.constant 0 : index
    %c0_34 = arith.constant 0 : index
    %64 = vector.load %arg10[%c0_33, %c0_34] : memref<32x32xf32, #tpu.memory_space<vmem>>, vector<32x32xf32>
    %cst_35 = arith.constant dense<0.000000e+00> : vector<6x32xf32>
    %65 = tpu.matmul %63, %64, %cst_35 {dimension_numbers = #tpu.dot_dimension_numbers<[1], [0], [0], [1], [0, 0, 1, 1], [], []>} : vector<6x32xf32>, vector<32x32xf32>, vector<6x32xf32> -> vector<6x32xf32>
    %c0_36 = arith.constant 0 : index
    %c0_37 = arith.constant 0 : index
    %66 = vector.load %arg11[%c0_36, %c0_37] : memref<1x32xf32, #tpu.memory_space<vmem>>, vector<1x32xf32>
    %67 = vector.broadcast %66 : vector<1x32xf32> to vector<6x32xf32>
    %68 = arith.addf %65, %67 : vector<6x32xf32>
    %cst_38 = arith.constant 0.000000e+00 : f32
    %69 = vector.broadcast %cst_38 : f32 to vector<6x32xf32>
    %70 = arith.maximumf %68, %69 : vector<6x32xf32>
    %c0_39 = arith.constant 0 : index
    %c0_40 = arith.constant 0 : index
    %71 = vector.load %arg12[%c0_39, %c0_40] : memref<6x32xf32, #tpu.memory_space<vmem>>, vector<6x32xf32>
    tpu.vector_store %arg12[%c0_39, %c0_40], %70 {strides = array<i32>} : memref<6x32xf32, #tpu.memory_space<vmem>>, vector<6x32xf32>,
    return
  }
}

module attributes {stable_mosaic.version = 11 : i64} {
  func.func @_mlp2_kernel(%arg0: memref<2x160xf32, #tpu.memory_space<vmem>>, %arg1: memref<160x96xf32, #tpu.memory_space<vmem>>, %arg2: memref<1x96xf32, #tpu.memory_space<vmem>>, %arg3: memref<96x32xf32, #tpu.memory_space<vmem>>, %arg4: memref<1x32xf32, #tpu.memory_space<vmem>>, %arg5: memref<2x32xf32, #tpu.memory_space<vmem>>) attributes {dimension_semantics = [], scalar_prefetch = 0 : i64, scratch_operands = 0 : i64, tpu.core_type = #tpu.core_type<tc>} {
    %c0 = arith.constant 0 : index
    %c0_0 = arith.constant 0 : index
    %0 = vector.load %arg0[%c0, %c0_0] : memref<2x160xf32, #tpu.memory_space<vmem>>, vector<2x160xf32>
    %c0_1 = arith.constant 0 : index
    %c0_2 = arith.constant 0 : index
    %1 = vector.load %arg1[%c0_1, %c0_2] : memref<160x96xf32, #tpu.memory_space<vmem>>, vector<160x96xf32>
    %cst = arith.constant dense<0.000000e+00> : vector<2x96xf32>
    %2 = tpu.matmul %0, %1, %cst {dimension_numbers = #tpu.dot_dimension_numbers<[1], [0], [0], [1], [0, 0, 1, 1], [], []>} : vector<2x160xf32>, vector<160x96xf32>, vector<2x96xf32> -> vector<2x96xf32>
    %c0_3 = arith.constant 0 : index
    %c0_4 = arith.constant 0 : index
    %3 = vector.load %arg2[%c0_3, %c0_4] : memref<1x96xf32, #tpu.memory_space<vmem>>, vector<1x96xf32>
    %4 = vector.broadcast %3 : vector<1x96xf32> to vector<2x96xf32>
    %5 = arith.addf %2, %4 : vector<2x96xf32>
    %cst_5 = arith.constant 0.000000e+00 : f32
    %6 = vector.broadcast %cst_5 : f32 to vector<2x96xf32>
    %7 = arith.maximumf %5, %6 : vector<2x96xf32>
    %c0_6 = arith.constant 0 : index
    %c0_7 = arith.constant 0 : index
    %8 = vector.load %arg3[%c0_6, %c0_7] : memref<96x32xf32, #tpu.memory_space<vmem>>, vector<96x32xf32>
    %cst_8 = arith.constant dense<0.000000e+00> : vector<2x32xf32>
    %9 = tpu.matmul %7, %8, %cst_8 {dimension_numbers = #tpu.dot_dimension_numbers<[1], [0], [0], [1], [0, 0, 1, 1], [], []>} : vector<2x96xf32>, vector<96x32xf32>, vector<2x32xf32> -> vector<2x32xf32>
    %c0_9 = arith.constant 0 : index
    %c0_10 = arith.constant 0 : index
    %10 = vector.load %arg4[%c0_9, %c0_10] : memref<1x32xf32, #tpu.memory_space<vmem>>, vector<1x32xf32>
    %11 = vector.broadcast %10 : vector<1x32xf32> to vector<2x32xf32>
    %12 = arith.addf %9, %11 : vector<2x32xf32>
    %cst_11 = arith.constant 0.000000e+00 : f32
    %13 = vector.broadcast %cst_11 : f32 to vector<2x32xf32>
    %14 = arith.maximumf %12, %13 : vector<2x32xf32>
    %c0_12 = arith.constant 0 : index
    %c0_13 = arith.constant 0 : index
    %15 = vector.load %arg5[%c0_12, %c0_13] : memref<2x32xf32, #tpu.memory_space<vmem>>, vector<2x32xf32>
    tpu.vector_store %arg5[%c0_12, %c0_13], %14 {strides = array<i32>} : memref<2x32xf32, #tpu.memory_space<vmem>>, vector<2x32xf32>,
    return
  }
}

module attributes {stable_mosaic.version = 11 : i64} {
  func.func @_att_kernel(%arg0: memref<6x32xf32, #tpu.memory_space<vmem>>, %arg1: memref<6x32xf32, #tpu.memory_space<vmem>>, %arg2: memref<6x1xf32, #tpu.memory_space<vmem>>, %arg3: memref<32x32xf32, #tpu.memory_space<vmem>>, %arg4: memref<1x32xf32, #tpu.memory_space<vmem>>, %arg5: memref<32x32xf32, #tpu.memory_space<vmem>>, %arg6: memref<32x32xf32, #tpu.memory_space<vmem>>, %arg7: memref<1x32xf32, #tpu.memory_space<vmem>>, %arg8: memref<1x32xf32, #tpu.memory_space<vmem>>, %arg9: memref<1x1xf32, #tpu.memory_space<vmem>>, %arg10: memref<32x32xf32, #tpu.memory_space<vmem>>, %arg11: memref<1x32xf32, #tpu.memory_space<vmem>>, %arg12: memref<2x32xf32, #tpu.memory_space<vmem>>) attributes {dimension_semantics = [], scalar_prefetch = 0 : i64, scratch_operands = 0 : i64, tpu.core_type = #tpu.core_type<tc>} {
    %c0 = arith.constant 0 : index
    %c0_0 = arith.constant 0 : index
    %0 = vector.load %arg0[%c0, %c0_0] : memref<6x32xf32, #tpu.memory_space<vmem>>, vector<6x32xf32>
    %c0_1 = arith.constant 0 : index
    %c0_2 = arith.constant 0 : index
    %1 = vector.load %arg1[%c0_1, %c0_2] : memref<6x32xf32, #tpu.memory_space<vmem>>, vector<6x32xf32>
    %c0_3 = arith.constant 0 : index
    %c0_4 = arith.constant 0 : index
    %2 = vector.load %arg3[%c0_3, %c0_4] : memref<32x32xf32, #tpu.memory_space<vmem>>, vector<32x32xf32>
    %c0_5 = arith.constant 0 : index
    %c0_6 = arith.constant 0 : index
    %3 = vector.load %arg4[%c0_5, %c0_6] : memref<1x32xf32, #tpu.memory_space<vmem>>, vector<1x32xf32>
    %cst = arith.constant dense<0.000000e+00> : vector<6x32xf32>
    %4 = tpu.matmul %0, %2, %cst {dimension_numbers = #tpu.dot_dimension_numbers<[1], [0], [0], [1], [0, 0, 1, 1], [], []>} : vector<6x32xf32>, vector<32x32xf32>, vector<6x32xf32> -> vector<6x32xf32>
    %5 = vector.broadcast %3 : vector<1x32xf32> to vector<6x32xf32>
    %6 = arith.addf %4, %5 : vector<6x32xf32>
    %cst_7 = arith.constant dense<0.000000e+00> : vector<6x32xf32>
    %7 = tpu.matmul %1, %2, %cst_7 {dimension_numbers = #tpu.dot_dimension_numbers<[1], [0], [0], [1], [0, 0, 1, 1], [], []>} : vector<6x32xf32>, vector<32x32xf32>, vector<6x32xf32> -> vector<6x32xf32>
    %8 = vector.broadcast %3 : vector<1x32xf32> to vector<6x32xf32>
    %9 = arith.addf %7, %8 : vector<6x32xf32>
    %c0_8 = arith.constant 0 : index
    %c0_9 = arith.constant 0 : index
    %10 = vector.load %arg5[%c0_8, %c0_9] : memref<32x32xf32, #tpu.memory_space<vmem>>, vector<32x32xf32>
    %cst_10 = arith.constant dense<0.000000e+00> : vector<6x32xf32>
    %11 = tpu.matmul %6, %10, %cst_10 {dimension_numbers = #tpu.dot_dimension_numbers<[1], [0], [0], [1], [0, 0, 1, 1], [], []>} : vector<6x32xf32>, vector<32x32xf32>, vector<6x32xf32> -> vector<6x32xf32>
    %c0_11 = arith.constant 0 : index
    %c0_12 = arith.constant 0 : index
    %12 = vector.load %arg6[%c0_11, %c0_12] : memref<32x32xf32, #tpu.memory_space<vmem>>, vector<32x32xf32>
    %cst_13 = arith.constant dense<0.000000e+00> : vector<6x32xf32>
    %13 = tpu.matmul %9, %12, %cst_13 {dimension_numbers = #tpu.dot_dimension_numbers<[1], [0], [0], [1], [0, 0, 1, 1], [], []>} : vector<6x32xf32>, vector<32x32xf32>, vector<6x32xf32> -> vector<6x32xf32>
    %14 = arith.addf %11, %13 : vector<6x32xf32>
    %c0_14 = arith.constant 0 : index
    %c0_15 = arith.constant 0 : index
    %15 = vector.load %arg7[%c0_14, %c0_15] : memref<1x32xf32, #tpu.memory_space<vmem>>, vector<1x32xf32>
    %16 = vector.broadcast %15 : vector<1x32xf32> to vector<6x32xf32>
    %17 = arith.addf %14, %16 : vector<6x32xf32>
    %cst_16 = arith.constant 0.000000e+00 : f32
    %18 = vector.broadcast %cst_16 : f32 to vector<6x32xf32>
    %19 = arith.cmpf oge, %17, %18 : vector<6x32xf32>
    %cst_17 = arith.constant 2.000000e-01 : f32
    %20 = vector.broadcast %cst_17 : f32 to vector<6x32xf32>
    %21 = arith.mulf %20, %17 : vector<6x32xf32>
    %22 = arith.select %19, %17, %21 : vector<6x32xi1>, vector<6x32xf32>
    %c0_18 = arith.constant 0 : index
    %c0_19 = arith.constant 0 : index
    %23 = vector.load %arg8[%c0_18, %c0_19] : memref<1x32xf32, #tpu.memory_space<vmem>>, vector<1x32xf32>
    %24 = vector.broadcast %23 : vector<1x32xf32> to vector<6x32xf32>
    %25 = arith.mulf %22, %24 : vector<6x32xf32>
    %cst_20 = arith.constant dense<0.000000e+00> : vector<6xf32>
    %26 = vector.multi_reduction <add>, %25, %cst_20 [1] : vector<6x32xf32> to vector<6xf32>
    %27 = vector.shape_cast %26 : vector<6xf32> to vector<6x1xf32>
    %c0_21 = arith.constant 0 : index
    %c0_22 = arith.constant 0 : index
    %28 = vector.load %arg9[%c0_21, %c0_22] : memref<1x1xf32, #tpu.memory_space<vmem>>, vector<1x1xf32>
    %29 = vector.broadcast %28 : vector<1x1xf32> to vector<6x1xf32>
    %30 = arith.addf %27, %29 : vector<6x1xf32>
    %c0_23 = arith.constant 0 : index
    %c0_24 = arith.constant 0 : index
    %31 = vector.load %arg2[%c0_23, %c0_24] : memref<6x1xf32, #tpu.memory_space<vmem>>, vector<6x1xf32>
    %cst_25 = arith.constant 0.000000e+00 : f32
    %32 = vector.broadcast %cst_25 : f32 to vector<6x1xf32>
    %33 = arith.cmpf ogt, %31, %32 : vector<6x1xf32>
    %cst_26 = arith.constant -1.000000e+30 : f32
    %34 = vector.broadcast %cst_26 : f32 to vector<6x1xf32>
    %35 = arith.select %33, %30, %34 : vector<6x1xi1>, vector<6x1xf32>
    %cst_27 = arith.constant dense<0xFF800000> : vector<1xf32>
    %36 = vector.multi_reduction <maximumf>, %35, %cst_27 [0] : vector<6x1xf32> to vector<1xf32>
    %37 = vector.shape_cast %36 : vector<1xf32> to vector<1x1xf32>
    %cst_28 = arith.constant 0.000000e+00 : f32
    %38 = vector.broadcast %cst_28 : f32 to vector<1x1xf32>
    %39 = arith.maximumf %37, %38 : vector<1x1xf32>
    %40 = vector.broadcast %39 : vector<1x1xf32> to vector<6x1xf32>
    %41 = arith.subf %35, %40 : vector<6x1xf32>
    %42 = math.exp %41 : vector<6x1xf32>
    %43 = arith.mulf %42, %31 : vector<6x1xf32>
    %44 = tpu.iota {dimensions = array<i32: 0>} : vector<2x6xi32>
    %45 = tpu.iota {dimensions = array<i32: 1>} : vector<2x6xi32>
    %c3_i32 = arith.constant 3 : i32
    %46 = vector.broadcast %c3_i32 : i32 to vector<2x6xi32>
    %47 = arith.muli %44, %46 : vector<2x6xi32>
    %48 = arith.cmpi sge, %45, %47 : vector<2x6xi32>
    %c3_i32_29 = arith.constant 3 : i32
    %49 = vector.broadcast %c3_i32_29 : i32 to vector<2x6xi32>
    %50 = arith.addi %47, %49 : vector<2x6xi32>
    %51 = arith.cmpi slt, %45, %50 : vector<2x6xi32>
    %52 = arith.andi %48, %51 : vector<2x6xi1>
    %53 = arith.extui %52 : vector<2x6xi1> to vector<2x6xi32>
    %54 = arith.sitofp %53 : vector<2x6xi32> to vector<2x6xf32>
    %55 = vector.broadcast %43 : vector<6x1xf32> to vector<6x32xf32>
    %56 = arith.mulf %55, %6 : vector<6x32xf32>
    %cst_30 = arith.constant dense<0.000000e+00> : vector<2x32xf32>
    %57 = tpu.matmul %54, %56, %cst_30 {dimension_numbers = #tpu.dot_dimension_numbers<[1], [0], [0], [1], [0, 0, 1, 1], [], []>} : vector<2x6xf32>, vector<6x32xf32>, vector<2x32xf32> -> vector<2x32xf32>
    %cst_31 = arith.constant dense<0.000000e+00> : vector<2x1xf32>
    %58 = tpu.matmul %54, %43, %cst_31 {dimension_numbers = #tpu.dot_dimension_numbers<[1], [0], [0], [1], [0, 0, 1, 1], [], []>} : vector<2x6xf32>, vector<6x1xf32>, vector<2x1xf32> -> vector<2x1xf32>
    %cst_32 = arith.constant 1.000000e-10 : f32
    %59 = vector.broadcast %cst_32 : f32 to vector<2x1xf32>
    %60 = arith.addf %58, %59 : vector<2x1xf32>
    %61 = tpu.reciprocal %60 {approx = true} : vector<2x1xf32> -> vector<2x1xf32>
    %62 = vector.broadcast %61 : vector<2x1xf32> to vector<2x32xf32>
    %63 = arith.mulf %57, %62 : vector<2x32xf32>
    %c0_33 = arith.constant 0 : index
    %c0_34 = arith.constant 0 : index
    %64 = vector.load %arg10[%c0_33, %c0_34] : memref<32x32xf32, #tpu.memory_space<vmem>>, vector<32x32xf32>
    %cst_35 = arith.constant dense<0.000000e+00> : vector<2x32xf32>
    %65 = tpu.matmul %63, %64, %cst_35 {dimension_numbers = #tpu.dot_dimension_numbers<[1], [0], [0], [1], [0, 0, 1, 1], [], []>} : vector<2x32xf32>, vector<32x32xf32>, vector<2x32xf32> -> vector<2x32xf32>
    %c0_36 = arith.constant 0 : index
    %c0_37 = arith.constant 0 : index
    %66 = vector.load %arg11[%c0_36, %c0_37] : memref<1x32xf32, #tpu.memory_space<vmem>>, vector<1x32xf32>
    %67 = vector.broadcast %66 : vector<1x32xf32> to vector<2x32xf32>
    %68 = arith.addf %65, %67 : vector<2x32xf32>
    %cst_38 = arith.constant 0.000000e+00 : f32
    %69 = vector.broadcast %cst_38 : f32 to vector<2x32xf32>
    %70 = arith.maximumf %68, %69 : vector<2x32xf32>
    %c0_39 = arith.constant 0 : index
    %c0_40 = arith.constant 0 : index
    %71 = vector.load %arg12[%c0_39, %c0_40] : memref<2x32xf32, #tpu.memory_space<vmem>>, vector<2x32xf32>
    tpu.vector_store %arg12[%c0_39, %c0_40], %70 {strides = array<i32>} : memref<2x32xf32, #tpu.memory_space<vmem>>, vector<2x32xf32>,
    return
  }
}

</mosaic_0001>

<llo_original>
// kernel: mul.66
$region0: #{mul.66}
  #allocation0 [shape = 's32[1]{0}', space=sflag, size = 0x4, scoped, tag = 'scoped memory for mul.66']
  %s0 = inlined_call_operand.vmem [shape: f32[2,32], index: 0, kind: input, shape index: {}]
  %s1 = inlined_call_operand.vmem [shape: f32[2,32], index: 1, kind: input, shape index: {}]
  %s2 = inlined_call_operand.vmem [shape: f32[2,32], index: 2, kind: output, shape index: {}]
  %v3 = vld [vmem:[%s0] sm:$0x3]
  %v4 = vld [vmem:[%s1] sm:$0x3]
  %5 = xla_tuple %v3, %v4
  %6 = xla_tuple %5
  %v7 = vmul.f32 %v3, %v4
  %8 = xla_tuple %v7
  %9 = vst [vmem:[%s2] sm:$0x3] %v7

// kernel: user_model_forward.10
$region0: #{user_model_forward.10}
  #allocation0 [shape = 'u32[]', space=smem, size = 0x4, offset = 0x4, fixed_abs, tag = 'smem constant byte address 0x4 - core index']
  #allocation1 [shape = 'u32[144,128]{1,0:T(1,128)}', space=vmem, size = 0x12000, scoped, tag = 'internal scratch']
  %s0 = inlined_call_operand.vmem [shape: f32[58,64], index: 0, kind: input, shape index: {}]
  %s1 = inlined_call_operand.vmem [shape: f32[64,32], index: 1, kind: input, shape index: {}]
  %s2 = inlined_call_operand.vmem [shape: f32[1,32], index: 2, kind: input, shape index: {}]
  %s3 = inlined_call_operand.vmem [shape: f32[32,32], index: 3, kind: input, shape index: {}]
  %s4 = inlined_call_operand.vmem [shape: f32[1,32], index: 4, kind: input, shape index: {}]
  %s5 = inlined_call_operand.vmem [shape: f32[32,128], index: 5, kind: input, shape index: {}]
  %s6 = inlined_call_operand.vmem [shape: f32[1,128], index: 6, kind: input, shape index: {}]
  %s7 = inlined_call_operand.vmem [shape: f32[58,32], index: 7, kind: output, shape index: {0}]
  %s8 = inlined_call_operand.vmem [shape: f32[34,128], index: 8, kind: output, shape index: {1}]
  %9 = xla_tuple %s7, %s8
  %s10 = sld [smem:[#allocation0]]
  $region46: #{user_model_forward.10} parent=0
    _
  %s12 = ssub.s32 1, %s10
  %s13 = scalar_select 0, %s12, %s10
  // Predicated region
  $region2: #{user_model_forward.10} parent=0 // pred_check
    _
  $region3: #{user_model_forward.10} parent=0 // pred_check_branch
    %15 = sbr.rel (0) target = $region5
  $region4: #{user_model_forward.10} parent=0 // pred_region
    _
  $region5: #{user_model_forward.10} parent=0 // pred_fallthru
    _
  // Predicated region
  $region6: #{user_model_forward.10} parent=0 // pred_check
    _
  $region7: #{user_model_forward.10} parent=0 // pred_check_branch
    %17 = sbr.rel (0) target = $region9
  $region8: #{user_model_forward.10} parent=0 // pred_region
    _
  $region9: #{user_model_forward.10} parent=0 // pred_fallthru
    _
  // Predicated region
  $region10: #{user_model_forward.10} parent=0 // pred_check
    _
  $region11: #{user_model_forward.10} parent=0 // pred_check_branch
    %19 = sbr.rel (0) target = $region13
  $region12: #{user_model_forward.10} parent=0 // pred_region
    _
  $region13: #{user_model_forward.10} parent=0 // pred_fallthru
    _
  // Predicated region
  $region14: #{user_model_forward.10} parent=0 // pred_check
    _
  $region15: #{user_model_forward.10} parent=0 // pred_check_branch
    %21 = sbr.rel (0) target = $region17
  $region16: #{user_model_forward.10} parent=0 // pred_region
    _
  $region17: #{user_model_forward.10} parent=0 // pred_fallthru
    _
  // Predicated region
  $region18: #{user_model_forward.10} parent=0 // pred_check
    _
  $region19: #{user_model_forward.10} parent=0 // pred_check_branch
    %23 = sbr.rel (0) target = $region21
  $region20: #{user_model_forward.10} parent=0 // pred_region
    _
  $region21: #{user_model_forward.10} parent=0 // pred_fallthru
    _
  // Predicated region
  $region22: #{user_model_forward.10} parent=0 // pred_check
    _
  $region23: #{user_model_forward.10} parent=0 // pred_check_branch
    %25 = sbr.rel (0) target = $region25
  $region24: #{user_model_forward.10} parent=0 // pred_region
    _
  $region25: #{user_model_forward.10} parent=0 // pred_fallthru
    _
  // Predicated region
  $region26: #{user_model_forward.10} parent=0 // pred_check
    _
  $region27: #{user_model_forward.10} parent=0 // pred_check_branch
    %27 = sbr.rel (0) target = $region29
  $region28: #{user_model_forward.10} parent=0 // pred_region
    _
  $region29: #{user_model_forward.10} parent=0 // pred_fallthru
    _
  %v28 = vld [vmem:[%s0] sm:$0xff]
  %v29 = vld [vmem:[%s0 + $0x8] sm:$0xff]
  %v30 = vld [vmem:[%s0 + $0x10] sm:$0xff]
  %v31 = vld [vmem:[%s0 + $0x18] sm:$0xff]
  %v32 = vld [vmem:[%s0 + $0x20] sm:$0xff]
  %v33 = vld [vmem:[%s0 + $0x28] sm:$0xff]
  %v34 = vld [vmem:[%s0 + $0x30] sm:$0xff]
  %v35 = vld [vmem:[%s0 + $0x38] sm:$0x3]
  %v36 = vld [vmem:[%s1] sm:$0xff]
  %v37 = vld [vmem:[%s1 + $0x8] sm:$0xff]
  %v38 = vld [vmem:[%s1 + $0x10] sm:$0xff]
  %v39 = vld [vmem:[%s1 + $0x18] sm:$0xff]
  %v40 = vld [vmem:[%s1 + $0x20] sm:$0xff]
  %v41 = vld [vmem:[%s1 + $0x28] sm:$0xff]
  %v42 = vld [vmem:[%s1 + $0x30] sm:$0xff]
  %v43 = vld [vmem:[%s1 + $0x38] sm:$0xff]
  %v44 = vld [vmem:[%s2] sm:$0x1]
  %v46 = vlaneseq
  %v47 = vshrl.u32 %v46, 7
  %v48 = vsub.s32 0, %v47
  %v49 = vrot.slane %v44, %v48
  %vm51 = vcmask 523264
  %v53 = vsel %vm51, %v28, 0
  %v56 = vsel %vm51, %v29, 0
  %v59 = vsel %vm51, %v30, 0
  %v62 = vsel %vm51, %v31, 0
  %v65 = vsel %vm51, %v32, 0
  %v68 = vsel %vm51, %v33, 0
  %v71 = vsel %vm51, %v34, 0
  %v74 = vsel %vm51, %v35, 0
  %76 = vmatprep.subr.mxu0 0.0
  %77 = vmatpush1.msra.mxu0 %v36
  %78 = vmatprep.subr.mxu0 0.0
  %79 = vmatpush1.msra.mxu0 %v37
  %80 = vmatprep.subr.mxu0 0.0
  %81 = vmatpush1.msra.mxu0 %v38
  %82 = vmatprep.subr.mxu0 0.0
  %83 = vmatpush1.msra.mxu0 %v39
  %84 = vmatprep.subr.mxu0 0.0
  %85 = vmatpush1.msra.mxu0 %v40
  %86 = vmatprep.subr.mxu0 0.0
  %87 = vmatpush1.msra.mxu0 %v41
  %88 = vmatprep.subr.mxu0 0.0
  %89 = vmatpush1.msra.mxu0 %v42
  %90 = vmatprep.subr.mxu0 0.0
  %91 = vmatpush1.msra.mxu0 %v43
  %92 = vmatprep.subr.mxu0 0.0
  %93 = vmatpush1.msra.mxu0 0.0
  %94 = vmatprep.subr.mxu0 0.0
  %95 = vmatpush1.msra.mxu0 0.0
  %96 = vmatprep.subr.mxu0 0.0
  %97 = vmatpush1.msra.mxu0 0.0
  %98 = vmatprep.subr.mxu0 0.0
  %99 = vmatpush1.msra.mxu0 0.0
  %100 = vmatprep.subr.mxu0 0.0
  %101 = vmatpush1.msra.mxu0 0.0
  %102 = vmatprep.subr.mxu0 0.0
  %103 = vmatpush1.msra.mxu0 0.0
  %104 = vmatprep.subr.mxu0 0.0
  %105 = vmatpush1.msra.mxu0 0.0
  %106 = vmatprep.subr.mxu0 0.0
  %107 = vmatpush1.msra.mxu0 0.0
  %108 = vmatprep.subr.mxu0 0.0
  %109 = vmatpush1.msra.mxu0 0.0
  %110 = vmatprep.subr.mxu0 0.0
  %111 = vmatpush1.msra.mxu0 0.0
  %112 = vmatprep.subr.mxu0 0.0
  %113 = vmatpush1.msra.mxu0 0.0
  %114 = vmatprep.subr.mxu0 0.0
  %115 = vmatpush1.msra.mxu0 0.0
  %116 = vmatprep.subr.mxu0 0.0
  %117 = vmatpush1.msra.mxu0 0.0
  %118 = vmatprep.subr.mxu0 0.0
  %119 = vmatpush1.msra.mxu0 0.0
  %120 = vmatprep.subr.mxu0 0.0
  %121 = vmatpush1.msra.mxu0 0.0
  %122 = vmatprep.subr.mxu0 0.0
  %123 = vmatpush1.msra.mxu0 0.0
  %124 = vmatprep.subr.mxu0 0.0
  %125 = vmatpush1.msra.mxu0 0.0
  %126 = vmatprep.subr.mxu0 0.0
  %127 = vmatpush1.msra.mxu0 0.0
  %128 = vmatprep.subr.mxu0 0.0
  %129 = vmatpush1.msra.mxu0 0.0
  %130 = vmatprep.subr.mxu0 0.0
  %131 = vmatpush1.msra.mxu0 0.0
  %132 = vmatprep.subr.mxu0 0.0
  %133 = vmatpush1.msra.mxu0 0.0
  %134 = vmatprep.subr.mxu0 0.0
  %135 = vmatpush1.msra.mxu0 0.0
  %136 = vmatprep.subr.mxu0 0.0
  %137 = vmatpush1.msra.mxu0 0.0
  %138 = vmatprep.subr.mxu0 0.0
  %139 = vmatpush1.msra.mxu0 0.0
  %140 = vmatprep.mubr.f32.mxu0 0.0
  %141 = vmatmul.mubr.f32.gmra.mrb[0].mxu0 %v53
  %v142 = vpop.f32.mrb[0].mxu0
  %v143 = vadd.f32 %v49, %v142
  %v144 = vpop.f32.mrb[0].mxu0
  %145 = vmatprep.mubr.f32.mxu0 0.0
  %146 = vmatmul.mubr.f32.gmra.mrb[0].mxu0 %v56
  %v147 = vpop.f32.mrb[0].mxu0
  %v148 = vadd.f32 %v49, %v147
  %v149 = vpop.f32.mrb[0].mxu0
  %150 = vmatprep.mubr.f32.mxu0 0.0
  %151 = vmatmul.mubr.f32.gmra.mrb[0].mxu0 %v59
  %v152 = vpop.f32.mrb[0].mxu0
  %v153 = vadd.f32 %v49, %v152
  %v154 = vpop.f32.mrb[0].mxu0
  %155 = vmatprep.mubr.f32.mxu0 0.0
  %156 = vmatmul.mubr.f32.gmra.mrb[0].mxu0 %v62
  %v157 = vpop.f32.mrb[0].mxu0
  %v158 = vadd.f32 %v49, %v157
  %v159 = vpop.f32.mrb[0].mxu0
  %160 = vmatprep.mubr.f32.mxu0 0.0
  %161 = vmatmul.mubr.f32.gmra.mrb[0].mxu0 %v65
  %v162 = vpop.f32.mrb[0].mxu0
  %v163 = vadd.f32 %v49, %v162
  %v164 = vpop.f32.mrb[0].mxu0
  %165 = vmatprep.mubr.f32.mxu0 0.0
  %166 = vmatmul.mubr.f32.gmra.mrb[0].mxu0 %v68
  %v167 = vpop.f32.mrb[0].mxu0
  %v168 = vadd.f32 %v49, %v167
  %v169 = vpop.f32.mrb[0].mxu0
  %170 = vmatprep.mubr.f32.mxu0 0.0
  %171 = vmatmul.mubr.f32.gmra.mrb[0].mxu0 %v71
  %v172 = vpop.f32.mrb[0].mxu0
  %v173 = vadd.f32 %v49, %v172
  %v174 = vpop.f32.mrb[0].mxu0
  %175 = vmatprep.mubr.f32.mxu0 0.0
  %176 = vmatmul.mubr.f32.gmra.mrb[0].mxu0 %v74
  %v177 = vpop.f32.mrb[0].mxu0
  %v178 = vadd.f32 %v49, %v177
  %v179 = vpop.f32.mrb[0].mxu0
  %180 = vdwg.mxu0
  %vm181 = vcmp.ge.f32.partialorder %v143, 0.0
  %vm182 = vcmp.ge.f32.partialorder %v148, 0.0
  %vm183 = vcmp.ge.f32.partialorder %v153, 0.0
  %vm184 = vcmp.ge.f32.partialorder %v158, 0.0
  %vm185 = vcmp.ge.f32.partialorder %v163, 0.0
  %vm186 = vcmp.ge.f32.partialorder %v168, 0.0
  %vm187 = vcmp.ge.f32.partialorder %v173, 0.0
  %vm188 = vcmp.ge.f32.partialorder %v178, 0.0
  %v189 = vmul.f32 %v143, 0.2
  %v190 = vmul.f32 %v148, 0.2
  %v191 = vmul.f32 %v153, 0.2
  %v192 = vmul.f32 %v158, 0.2
  %v193 = vmul.f32 %v163, 0.2
  %v194 = vmul.f32 %v168, 0.2
  %v195 = vmul.f32 %v173, 0.2
  %v196 = vmul.f32 %v178, 0.2
  %v197 = vsel %vm181, %v143, %v189
  %v198 = vsel %vm182, %v148, %v190
  %v199 = vsel %vm183, %v153, %v191
  %v200 = vsel %vm184, %v158, %v192
  %v201 = vsel %vm185, %v163, %v193
  %v202 = vsel %vm186, %v168, %v194
  %v203 = vsel %vm187, %v173, %v195
  %v204 = vsel %vm188, %v178, %v196
  %v205 = vld [vmem:[%s3] sm:$0xff]
  %v206 = vld [vmem:[%s3 + $0x8] sm:$0xff]
  %v207 = vld [vmem:[%s3 + $0x10] sm:$0xff]
  %v208 = vld [vmem:[%s3 + $0x18] sm:$0xff]
  %v209 = vld [vmem:[%s4] sm:$0x1]
  %v211 = vlaneseq
  %v212 = vshrl.u32 %v211, 7
  %v213 = vsub.s32 0, %v212
  %v214 = vrot.slane %v209, %v213
  %vm216 = vcmask 261120
  %v218 = vsel %vm216, %v197, 0
  %v221 = vsel %vm216, %v198, 0
  %v224 = vsel %vm216, %v199, 0
  %v227 = vsel %vm216, %v200, 0
  %v230 = vsel %vm216, %v201, 0
  %v233 = vsel %vm216, %v202, 0
  %v236 = vsel %vm216, %v203, 0
  %v239 = vsel %vm216, %v204, 0
  %241 = vmatprep.subr.mxu0 0.0
  %242 = vmatpush1.msra.mxu0 %v205
  %243 = vmatprep.subr.mxu0 0.0
  %244 = vmatpush1.msra.mxu0 %v206
  %245 = vmatprep.subr.mxu0 0.0
  %246 = vmatpush1.msra.mxu0 %v207
  %247 = vmatprep.subr.mxu0 0.0
  %248 = vmatpush1.msra.mxu0 %v208
  %249 = vmatprep.subr.mxu0 0.0
  %250 = vmatpush1.msra.mxu0 0.0
  %251 = vmatprep.subr.mxu0 0.0
  %252 = vmatpush1.msra.mxu0 0.0
  %253 = vmatprep.subr.mxu0 0.0
  %254 = vmatpush1.msra.mxu0 0.0
  %255 = vmatprep.subr.mxu0 0.0
  %256 = vmatpush1.msra.mxu0 0.0
  %257 = vmatprep.subr.mxu0 0.0
  %258 = vmatpush1.msra.mxu0 0.0
  %259 = vmatprep.subr.mxu0 0.0
  %260 = vmatpush1.msra.mxu0 0.0
  %261 = vmatprep.subr.mxu0 0.0
  %262 = vmatpush1.msra.mxu0 0.0
  %263 = vmatprep.subr.mxu0 0.0
  %264 = vmatpush1.msra.mxu0 0.0
  %265 = vmatprep.subr.mxu0 0.0
  %266 = vmatpush1.msra.mxu0 0.0
  %267 = vmatprep.subr.mxu0 0.0
  %268 = vmatpush1.msra.mxu0 0.0
  %269 = vmatprep.subr.mxu0 0.0
  %270 = vmatpush1.msra.mxu0 0.0
  %271 = vmatprep.subr.mxu0 0.0
  %272 = vmatpush1.msra.mxu0 0.0
  %273 = vmatprep.subr.mxu0 0.0
  %274 = vmatpush1.msra.mxu0 0.0
  %275 = vmatprep.subr.mxu0 0.0
  %276 = vmatpush1.msra.mxu0 0.0
  %277 = vmatprep.subr.mxu0 0.0
  %278 = vmatpush1.msra.mxu0 0.0
  %279 = vmatprep.subr.mxu0 0.0
  %280 = vmatpush1.msra.mxu0 0.0
  %281 = vmatprep.subr.mxu0 0.0
  %282 = vmatpush1.msra.mxu0 0.0
  %283 = vmatprep.subr.mxu0 0.0
  %284 = vmatpush1.msra.mxu0 0.0
  %285 = vmatprep.subr.mxu0 0.0
  %286 = vmatpush1.msra.mxu0 0.0
  %287 = vmatprep.subr.mxu0 0.0
  %288 = vmatpush1.msra.mxu0 0.0
  %289 = vmatprep.subr.mxu0 0.0
  %290 = vmatpush1.msra.mxu0 0.0
  %291 = vmatprep.subr.mxu0 0.0
  %292 = vmatpush1.msra.mxu0 0.0
  %293 = vmatprep.subr.mxu0 0.0
  %294 = vmatpush1.msra.mxu0 0.0
  %295 = vmatprep.subr.mxu0 0.0
  %296 = vmatpush1.msra.mxu0 0.0
  %297 = vmatprep.subr.mxu0 0.0
  %298 = vmatpush1.msra.mxu0 0.0
  %299 = vmatprep.subr.mxu0 0.0
  %300 = vmatpush1.msra.mxu0 0.0
  %301 = vmatprep.subr.mxu0 0.0
  %302 = vmatpush1.msra.mxu0 0.0
  %303 = vmatprep.subr.mxu0 0.0
  %304 = vmatpush1.msra.mxu0 0.0
  %305 = vmatprep.mubr.f32.mxu0 0.0
  %306 = vmatmul.mubr.f32.gmra.mrb[0].mxu0 %v218
  %v307 = vpop.f32.mrb[0].mxu0
  %v308 = vadd.f32 %v214, %v307
  %v309 = vpop.f32.mrb[0].mxu0
  %310 = vmatprep.mubr.f32.mxu0 0.0
  %311 = vmatmul.mubr.f32.gmra.mrb[0].mxu0 %v221
  %v312 = vpop.f32.mrb[0].mxu0
  %v313 = vadd.f32 %v214, %v312
  %v314 = vpop.f32.mrb[0].mxu0
  %315 = vmatprep.mubr.f32.mxu0 0.0
  %316 = vmatmul.mubr.f32.gmra.mrb[0].mxu0 %v224
  %v317 = vpop.f32.mrb[0].mxu0
  %v318 = vadd.f32 %v214, %v317
  %v319 = vpop.f32.mrb[0].mxu0
  %320 = vmatprep.mubr.f32.mxu0 0.0
  %321 = vmatmul.mubr.f32.gmra.mrb[0].mxu0 %v227
  %v322 = vpop.f32.mrb[0].mxu0
  %v323 = vadd.f32 %v214, %v322
  %v324 = vpop.f32.mrb[0].mxu0
  %325 = vmatprep.mubr.f32.mxu0 0.0
  %326 = vmatmul.mubr.f32.gmra.mrb[0].mxu0 %v230
  %v327 = vpop.f32.mrb[0].mxu0
  %v328 = vadd.f32 %v214, %v327
  %v329 = vpop.f32.mrb[0].mxu0
  %330 = vmatprep.mubr.f32.mxu0 0.0
  %331 = vmatmul.mubr.f32.gmra.mrb[0].mxu0 %v233
  %v332 = vpop.f32.mrb[0].mxu0
  %v333 = vadd.f32 %v214, %v332
  %v334 = vpop.f32.mrb[0].mxu0
  %335 = vmatprep.mubr.f32.mxu0 0.0
  %336 = vmatmul.mubr.f32.gmra.mrb[0].mxu0 %v236
  %v337 = vpop.f32.mrb[0].mxu0
  %v338 = vadd.f32 %v214, %v337
  %v339 = vpop.f32.mrb[0].mxu0
  %340 = vmatprep.mubr.f32.mxu0 0.0
  %341 = vmatmul.mubr.f32.gmra.mrb[0].mxu0 %v239
  %v342 = vpop.f32.mrb[0].mxu0
  %v343 = vadd.f32 %v214, %v342
  %v344 = vpop.f32.mrb[0].mxu0
  %345 = vdwg.mxu0
  %346 = vst.msk [vmem:[%s7] sm:$0xff] %vm216, %v308
  %347 = vst.msk [vmem:[%s7 + $0x8] sm:$0xff] %vm216, %v313
  %348 = vst.msk [vmem:[%s7 + $0x10] sm:$0xff] %vm216, %v318
  %349 = vst.msk [vmem:[%s7 + $0x18] sm:$0xff] %vm216, %v323
  %350 = vst.msk [vmem:[%s7 + $0x20] sm:$0xff] %vm216, %v328
  %351 = vst.msk [vmem:[%s7 + $0x28] sm:$0xff] %vm216, %v333
  %352 = vst.msk [vmem:[%s7 + $0x30] sm:$0xff] %vm216, %v338
  %vm353 = vcmask 254976
  %354 = vst.msk [vmem:[%s7 + $0x38] sm:$0x3] %vm353, %v343
  %v355 = vld [vmem:[%s5] sm:$0xff]
  %v356 = vld [vmem:[%s5 + $0x8] sm:$0xff]
  %v357 = vld [vmem:[%s5 + $0x10] sm:$0xff]
  %v358 = vld [vmem:[%s5 + $0x18] sm:$0xff]
  %v359 = vld [vmem:[%s6] sm:$0x1]
  %v361 = vlaneseq
  %v362 = vshrl.u32 %v361, 7
  %v363 = vsub.s32 0, %v362
  %v364 = vrot.slane %v359, %v363
  %v367 = vsel %vm216, %v308, 0
  %v370 = vsel %vm216, %v313, 0
  %v373 = vsel %vm216, %v318, 0
  %v376 = vsel %vm216, %v323, 0
  %v379 = vsel %vm216, %v328, 0
  %381 = vmatprep.subr.mxu0 0.0
  %382 = vmatpush1.msra.mxu0 %v355
  %383 = vmatprep.subr.mxu0 0.0
  %384 = vmatpush1.msra.mxu0 %v356
  %385 = vmatprep.subr.mxu0 0.0
  %386 = vmatpush1.msra.mxu0 %v357
  %387 = vmatprep.subr.mxu0 0.0
  %388 = vmatpush1.msra.mxu0 %v358
  %389 = vmatprep.subr.mxu0 0.0
  %390 = vmatpush1.msra.mxu0 0.0
  %391 = vmatprep.subr.mxu0 0.0
  %392 = vmatpush1.msra.mxu0 0.0
  %393 = vmatprep.subr.mxu0 0.0
  %394 = vmatpush1.msra.mxu0 0.0
  %395 = vmatprep.subr.mxu0 0.0
  %396 = vmatpush1.msra.mxu0 0.0
  %397 = vmatprep.subr.mxu0 0.0
  %398 = vmatpush1.msra.mxu0 0.0
  %399 = vmatprep.subr.mxu0 0.0
  %400 = vmatpush1.msra.mxu0 0.0
  %401 = vmatprep.subr.mxu0 0.0
  %402 = vmatpush1.msra.mxu0 0.0
  %403 = vmatprep.subr.mxu0 0.0
  %404 = vmatpush1.msra.mxu0 0.0
  %405 = vmatprep.subr.mxu0 0.0
  %406 = vmatpush1.msra.mxu0 0.0
  %407 = vmatprep.subr.mxu0 0.0
  %408 = vmatpush1.msra.mxu0 0.0
  %409 = vmatprep.subr.mxu0 0.0
  %410 = vmatpush1.msra.mxu0 0.0
  %411 = vmatprep.subr.mxu0 0.0
  %412 = vmatpush1.msra.mxu0 0.0
  %413 = vmatprep.subr.mxu0 0.0
  %414 = vmatpush1.msra.mxu0 0.0
  %415 = vmatprep.subr.mxu0 0.0
  %416 = vmatpush1.msra.mxu0 0.0
  %417 = vmatprep.subr.mxu0 0.0
  %418 = vmatpush1.msra.mxu0 0.0
  %419 = vmatprep.subr.mxu0 0.0
  %420 = vmatpush1.msra.mxu0 0.0
  %421 = vmatprep.subr.mxu0 0.0
  %422 = vmatpush1.msra.mxu0 0.0
  %423 = vmatprep.subr.mxu0 0.0
  %424 = vmatpush1.msra.mxu0 0.0
  %425 = vmatprep.subr.mxu0 0.0
  %426 = vmatpush1.msra.mxu0 0.0
  %427 = vmatprep.subr.mxu0 0.0
  %428 = vmatpush1.msra.mxu0 0.0
  %429 = vmatprep.subr.mxu0 0.0
  %430 = vmatpush1.msra.mxu0 0.0
  %431 = vmatprep.subr.mxu0 0.0
  %432 = vmatpush1.msra.mxu0 0.0
  %433 = vmatprep.subr.mxu0 0.0
  %434 = vmatpush1.msra.mxu0 0.0
  %435 = vmatprep.subr.mxu0 0.0
  %436 = vmatpush1.msra.mxu0 0.0
  %437 = vmatprep.subr.mxu0 0.0
  %438 = vmatpush1.msra.mxu0 0.0
  %439 = vmatprep.subr.mxu0 0.0
  %440 = vmatpush1.msra.mxu0 0.0
  %441 = vmatprep.subr.mxu0 0.0
  %442 = vmatpush1.msra.mxu0 0.0
  %443 = vmatprep.subr.mxu0 0.0
  %444 = vmatpush1.msra.mxu0 0.0
  %445 = vmatprep.mubr.f32.mxu0 0.0
  %446 = vmatmul.mubr.f32.gmra.mrb[0].mxu0 %v367
  %v447 = vpop.f32.mrb[0].mxu0
  %v448 = vadd.f32 %v364, %v447
  %v449 = vpop.f32.mrb[0].mxu0
  %450 = vmatprep.mubr.f32.mxu0 0.0
  %451 = vmatmul.mubr.f32.gmra.mrb[0].mxu0 %v370
  %v452 = vpop.f32.mrb[0].mxu0
  %v453 = vadd.f32 %v364, %v452
  %v454 = vpop.f32.mrb[0].mxu0
  %455 = vmatprep.mubr.f32.mxu0 0.0
  %456 = vmatmul.mubr.f32.gmra.mrb[0].mxu0 %v373
  %v457 = vpop.f32.mrb[0].mxu0
  %v458 = vadd.f32 %v364, %v457
  %v459 = vpop.f32.mrb[0].mxu0
  %460 = vmatprep.mubr.f32.mxu0 0.0
  %461 = vmatmul.mubr.f32.gmra.mrb[0].mxu0 %v376
  %v462 = vpop.f32.mrb[0].mxu0
  %v463 = vadd.f32 %v364, %v462
  %v464 = vpop.f32.mrb[0].mxu0
  %465 = vmatprep.mubr.f32.mxu0 0.0
  %466 = vmatmul.mubr.f32.gmra.mrb[0].mxu0 %v379
  %v467 = vpop.f32.mrb[0].mxu0
  %v468 = vadd.f32 %v364, %v467
  %v469 = vpop.f32.mrb[0].mxu0
  %470 = vdwg.mxu0
  %471 = vst [vmem:[%s8] sm:$0xff] %v448
  %472 = vst [vmem:[%s8 + $0x8] sm:$0xff] %v453
  %473 = vst [vmem:[%s8 + $0x10] sm:$0xff] %v458
  %474 = vst [vmem:[%s8 + $0x18] sm:$0xff] %v463
  %475 = vst [vmem:[%s8 + $0x20] sm:$0x3] %v468
  // Predicated region
  $region30: #{user_model_forward.10} parent=0 // pred_check
    _
  $region31: #{user_model_forward.10} parent=0 // pred_check_branch
    %477 = sbr.rel (0) target = $region33
  $region32: #{user_model_forward.10} parent=0 // pred_region
    _
  $region33: #{user_model_forward.10} parent=0 // pred_fallthru
    _
  // Predicated region
  $region34: #{user_model_forward.10} parent=0 // pred_check
    _
  $region35: #{user_model_forward.10} parent=0 // pred_check_branch
    %479 = sbr.rel (0) target = $region37
  $region36: #{user_model_forward.10} parent=0 // pred_region
    _
  $region37: #{user_model_forward.10} parent=0 // pred_fallthru
    _
  // Predicated region
  $region38: #{user_model_forward.10} parent=0 // pred_check
    _
  $region39: #{user_model_forward.10} parent=0 // pred_check_branch
    %481 = sbr.rel (0) target = $region41
  $region40: #{user_model_forward.10} parent=0 // pred_region
    _
  $region41: #{user_model_forward.10} parent=0 // pred_fallthru
    _
  // Predicated region
  $region42: #{user_model_forward.10} parent=0 // pred_check
    _
  $region43: #{user_model_forward.10} parent=0 // pred_check_branch
    %483 = sbr.rel (0) target = $region45
  $region44: #{user_model_forward.10} parent=0 // pred_region
    _
  $region45: #{user_model_forward.10} parent=0 // pred_fallthru
    _

// kernel: mul.3
$region0: #{mul.3}
  #allocation0 [shape = 's32[1]{0}', space=sflag, size = 0x4, scoped, tag = 'scoped memory for mul.3']
  %s0 = inlined_call_operand.vmem [shape: f32[6,32], index: 0, kind: input, shape index: {}]
  %s1 = inlined_call_operand.vmem [shape: f32[6,32], index: 1, kind: input, shape index: {}]
  %s2 = inlined_call_operand.vmem [shape: f32[6,32], index: 2, kind: output, shape index: {}]
  %v3 = vld [vmem:[%s0] sm:$0x3f]
  %v4 = vld [vmem:[%s1] sm:$0x3f]
  %5 = xla_tuple %v3, %v4
  %6 = xla_tuple %5
  %v7 = vmul.f32 %v3, %v4
  %8 = xla_tuple %v7
  %9 = vst [vmem:[%s2] sm:$0xff] %v7

// kernel: user_model_forward.12
$region0: #{user_model_forward.12}
  #allocation0 [shape = 'u32[]', space=smem, size = 0x4, offset = 0x4, fixed_abs, tag = 'smem constant byte address 0x4 - core index']
  #allocation1 [shape = 'u32[144,128]{1,0:T(1,128)}', space=vmem, size = 0x12000, scoped, tag = 'internal scratch']
  #allocation2 [shape = 'f32[1,1]{1,0:T(1,128)S(1)}', space=vmem, size = 0x200, scoped, tag = 'scoped memory for user_model_forward.12']
  %s0 = inlined_call_operand.vmem [shape: f32[10,32], index: 0, kind: input, shape index: {}]
  %s1 = inlined_call_operand.vmem [shape: f32[10,32], index: 1, kind: input, shape index: {}]
  %s2 = inlined_call_operand.vmem [shape: f32[10,1], index: 2, kind: input, shape index: {}]
  %s3 = inlined_call_operand.vmem [shape: f32[32,32], index: 3, kind: input, shape index: {}]
  %s4 = inlined_call_operand.vmem [shape: f32[1,32], index: 4, kind: input, shape index: {}]
  %s5 = inlined_call_operand.vmem [shape: f32[32,32], index: 5, kind: input, shape index: {}]
  %s6 = inlined_call_operand.vmem [shape: f32[32,32], index: 6, kind: input, shape index: {}]
  %s7 = inlined_call_operand.vmem [shape: f32[1,32], index: 7, kind: input, shape index: {}]
  %s8 = inlined_call_operand.vmem [shape: f32[1,32], index: 8, kind: input, shape index: {}]
  %s9 = inlined_call_operand.<no memory space> [shape: f32[1,1], index: 9, kind: input, shape index: {}]
  %s10 = inlined_call_operand.vmem [shape: f32[32,32], index: 10, kind: input, shape index: {}]
  %s11 = inlined_call_operand.vmem [shape: f32[1,32], index: 11, kind: input, shape index: {}]
  %s12 = inlined_call_operand.vmem [shape: f32[2,32], index: 12, kind: output, shape index: {}]
  %s13 = sld [smem:[#allocation0]]
  $region58: #{user_model_forward.12} parent=0
    _
  %s15 = ssub.s32 1, %s13
  %s16 = scalar_select 0, %s15, %s13
  %v17 = vstv %s9
  %18 = vst [vmem:[#allocation2] sm:$0x1] %v17
  // Predicated region
  $region2: #{user_model_forward.12} parent=0 // pred_check
    _
  $region3: #{user_model_forward.12} parent=0 // pred_check_branch
    %20 = sbr.rel (0) target = $region5
  $region4: #{user_model_forward.12} parent=0 // pred_region
    _
  $region5: #{user_model_forward.12} parent=0 // pred_fallthru
    _
  // Predicated region
  $region6: #{user_model_forward.12} parent=0 // pred_check
    _
  $region7: #{user_model_forward.12} parent=0 // pred_check_branch
    %22 = sbr.rel (0) target = $region9
  $region8: #{user_model_forward.12} parent=0 // pred_region
    _
  $region9: #{user_model_forward.12} parent=0 // pred_fallthru
    _
  // Predicated region
  $region10: #{user_model_forward.12} parent=0 // pred_check
    _
  $region11: #{user_model_forward.12} parent=0 // pred_check_branch
    %24 = sbr.rel (0) target = $region13
  $region12: #{user_model_forward.12} parent=0 // pred_region
    _
  $region13: #{user_model_forward.12} parent=0 // pred_fallthru
    _
  // Predicated region
  $region14: #{user_model_forward.12} parent=0 // pred_check
    _
  $region15: #{user_model_forward.12} parent=0 // pred_check_branch
    %26 = sbr.rel (0) target = $region17
  $region16: #{user_model_forward.12} parent=0 // pred_region
    _
  $region17: #{user_model_forward.12} parent=0 // pred_fallthru
    _
  // Predicated region
  $region18: #{user_model_forward.12} parent=0 // pred_check
    _
  $region19: #{user_model_forward.12} parent=0 // pred_check_branch
    %28 = sbr.rel (0) target = $region21
  $region20: #{user_model_forward.12} parent=0 // pred_region
    _
  $region21: #{user_model_forward.12} parent=0 // pred_fallthru
    _
  // Predicated region
  $region22: #{user_model_forward.12} parent=0 // pred_check
    _
  $region23: #{user_model_forward.12} parent=0 // pred_check_branch
    %30 = sbr.rel (0) target = $region25
  $region24: #{user_model_forward.12} parent=0 // pred_region
    _
  $region25: #{user_model_forward.12} parent=0 // pred_fallthru
    _
  // Predicated region
  $region26: #{user_model_forward.12} parent=0 // pred_check
    _
  $region27: #{user_model_forward.12} parent=0 // pred_check_branch
    %32 = sbr.rel (0) target = $region29
  $region28: #{user_model_forward.12} parent=0 // pred_region
    _
  $region29: #{user_model_forward.12} parent=0 // pred_fallthru
    _
  // Predicated region
  $region30: #{user_model_forward.12} parent=0 // pred_check
    _
  $region31: #{user_model_forward.12} parent=0 // pred_check_branch
    %34 = sbr.rel (0) target = $region33
  $region32: #{user_model_forward.12} parent=0 // pred_region
    _
  $region33: #{user_model_forward.12} parent=0 // pred_fallthru
    _
  // Predicated region
  $region34: #{user_model_forward.12} parent=0 // pred_check
    _
  $region35: #{user_model_forward.12} parent=0 // pred_check_branch
    %36 = sbr.rel (0) target = $region37
  $region36: #{user_model_forward.12} parent=0 // pred_region
    _
  $region37: #{user_model_forward.12} parent=0 // pred_fallthru
    _
  // Predicated region
  $region38: #{user_model_forward.12} parent=0 // pred_check
    _
  $region39: #{user_model_forward.12} parent=0 // pred_check_branch
    %38 = sbr.rel (0) target = $region41
  $region40: #{user_model_forward.12} parent=0 // pred_region
    _
  $region41: #{user_model_forward.12} parent=0 // pred_fallthru
    _
  // Predicated region
  $region42: #{user_model_forward.12} parent=0 // pred_check
    _
  $region43: #{user_model_forward.12} parent=0 // pred_check_branch
    %40 = sbr.rel (0) target = $region45
  $region44: #{user_model_forward.12} parent=0 // pred_region
    _
  $region45: #{user_model_forward.12} parent=0 // pred_fallthru
    _
  // Predicated region
  $region46: #{user_model_forward.12} parent=0 // pred_check
    _
  $region47: #{user_model_forward.12} parent=0 // pred_check_branch
    %42 = sbr.rel (0) target = $region49
  $region48: #{user_model_forward.12} parent=0 // pred_region
    _
  $region49: #{user_model_forward.12} parent=0 // pred_fallthru
    _
  %v43 = vld [vmem:[%s0] sm:$0xff]
  %v44 = vld [vmem:[%s0 + $0x8] sm:$0x3]
  %v45 = vld [vmem:[%s1] sm:$0xff]
  %v46 = vld [vmem:[%s1 + $0x8] sm:$0x3]
  %v47 = vld [vmem:[%s3] sm:$0xff]
  %v48 = vld [vmem:[%s3 + $0x8] sm:$0xff]
  %v49 = vld [vmem:[%s3 + $0x10] sm:$0xff]
  %v50 = vld [vmem:[%s3 + $0x18] sm:$0xff]
  %v51 = vld [vmem:[%s4] sm:$0x1]
  %v53 = vlaneseq
  %v54 = vshrl.u32 %v53, 7
  %v55 = vsub.s32 0, %v54
  %v56 = vrot.slane %v51, %v55
  %vm58 = vcmask 261120
  %v60 = vsel %vm58, %v43, 0
  %v63 = vsel %vm58, %v44, 0
  %65 = vmatprep.subr.mxu0 0.0
  %66 = vmatpush1.msra.mxu0 %v47
  %67 = vmatprep.subr.mxu0 0.0
  %68 = vmatpush1.msra.mxu0 %v48
  %69 = vmatprep.subr.mxu0 0.0
  %70 = vmatpush1.msra.mxu0 %v49
  %71 = vmatprep.subr.mxu0 0.0
  %72 = vmatpush1.msra.mxu0 %v50
  %73 = vmatprep.subr.mxu0 0.0
  %74 = vmatpush1.msra.mxu0 0.0
  %75 = vmatprep.subr.mxu0 0.0
  %76 = vmatpush1.msra.mxu0 0.0
  %77 = vmatprep.subr.mxu0 0.0
  %78 = vmatpush1.msra.mxu0 0.0
  %79 = vmatprep.subr.mxu0 0.0
  %80 = vmatpush1.msra.mxu0 0.0
  %81 = vmatprep.subr.mxu0 0.0
  %82 = vmatpush1.msra.mxu0 0.0
  %83 = vmatprep.subr.mxu0 0.0
  %84 = vmatpush1.msra.mxu0 0.0
  %85 = vmatprep.subr.mxu0 0.0
  %86 = vmatpush1.msra.mxu0 0.0
  %87 = vmatprep.subr.mxu0 0.0
  %88 = vmatpush1.msra.mxu0 0.0
  %89 = vmatprep.subr.mxu0 0.0
  %90 = vmatpush1.msra.mxu0 0.0
  %91 = vmatprep.subr.mxu0 0.0
  %92 = vmatpush1.msra.mxu0 0.0
  %93 = vmatprep.subr.mxu0 0.0
  %94 = vmatpush1.msra.mxu0 0.0
  %95 = vmatprep.subr.mxu0 0.0
  %96 = vmatpush1.msra.mxu0 0.0
  %97 = vmatprep.subr.mxu0 0.0
  %98 = vmatpush1.msra.mxu0 0.0
  %99 = vmatprep.subr.mxu0 0.0
  %100 = vmatpush1.msra.mxu0 0.0
  %101 = vmatprep.subr.mxu0 0.0
  %102 = vmatpush1.msra.mxu0 0.0
  %103 = vmatprep.subr.mxu0 0.0
  %104 = vmatpush1.msra.mxu0 0.0
  %105 = vmatprep.subr.mxu0 0.0
  %106 = vmatpush1.msra.mxu0 0.0
  %107 = vmatprep.subr.mxu0 0.0
  %108 = vmatpush1.msra.mxu0 0.0
  %109 = vmatprep.subr.mxu0 0.0
  %110 = vmatpush1.msra.mxu0 0.0
  %111 = vmatprep.subr.mxu0 0.0
  %112 = vmatpush1.msra.mxu0 0.0
  %113 = vmatprep.subr.mxu0 0.0
  %114 = vmatpush1.msra.mxu0 0.0
  %115 = vmatprep.subr.mxu0 0.0
  %116 = vmatpush1.msra.mxu0 0.0
  %117 = vmatprep.subr.mxu0 0.0
  %118 = vmatpush1.msra.mxu0 0.0
  %119 = vmatprep.subr.mxu0 0.0
  %120 = vmatpush1.msra.mxu0 0.0
  %121 = vmatprep.subr.mxu0 0.0
  %122 = vmatpush1.msra.mxu0 0.0
  %123 = vmatprep.subr.mxu0 0.0
  %124 = vmatpush1.msra.mxu0 0.0
  %125 = vmatprep.subr.mxu0 0.0
  %126 = vmatpush1.msra.mxu0 0.0
  %127 = vmatprep.subr.mxu0 0.0
  %128 = vmatpush1.msra.mxu0 0.0
  %129 = vmatprep.mubr.f32.mxu0 0.0
  %130 = vmatmul.mubr.f32.gmra.mrb[0].mxu0 %v60
  %v131 = vpop.f32.mrb[0].mxu0
  %v132 = vadd.f32 %v56, %v131
  %v133 = vpop.f32.mrb[0].mxu0
  %134 = vmatprep.mubr.f32.mxu0 0.0
  %135 = vmatmul.mubr.f32.gmra.mrb[0].mxu0 %v63
  %v136 = vpop.f32.mrb[0].mxu0
  %v137 = vadd.f32 %v56, %v136
  %v138 = vpop.f32.mrb[0].mxu0
  %139 = vdwg.mxu0
  %v141 = vsel %vm58, %v45, 0
  %v144 = vsel %vm58, %v46, 0
  %146 = vmatprep.subr.mxu0 0.0
  %147 = vmatpush1.msra.mxu0 %v47
  %148 = vmatprep.subr.mxu0 0.0
  %149 = vmatpush1.msra.mxu0 %v48
  %150 = vmatprep.subr.mxu0 0.0
  %151 = vmatpush1.msra.mxu0 %v49
  %152 = vmatprep.subr.mxu0 0.0
  %153 = vmatpush1.msra.mxu0 %v50
  %154 = vmatprep.subr.mxu0 0.0
  %155 = vmatpush1.msra.mxu0 0.0
  %156 = vmatprep.subr.mxu0 0.0
  %157 = vmatpush1.msra.mxu0 0.0
  %158 = vmatprep.subr.mxu0 0.0
  %159 = vmatpush1.msra.mxu0 0.0
  %160 = vmatprep.subr.mxu0 0.0
  %161 = vmatpush1.msra.mxu0 0.0
  %162 = vmatprep.subr.mxu0 0.0
  %163 = vmatpush1.msra.mxu0 0.0
  %164 = vmatprep.subr.mxu0 0.0
  %165 = vmatpush1.msra.mxu0 0.0
  %166 = vmatprep.subr.mxu0 0.0
  %167 = vmatpush1.msra.mxu0 0.0
  %168 = vmatprep.subr.mxu0 0.0
  %169 = vmatpush1.msra.mxu0 0.0
  %170 = vmatprep.subr.mxu0 0.0
  %171 = vmatpush1.msra.mxu0 0.0
  %172 = vmatprep.subr.mxu0 0.0
  %173 = vmatpush1.msra.mxu0 0.0
  %174 = vmatprep.subr.mxu0 0.0
  %175 = vmatpush1.msra.mxu0 0.0
  %176 = vmatprep.subr.mxu0 0.0
  %177 = vmatpush1.msra.mxu0 0.0
  %178 = vmatprep.subr.mxu0 0.0
  %179 = vmatpush1.msra.mxu0 0.0
  %180 = vmatprep.subr.mxu0 0.0
  %181 = vmatpush1.msra.mxu0 0.0
  %182 = vmatprep.subr.mxu0 0.0
  %183 = vmatpush1.msra.mxu0 0.0
  %184 = vmatprep.subr.mxu0 0.0
  %185 = vmatpush1.msra.mxu0 0.0
  %186 = vmatprep.subr.mxu0 0.0
  %187 = vmatpush1.msra.mxu0 0.0
  %188 = vmatprep.subr.mxu0 0.0
  %189 = vmatpush1.msra.mxu0 0.0
  %190 = vmatprep.subr.mxu0 0.0
  %191 = vmatpush1.msra.mxu0 0.0
  %192 = vmatprep.subr.mxu0 0.0
  %193 = vmatpush1.msra.mxu0 0.0
  %194 = vmatprep.subr.mxu0 0.0
  %195 = vmatpush1.msra.mxu0 0.0
  %196 = vmatprep.subr.mxu0 0.0
  %197 = vmatpush1.msra.mxu0 0.0
  %198 = vmatprep.subr.mxu0 0.0
  %199 = vmatpush1.msra.mxu0 0.0
  %200 = vmatprep.subr.mxu0 0.0
  %201 = vmatpush1.msra.mxu0 0.0
  %202 = vmatprep.subr.mxu0 0.0
  %203 = vmatpush1.msra.mxu0 0.0
  %204 = vmatprep.subr.mxu0 0.0
  %205 = vmatpush1.msra.mxu0 0.0
  %206 = vmatprep.subr.mxu0 0.0
  %207 = vmatpush1.msra.mxu0 0.0
  %208 = vmatprep.subr.mxu0 0.0
  %209 = vmatpush1.msra.mxu0 0.0
  %210 = vmatprep.mubr.f32.mxu0 0.0
  %211 = vmatmul.mubr.f32.gmra.mrb[0].mxu0 %v141
  %v212 = vpop.f32.mrb[0].mxu0
  %v213 = vadd.f32 %v56, %v212
  %v214 = vpop.f32.mrb[0].mxu0
  %215 = vmatprep.mubr.f32.mxu0 0.0
  %216 = vmatmul.mubr.f32.gmra.mrb[0].mxu0 %v144
  %v217 = vpop.f32.mrb[0].mxu0
  %v218 = vadd.f32 %v56, %v217
  %v219 = vpop.f32.mrb[0].mxu0
  %220 = vdwg.mxu0
  %v221 = vld [vmem:[%s5] sm:$0xff]
  %v222 = vld [vmem:[%s5 + $0x8] sm:$0xff]
  %v223 = vld [vmem:[%s5 + $0x10] sm:$0xff]
  %v224 = vld [vmem:[%s5 + $0x18] sm:$0xff]
  %v225 = vld [vmem:[%s6] sm:$0xff]
  %v226 = vld [vmem:[%s6 + $0x8] sm:$0xff]
  %v227 = vld [vmem:[%s6 + $0x10] sm:$0xff]
  %v228 = vld [vmem:[%s6 + $0x18] sm:$0xff]
  %v230 = vsel %vm58, %v213, 0
  %v233 = vsel %vm58, %v218, 0
  %235 = vmatprep.subr.mxu0 0.0
  %236 = vmatpush1.msra.mxu0 %v225
  %237 = vmatprep.subr.mxu0 0.0
  %238 = vmatpush1.msra.mxu0 %v226
  %239 = vmatprep.subr.mxu0 0.0
  %240 = vmatpush1.msra.mxu0 %v227
  %241 = vmatprep.subr.mxu0 0.0
  %242 = vmatpush1.msra.mxu0 %v228
  %243 = vmatprep.subr.mxu0 0.0
  %244 = vmatpush1.msra.mxu0 0.0
  %245 = vmatprep.subr.mxu0 0.0
  %246 = vmatpush1.msra.mxu0 0.0
  %247 = vmatprep.subr.mxu0 0.0
  %248 = vmatpush1.msra.mxu0 0.0
  %249 = vmatprep.subr.mxu0 0.0
  %250 = vmatpush1.msra.mxu0 0.0
  %251 = vmatprep.subr.mxu0 0.0
  %252 = vmatpush1.msra.mxu0 0.0
  %253 = vmatprep.subr.mxu0 0.0
  %254 = vmatpush1.msra.mxu0 0.0
  %255 = vmatprep.subr.mxu0 0.0
  %256 = vmatpush1.msra.mxu0 0.0
  %257 = vmatprep.subr.mxu0 0.0
  %258 = vmatpush1.msra.mxu0 0.0
  %259 = vmatprep.subr.mxu0 0.0
  %260 = vmatpush1.msra.mxu0 0.0
  %261 = vmatprep.subr.mxu0 0.0
  %262 = vmatpush1.msra.mxu0 0.0
  %263 = vmatprep.subr.mxu0 0.0
  %264 = vmatpush1.msra.mxu0 0.0
  %265 = vmatprep.subr.mxu0 0.0
  %266 = vmatpush1.msra.mxu0 0.0
  %267 = vmatprep.subr.mxu0 0.0
  %268 = vmatpush1.msra.mxu0 0.0
  %269 = vmatprep.subr.mxu0 0.0
  %270 = vmatpush1.msra.mxu0 0.0
  %271 = vmatprep.subr.mxu0 0.0
  %272 = vmatpush1.msra.mxu0 0.0
  %273 = vmatprep.subr.mxu0 0.0
  %274 = vmatpush1.msra.mxu0 0.0
  %275 = vmatprep.subr.mxu0 0.0
  %276 = vmatpush1.msra.mxu0 0.0
  %277 = vmatprep.subr.mxu0 0.0
  %278 = vmatpush1.msra.mxu0 0.0
  %279 = vmatprep.subr.mxu0 0.0
  %280 = vmatpush1.msra.mxu0 0.0
  %281 = vmatprep.subr.mxu0 0.0
  %282 = vmatpush1.msra.mxu0 0.0
  %283 = vmatprep.subr.mxu0 0.0
  %284 = vmatpush1.msra.mxu0 0.0
  %285 = vmatprep.subr.mxu0 0.0
  %286 = vmatpush1.msra.mxu0 0.0
  %287 = vmatprep.subr.mxu0 0.0
  %288 = vmatpush1.msra.mxu0 0.0
  %289 = vmatprep.subr.mxu0 0.0
  %290 = vmatpush1.msra.mxu0 0.0
  %291 = vmatprep.subr.mxu0 0.0
  %292 = vmatpush1.msra.mxu0 0.0
  %293 = vmatprep.subr.mxu0 0.0
  %294 = vmatpush1.msra.mxu0 0.0
  %295 = vmatprep.subr.mxu0 0.0
  %296 = vmatpush1.msra.mxu0 0.0
  %297 = vmatprep.subr.mxu0 0.0
  %298 = vmatpush1.msra.mxu0 0.0
  %299 = vmatprep.mubr.f32.mxu0 0.0
  %300 = vmatmul.mubr.f32.gmra.mrb[0].mxu0 %v230
  %v301 = vpop.f32.mrb[0].mxu0
  %v302 = vadd.f32 0.0, %v301
  %v303 = vpop.f32.mrb[0].mxu0
  %304 = vmatprep.mubr.f32.mxu0 0.0
  %305 = vmatmul.mubr.f32.gmra.mrb[0].mxu0 %v233
  %v306 = vpop.f32.mrb[0].mxu0
  %v307 = vadd.f32 0.0, %v306
  %v308 = vpop.f32.mrb[0].mxu0
  %309 = vdwg.mxu0
  %v311 = vsel %vm58, %v132, 0
  %v314 = vsel %vm58, %v137, 0
  %316 = vmatprep.subr.mxu0 0.0
  %317 = vmatpush1.msra.mxu0 %v221
  %318 = vmatprep.subr.mxu0 0.0
  %319 = vmatpush1.msra.mxu0 %v222
  %320 = vmatprep.subr.mxu0 0.0
  %321 = vmatpush1.msra.mxu0 %v223
  %322 = vmatprep.subr.mxu0 0.0
  %323 = vmatpush1.msra.mxu0 %v224
  %324 = vmatprep.subr.mxu0 0.0
  %325 = vmatpush1.msra.mxu0 0.0
  %326 = vmatprep.subr.mxu0 0.0
  %327 = vmatpush1.msra.mxu0 0.0
  %328 = vmatprep.subr.mxu0 0.0
  %329 = vmatpush1.msra.mxu0 0.0
  %330 = vmatprep.subr.mxu0 0.0
  %331 = vmatpush1.msra.mxu0 0.0
  %332 = vmatprep.subr.mxu0 0.0
  %333 = vmatpush1.msra.mxu0 0.0
  %334 = vmatprep.subr.mxu0 0.0
  %335 = vmatpush1.msra.mxu0 0.0
  %336 = vmatprep.subr.mxu0 0.0
  %337 = vmatpush1.msra.mxu0 0.0
  %338 = vmatprep.subr.mxu0 0.0
  %339 = vmatpush1.msra.mxu0 0.0
  %340 = vmatprep.subr.mxu0 0.0
  %341 = vmatpush1.msra.mxu0 0.0
  %342 = vmatprep.subr.mxu0 0.0
  %343 = vmatpush1.msra.mxu0 0.0
  %344 = vmatprep.subr.mxu0 0.0
  %345 = vmatpush1.msra.mxu0 0.0
  %346 = vmatprep.subr.mxu0 0.0
  %347 = vmatpush1.msra.mxu0 0.0
  %348 = vmatprep.subr.mxu0 0.0
  %349 = vmatpush1.msra.mxu0 0.0
  %350 = vmatprep.subr.mxu0 0.0
  %351 = vmatpush1.msra.mxu0 0.0
  %352 = vmatprep.subr.mxu0 0.0
  %353 = vmatpush1.msra.mxu0 0.0
  %354 = vmatprep.subr.mxu0 0.0
  %355 = vmatpush1.msra.mxu0 0.0
  %356 = vmatprep.subr.mxu0 0.0
  %357 = vmatpush1.msra.mxu0 0.0
  %358 = vmatprep.subr.mxu0 0.0
  %359 = vmatpush1.msra.mxu0 0.0
  %360 = vmatprep.subr.mxu0 0.0
  %361 = vmatpush1.msra.mxu0 0.0
  %362 = vmatprep.subr.mxu0 0.0
  %363 = vmatpush1.msra.mxu0 0.0
  %364 = vmatprep.subr.mxu0 0.0
  %365 = vmatpush1.msra.mxu0 0.0
  %366 = vmatprep.subr.mxu0 0.0
  %367 = vmatpush1.msra.mxu0 0.0
  %368 = vmatprep.subr.mxu0 0.0
  %369 = vmatpush1.msra.mxu0 0.0
  %370 = vmatprep.subr.mxu0 0.0
  %371 = vmatpush1.msra.mxu0 0.0
  %372 = vmatprep.subr.mxu0 0.0
  %373 = vmatpush1.msra.mxu0 0.0
  %374 = vmatprep.subr.mxu0 0.0
  %375 = vmatpush1.msra.mxu0 0.0
  %376 = vmatprep.subr.mxu0 0.0
  %377 = vmatpush1.msra.mxu0 0.0
  %378 = vmatprep.subr.mxu0 0.0
  %379 = vmatpush1.msra.mxu0 0.0
  %380 = vmatprep.mubr.f32.mxu0 0.0
  %381 = vmatmul.mubr.f32.gmra.mrb[0].mxu0 %v311
  %v382 = vpop.f32.mrb[0].mxu0
  %v383 = vadd.f32 %v302, %v382
  %v384 = vpop.f32.mrb[0].mxu0
  %385 = vmatprep.mubr.f32.mxu0 0.0
  %386 = vmatmul.mubr.f32.gmra.mrb[0].mxu0 %v314
  %v387 = vpop.f32.mrb[0].mxu0
  %v388 = vadd.f32 %v307, %v387
  %v389 = vpop.f32.mrb[0].mxu0
  %390 = vdwg.mxu0
  %v391 = vld [vmem:[%s7] sm:$0x1]
  %v393 = vlaneseq
  %v394 = vshrl.u32 %v393, 7
  %v395 = vsub.s32 0, %v394
  %v396 = vrot.slane %v391, %v395
  %v398 = vadd.f32 %v383, %v396
  %v399 = vadd.f32 %v388, %v396
  %vm400 = vcmp.ge.f32.partialorder %v398, 0.0
  %vm401 = vcmp.ge.f32.partialorder %v399, 0.0
  %v402 = vmul.f32 %v398, 0.2
  %v403 = vmul.f32 %v399, 0.2
  %v404 = vsel %vm400, %v398, %v402
  %v405 = vsel %vm401, %v399, %v403
  %v406 = vld [vmem:[%s8] sm:$0x1]
  %v408 = vlaneseq
  %v409 = vshrl.u32 %v408, 7
  %v410 = vsub.s32 0, %v409
  %v411 = vrot.slane %v406, %v410
  %v413 = vmul.f32 %v404, %v411
  %v414 = vmul.f32 %v405, %v411
  %v415 = vsel %vm58, %v413, 0.0
  %416 = vadd.xlane.f32.xlu0 %v415
  %v417 = vpop.xlane.xlu0 %416
  %vm418 = vcmask 254976
  %v419 = vsel %vm418, %v414, 0.0
  %420 = vadd.xlane.f32.xlu0 %v419
  %v421 = vpop.xlane.xlu0 %420
  %v422 = vld [vmem:[#allocation2] sm:$0x1]
  %v424 = vlaneseq
  %v425 = vshrl.u32 %v424, 7
  %v426 = vsub.s32 0, %v425
  %v427 = vrot.slane %v422, %v426
  %v429 = vadd.f32 %v417, %v427
  %v430 = vadd.f32 %v421, %v427
  %v431 = vld [vmem:[%s2] sm:$0xff]
  %v432 = vld [vmem:[%s2 + $0x8] sm:$0x3]
  %vm433 = vcmp.gt.f32.partialorder %v431, 0.0
  %vm434 = vcmp.gt.f32.partialorder %v432, 0.0
  %v435 = vsel %vm433, %v429, -1e+30
  %v436 = vsel %vm434, %v430, -1e+30
  %vm437 = vcmask 7168
  %v438 = vsel %vm437, %v435, -inf
  %vm439 = vcmask 1024
  %v440 = vsel %vm439, %v436, -inf
  %v441 = vmax.f32 %v438, %v440
  %v442 = vrot.slane %v441, 4
  %v443 = vmax.f32 %v441, %v442
  %v444 = vrot.slane %v443, 2
  %v445 = vmax.f32 %v443, %v444
  %v446 = vrot.slane %v445, 1
  %v447 = vmax.f32 %v445, %v446
  %v448 = vmax.f32 %v447, 0.0
  %v449 = vsub.f32 %v435, %v448
  %v450 = vsub.f32 %v436, %v448
  %v451 = vmul.f32 %v449, 1.442695
  %v452 = vpow.pop %v451
  %v453 = vmul.f32 %v450, 1.442695
  %v454 = vpow.pop %v453
  %v455 = vmul.f32 %v452, %v431
  %v456 = vmul.f32 %v454, %v432
  %v457 = vlaneseq
  %v458 = vshrl.u32 %v457, 7
  %v459 = vlaneseq
  %v460 = vand.u32 %v459, 127
  %v461 = vmul.u32 %v458, 5
  %vm462 = vcmp.ge.s32.totalorder %v460, %v461
  %v463 = vadd.s32 %v461, 5
  %vm464 = vcmp.lt.s32.totalorder %v460, %v463
  %vm465 = vmand %vm462, %vm464
  %v466 = vsel %vm465, 1, 0
  %v467 = vcvt.s32.f32 %v466
  %469 = vset.pattern.permute.xlu0 0
  %470 = vperm.xlu0 %469, %v455
  %v471 = vpop.permute.xlu0 %470
  %474 = vset.pattern.permute.xlu0 0
  %475 = vperm.xlu0 %474, %v456
  %v476 = vpop.permute.xlu0 %475
  %v478 = vmul.f32 %v471, %v43
  %v479 = vmul.f32 %v476, %v44
  %vm480 = vcmask 80896
  %v482 = vsel %vm480, %v467, 0
  %vm484 = vcmask 1041408
  %v486 = vsel %vm484, %v479, 0
  %488 = vmatprep.subr.mxu0 0.0
  %489 = vmatpush1.msra.mxu0 %v478
  %490 = vmatprep.subr.mxu0 0.0
  %491 = vmatpush1.msra.mxu0 %v486
  %492 = vmatprep.subr.mxu0 0.0
  %493 = vmatpush1.msra.mxu0 0.0
  %494 = vmatprep.subr.mxu0 0.0
  %495 = vmatpush1.msra.mxu0 0.0
  %496 = vmatprep.subr.mxu0 0.0
  %497 = vmatpush1.msra.mxu0 0.0
  %498 = vmatprep.subr.mxu0 0.0
  %499 = vmatpush1.msra.mxu0 0.0
  %500 = vmatprep.subr.mxu0 0.0
  %501 = vmatpush1.msra.mxu0 0.0
  %502 = vmatprep.subr.mxu0 0.0
  %503 = vmatpush1.msra.mxu0 0.0
  %504 = vmatprep.subr.mxu0 0.0
  %505 = vmatpush1.msra.mxu0 0.0
  %506 = vmatprep.subr.mxu0 0.0
  %507 = vmatpush1.msra.mxu0 0.0
  %508 = vmatprep.subr.mxu0 0.0
  %509 = vmatpush1.msra.mxu0 0.0
  %510 = vmatprep.subr.mxu0 0.0
  %511 = vmatpush1.msra.mxu0 0.0
  %512 = vmatprep.subr.mxu0 0.0
  %513 = vmatpush1.msra.mxu0 0.0
  %514 = vmatprep.subr.mxu0 0.0
  %515 = vmatpush1.msra.mxu0 0.0
  %516 = vmatprep.subr.mxu0 0.0
  %517 = vmatpush1.msra.mxu0 0.0
  %518 = vmatprep.subr.mxu0 0.0
  %519 = vmatpush1.msra.mxu0 0.0
  %520 = vmatprep.subr.mxu0 0.0
  %521 = vmatpush1.msra.mxu0 0.0
  %522 = vmatprep.subr.mxu0 0.0
  %523 = vmatpush1.msra.mxu0 0.0
  %524 = vmatprep.subr.mxu0 0.0
  %525 = vmatpush1.msra.mxu0 0.0
  %526 = vmatprep.subr.mxu0 0.0
  %527 = vmatpush1.msra.mxu0 0.0
  %528 = vmatprep.subr.mxu0 0.0
  %529 = vmatpush1.msra.mxu0 0.0
  %530 = vmatprep.subr.mxu0 0.0
  %531 = vmatpush1.msra.mxu0 0.0
  %532 = vmatprep.subr.mxu0 0.0
  %533 = vmatpush1.msra.mxu0 0.0
  %534 = vmatprep.subr.mxu0 0.0
  %535 = vmatpush1.msra.mxu0 0.0
  %536 = vmatprep.subr.mxu0 0.0
  %537 = vmatpush1.msra.mxu0 0.0
  %538 = vmatprep.subr.mxu0 0.0
  %539 = vmatpush1.msra.mxu0 0.0
  %540 = vmatprep.subr.mxu0 0.0
  %541 = vmatpush1.msra.mxu0 0.0
  %542 = vmatprep.subr.mxu0 0.0
  %543 = vmatpush1.msra.mxu0 0.0
  %544 = vmatprep.subr.mxu0 0.0
  %545 = vmatpush1.msra.mxu0 0.0
  %546 = vmatprep.subr.mxu0 0.0
  %547 = vmatpush1.msra.mxu0 0.0
  %548 = vmatprep.subr.mxu0 0.0
  %549 = vmatpush1.msra.mxu0 0.0
  %550 = vmatprep.subr.mxu0 0.0
  %551 = vmatpush1.msra.mxu0 0.0
  %552 = vmatprep.mubr.f32.mxu0 0.0
  %553 = vmatmul.mubr.f32.gmra.mrb[0].mxu0 %v482
  %v554 = vpop.f32.mrb[0].mxu0
  %v555 = vadd.f32 0.0, %v554
  %v556 = vpop.f32.mrb[0].mxu0
  %557 = vdwg.mxu0
  %v558 = vsel %vm484, %v456, 0
  %560 = vmatprep.subr.mxu0 0.0
  %561 = vmatpush1.msra.mxu0 %v455
  %562 = vmatprep.subr.mxu0 0.0
  %563 = vmatpush1.msra.mxu0 %v558
  %564 = vmatprep.subr.mxu0 0.0
  %565 = vmatpush1.msra.mxu0 0.0
  %566 = vmatprep.subr.mxu0 0.0
  %567 = vmatpush1.msra.mxu0 0.0
  %568 = vmatprep.subr.mxu0 0.0
  %569 = vmatpush1.msra.mxu0 0.0
  %570 = vmatprep.subr.mxu0 0.0
  %571 = vmatpush1.msra.mxu0 0.0
  %572 = vmatprep.subr.mxu0 0.0
  %573 = vmatpush1.msra.mxu0 0.0
  %574 = vmatprep.subr.mxu0 0.0
  %575 = vmatpush1.msra.mxu0 0.0
  %576 = vmatprep.subr.mxu0 0.0
  %577 = vmatpush1.msra.mxu0 0.0
  %578 = vmatprep.subr.mxu0 0.0
  %579 = vmatpush1.msra.mxu0 0.0
  %580 = vmatprep.subr.mxu0 0.0
  %581 = vmatpush1.msra.mxu0 0.0
  %582 = vmatprep.subr.mxu0 0.0
  %583 = vmatpush1.msra.mxu0 0.0
  %584 = vmatprep.subr.mxu0 0.0
  %585 = vmatpush1.msra.mxu0 0.0
  %586 = vmatprep.subr.mxu0 0.0
  %587 = vmatpush1.msra.mxu0 0.0
  %588 = vmatprep.subr.mxu0 0.0
  %589 = vmatpush1.msra.mxu0 0.0
  %590 = vmatprep.subr.mxu0 0.0
  %591 = vmatpush1.msra.mxu0 0.0
  %592 = vmatprep.subr.mxu0 0.0
  %593 = vmatpush1.msra.mxu0 0.0
  %594 = vmatprep.subr.mxu0 0.0
  %595 = vmatpush1.msra.mxu0 0.0
  %596 = vmatprep.subr.mxu0 0.0
  %597 = vmatpush1.msra.mxu0 0.0
  %598 = vmatprep.subr.mxu0 0.0
  %599 = vmatpush1.msra.mxu0 0.0
  %600 = vmatprep.subr.mxu0 0.0
  %601 = vmatpush1.msra.mxu0 0.0
  %602 = vmatprep.subr.mxu0 0.0
  %603 = vmatpush1.msra.mxu0 0.0
  %604 = vmatprep.subr.mxu0 0.0
  %605 = vmatpush1.msra.mxu0 0.0
  %606 = vmatprep.subr.mxu0 0.0
  %607 = vmatpush1.msra.mxu0 0.0
  %608 = vmatprep.subr.mxu0 0.0
  %609 = vmatpush1.msra.mxu0 0.0
  %610 = vmatprep.subr.mxu0 0.0
  %611 = vmatpush1.msra.mxu0 0.0
  %612 = vmatprep.subr.mxu0 0.0
  %613 = vmatpush1.msra.mxu0 0.0
  %614 = vmatprep.subr.mxu0 0.0
  %615 = vmatpush1.msra.mxu0 0.0
  %616 = vmatprep.subr.mxu0 0.0
  %617 = vmatpush1.msra.mxu0 0.0
  %618 = vmatprep.subr.mxu0 0.0
  %619 = vmatpush1.msra.mxu0 0.0
  %620 = vmatprep.subr.mxu0 0.0
  %621 = vmatpush1.msra.mxu0 0.0
  %622 = vmatprep.subr.mxu0 0.0
  %623 = vmatpush1.msra.mxu0 0.0
  %624 = vmatprep.mubr.f32.mxu0 0.0
  %625 = vmatmul.mubr.f32.gmra.mrb[0].mxu0 %v482
  %v626 = vpop.f32.mrb[0].mxu0
  %v627 = vadd.f32 1e-10, %v626
  %v628 = vpop.f32.mrb[0].mxu0
  %629 = vdwg.mxu0
  %v630 = vrcp.pop %v627
  %632 = vset.pattern.permute.xlu0 0
  %633 = vperm.xlu0 %632, %v630
  %v634 = vpop.permute.xlu0 %633
  %v636 = vmul.f32 %v555, %v634
  %v637 = vld [vmem:[%s10] sm:$0xff]
  %v638 = vld [vmem:[%s10 + $0x8] sm:$0xff]
  %v639 = vld [vmem:[%s10 + $0x10] sm:$0xff]
  %v640 = vld [vmem:[%s10 + $0x18] sm:$0xff]
  %v641 = vld [vmem:[%s11] sm:$0x1]
  %v643 = vlaneseq
  %v644 = vshrl.u32 %v643, 7
  %v645 = vsub.s32 0, %v644
  %v646 = vrot.slane %v641, %v645
  %v649 = vsel %vm58, %v636, 0
  %651 = vmatprep.subr.mxu0 0.0
  %652 = vmatpush1.msra.mxu0 %v637
  %653 = vmatprep.subr.mxu0 0.0
  %654 = vmatpush1.msra.mxu0 %v638
  %655 = vmatprep.subr.mxu0 0.0
  %656 = vmatpush1.msra.mxu0 %v639
  %657 = vmatprep.subr.mxu0 0.0
  %658 = vmatpush1.msra.mxu0 %v640
  %659 = vmatprep.subr.mxu0 0.0
  %660 = vmatpush1.msra.mxu0 0.0
  %661 = vmatprep.subr.mxu0 0.0
  %662 = vmatpush1.msra.mxu0 0.0
  %663 = vmatprep.subr.mxu0 0.0
  %664 = vmatpush1.msra.mxu0 0.0
  %665 = vmatprep.subr.mxu0 0.0
  %666 = vmatpush1.msra.mxu0 0.0
  %667 = vmatprep.subr.mxu0 0.0
  %668 = vmatpush1.msra.mxu0 0.0
  %669 = vmatprep.subr.mxu0 0.0
  %670 = vmatpush1.msra.mxu0 0.0
  %671 = vmatprep.subr.mxu0 0.0
  %672 = vmatpush1.msra.mxu0 0.0
  %673 = vmatprep.subr.mxu0 0.0
  %674 = vmatpush1.msra.mxu0 0.0
  %675 = vmatprep.subr.mxu0 0.0
  %676 = vmatpush1.msra.mxu0 0.0
  %677 = vmatprep.subr.mxu0 0.0
  %678 = vmatpush1.msra.mxu0 0.0
  %679 = vmatprep.subr.mxu0 0.0
  %680 = vmatpush1.msra.mxu0 0.0
  %681 = vmatprep.subr.mxu0 0.0
  %682 = vmatpush1.msra.mxu0 0.0
  %683 = vmatprep.subr.mxu0 0.0
  %684 = vmatpush1.msra.mxu0 0.0
  %685 = vmatprep.subr.mxu0 0.0
  %686 = vmatpush1.msra.mxu0 0.0
  %687 = vmatprep.subr.mxu0 0.0
  %688 = vmatpush1.msra.mxu0 0.0
  %689 = vmatprep.subr.mxu0 0.0
  %690 = vmatpush1.msra.mxu0 0.0
  %691 = vmatprep.subr.mxu0 0.0
  %692 = vmatpush1.msra.mxu0 0.0
  %693 = vmatprep.subr.mxu0 0.0
  %694 = vmatpush1.msra.mxu0 0.0
  %695 = vmatprep.subr.mxu0 0.0
  %696 = vmatpush1.msra.mxu0 0.0
  %697 = vmatprep.subr.mxu0 0.0
  %698 = vmatpush1.msra.mxu0 0.0
  %699 = vmatprep.subr.mxu0 0.0
  %700 = vmatpush1.msra.mxu0 0.0
  %701 = vmatprep.subr.mxu0 0.0
  %702 = vmatpush1.msra.mxu0 0.0
  %703 = vmatprep.subr.mxu0 0.0
  %704 = vmatpush1.msra.mxu0 0.0
  %705 = vmatprep.subr.mxu0 0.0
  %706 = vmatpush1.msra.mxu0 0.0
  %707 = vmatprep.subr.mxu0 0.0
  %708 = vmatpush1.msra.mxu0 0.0
  %709 = vmatprep.subr.mxu0 0.0
  %710 = vmatpush1.msra.mxu0 0.0
  %711 = vmatprep.subr.mxu0 0.0
  %712 = vmatpush1.msra.mxu0 0.0
  %713 = vmatprep.subr.mxu0 0.0
  %714 = vmatpush1.msra.mxu0 0.0
  %715 = vmatprep.mubr.f32.mxu0 0.0
  %716 = vmatmul.mubr.f32.gmra.mrb[0].mxu0 %v649
  %v717 = vpop.f32.mrb[0].mxu0
  %v718 = vadd.f32 %v646, %v717
  %v719 = vpop.f32.mrb[0].mxu0
  %720 = vdwg.mxu0
  %v721 = vmax.f32 %v718, 0.0
  %722 = vst.msk [vmem:[%s12] sm:$0x3] %vm418, %v721
  // Predicated region
  $region50: #{user_model_forward.12} parent=0 // pred_check
    _
  $region51: #{user_model_forward.12} parent=0 // pred_check_branch
    %724 = sbr.rel (0) target = $region53
  $region52: #{user_model_forward.12} parent=0 // pred_region
    _
  $region53: #{user_model_forward.12} parent=0 // pred_fallthru
    _
  // Predicated region
  $region54: #{user_model_forward.12} parent=0 // pred_check
    _
  $region55: #{user_model_forward.12} parent=0 // pred_check_branch
    %726 = sbr.rel (0) target = $region57
  $region56: #{user_model_forward.12} parent=0 // pred_region
    _
  $region57: #{user_model_forward.12} parent=0 // pred_fallthru
    _

// kernel: user_model_forward.13
$region0: #{user_model_forward.13}
  #allocation0 [shape = 'u32[]', space=smem, size = 0x4, offset = 0x4, fixed_abs, tag = 'smem constant byte address 0x4 - core index']
  #allocation1 [shape = 'u32[144,128]{1,0:T(1,128)}', space=vmem, size = 0x12000, scoped, tag = 'internal scratch']
  #allocation2 [shape = 'f32[1,1]{1,0:T(1,128)S(1)}', space=vmem, size = 0x200, scoped, tag = 'scoped memory for user_model_forward.13']
  %s0 = inlined_call_operand.vmem [shape: f32[24,32], index: 0, kind: input, shape index: {}]
  %s1 = inlined_call_operand.vmem [shape: f32[24,32], index: 1, kind: input, shape index: {}]
  %s2 = inlined_call_operand.vmem [shape: f32[24,1], index: 2, kind: input, shape index: {}]
  %s3 = inlined_call_operand.vmem [shape: f32[32,32], index: 3, kind: input, shape index: {}]
  %s4 = inlined_call_operand.vmem [shape: f32[1,32], index: 4, kind: input, shape index: {}]
  %s5 = inlined_call_operand.vmem [shape: f32[32,32], index: 5, kind: input, shape index: {}]
  %s6 = inlined_call_operand.vmem [shape: f32[32,32], index: 6, kind: input, shape index: {}]
  %s7 = inlined_call_operand.vmem [shape: f32[1,32], index: 7, kind: input, shape index: {}]
  %s8 = inlined_call_operand.vmem [shape: f32[1,32], index: 8, kind: input, shape index: {}]
  %s9 = inlined_call_operand.<no memory space> [shape: f32[1,1], index: 9, kind: input, shape index: {}]
  %s10 = inlined_call_operand.vmem [shape: f32[32,32], index: 10, kind: input, shape index: {}]
  %s11 = inlined_call_operand.vmem [shape: f32[1,32], index: 11, kind: input, shape index: {}]
  %s12 = inlined_call_operand.vmem [shape: f32[6,32], index: 12, kind: output, shape index: {}]
  %s13 = sld [smem:[#allocation0]]
  $region58: #{user_model_forward.13} parent=0
    _
  %s15 = ssub.s32 1, %s13
  %s16 = scalar_select 0, %s15, %s13
  %v17 = vstv %s9
  %18 = vst [vmem:[#allocation2] sm:$0x1] %v17
  // Predicated region
  $region2: #{user_model_forward.13} parent=0 // pred_check
    _
  $region3: #{user_model_forward.13} parent=0 // pred_check_branch
    %20 = sbr.rel (0) target = $region5
  $region4: #{user_model_forward.13} parent=0 // pred_region
    _
  $region5: #{user_model_forward.13} parent=0 // pred_fallthru
    _
  // Predicated region
  $region6: #{user_model_forward.13} parent=0 // pred_check
    _
  $region7: #{user_model_forward.13} parent=0 // pred_check_branch
    %22 = sbr.rel (0) target = $region9
  $region8: #{user_model_forward.13} parent=0 // pred_region
    _
  $region9: #{user_model_forward.13} parent=0 // pred_fallthru
    _
  // Predicated region
  $region10: #{user_model_forward.13} parent=0 // pred_check
    _
  $region11: #{user_model_forward.13} parent=0 // pred_check_branch
    %24 = sbr.rel (0) target = $region13
  $region12: #{user_model_forward.13} parent=0 // pred_region
    _
  $region13: #{user_model_forward.13} parent=0 // pred_fallthru
    _
  // Predicated region
  $region14: #{user_model_forward.13} parent=0 // pred_check
    _
  $region15: #{user_model_forward.13} parent=0 // pred_check_branch
    %26 = sbr.rel (0) target = $region17
  $region16: #{user_model_forward.13} parent=0 // pred_region
    _
  $region17: #{user_model_forward.13} parent=0 // pred_fallthru
    _
  // Predicated region
  $region18: #{user_model_forward.13} parent=0 // pred_check
    _
  $region19: #{user_model_forward.13} parent=0 // pred_check_branch
    %28 = sbr.rel (0) target = $region21
  $region20: #{user_model_forward.13} parent=0 // pred_region
    _
  $region21: #{user_model_forward.13} parent=0 // pred_fallthru
    _
  // Predicated region
  $region22: #{user_model_forward.13} parent=0 // pred_check
    _
  $region23: #{user_model_forward.13} parent=0 // pred_check_branch
    %30 = sbr.rel (0) target = $region25
  $region24: #{user_model_forward.13} parent=0 // pred_region
    _
  $region25: #{user_model_forward.13} parent=0 // pred_fallthru
    _
  // Predicated region
  $region26: #{user_model_forward.13} parent=0 // pred_check
    _
  $region27: #{user_model_forward.13} parent=0 // pred_check_branch
    %32 = sbr.rel (0) target = $region29
  $region28: #{user_model_forward.13} parent=0 // pred_region
    _
  $region29: #{user_model_forward.13} parent=0 // pred_fallthru
    _
  // Predicated region
  $region30: #{user_model_forward.13} parent=0 // pred_check
    _
  $region31: #{user_model_forward.13} parent=0 // pred_check_branch
    %34 = sbr.rel (0) target = $region33
  $region32: #{user_model_forward.13} parent=0 // pred_region
    _
  $region33: #{user_model_forward.13} parent=0 // pred_fallthru
    _
  // Predicated region
  $region34: #{user_model_forward.13} parent=0 // pred_check
    _
  $region35: #{user_model_forward.13} parent=0 // pred_check_branch
    %36 = sbr.rel (0) target = $region37
  $region36: #{user_model_forward.13} parent=0 // pred_region
    _
  $region37: #{user_model_forward.13} parent=0 // pred_fallthru
    _
  // Predicated region
  $region38: #{user_model_forward.13} parent=0 // pred_check
    _
  $region39: #{user_model_forward.13} parent=0 // pred_check_branch
    %38 = sbr.rel (0) target = $region41
  $region40: #{user_model_forward.13} parent=0 // pred_region
    _
  $region41: #{user_model_forward.13} parent=0 // pred_fallthru
    _
  // Predicated region
  $region42: #{user_model_forward.13} parent=0 // pred_check
    _
  $region43: #{user_model_forward.13} parent=0 // pred_check_branch
    %40 = sbr.rel (0) target = $region45
  $region44: #{user_model_forward.13} parent=0 // pred_region
    _
  $region45: #{user_model_forward.13} parent=0 // pred_fallthru
    _
  // Predicated region
  $region46: #{user_model_forward.13} parent=0 // pred_check
    _
  $region47: #{user_model_forward.13} parent=0 // pred_check_branch
    %42 = sbr.rel (0) target = $region49
  $region48: #{user_model_forward.13} parent=0 // pred_region
    _
  $region49: #{user_model_forward.13} parent=0 // pred_fallthru
    _
  %v43 = vld [vmem:[%s0] sm:$0xff]
  %v44 = vld [vmem:[%s0 + $0x8] sm:$0xff]
  %v45 = vld [vmem:[%s0 + $0x10] sm:$0xff]
  %v46 = vld [vmem:[%s1] sm:$0xff]
  %v47 = vld [vmem:[%s1 + $0x8] sm:$0xff]
  %v48 = vld [vmem:[%s1 + $0x10] sm:$0xff]
  %v49 = vld [vmem:[%s3] sm:$0xff]
  %v50 = vld [vmem:[%s3 + $0x8] sm:$0xff]
  %v51 = vld [vmem:[%s3 + $0x10] sm:$0xff]
  %v52 = vld [vmem:[%s3 + $0x18] sm:$0xff]
  %v53 = vld [vmem:[%s4] sm:$0x1]
  %v55 = vlaneseq
  %v56 = vshrl.u32 %v55, 7
  %v57 = vsub.s32 0, %v56
  %v58 = vrot.slane %v53, %v57
  %vm60 = vcmask 261120
  %v62 = vsel %vm60, %v43, 0
  %v65 = vsel %vm60, %v44, 0
  %v68 = vsel %vm60, %v45, 0
  %70 = vmatprep.subr.mxu0 0.0
  %71 = vmatpush1.msra.mxu0 %v49
  %72 = vmatprep.subr.mxu0 0.0
  %73 = vmatpush1.msra.mxu0 %v50
  %74 = vmatprep.subr.mxu0 0.0
  %75 = vmatpush1.msra.mxu0 %v51
  %76 = vmatprep.subr.mxu0 0.0
  %77 = vmatpush1.msra.mxu0 %v52
  %78 = vmatprep.subr.mxu0 0.0
  %79 = vmatpush1.msra.mxu0 0.0
  %80 = vmatprep.subr.mxu0 0.0
  %81 = vmatpush1.msra.mxu0 0.0
  %82 = vmatprep.subr.mxu0 0.0
  %83 = vmatpush1.msra.mxu0 0.0
  %84 = vmatprep.subr.mxu0 0.0
  %85 = vmatpush1.msra.mxu0 0.0
  %86 = vmatprep.subr.mxu0 0.0
  %87 = vmatpush1.msra.mxu0 0.0
  %88 = vmatprep.subr.mxu0 0.0
  %89 = vmatpush1.msra.mxu0 0.0
  %90 = vmatprep.subr.mxu0 0.0
  %91 = vmatpush1.msra.mxu0 0.0
  %92 = vmatprep.subr.mxu0 0.0
  %93 = vmatpush1.msra.mxu0 0.0
  %94 = vmatprep.subr.mxu0 0.0
  %95 = vmatpush1.msra.mxu0 0.0
  %96 = vmatprep.subr.mxu0 0.0
  %97 = vmatpush1.msra.mxu0 0.0
  %98 = vmatprep.subr.mxu0 0.0
  %99 = vmatpush1.msra.mxu0 0.0
  %100 = vmatprep.subr.mxu0 0.0
  %101 = vmatpush1.msra.mxu0 0.0
  %102 = vmatprep.subr.mxu0 0.0
  %103 = vmatpush1.msra.mxu0 0.0
  %104 = vmatprep.subr.mxu0 0.0
  %105 = vmatpush1.msra.mxu0 0.0
  %106 = vmatprep.subr.mxu0 0.0
  %107 = vmatpush1.msra.mxu0 0.0
  %108 = vmatprep.subr.mxu0 0.0
  %109 = vmatpush1.msra.mxu0 0.0
  %110 = vmatprep.subr.mxu0 0.0
  %111 = vmatpush1.msra.mxu0 0.0
  %112 = vmatprep.subr.mxu0 0.0
  %113 = vmatpush1.msra.mxu0 0.0
  %114 = vmatprep.subr.mxu0 0.0
  %115 = vmatpush1.msra.mxu0 0.0
  %116 = vmatprep.subr.mxu0 0.0
  %117 = vmatpush1.msra.mxu0 0.0
  %118 = vmatprep.subr.mxu0 0.0
  %119 = vmatpush1.msra.mxu0 0.0
  %120 = vmatprep.subr.mxu0 0.0
  %121 = vmatpush1.msra.mxu0 0.0
  %122 = vmatprep.subr.mxu0 0.0
  %123 = vmatpush1.msra.mxu0 0.0
  %124 = vmatprep.subr.mxu0 0.0
  %125 = vmatpush1.msra.mxu0 0.0
  %126 = vmatprep.subr.mxu0 0.0
  %127 = vmatpush1.msra.mxu0 0.0
  %128 = vmatprep.subr.mxu0 0.0
  %129 = vmatpush1.msra.mxu0 0.0
  %130 = vmatprep.subr.mxu0 0.0
  %131 = vmatpush1.msra.mxu0 0.0
  %132 = vmatprep.subr.mxu0 0.0
  %133 = vmatpush1.msra.mxu0 0.0
  %134 = vmatprep.mubr.f32.mxu0 0.0
  %135 = vmatmul.mubr.f32.gmra.mrb[0].mxu0 %v62
  %v136 = vpop.f32.mrb[0].mxu0
  %v137 = vadd.f32 %v58, %v136
  %v138 = vpop.f32.mrb[0].mxu0
  %139 = vmatprep.mubr.f32.mxu0 0.0
  %140 = vmatmul.mubr.f32.gmra.mrb[0].mxu0 %v65
  %v141 = vpop.f32.mrb[0].mxu0
  %v142 = vadd.f32 %v58, %v141
  %v143 = vpop.f32.mrb[0].mxu0
  %144 = vmatprep.mubr.f32.mxu0 0.0
  %145 = vmatmul.mubr.f32.gmra.mrb[0].mxu0 %v68
  %v146 = vpop.f32.mrb[0].mxu0
  %v147 = vadd.f32 %v58, %v146
  %v148 = vpop.f32.mrb[0].mxu0
  %149 = vdwg.mxu0
  %v151 = vsel %vm60, %v46, 0
  %v154 = vsel %vm60, %v47, 0
  %v157 = vsel %vm60, %v48, 0
  %159 = vmatprep.subr.mxu0 0.0
  %160 = vmatpush1.msra.mxu0 %v49
  %161 = vmatprep.subr.mxu0 0.0
  %162 = vmatpush1.msra.mxu0 %v50
  %163 = vmatprep.subr.mxu0 0.0
  %164 = vmatpush1.msra.mxu0 %v51
  %165 = vmatprep.subr.mxu0 0.0
  %166 = vmatpush1.msra.mxu0 %v52
  %167 = vmatprep.subr.mxu0 0.0
  %168 = vmatpush1.msra.mxu0 0.0
  %169 = vmatprep.subr.mxu0 0.0
  %170 = vmatpush1.msra.mxu0 0.0
  %171 = vmatprep.subr.mxu0 0.0
  %172 = vmatpush1.msra.mxu0 0.0
  %173 = vmatprep.subr.mxu0 0.0
  %174 = vmatpush1.msra.mxu0 0.0
  %175 = vmatprep.subr.mxu0 0.0
  %176 = vmatpush1.msra.mxu0 0.0
  %177 = vmatprep.subr.mxu0 0.0
  %178 = vmatpush1.msra.mxu0 0.0
  %179 = vmatprep.subr.mxu0 0.0
  %180 = vmatpush1.msra.mxu0 0.0
  %181 = vmatprep.subr.mxu0 0.0
  %182 = vmatpush1.msra.mxu0 0.0
  %183 = vmatprep.subr.mxu0 0.0
  %184 = vmatpush1.msra.mxu0 0.0
  %185 = vmatprep.subr.mxu0 0.0
  %186 = vmatpush1.msra.mxu0 0.0
  %187 = vmatprep.subr.mxu0 0.0
  %188 = vmatpush1.msra.mxu0 0.0
  %189 = vmatprep.subr.mxu0 0.0
  %190 = vmatpush1.msra.mxu0 0.0
  %191 = vmatprep.subr.mxu0 0.0
  %192 = vmatpush1.msra.mxu0 0.0
  %193 = vmatprep.subr.mxu0 0.0
  %194 = vmatpush1.msra.mxu0 0.0
  %195 = vmatprep.subr.mxu0 0.0
  %196 = vmatpush1.msra.mxu0 0.0
  %197 = vmatprep.subr.mxu0 0.0
  %198 = vmatpush1.msra.mxu0 0.0
  %199 = vmatprep.subr.mxu0 0.0
  %200 = vmatpush1.msra.mxu0 0.0
  %201 = vmatprep.subr.mxu0 0.0
  %202 = vmatpush1.msra.mxu0 0.0
  %203 = vmatprep.subr.mxu0 0.0
  %204 = vmatpush1.msra.mxu0 0.0
  %205 = vmatprep.subr.mxu0 0.0
  %206 = vmatpush1.msra.mxu0 0.0
  %207 = vmatprep.subr.mxu0 0.0
  %208 = vmatpush1.msra.mxu0 0.0
  %209 = vmatprep.subr.mxu0 0.0
  %210 = vmatpush1.msra.mxu0 0.0
  %211 = vmatprep.subr.mxu0 0.0
  %212 = vmatpush1.msra.mxu0 0.0
  %213 = vmatprep.subr.mxu0 0.0
  %214 = vmatpush1.msra.mxu0 0.0
  %215 = vmatprep.subr.mxu0 0.0
  %216 = vmatpush1.msra.mxu0 0.0
  %217 = vmatprep.subr.mxu0 0.0
  %218 = vmatpush1.msra.mxu0 0.0
  %219 = vmatprep.subr.mxu0 0.0
  %220 = vmatpush1.msra.mxu0 0.0
  %221 = vmatprep.subr.mxu0 0.0
  %222 = vmatpush1.msra.mxu0 0.0
  %223 = vmatprep.mubr.f32.mxu0 0.0
  %224 = vmatmul.mubr.f32.gmra.mrb[0].mxu0 %v151
  %v225 = vpop.f32.mrb[0].mxu0
  %v226 = vadd.f32 %v58, %v225
  %v227 = vpop.f32.mrb[0].mxu0
  %228 = vmatprep.mubr.f32.mxu0 0.0
  %229 = vmatmul.mubr.f32.gmra.mrb[0].mxu0 %v154
  %v230 = vpop.f32.mrb[0].mxu0
  %v231 = vadd.f32 %v58, %v230
  %v232 = vpop.f32.mrb[0].mxu0
  %233 = vmatprep.mubr.f32.mxu0 0.0
  %234 = vmatmul.mubr.f32.gmra.mrb[0].mxu0 %v157
  %v235 = vpop.f32.mrb[0].mxu0
  %v236 = vadd.f32 %v58, %v235
  %v237 = vpop.f32.mrb[0].mxu0
  %238 = vdwg.mxu0
  %v239 = vld [vmem:[%s5] sm:$0xff]
  %v240 = vld [vmem:[%s5 + $0x8] sm:$0xff]
  %v241 = vld [vmem:[%s5 + $0x10] sm:$0xff]
  %v242 = vld [vmem:[%s5 + $0x18] sm:$0xff]
  %v243 = vld [vmem:[%s6] sm:$0xff]
  %v244 = vld [vmem:[%s6 + $0x8] sm:$0xff]
  %v245 = vld [vmem:[%s6 + $0x10] sm:$0xff]
  %v246 = vld [vmem:[%s6 + $0x18] sm:$0xff]
  %v248 = vsel %vm60, %v226, 0
  %v251 = vsel %vm60, %v231, 0
  %v254 = vsel %vm60, %v236, 0
  %256 = vmatprep.subr.mxu0 0.0
  %257 = vmatpush1.msra.mxu0 %v243
  %258 = vmatprep.subr.mxu0 0.0
  %259 = vmatpush1.msra.mxu0 %v244
  %260 = vmatprep.subr.mxu0 0.0
  %261 = vmatpush1.msra.mxu0 %v245
  %262 = vmatprep.subr.mxu0 0.0
  %263 = vmatpush1.msra.mxu0 %v246
  %264 = vmatprep.subr.mxu0 0.0
  %265 = vmatpush1.msra.mxu0 0.0
  %266 = vmatprep.subr.mxu0 0.0
  %267 = vmatpush1.msra.mxu0 0.0
  %268 = vmatprep.subr.mxu0 0.0
  %269 = vmatpush1.msra.mxu0 0.0
  %270 = vmatprep.subr.mxu0 0.0
  %271 = vmatpush1.msra.mxu0 0.0
  %272 = vmatprep.subr.mxu0 0.0
  %273 = vmatpush1.msra.mxu0 0.0
  %274 = vmatprep.subr.mxu0 0.0
  %275 = vmatpush1.msra.mxu0 0.0
  %276 = vmatprep.subr.mxu0 0.0
  %277 = vmatpush1.msra.mxu0 0.0
  %278 = vmatprep.subr.mxu0 0.0
  %279 = vmatpush1.msra.mxu0 0.0
  %280 = vmatprep.subr.mxu0 0.0
  %281 = vmatpush1.msra.mxu0 0.0
  %282 = vmatprep.subr.mxu0 0.0
  %283 = vmatpush1.msra.mxu0 0.0
  %284 = vmatprep.subr.mxu0 0.0
  %285 = vmatpush1.msra.mxu0 0.0
  %286 = vmatprep.subr.mxu0 0.0
  %287 = vmatpush1.msra.mxu0 0.0
  %288 = vmatprep.subr.mxu0 0.0
  %289 = vmatpush1.msra.mxu0 0.0
  %290 = vmatprep.subr.mxu0 0.0
  %291 = vmatpush1.msra.mxu0 0.0
  %292 = vmatprep.subr.mxu0 0.0
  %293 = vmatpush1.msra.mxu0 0.0
  %294 = vmatprep.subr.mxu0 0.0
  %295 = vmatpush1.msra.mxu0 0.0
  %296 = vmatprep.subr.mxu0 0.0
  %297 = vmatpush1.msra.mxu0 0.0
  %298 = vmatprep.subr.mxu0 0.0
  %299 = vmatpush1.msra.mxu0 0.0
  %300 = vmatprep.subr.mxu0 0.0
  %301 = vmatpush1.msra.mxu0 0.0
  %302 = vmatprep.subr.mxu0 0.0
  %303 = vmatpush1.msra.mxu0 0.0
  %304 = vmatprep.subr.mxu0 0.0
  %305 = vmatpush1.msra.mxu0 0.0
  %306 = vmatprep.subr.mxu0 0.0
  %307 = vmatpush1.msra.mxu0 0.0
  %308 = vmatprep.subr.mxu0 0.0
  %309 = vmatpush1.msra.mxu0 0.0
  %310 = vmatprep.subr.mxu0 0.0
  %311 = vmatpush1.msra.mxu0 0.0
  %312 = vmatprep.subr.mxu0 0.0
  %313 = vmatpush1.msra.mxu0 0.0
  %314 = vmatprep.subr.mxu0 0.0
  %315 = vmatpush1.msra.mxu0 0.0
  %316 = vmatprep.subr.mxu0 0.0
  %317 = vmatpush1.msra.mxu0 0.0
  %318 = vmatprep.subr.mxu0 0.0
  %319 = vmatpush1.msra.mxu0 0.0
  %320 = vmatprep.mubr.f32.mxu0 0.0
  %321 = vmatmul.mubr.f32.gmra.mrb[0].mxu0 %v248
  %v322 = vpop.f32.mrb[0].mxu0
  %v323 = vadd.f32 0.0, %v322
  %v324 = vpop.f32.mrb[0].mxu0
  %325 = vmatprep.mubr.f32.mxu0 0.0
  %326 = vmatmul.mubr.f32.gmra.mrb[0].mxu0 %v251
  %v327 = vpop.f32.mrb[0].mxu0
  %v328 = vadd.f32 0.0, %v327
  %v329 = vpop.f32.mrb[0].mxu0
  %330 = vmatprep.mubr.f32.mxu0 0.0
  %331 = vmatmul.mubr.f32.gmra.mrb[0].mxu0 %v254
  %v332 = vpop.f32.mrb[0].mxu0
  %v333 = vadd.f32 0.0, %v332
  %v334 = vpop.f32.mrb[0].mxu0
  %335 = vdwg.mxu0
  %v337 = vsel %vm60, %v137, 0
  %v340 = vsel %vm60, %v142, 0
  %v343 = vsel %vm60, %v147, 0
  %345 = vmatprep.subr.mxu0 0.0
  %346 = vmatpush1.msra.mxu0 %v239
  %347 = vmatprep.subr.mxu0 0.0
  %348 = vmatpush1.msra.mxu0 %v240
  %349 = vmatprep.subr.mxu0 0.0
  %350 = vmatpush1.msra.mxu0 %v241
  %351 = vmatprep.subr.mxu0 0.0
  %352 = vmatpush1.msra.mxu0 %v242
  %353 = vmatprep.subr.mxu0 0.0
  %354 = vmatpush1.msra.mxu0 0.0
  %355 = vmatprep.subr.mxu0 0.0
  %356 = vmatpush1.msra.mxu0 0.0
  %357 = vmatprep.subr.mxu0 0.0
  %358 = vmatpush1.msra.mxu0 0.0
  %359 = vmatprep.subr.mxu0 0.0
  %360 = vmatpush1.msra.mxu0 0.0
  %361 = vmatprep.subr.mxu0 0.0
  %362 = vmatpush1.msra.mxu0 0.0
  %363 = vmatprep.subr.mxu0 0.0
  %364 = vmatpush1.msra.mxu0 0.0
  %365 = vmatprep.subr.mxu0 0.0
  %366 = vmatpush1.msra.mxu0 0.0
  %367 = vmatprep.subr.mxu0 0.0
  %368 = vmatpush1.msra.mxu0 0.0
  %369 = vmatprep.subr.mxu0 0.0
  %370 = vmatpush1.msra.mxu0 0.0
  %371 = vmatprep.subr.mxu0 0.0
  %372 = vmatpush1.msra.mxu0 0.0
  %373 = vmatprep.subr.mxu0 0.0
  %374 = vmatpush1.msra.mxu0 0.0
  %375 = vmatprep.subr.mxu0 0.0
  %376 = vmatpush1.msra.mxu0 0.0
  %377 = vmatprep.subr.mxu0 0.0
  %378 = vmatpush1.msra.mxu0 0.0
  %379 = vmatprep.subr.mxu0 0.0
  %380 = vmatpush1.msra.mxu0 0.0
  %381 = vmatprep.subr.mxu0 0.0
  %382 = vmatpush1.msra.mxu0 0.0
  %383 = vmatprep.subr.mxu0 0.0
  %384 = vmatpush1.msra.mxu0 0.0
  %385 = vmatprep.subr.mxu0 0.0
  %386 = vmatpush1.msra.mxu0 0.0
  %387 = vmatprep.subr.mxu0 0.0
  %388 = vmatpush1.msra.mxu0 0.0
  %389 = vmatprep.subr.mxu0 0.0
  %390 = vmatpush1.msra.mxu0 0.0
  %391 = vmatprep.subr.mxu0 0.0
  %392 = vmatpush1.msra.mxu0 0.0
  %393 = vmatprep.subr.mxu0 0.0
  %394 = vmatpush1.msra.mxu0 0.0
  %395 = vmatprep.subr.mxu0 0.0
  %396 = vmatpush1.msra.mxu0 0.0
  %397 = vmatprep.subr.mxu0 0.0
  %398 = vmatpush1.msra.mxu0 0.0
  %399 = vmatprep.subr.mxu0 0.0
  %400 = vmatpush1.msra.mxu0 0.0
  %401 = vmatprep.subr.mxu0 0.0
  %402 = vmatpush1.msra.mxu0 0.0
  %403 = vmatprep.subr.mxu0 0.0
  %404 = vmatpush1.msra.mxu0 0.0
  %405 = vmatprep.subr.mxu0 0.0
  %406 = vmatpush1.msra.mxu0 0.0
  %407 = vmatprep.subr.mxu0 0.0
  %408 = vmatpush1.msra.mxu0 0.0
  %409 = vmatprep.mubr.f32.mxu0 0.0
  %410 = vmatmul.mubr.f32.gmra.mrb[0].mxu0 %v337
  %v411 = vpop.f32.mrb[0].mxu0
  %v412 = vadd.f32 %v323, %v411
  %v413 = vpop.f32.mrb[0].mxu0
  %414 = vmatprep.mubr.f32.mxu0 0.0
  %415 = vmatmul.mubr.f32.gmra.mrb[0].mxu0 %v340
  %v416 = vpop.f32.mrb[0].mxu0
  %v417 = vadd.f32 %v328, %v416
  %v418 = vpop.f32.mrb[0].mxu0
  %419 = vmatprep.mubr.f32.mxu0 0.0
  %420 = vmatmul.mubr.f32.gmra.mrb[0].mxu0 %v343
  %v421 = vpop.f32.mrb[0].mxu0
  %v422 = vadd.f32 %v333, %v421
  %v423 = vpop.f32.mrb[0].mxu0
  %424 = vdwg.mxu0
  %v425 = vld [vmem:[%s7] sm:$0x1]
  %v427 = vlaneseq
  %v428 = vshrl.u32 %v427, 7
  %v429 = vsub.s32 0, %v428
  %v430 = vrot.slane %v425, %v429
  %v432 = vadd.f32 %v412, %v430
  %v433 = vadd.f32 %v417, %v430
  %v434 = vadd.f32 %v422, %v430
  %vm435 = vcmp.ge.f32.partialorder %v432, 0.0
  %vm436 = vcmp.ge.f32.partialorder %v433, 0.0
  %vm437 = vcmp.ge.f32.partialorder %v434, 0.0
  %v438 = vmul.f32 %v432, 0.2
  %v439 = vmul.f32 %v433, 0.2
  %v440 = vmul.f32 %v434, 0.2
  %v441 = vsel %vm435, %v432, %v438
  %v442 = vsel %vm436, %v433, %v439
  %v443 = vsel %vm437, %v434, %v440
  %v444 = vld [vmem:[%s8] sm:$0x1]
  %v446 = vlaneseq
  %v447 = vshrl.u32 %v446, 7
  %v448 = vsub.s32 0, %v447
  %v449 = vrot.slane %v444, %v448
  %v451 = vmul.f32 %v441, %v449
  %v452 = vmul.f32 %v442, %v449
  %v453 = vmul.f32 %v443, %v449
  %v454 = vsel %vm60, %v451, 0.0
  %455 = vadd.xlane.f32.xlu0 %v454
  %v456 = vpop.xlane.xlu0 %455
  %v457 = vsel %vm60, %v452, 0.0
  %458 = vadd.xlane.f32.xlu0 %v457
  %v459 = vpop.xlane.xlu0 %458
  %v460 = vsel %vm60, %v453, 0.0
  %461 = vadd.xlane.f32.xlu0 %v460
  %v462 = vpop.xlane.xlu0 %461
  %v463 = vld [vmem:[#allocation2] sm:$0x1]
  %v465 = vlaneseq
  %v466 = vshrl.u32 %v465, 7
  %v467 = vsub.s32 0, %v466
  %v468 = vrot.slane %v463, %v467
  %v470 = vadd.f32 %v456, %v468
  %v471 = vadd.f32 %v459, %v468
  %v472 = vadd.f32 %v462, %v468
  %v473 = vld [vmem:[%s2] sm:$0xff]
  %v474 = vld [vmem:[%s2 + $0x8] sm:$0xff]
  %v475 = vld [vmem:[%s2 + $0x10] sm:$0xff]
  %vm476 = vcmp.gt.f32.partialorder %v473, 0.0
  %vm477 = vcmp.gt.f32.partialorder %v474, 0.0
  %vm478 = vcmp.gt.f32.partialorder %v475, 0.0
  %v479 = vsel %vm476, %v470, -1e+30
  %v480 = vsel %vm477, %v471, -1e+30
  %v481 = vsel %vm478, %v472, -1e+30
  %vm482 = vcmask 7168
  %v483 = vsel %vm482, %v479, -inf
  %v484 = vsel %vm482, %v480, -inf
  %v485 = vsel %vm482, %v481, -inf
  %v486 = vmax.f32 %v483, %v484
  %v487 = vmax.f32 %v486, %v485
  %v488 = vrot.slane %v487, 4
  %v489 = vmax.f32 %v487, %v488
  %v490 = vrot.slane %v489, 2
  %v491 = vmax.f32 %v489, %v490
  %v492 = vrot.slane %v491, 1
  %v493 = vmax.f32 %v491, %v492
  %v494 = vmax.f32 %v493, 0.0
  %v495 = vsub.f32 %v479, %v494
  %v496 = vsub.f32 %v480, %v494
  %v497 = vsub.f32 %v481, %v494
  %v498 = vmul.f32 %v495, 1.442695
  %v499 = vpow.pop %v498
  %v500 = vmul.f32 %v496, 1.442695
  %v501 = vpow.pop %v500
  %v502 = vmul.f32 %v497, 1.442695
  %v503 = vpow.pop %v502
  %v504 = vmul.f32 %v499, %v473
  %v505 = vmul.f32 %v501, %v474
  %v506 = vmul.f32 %v503, %v475
  %v507 = vlaneseq
  %v508 = vshrl.u32 %v507, 7
  %v509 = vlaneseq
  %v510 = vand.u32 %v509, 127
  %v511 = vmul.u32 %v508, 4
  %vm512 = vcmp.ge.s32.totalorder %v510, %v511
  %v513 = vadd.s32 %v511, 4
  %vm514 = vcmp.lt.s32.totalorder %v510, %v513
  %vm515 = vmand %vm512, %vm514
  %v516 = vsel %vm515, 1, 0
  %v517 = vcvt.s32.f32 %v516
  %519 = vset.pattern.permute.xlu0 0
  %520 = vperm.xlu0 %519, %v504
  %v521 = vpop.permute.xlu0 %520
  %524 = vset.pattern.permute.xlu0 0
  %525 = vperm.xlu0 %524, %v505
  %v526 = vpop.permute.xlu0 %525
  %529 = vset.pattern.permute.xlu0 0
  %530 = vperm.xlu0 %529, %v506
  %v531 = vpop.permute.xlu0 %530
  %v533 = vmul.f32 %v521, %v43
  %v534 = vmul.f32 %v526, %v44
  %v535 = vmul.f32 %v531, %v45
  %vm536 = vcmask 195584
  %v538 = vsel %vm536, %v517, 0
  %540 = vmatprep.subr.mxu0 0.0
  %541 = vmatpush1.msra.mxu0 %v533
  %542 = vmatprep.subr.mxu0 0.0
  %543 = vmatpush1.msra.mxu0 %v534
  %544 = vmatprep.subr.mxu0 0.0
  %545 = vmatpush1.msra.mxu0 %v535
  %546 = vmatprep.subr.mxu0 0.0
  %547 = vmatpush1.msra.mxu0 0.0
  %548 = vmatprep.subr.mxu0 0.0
  %549 = vmatpush1.msra.mxu0 0.0
  %550 = vmatprep.subr.mxu0 0.0
  %551 = vmatpush1.msra.mxu0 0.0
  %552 = vmatprep.subr.mxu0 0.0
  %553 = vmatpush1.msra.mxu0 0.0
  %554 = vmatprep.subr.mxu0 0.0
  %555 = vmatpush1.msra.mxu0 0.0
  %556 = vmatprep.subr.mxu0 0.0
  %557 = vmatpush1.msra.mxu0 0.0
  %558 = vmatprep.subr.mxu0 0.0
  %559 = vmatpush1.msra.mxu0 0.0
  %560 = vmatprep.subr.mxu0 0.0
  %561 = vmatpush1.msra.mxu0 0.0
  %562 = vmatprep.subr.mxu0 0.0
  %563 = vmatpush1.msra.mxu0 0.0
  %564 = vmatprep.subr.mxu0 0.0
  %565 = vmatpush1.msra.mxu0 0.0
  %566 = vmatprep.subr.mxu0 0.0
  %567 = vmatpush1.msra.mxu0 0.0
  %568 = vmatprep.subr.mxu0 0.0
  %569 = vmatpush1.msra.mxu0 0.0
  %570 = vmatprep.subr.mxu0 0.0
  %571 = vmatpush1.msra.mxu0 0.0
  %572 = vmatprep.subr.mxu0 0.0
  %573 = vmatpush1.msra.mxu0 0.0
  %574 = vmatprep.subr.mxu0 0.0
  %575 = vmatpush1.msra.mxu0 0.0
  %576 = vmatprep.subr.mxu0 0.0
  %577 = vmatpush1.msra.mxu0 0.0
  %578 = vmatprep.subr.mxu0 0.0
  %579 = vmatpush1.msra.mxu0 0.0
  %580 = vmatprep.subr.mxu0 0.0
  %581 = vmatpush1.msra.mxu0 0.0
  %582 = vmatprep.subr.mxu0 0.0
  %583 = vmatpush1.msra.mxu0 0.0
  %584 = vmatprep.subr.mxu0 0.0
  %585 = vmatpush1.msra.mxu0 0.0
  %586 = vmatprep.subr.mxu0 0.0
  %587 = vmatpush1.msra.mxu0 0.0
  %588 = vmatprep.subr.mxu0 0.0
  %589 = vmatpush1.msra.mxu0 0.0
  %590 = vmatprep.subr.mxu0 0.0
  %591 = vmatpush1.msra.mxu0 0.0
  %592 = vmatprep.subr.mxu0 0.0
  %593 = vmatpush1.msra.mxu0 0.0
  %594 = vmatprep.subr.mxu0 0.0
  %595 = vmatpush1.msra.mxu0 0.0
  %596 = vmatprep.subr.mxu0 0.0
  %597 = vmatpush1.msra.mxu0 0.0
  %598 = vmatprep.subr.mxu0 0.0
  %599 = vmatpush1.msra.mxu0 0.0
  %600 = vmatprep.subr.mxu0 0.0
  %601 = vmatpush1.msra.mxu0 0.0
  %602 = vmatprep.subr.mxu0 0.0
  %603 = vmatpush1.msra.mxu0 0.0
  %604 = vmatprep.mubr.f32.mxu0 0.0
  %605 = vmatmul.mubr.f32.gmra.mrb[0].mxu0 %v538
  %v606 = vpop.f32.mrb[0].mxu0
  %v607 = vadd.f32 0.0, %v606
  %v608 = vpop.f32.mrb[0].mxu0
  %609 = vdwg.mxu0
  %610 = vmatprep.subr.mxu0 0.0
  %611 = vmatpush1.msra.mxu0 %v504
  %612 = vmatprep.subr.mxu0 0.0
  %613 = vmatpush1.msra.mxu0 %v505
  %614 = vmatprep.subr.mxu0 0.0
  %615 = vmatpush1.msra.mxu0 %v506
  %616 = vmatprep.subr.mxu0 0.0
  %617 = vmatpush1.msra.mxu0 0.0
  %618 = vmatprep.subr.mxu0 0.0
  %619 = vmatpush1.msra.mxu0 0.0
  %620 = vmatprep.subr.mxu0 0.0
  %621 = vmatpush1.msra.mxu0 0.0
  %622 = vmatprep.subr.mxu0 0.0
  %623 = vmatpush1.msra.mxu0 0.0
  %624 = vmatprep.subr.mxu0 0.0
  %625 = vmatpush1.msra.mxu0 0.0
  %626 = vmatprep.subr.mxu0 0.0
  %627 = vmatpush1.msra.mxu0 0.0
  %628 = vmatprep.subr.mxu0 0.0
  %629 = vmatpush1.msra.mxu0 0.0
  %630 = vmatprep.subr.mxu0 0.0
  %631 = vmatpush1.msra.mxu0 0.0
  %632 = vmatprep.subr.mxu0 0.0
  %633 = vmatpush1.msra.mxu0 0.0
  %634 = vmatprep.subr.mxu0 0.0
  %635 = vmatpush1.msra.mxu0 0.0
  %636 = vmatprep.subr.mxu0 0.0
  %637 = vmatpush1.msra.mxu0 0.0
  %638 = vmatprep.subr.mxu0 0.0
  %639 = vmatpush1.msra.mxu0 0.0
  %640 = vmatprep.subr.mxu0 0.0
  %641 = vmatpush1.msra.mxu0 0.0
  %642 = vmatprep.subr.mxu0 0.0
  %643 = vmatpush1.msra.mxu0 0.0
  %644 = vmatprep.subr.mxu0 0.0
  %645 = vmatpush1.msra.mxu0 0.0
  %646 = vmatprep.subr.mxu0 0.0
  %647 = vmatpush1.msra.mxu0 0.0
  %648 = vmatprep.subr.mxu0 0.0
  %649 = vmatpush1.msra.mxu0 0.0
  %650 = vmatprep.subr.mxu0 0.0
  %651 = vmatpush1.msra.mxu0 0.0
  %652 = vmatprep.subr.mxu0 0.0
  %653 = vmatpush1.msra.mxu0 0.0
  %654 = vmatprep.subr.mxu0 0.0
  %655 = vmatpush1.msra.mxu0 0.0
  %656 = vmatprep.subr.mxu0 0.0
  %657 = vmatpush1.msra.mxu0 0.0
  %658 = vmatprep.subr.mxu0 0.0
  %659 = vmatpush1.msra.mxu0 0.0
  %660 = vmatprep.subr.mxu0 0.0
  %661 = vmatpush1.msra.mxu0 0.0
  %662 = vmatprep.subr.mxu0 0.0
  %663 = vmatpush1.msra.mxu0 0.0
  %664 = vmatprep.subr.mxu0 0.0
  %665 = vmatpush1.msra.mxu0 0.0
  %666 = vmatprep.subr.mxu0 0.0
  %667 = vmatpush1.msra.mxu0 0.0
  %668 = vmatprep.subr.mxu0 0.0
  %669 = vmatpush1.msra.mxu0 0.0
  %670 = vmatprep.subr.mxu0 0.0
  %671 = vmatpush1.msra.mxu0 0.0
  %672 = vmatprep.subr.mxu0 0.0
  %673 = vmatpush1.msra.mxu0 0.0
  %674 = vmatprep.mubr.f32.mxu0 0.0
  %675 = vmatmul.mubr.f32.gmra.mrb[0].mxu0 %v538
  %v676 = vpop.f32.mrb[0].mxu0
  %v677 = vadd.f32 1e-10, %v676
  %v678 = vpop.f32.mrb[0].mxu0
  %679 = vdwg.mxu0
  %v680 = vrcp.pop %v677
  %682 = vset.pattern.permute.xlu0 0
  %683 = vperm.xlu0 %682, %v680
  %v684 = vpop.permute.xlu0 %683
  %v686 = vmul.f32 %v607, %v684
  %v687 = vld [vmem:[%s10] sm:$0xff]
  %v688 = vld [vmem:[%s10 + $0x8] sm:$0xff]
  %v689 = vld [vmem:[%s10 + $0x10] sm:$0xff]
  %v690 = vld [vmem:[%s10 + $0x18] sm:$0xff]
  %v691 = vld [vmem:[%s11] sm:$0x1]
  %v693 = vlaneseq
  %v694 = vshrl.u32 %v693, 7
  %v695 = vsub.s32 0, %v694
  %v696 = vrot.slane %v691, %v695
  %v699 = vsel %vm60, %v686, 0
  %701 = vmatprep.subr.mxu0 0.0
  %702 = vmatpush1.msra.mxu0 %v687
  %703 = vmatprep.subr.mxu0 0.0
  %704 = vmatpush1.msra.mxu0 %v688
  %705 = vmatprep.subr.mxu0 0.0
  %706 = vmatpush1.msra.mxu0 %v689
  %707 = vmatprep.subr.mxu0 0.0
  %708 = vmatpush1.msra.mxu0 %v690
  %709 = vmatprep.subr.mxu0 0.0
  %710 = vmatpush1.msra.mxu0 0.0
  %711 = vmatprep.subr.mxu0 0.0
  %712 = vmatpush1.msra.mxu0 0.0
  %713 = vmatprep.subr.mxu0 0.0
  %714 = vmatpush1.msra.mxu0 0.0
  %715 = vmatprep.subr.mxu0 0.0
  %716 = vmatpush1.msra.mxu0 0.0
  %717 = vmatprep.subr.mxu0 0.0
  %718 = vmatpush1.msra.mxu0 0.0
  %719 = vmatprep.subr.mxu0 0.0
  %720 = vmatpush1.msra.mxu0 0.0
  %721 = vmatprep.subr.mxu0 0.0
  %722 = vmatpush1.msra.mxu0 0.0
  %723 = vmatprep.subr.mxu0 0.0
  %724 = vmatpush1.msra.mxu0 0.0
  %725 = vmatprep.subr.mxu0 0.0
  %726 = vmatpush1.msra.mxu0 0.0
  %727 = vmatprep.subr.mxu0 0.0
  %728 = vmatpush1.msra.mxu0 0.0
  %729 = vmatprep.subr.mxu0 0.0
  %730 = vmatpush1.msra.mxu0 0.0
  %731 = vmatprep.subr.mxu0 0.0
  %732 = vmatpush1.msra.mxu0 0.0
  %733 = vmatprep.subr.mxu0 0.0
  %734 = vmatpush1.msra.mxu0 0.0
  %735 = vmatprep.subr.mxu0 0.0
  %736 = vmatpush1.msra.mxu0 0.0
  %737 = vmatprep.subr.mxu0 0.0
  %738 = vmatpush1.msra.mxu0 0.0
  %739 = vmatprep.subr.mxu0 0.0
  %740 = vmatpush1.msra.mxu0 0.0
  %741 = vmatprep.subr.mxu0 0.0
  %742 = vmatpush1.msra.mxu0 0.0
  %743 = vmatprep.subr.mxu0 0.0
  %744 = vmatpush1.msra.mxu0 0.0
  %745 = vmatprep.subr.mxu0 0.0
  %746 = vmatpush1.msra.mxu0 0.0
  %747 = vmatprep.subr.mxu0 0.0
  %748 = vmatpush1.msra.mxu0 0.0
  %749 = vmatprep.subr.mxu0 0.0
  %750 = vmatpush1.msra.mxu0 0.0
  %751 = vmatprep.subr.mxu0 0.0
  %752 = vmatpush1.msra.mxu0 0.0
  %753 = vmatprep.subr.mxu0 0.0
  %754 = vmatpush1.msra.mxu0 0.0
  %755 = vmatprep.subr.mxu0 0.0
  %756 = vmatpush1.msra.mxu0 0.0
  %757 = vmatprep.subr.mxu0 0.0
  %758 = vmatpush1.msra.mxu0 0.0
  %759 = vmatprep.subr.mxu0 0.0
  %760 = vmatpush1.msra.mxu0 0.0
  %761 = vmatprep.subr.mxu0 0.0
  %762 = vmatpush1.msra.mxu0 0.0
  %763 = vmatprep.subr.mxu0 0.0
  %764 = vmatpush1.msra.mxu0 0.0
  %765 = vmatprep.mubr.f32.mxu0 0.0
  %766 = vmatmul.mubr.f32.gmra.mrb[0].mxu0 %v699
  %v767 = vpop.f32.mrb[0].mxu0
  %v768 = vadd.f32 %v696, %v767
  %v769 = vpop.f32.mrb[0].mxu0
  %770 = vdwg.mxu0
  %v771 = vmax.f32 %v768, 0.0
  %vm772 = vcmask 259072
  %773 = vst.msk [vmem:[%s12] sm:$0x3f] %vm772, %v771
  // Predicated region
  $region50: #{user_model_forward.13} parent=0 // pred_check
    _
  $region51: #{user_model_forward.13} parent=0 // pred_check_branch
    %775 = sbr.rel (0) target = $region53
  $region52: #{user_model_forward.13} parent=0 // pred_region
    _
  $region53: #{user_model_forward.13} parent=0 // pred_fallthru
    _
  // Predicated region
  $region54: #{user_model_forward.13} parent=0 // pred_check
    _
  $region55: #{user_model_forward.13} parent=0 // pred_check_branch
    %777 = sbr.rel (0) target = $region57
  $region56: #{user_model_forward.13} parent=0 // pred_region
    _
  $region57: #{user_model_forward.13} parent=0 // pred_fallthru
    _

// kernel: user_model_forward.14
$region0: #{user_model_forward.14}
  #allocation0 [shape = 'u32[]', space=smem, size = 0x4, offset = 0x4, fixed_abs, tag = 'smem constant byte address 0x4 - core index']
  #allocation1 [shape = 'u32[144,128]{1,0:T(1,128)}', space=vmem, size = 0x12000, scoped, tag = 'internal scratch']
  #allocation2 [shape = 'f32[1,1]{1,0:T(1,128)S(1)}', space=vmem, size = 0x200, scoped, tag = 'scoped memory for user_model_forward.14']
  %s0 = inlined_call_operand.vmem [shape: f32[6,32], index: 0, kind: input, shape index: {}]
  %s1 = inlined_call_operand.vmem [shape: f32[6,32], index: 1, kind: input, shape index: {}]
  %s2 = inlined_call_operand.vmem [shape: f32[6,1], index: 2, kind: input, shape index: {}]
  %s3 = inlined_call_operand.vmem [shape: f32[32,32], index: 3, kind: input, shape index: {}]
  %s4 = inlined_call_operand.vmem [shape: f32[1,32], index: 4, kind: input, shape index: {}]
  %s5 = inlined_call_operand.vmem [shape: f32[32,32], index: 5, kind: input, shape index: {}]
  %s6 = inlined_call_operand.vmem [shape: f32[32,32], index: 6, kind: input, shape index: {}]
  %s7 = inlined_call_operand.vmem [shape: f32[1,32], index: 7, kind: input, shape index: {}]
  %s8 = inlined_call_operand.vmem [shape: f32[1,32], index: 8, kind: input, shape index: {}]
  %s9 = inlined_call_operand.<no memory space> [shape: f32[1,1], index: 9, kind: input, shape index: {}]
  %s10 = inlined_call_operand.vmem [shape: f32[32,32], index: 10, kind: input, shape index: {}]
  %s11 = inlined_call_operand.vmem [shape: f32[1,32], index: 11, kind: input, shape index: {}]
  %s12 = inlined_call_operand.vmem [shape: f32[2,32], index: 12, kind: output, shape index: {}]
  %s13 = sld [smem:[#allocation0]]
  $region58: #{user_model_forward.14} parent=0
    _
  %s15 = ssub.s32 1, %s13
  %s16 = scalar_select 0, %s15, %s13
  %v17 = vstv %s9
  %18 = vst [vmem:[#allocation2] sm:$0x1] %v17
  // Predicated region
  $region2: #{user_model_forward.14} parent=0 // pred_check
    _
  $region3: #{user_model_forward.14} parent=0 // pred_check_branch
    %20 = sbr.rel (0) target = $region5
  $region4: #{user_model_forward.14} parent=0 // pred_region
    _
  $region5: #{user_model_forward.14} parent=0 // pred_fallthru
    _
  // Predicated region
  $region6: #{user_model_forward.14} parent=0 // pred_check
    _
  $region7: #{user_model_forward.14} parent=0 // pred_check_branch
    %22 = sbr.rel (0) target = $region9
  $region8: #{user_model_forward.14} parent=0 // pred_region
    _
  $region9: #{user_model_forward.14} parent=0 // pred_fallthru
    _
  // Predicated region
  $region10: #{user_model_forward.14} parent=0 // pred_check
    _
  $region11: #{user_model_forward.14} parent=0 // pred_check_branch
    %24 = sbr.rel (0) target = $region13
  $region12: #{user_model_forward.14} parent=0 // pred_region
    _
  $region13: #{user_model_forward.14} parent=0 // pred_fallthru
    _
  // Predicated region
  $region14: #{user_model_forward.14} parent=0 // pred_check
    _
  $region15: #{user_model_forward.14} parent=0 // pred_check_branch
    %26 = sbr.rel (0) target = $region17
  $region16: #{user_model_forward.14} parent=0 // pred_region
    _
  $region17: #{user_model_forward.14} parent=0 // pred_fallthru
    _
  // Predicated region
  $region18: #{user_model_forward.14} parent=0 // pred_check
    _
  $region19: #{user_model_forward.14} parent=0 // pred_check_branch
    %28 = sbr.rel (0) target = $region21
  $region20: #{user_model_forward.14} parent=0 // pred_region
    _
  $region21: #{user_model_forward.14} parent=0 // pred_fallthru
    _
  // Predicated region
  $region22: #{user_model_forward.14} parent=0 // pred_check
    _
  $region23: #{user_model_forward.14} parent=0 // pred_check_branch
    %30 = sbr.rel (0) target = $region25
  $region24: #{user_model_forward.14} parent=0 // pred_region
    _
  $region25: #{user_model_forward.14} parent=0 // pred_fallthru
    _
  // Predicated region
  $region26: #{user_model_forward.14} parent=0 // pred_check
    _
  $region27: #{user_model_forward.14} parent=0 // pred_check_branch
    %32 = sbr.rel (0) target = $region29
  $region28: #{user_model_forward.14} parent=0 // pred_region
    _
  $region29: #{user_model_forward.14} parent=0 // pred_fallthru
    _
  // Predicated region
  $region30: #{user_model_forward.14} parent=0 // pred_check
    _
  $region31: #{user_model_forward.14} parent=0 // pred_check_branch
    %34 = sbr.rel (0) target = $region33
  $region32: #{user_model_forward.14} parent=0 // pred_region
    _
  $region33: #{user_model_forward.14} parent=0 // pred_fallthru
    _
  // Predicated region
  $region34: #{user_model_forward.14} parent=0 // pred_check
    _
  $region35: #{user_model_forward.14} parent=0 // pred_check_branch
    %36 = sbr.rel (0) target = $region37
  $region36: #{user_model_forward.14} parent=0 // pred_region
    _
  $region37: #{user_model_forward.14} parent=0 // pred_fallthru
    _
  // Predicated region
  $region38: #{user_model_forward.14} parent=0 // pred_check
    _
  $region39: #{user_model_forward.14} parent=0 // pred_check_branch
    %38 = sbr.rel (0) target = $region41
  $region40: #{user_model_forward.14} parent=0 // pred_region
    _
  $region41: #{user_model_forward.14} parent=0 // pred_fallthru
    _
  // Predicated region
  $region42: #{user_model_forward.14} parent=0 // pred_check
    _
  $region43: #{user_model_forward.14} parent=0 // pred_check_branch
    %40 = sbr.rel (0) target = $region45
  $region44: #{user_model_forward.14} parent=0 // pred_region
    _
  $region45: #{user_model_forward.14} parent=0 // pred_fallthru
    _
  // Predicated region
  $region46: #{user_model_forward.14} parent=0 // pred_check
    _
  $region47: #{user_model_forward.14} parent=0 // pred_check_branch
    %42 = sbr.rel (0) target = $region49
  $region48: #{user_model_forward.14} parent=0 // pred_region
    _
  $region49: #{user_model_forward.14} parent=0 // pred_fallthru
    _
  %v43 = vld [vmem:[%s0] sm:$0x3f]
  %v44 = vld [vmem:[%s1] sm:$0x3f]
  %v45 = vld [vmem:[%s3] sm:$0xff]
  %v46 = vld [vmem:[%s3 + $0x8] sm:$0xff]
  %v47 = vld [vmem:[%s3 + $0x10] sm:$0xff]
  %v48 = vld [vmem:[%s3 + $0x18] sm:$0xff]
  %v49 = vld [vmem:[%s4] sm:$0x1]
  %v51 = vlaneseq
  %v52 = vshrl.u32 %v51, 7
  %v53 = vsub.s32 0, %v52
  %v54 = vrot.slane %v49, %v53
  %vm56 = vcmask 261120
  %v58 = vsel %vm56, %v43, 0
  %60 = vmatprep.subr.mxu0 0.0
  %61 = vmatpush1.msra.mxu0 %v45
  %62 = vmatprep.subr.mxu0 0.0
  %63 = vmatpush1.msra.mxu0 %v46
  %64 = vmatprep.subr.mxu0 0.0
  %65 = vmatpush1.msra.mxu0 %v47
  %66 = vmatprep.subr.mxu0 0.0
  %67 = vmatpush1.msra.mxu0 %v48
  %68 = vmatprep.subr.mxu0 0.0
  %69 = vmatpush1.msra.mxu0 0.0
  %70 = vmatprep.subr.mxu0 0.0
  %71 = vmatpush1.msra.mxu0 0.0
  %72 = vmatprep.subr.mxu0 0.0
  %73 = vmatpush1.msra.mxu0 0.0
  %74 = vmatprep.subr.mxu0 0.0
  %75 = vmatpush1.msra.mxu0 0.0
  %76 = vmatprep.subr.mxu0 0.0
  %77 = vmatpush1.msra.mxu0 0.0
  %78 = vmatprep.subr.mxu0 0.0
  %79 = vmatpush1.msra.mxu0 0.0
  %80 = vmatprep.subr.mxu0 0.0
  %81 = vmatpush1.msra.mxu0 0.0
  %82 = vmatprep.subr.mxu0 0.0
  %83 = vmatpush1.msra.mxu0 0.0
  %84 = vmatprep.subr.mxu0 0.0
  %85 = vmatpush1.msra.mxu0 0.0
  %86 = vmatprep.subr.mxu0 0.0
  %87 = vmatpush1.msra.mxu0 0.0
  %88 = vmatprep.subr.mxu0 0.0
  %89 = vmatpush1.msra.mxu0 0.0
  %90 = vmatprep.subr.mxu0 0.0
  %91 = vmatpush1.msra.mxu0 0.0
  %92 = vmatprep.subr.mxu0 0.0
  %93 = vmatpush1.msra.mxu0 0.0
  %94 = vmatprep.subr.mxu0 0.0
  %95 = vmatpush1.msra.mxu0 0.0
  %96 = vmatprep.subr.mxu0 0.0
  %97 = vmatpush1.msra.mxu0 0.0
  %98 = vmatprep.subr.mxu0 0.0
  %99 = vmatpush1.msra.mxu0 0.0
  %100 = vmatprep.subr.mxu0 0.0
  %101 = vmatpush1.msra.mxu0 0.0
  %102 = vmatprep.subr.mxu0 0.0
  %103 = vmatpush1.msra.mxu0 0.0
  %104 = vmatprep.subr.mxu0 0.0
  %105 = vmatpush1.msra.mxu0 0.0
  %106 = vmatprep.subr.mxu0 0.0
  %107 = vmatpush1.msra.mxu0 0.0
  %108 = vmatprep.subr.mxu0 0.0
  %109 = vmatpush1.msra.mxu0 0.0
  %110 = vmatprep.subr.mxu0 0.0
  %111 = vmatpush1.msra.mxu0 0.0
  %112 = vmatprep.subr.mxu0 0.0
  %113 = vmatpush1.msra.mxu0 0.0
  %114 = vmatprep.subr.mxu0 0.0
  %115 = vmatpush1.msra.mxu0 0.0
  %116 = vmatprep.subr.mxu0 0.0
  %117 = vmatpush1.msra.mxu0 0.0
  %118 = vmatprep.subr.mxu0 0.0
  %119 = vmatpush1.msra.mxu0 0.0
  %120 = vmatprep.subr.mxu0 0.0
  %121 = vmatpush1.msra.mxu0 0.0
  %122 = vmatprep.subr.mxu0 0.0
  %123 = vmatpush1.msra.mxu0 0.0
  %124 = vmatprep.mubr.f32.mxu0 0.0
  %125 = vmatmul.mubr.f32.gmra.mrb[0].mxu0 %v58
  %v126 = vpop.f32.mrb[0].mxu0
  %v127 = vadd.f32 %v54, %v126
  %v128 = vpop.f32.mrb[0].mxu0
  %129 = vdwg.mxu0
  %v131 = vsel %vm56, %v44, 0
  %133 = vmatprep.subr.mxu0 0.0
  %134 = vmatpush1.msra.mxu0 %v45
  %135 = vmatprep.subr.mxu0 0.0
  %136 = vmatpush1.msra.mxu0 %v46
  %137 = vmatprep.subr.mxu0 0.0
  %138 = vmatpush1.msra.mxu0 %v47
  %139 = vmatprep.subr.mxu0 0.0
  %140 = vmatpush1.msra.mxu0 %v48
  %141 = vmatprep.subr.mxu0 0.0
  %142 = vmatpush1.msra.mxu0 0.0
  %143 = vmatprep.subr.mxu0 0.0
  %144 = vmatpush1.msra.mxu0 0.0
  %145 = vmatprep.subr.mxu0 0.0
  %146 = vmatpush1.msra.mxu0 0.0
  %147 = vmatprep.subr.mxu0 0.0
  %148 = vmatpush1.msra.mxu0 0.0
  %149 = vmatprep.subr.mxu0 0.0
  %150 = vmatpush1.msra.mxu0 0.0
  %151 = vmatprep.subr.mxu0 0.0
  %152 = vmatpush1.msra.mxu0 0.0
  %153 = vmatprep.subr.mxu0 0.0
  %154 = vmatpush1.msra.mxu0 0.0
  %155 = vmatprep.subr.mxu0 0.0
  %156 = vmatpush1.msra.mxu0 0.0
  %157 = vmatprep.subr.mxu0 0.0
  %158 = vmatpush1.msra.mxu0 0.0
  %159 = vmatprep.subr.mxu0 0.0
  %160 = vmatpush1.msra.mxu0 0.0
  %161 = vmatprep.subr.mxu0 0.0
  %162 = vmatpush1.msra.mxu0 0.0
  %163 = vmatprep.subr.mxu0 0.0
  %164 = vmatpush1.msra.mxu0 0.0
  %165 = vmatprep.subr.mxu0 0.0
  %166 = vmatpush1.msra.mxu0 0.0
  %167 = vmatprep.subr.mxu0 0.0
  %168 = vmatpush1.msra.mxu0 0.0
  %169 = vmatprep.subr.mxu0 0.0
  %170 = vmatpush1.msra.mxu0 0.0
  %171 = vmatprep.subr.mxu0 0.0
  %172 = vmatpush1.msra.mxu0 0.0
  %173 = vmatprep.subr.mxu0 0.0
  %174 = vmatpush1.msra.mxu0 0.0
  %175 = vmatprep.subr.mxu0 0.0
  %176 = vmatpush1.msra.mxu0 0.0
  %177 = vmatprep.subr.mxu0 0.0
  %178 = vmatpush1.msra.mxu0 0.0
  %179 = vmatprep.subr.mxu0 0.0
  %180 = vmatpush1.msra.mxu0 0.0
  %181 = vmatprep.subr.mxu0 0.0
  %182 = vmatpush1.msra.mxu0 0.0
  %183 = vmatprep.subr.mxu0 0.0
  %184 = vmatpush1.msra.mxu0 0.0
  %185 = vmatprep.subr.mxu0 0.0
  %186 = vmatpush1.msra.mxu0 0.0
  %187 = vmatprep.subr.mxu0 0.0
  %188 = vmatpush1.msra.mxu0 0.0
  %189 = vmatprep.subr.mxu0 0.0
  %190 = vmatpush1.msra.mxu0 0.0
  %191 = vmatprep.subr.mxu0 0.0
  %192 = vmatpush1.msra.mxu0 0.0
  %193 = vmatprep.subr.mxu0 0.0
  %194 = vmatpush1.msra.mxu0 0.0
  %195 = vmatprep.subr.mxu0 0.0
  %196 = vmatpush1.msra.mxu0 0.0
  %197 = vmatprep.mubr.f32.mxu0 0.0
  %198 = vmatmul.mubr.f32.gmra.mrb[0].mxu0 %v131
  %v199 = vpop.f32.mrb[0].mxu0
  %v200 = vadd.f32 %v54, %v199
  %v201 = vpop.f32.mrb[0].mxu0
  %202 = vdwg.mxu0
  %v203 = vld [vmem:[%s5] sm:$0xff]
  %v204 = vld [vmem:[%s5 + $0x8] sm:$0xff]
  %v205 = vld [vmem:[%s5 + $0x10] sm:$0xff]
  %v206 = vld [vmem:[%s5 + $0x18] sm:$0xff]
  %v207 = vld [vmem:[%s6] sm:$0xff]
  %v208 = vld [vmem:[%s6 + $0x8] sm:$0xff]
  %v209 = vld [vmem:[%s6 + $0x10] sm:$0xff]
  %v210 = vld [vmem:[%s6 + $0x18] sm:$0xff]
  %v212 = vsel %vm56, %v200, 0
  %214 = vmatprep.subr.mxu0 0.0
  %215 = vmatpush1.msra.mxu0 %v207
  %216 = vmatprep.subr.mxu0 0.0
  %217 = vmatpush1.msra.mxu0 %v208
  %218 = vmatprep.subr.mxu0 0.0
  %219 = vmatpush1.msra.mxu0 %v209
  %220 = vmatprep.subr.mxu0 0.0
  %221 = vmatpush1.msra.mxu0 %v210
  %222 = vmatprep.subr.mxu0 0.0
  %223 = vmatpush1.msra.mxu0 0.0
  %224 = vmatprep.subr.mxu0 0.0
  %225 = vmatpush1.msra.mxu0 0.0
  %226 = vmatprep.subr.mxu0 0.0
  %227 = vmatpush1.msra.mxu0 0.0
  %228 = vmatprep.subr.mxu0 0.0
  %229 = vmatpush1.msra.mxu0 0.0
  %230 = vmatprep.subr.mxu0 0.0
  %231 = vmatpush1.msra.mxu0 0.0
  %232 = vmatprep.subr.mxu0 0.0
  %233 = vmatpush1.msra.mxu0 0.0
  %234 = vmatprep.subr.mxu0 0.0
  %235 = vmatpush1.msra.mxu0 0.0
  %236 = vmatprep.subr.mxu0 0.0
  %237 = vmatpush1.msra.mxu0 0.0
  %238 = vmatprep.subr.mxu0 0.0
  %239 = vmatpush1.msra.mxu0 0.0
  %240 = vmatprep.subr.mxu0 0.0
  %241 = vmatpush1.msra.mxu0 0.0
  %242 = vmatprep.subr.mxu0 0.0
  %243 = vmatpush1.msra.mxu0 0.0
  %244 = vmatprep.subr.mxu0 0.0
  %245 = vmatpush1.msra.mxu0 0.0
  %246 = vmatprep.subr.mxu0 0.0
  %247 = vmatpush1.msra.mxu0 0.0
  %248 = vmatprep.subr.mxu0 0.0
  %249 = vmatpush1.msra.mxu0 0.0
  %250 = vmatprep.subr.mxu0 0.0
  %251 = vmatpush1.msra.mxu0 0.0
  %252 = vmatprep.subr.mxu0 0.0
  %253 = vmatpush1.msra.mxu0 0.0
  %254 = vmatprep.subr.mxu0 0.0
  %255 = vmatpush1.msra.mxu0 0.0
  %256 = vmatprep.subr.mxu0 0.0
  %257 = vmatpush1.msra.mxu0 0.0
  %258 = vmatprep.subr.mxu0 0.0
  %259 = vmatpush1.msra.mxu0 0.0
  %260 = vmatprep.subr.mxu0 0.0
  %261 = vmatpush1.msra.mxu0 0.0
  %262 = vmatprep.subr.mxu0 0.0
  %263 = vmatpush1.msra.mxu0 0.0
  %264 = vmatprep.subr.mxu0 0.0
  %265 = vmatpush1.msra.mxu0 0.0
  %266 = vmatprep.subr.mxu0 0.0
  %267 = vmatpush1.msra.mxu0 0.0
  %268 = vmatprep.subr.mxu0 0.0
  %269 = vmatpush1.msra.mxu0 0.0
  %270 = vmatprep.subr.mxu0 0.0
  %271 = vmatpush1.msra.mxu0 0.0
  %272 = vmatprep.subr.mxu0 0.0
  %273 = vmatpush1.msra.mxu0 0.0
  %274 = vmatprep.subr.mxu0 0.0
  %275 = vmatpush1.msra.mxu0 0.0
  %276 = vmatprep.subr.mxu0 0.0
  %277 = vmatpush1.msra.mxu0 0.0
  %278 = vmatprep.mubr.f32.mxu0 0.0
  %279 = vmatmul.mubr.f32.gmra.mrb[0].mxu0 %v212
  %v280 = vpop.f32.mrb[0].mxu0
  %v281 = vadd.f32 0.0, %v280
  %v282 = vpop.f32.mrb[0].mxu0
  %283 = vdwg.mxu0
  %v285 = vsel %vm56, %v127, 0
  %287 = vmatprep.subr.mxu0 0.0
  %288 = vmatpush1.msra.mxu0 %v203
  %289 = vmatprep.subr.mxu0 0.0
  %290 = vmatpush1.msra.mxu0 %v204
  %291 = vmatprep.subr.mxu0 0.0
  %292 = vmatpush1.msra.mxu0 %v205
  %293 = vmatprep.subr.mxu0 0.0
  %294 = vmatpush1.msra.mxu0 %v206
  %295 = vmatprep.subr.mxu0 0.0
  %296 = vmatpush1.msra.mxu0 0.0
  %297 = vmatprep.subr.mxu0 0.0
  %298 = vmatpush1.msra.mxu0 0.0
  %299 = vmatprep.subr.mxu0 0.0
  %300 = vmatpush1.msra.mxu0 0.0
  %301 = vmatprep.subr.mxu0 0.0
  %302 = vmatpush1.msra.mxu0 0.0
  %303 = vmatprep.subr.mxu0 0.0
  %304 = vmatpush1.msra.mxu0 0.0
  %305 = vmatprep.subr.mxu0 0.0
  %306 = vmatpush1.msra.mxu0 0.0
  %307 = vmatprep.subr.mxu0 0.0
  %308 = vmatpush1.msra.mxu0 0.0
  %309 = vmatprep.subr.mxu0 0.0
  %310 = vmatpush1.msra.mxu0 0.0
  %311 = vmatprep.subr.mxu0 0.0
  %312 = vmatpush1.msra.mxu0 0.0
  %313 = vmatprep.subr.mxu0 0.0
  %314 = vmatpush1.msra.mxu0 0.0
  %315 = vmatprep.subr.mxu0 0.0
  %316 = vmatpush1.msra.mxu0 0.0
  %317 = vmatprep.subr.mxu0 0.0
  %318 = vmatpush1.msra.mxu0 0.0
  %319 = vmatprep.subr.mxu0 0.0
  %320 = vmatpush1.msra.mxu0 0.0
  %321 = vmatprep.subr.mxu0 0.0
  %322 = vmatpush1.msra.mxu0 0.0
  %323 = vmatprep.subr.mxu0 0.0
  %324 = vmatpush1.msra.mxu0 0.0
  %325 = vmatprep.subr.mxu0 0.0
  %326 = vmatpush1.msra.mxu0 0.0
  %327 = vmatprep.subr.mxu0 0.0
  %328 = vmatpush1.msra.mxu0 0.0
  %329 = vmatprep.subr.mxu0 0.0
  %330 = vmatpush1.msra.mxu0 0.0
  %331 = vmatprep.subr.mxu0 0.0
  %332 = vmatpush1.msra.mxu0 0.0
  %333 = vmatprep.subr.mxu0 0.0
  %334 = vmatpush1.msra.mxu0 0.0
  %335 = vmatprep.subr.mxu0 0.0
  %336 = vmatpush1.msra.mxu0 0.0
  %337 = vmatprep.subr.mxu0 0.0
  %338 = vmatpush1.msra.mxu0 0.0
  %339 = vmatprep.subr.mxu0 0.0
  %340 = vmatpush1.msra.mxu0 0.0
  %341 = vmatprep.subr.mxu0 0.0
  %342 = vmatpush1.msra.mxu0 0.0
  %343 = vmatprep.subr.mxu0 0.0
  %344 = vmatpush1.msra.mxu0 0.0
  %345 = vmatprep.subr.mxu0 0.0
  %346 = vmatpush1.msra.mxu0 0.0
  %347 = vmatprep.subr.mxu0 0.0
  %348 = vmatpush1.msra.mxu0 0.0
  %349 = vmatprep.subr.mxu0 0.0
  %350 = vmatpush1.msra.mxu0 0.0
  %351 = vmatprep.mubr.f32.mxu0 0.0
  %352 = vmatmul.mubr.f32.gmra.mrb[0].mxu0 %v285
  %v353 = vpop.f32.mrb[0].mxu0
  %v354 = vadd.f32 %v281, %v353
  %v355 = vpop.f32.mrb[0].mxu0
  %356 = vdwg.mxu0
  %v357 = vld [vmem:[%s7] sm:$0x1]
  %v359 = vlaneseq
  %v360 = vshrl.u32 %v359, 7
  %v361 = vsub.s32 0, %v360
  %v362 = vrot.slane %v357, %v361
  %v364 = vadd.f32 %v354, %v362
  %vm365 = vcmp.ge.f32.partialorder %v364, 0.0
  %v366 = vmul.f32 %v364, 0.2
  %v367 = vsel %vm365, %v364, %v366
  %v368 = vld [vmem:[%s8] sm:$0x1]
  %v370 = vlaneseq
  %v371 = vshrl.u32 %v370, 7
  %v372 = vsub.s32 0, %v371
  %v373 = vrot.slane %v368, %v372
  %v375 = vmul.f32 %v367, %v373
  %vm376 = vcmask 259072
  %v377 = vsel %vm376, %v375, 0.0
  %378 = vadd.xlane.f32.xlu0 %v377
  %v379 = vpop.xlane.xlu0 %378
  %v380 = vld [vmem:[#allocation2] sm:$0x1]
  %v382 = vlaneseq
  %v383 = vshrl.u32 %v382, 7
  %v384 = vsub.s32 0, %v383
  %v385 = vrot.slane %v380, %v384
  %v387 = vadd.f32 %v379, %v385
  %v388 = vld [vmem:[%s2] sm:$0x3f]
  %vm389 = vcmp.gt.f32.partialorder %v388, 0.0
  %v390 = vsel %vm389, %v387, -1e+30
  %vm391 = vcmask 5120
  %v392 = vsel %vm391, %v390, -inf
  %v393 = vrot.slane %v392, 4
  %v394 = vmax.f32 %v392, %v393
  %v395 = vrot.slane %v394, 2
  %v396 = vmax.f32 %v394, %v395
  %v397 = vrot.slane %v396, 1
  %v398 = vmax.f32 %v396, %v397
  %v399 = vmax.f32 %v398, 0.0
  %v400 = vsub.f32 %v390, %v399
  %v401 = vmul.f32 %v400, 1.442695
  %v402 = vpow.pop %v401
  %v403 = vmul.f32 %v402, %v388
  %v404 = vlaneseq
  %v405 = vshrl.u32 %v404, 7
  %v406 = vlaneseq
  %v407 = vand.u32 %v406, 127
  %v408 = vmul.u32 %v405, 3
  %vm409 = vcmp.ge.s32.totalorder %v407, %v408
  %v410 = vadd.s32 %v408, 3
  %vm411 = vcmp.lt.s32.totalorder %v407, %v410
  %vm412 = vmand %vm409, %vm411
  %v413 = vsel %vm412, 1, 0
  %v414 = vcvt.s32.f32 %v413
  %416 = vset.pattern.permute.xlu0 0
  %417 = vperm.xlu0 %416, %v403
  %v418 = vpop.permute.xlu0 %417
  %v420 = vmul.f32 %v418, %v43
  %vm421 = vcmask 48128
  %v423 = vsel %vm421, %v414, 0
  %vm425 = vcmask 1045504
  %v427 = vsel %vm425, %v420, 0
  %429 = vmatprep.subr.mxu0 0.0
  %430 = vmatpush1.msra.mxu0 %v427
  %431 = vmatprep.subr.mxu0 0.0
  %432 = vmatpush1.msra.mxu0 0.0
  %433 = vmatprep.subr.mxu0 0.0
  %434 = vmatpush1.msra.mxu0 0.0
  %435 = vmatprep.subr.mxu0 0.0
  %436 = vmatpush1.msra.mxu0 0.0
  %437 = vmatprep.subr.mxu0 0.0
  %438 = vmatpush1.msra.mxu0 0.0
  %439 = vmatprep.subr.mxu0 0.0
  %440 = vmatpush1.msra.mxu0 0.0
  %441 = vmatprep.subr.mxu0 0.0
  %442 = vmatpush1.msra.mxu0 0.0
  %443 = vmatprep.subr.mxu0 0.0
  %444 = vmatpush1.msra.mxu0 0.0
  %445 = vmatprep.subr.mxu0 0.0
  %446 = vmatpush1.msra.mxu0 0.0
  %447 = vmatprep.subr.mxu0 0.0
  %448 = vmatpush1.msra.mxu0 0.0
  %449 = vmatprep.subr.mxu0 0.0
  %450 = vmatpush1.msra.mxu0 0.0
  %451 = vmatprep.subr.mxu0 0.0
  %452 = vmatpush1.msra.mxu0 0.0
  %453 = vmatprep.subr.mxu0 0.0
  %454 = vmatpush1.msra.mxu0 0.0
  %455 = vmatprep.subr.mxu0 0.0
  %456 = vmatpush1.msra.mxu0 0.0
  %457 = vmatprep.subr.mxu0 0.0
  %458 = vmatpush1.msra.mxu0 0.0
  %459 = vmatprep.subr.mxu0 0.0
  %460 = vmatpush1.msra.mxu0 0.0
  %461 = vmatprep.subr.mxu0 0.0
  %462 = vmatpush1.msra.mxu0 0.0
  %463 = vmatprep.subr.mxu0 0.0
  %464 = vmatpush1.msra.mxu0 0.0
  %465 = vmatprep.subr.mxu0 0.0
  %466 = vmatpush1.msra.mxu0 0.0
  %467 = vmatprep.subr.mxu0 0.0
  %468 = vmatpush1.msra.mxu0 0.0
  %469 = vmatprep.subr.mxu0 0.0
  %470 = vmatpush1.msra.mxu0 0.0
  %471 = vmatprep.subr.mxu0 0.0
  %472 = vmatpush1.msra.mxu0 0.0
  %473 = vmatprep.subr.mxu0 0.0
  %474 = vmatpush1.msra.mxu0 0.0
  %475 = vmatprep.subr.mxu0 0.0
  %476 = vmatpush1.msra.mxu0 0.0
  %477 = vmatprep.subr.mxu0 0.0
  %478 = vmatpush1.msra.mxu0 0.0
  %479 = vmatprep.subr.mxu0 0.0
  %480 = vmatpush1.msra.mxu0 0.0
  %481 = vmatprep.subr.mxu0 0.0
  %482 = vmatpush1.msra.mxu0 0.0
  %483 = vmatprep.subr.mxu0 0.0
  %484 = vmatpush1.msra.mxu0 0.0
  %485 = vmatprep.subr.mxu0 0.0
  %486 = vmatpush1.msra.mxu0 0.0
  %487 = vmatprep.subr.mxu0 0.0
  %488 = vmatpush1.msra.mxu0 0.0
  %489 = vmatprep.subr.mxu0 0.0
  %490 = vmatpush1.msra.mxu0 0.0
  %491 = vmatprep.subr.mxu0 0.0
  %492 = vmatpush1.msra.mxu0 0.0
  %493 = vmatprep.mubr.f32.mxu0 0.0
  %494 = vmatmul.mubr.f32.gmra.mrb[0].mxu0 %v423
  %v495 = vpop.f32.mrb[0].mxu0
  %v496 = vadd.f32 0.0, %v495
  %v497 = vpop.f32.mrb[0].mxu0
  %498 = vdwg.mxu0
  %v499 = vsel %vm425, %v403, 0
  %501 = vmatprep.subr.mxu0 0.0
  %502 = vmatpush1.msra.mxu0 %v499
  %503 = vmatprep.subr.mxu0 0.0
  %504 = vmatpush1.msra.mxu0 0.0
  %505 = vmatprep.subr.mxu0 0.0
  %506 = vmatpush1.msra.mxu0 0.0
  %507 = vmatprep.subr.mxu0 0.0
  %508 = vmatpush1.msra.mxu0 0.0
  %509 = vmatprep.subr.mxu0 0.0
  %510 = vmatpush1.msra.mxu0 0.0
  %511 = vmatprep.subr.mxu0 0.0
  %512 = vmatpush1.msra.mxu0 0.0
  %513 = vmatprep.subr.mxu0 0.0
  %514 = vmatpush1.msra.mxu0 0.0
  %515 = vmatprep.subr.mxu0 0.0
  %516 = vmatpush1.msra.mxu0 0.0
  %517 = vmatprep.subr.mxu0 0.0
  %518 = vmatpush1.msra.mxu0 0.0
  %519 = vmatprep.subr.mxu0 0.0
  %520 = vmatpush1.msra.mxu0 0.0
  %521 = vmatprep.subr.mxu0 0.0
  %522 = vmatpush1.msra.mxu0 0.0
  %523 = vmatprep.subr.mxu0 0.0
  %524 = vmatpush1.msra.mxu0 0.0
  %525 = vmatprep.subr.mxu0 0.0
  %526 = vmatpush1.msra.mxu0 0.0
  %527 = vmatprep.subr.mxu0 0.0
  %528 = vmatpush1.msra.mxu0 0.0
  %529 = vmatprep.subr.mxu0 0.0
  %530 = vmatpush1.msra.mxu0 0.0
  %531 = vmatprep.subr.mxu0 0.0
  %532 = vmatpush1.msra.mxu0 0.0
  %533 = vmatprep.subr.mxu0 0.0
  %534 = vmatpush1.msra.mxu0 0.0
  %535 = vmatprep.subr.mxu0 0.0
  %536 = vmatpush1.msra.mxu0 0.0
  %537 = vmatprep.subr.mxu0 0.0
  %538 = vmatpush1.msra.mxu0 0.0
  %539 = vmatprep.subr.mxu0 0.0
  %540 = vmatpush1.msra.mxu0 0.0
  %541 = vmatprep.subr.mxu0 0.0
  %542 = vmatpush1.msra.mxu0 0.0
  %543 = vmatprep.subr.mxu0 0.0
  %544 = vmatpush1.msra.mxu0 0.0
  %545 = vmatprep.subr.mxu0 0.0
  %546 = vmatpush1.msra.mxu0 0.0
  %547 = vmatprep.subr.mxu0 0.0
  %548 = vmatpush1.msra.mxu0 0.0
  %549 = vmatprep.subr.mxu0 0.0
  %550 = vmatpush1.msra.mxu0 0.0
  %551 = vmatprep.subr.mxu0 0.0
  %552 = vmatpush1.msra.mxu0 0.0
  %553 = vmatprep.subr.mxu0 0.0
  %554 = vmatpush1.msra.mxu0 0.0
  %555 = vmatprep.subr.mxu0 0.0
  %556 = vmatpush1.msra.mxu0 0.0
  %557 = vmatprep.subr.mxu0 0.0
  %558 = vmatpush1.msra.mxu0 0.0
  %559 = vmatprep.subr.mxu0 0.0
  %560 = vmatpush1.msra.mxu0 0.0
  %561 = vmatprep.subr.mxu0 0.0
  %562 = vmatpush1.msra.mxu0 0.0
  %563 = vmatprep.subr.mxu0 0.0
  %564 = vmatpush1.msra.mxu0 0.0
  %565 = vmatprep.mubr.f32.mxu0 0.0
  %566 = vmatmul.mubr.f32.gmra.mrb[0].mxu0 %v423
  %v567 = vpop.f32.mrb[0].mxu0
  %v568 = vadd.f32 1e-10, %v567
  %v569 = vpop.f32.mrb[0].mxu0
  %570 = vdwg.mxu0
  %v571 = vrcp.pop %v568
  %573 = vset.pattern.permute.xlu0 0
  %574 = vperm.xlu0 %573, %v571
  %v575 = vpop.permute.xlu0 %574
  %v577 = vmul.f32 %v496, %v575
  %v578 = vld [vmem:[%s10] sm:$0xff]
  %v579 = vld [vmem:[%s10 + $0x8] sm:$0xff]
  %v580 = vld [vmem:[%s10 + $0x10] sm:$0xff]
  %v581 = vld [vmem:[%s10 + $0x18] sm:$0xff]
  %v582 = vld [vmem:[%s11] sm:$0x1]
  %v584 = vlaneseq
  %v585 = vshrl.u32 %v584, 7
  %v586 = vsub.s32 0, %v585
  %v587 = vrot.slane %v582, %v586
  %v590 = vsel %vm56, %v577, 0
  %592 = vmatprep.subr.mxu0 0.0
  %593 = vmatpush1.msra.mxu0 %v578
  %594 = vmatprep.subr.mxu0 0.0
  %595 = vmatpush1.msra.mxu0 %v579
  %596 = vmatprep.subr.mxu0 0.0
  %597 = vmatpush1.msra.mxu0 %v580
  %598 = vmatprep.subr.mxu0 0.0
  %599 = vmatpush1.msra.mxu0 %v581
  %600 = vmatprep.subr.mxu0 0.0
  %601 = vmatpush1.msra.mxu0 0.0
  %602 = vmatprep.subr.mxu0 0.0
  %603 = vmatpush1.msra.mxu0 0.0
  %604 = vmatprep.subr.mxu0 0.0
  %605 = vmatpush1.msra.mxu0 0.0
  %606 = vmatprep.subr.mxu0 0.0
  %607 = vmatpush1.msra.mxu0 0.0
  %608 = vmatprep.subr.mxu0 0.0
  %609 = vmatpush1.msra.mxu0 0.0
  %610 = vmatprep.subr.mxu0 0.0
  %611 = vmatpush1.msra.mxu0 0.0
  %612 = vmatprep.subr.mxu0 0.0
  %613 = vmatpush1.msra.mxu0 0.0
  %614 = vmatprep.subr.mxu0 0.0
  %615 = vmatpush1.msra.mxu0 0.0
  %616 = vmatprep.subr.mxu0 0.0
  %617 = vmatpush1.msra.mxu0 0.0
  %618 = vmatprep.subr.mxu0 0.0
  %619 = vmatpush1.msra.mxu0 0.0
  %620 = vmatprep.subr.mxu0 0.0
  %621 = vmatpush1.msra.mxu0 0.0
  %622 = vmatprep.subr.mxu0 0.0
  %623 = vmatpush1.msra.mxu0 0.0
  %624 = vmatprep.subr.mxu0 0.0
  %625 = vmatpush1.msra.mxu0 0.0
  %626 = vmatprep.subr.mxu0 0.0
  %627 = vmatpush1.msra.mxu0 0.0
  %628 = vmatprep.subr.mxu0 0.0
  %629 = vmatpush1.msra.mxu0 0.0
  %630 = vmatprep.subr.mxu0 0.0
  %631 = vmatpush1.msra.mxu0 0.0
  %632 = vmatprep.subr.mxu0 0.0
  %633 = vmatpush1.msra.mxu0 0.0
  %634 = vmatprep.subr.mxu0 0.0
  %635 = vmatpush1.msra.mxu0 0.0
  %636 = vmatprep.subr.mxu0 0.0
  %637 = vmatpush1.msra.mxu0 0.0
  %638 = vmatprep.subr.mxu0 0.0
  %639 = vmatpush1.msra.mxu0 0.0
  %640 = vmatprep.subr.mxu0 0.0
  %641 = vmatpush1.msra.mxu0 0.0
  %642 = vmatprep.subr.mxu0 0.0
  %643 = vmatpush1.msra.mxu0 0.0
  %644 = vmatprep.subr.mxu0 0.0
  %645 = vmatpush1.msra.mxu0 0.0
  %646 = vmatprep.subr.mxu0 0.0
  %647 = vmatpush1.msra.mxu0 0.0
  %648 = vmatprep.subr.mxu0 0.0
  %649 = vmatpush1.msra.mxu0 0.0
  %650 = vmatprep.subr.mxu0 0.0
  %651 = vmatpush1.msra.mxu0 0.0
  %652 = vmatprep.subr.mxu0 0.0
  %653 = vmatpush1.msra.mxu0 0.0
  %654 = vmatprep.subr.mxu0 0.0
  %655 = vmatpush1.msra.mxu0 0.0
  %656 = vmatprep.mubr.f32.mxu0 0.0
  %657 = vmatmul.mubr.f32.gmra.mrb[0].mxu0 %v590
  %v658 = vpop.f32.mrb[0].mxu0
  %v659 = vadd.f32 %v587, %v658
  %v660 = vpop.f32.mrb[0].mxu0
  %661 = vdwg.mxu0
  %v662 = vmax.f32 %v659, 0.0
  %vm663 = vcmask 254976
  %664 = vst.msk [vmem:[%s12] sm:$0x3] %vm663, %v662
  // Predicated region
  $region50: #{user_model_forward.14} parent=0 // pred_check
    _
  $region51: #{user_model_forward.14} parent=0 // pred_check_branch
    %666 = sbr.rel (0) target = $region53
  $region52: #{user_model_forward.14} parent=0 // pred_region
    _
  $region53: #{user_model_forward.14} parent=0 // pred_fallthru
    _
  // Predicated region
  $region54: #{user_model_forward.14} parent=0 // pred_check
    _
  $region55: #{user_model_forward.14} parent=0 // pred_check_branch
    %668 = sbr.rel (0) target = $region57
  $region56: #{user_model_forward.14} parent=0 // pred_region
    _
  $region57: #{user_model_forward.14} parent=0 // pred_fallthru
    _

// kernel: user_model_forward.15
$region0: #{user_model_forward.15}
  #allocation0 [shape = 'u32[]', space=smem, size = 0x4, offset = 0x4, fixed_abs, tag = 'smem constant byte address 0x4 - core index']
  #allocation1 [shape = 'u32[144,128]{1,0:T(1,128)}', space=vmem, size = 0x12000, scoped, tag = 'internal scratch']
  #allocation2 [shape = 'f32[1,1]{1,0:T(1,128)S(1)}', space=vmem, size = 0x200, scoped, tag = 'scoped memory for user_model_forward.15']
  %s0 = inlined_call_operand.vmem [shape: f32[24,32], index: 0, kind: input, shape index: {}]
  %s1 = inlined_call_operand.vmem [shape: f32[24,32], index: 1, kind: input, shape index: {}]
  %s2 = inlined_call_operand.vmem [shape: f32[24,1], index: 2, kind: input, shape index: {}]
  %s3 = inlined_call_operand.vmem [shape: f32[32,32], index: 3, kind: input, shape index: {}]
  %s4 = inlined_call_operand.vmem [shape: f32[1,32], index: 4, kind: input, shape index: {}]
  %s5 = inlined_call_operand.vmem [shape: f32[32,32], index: 5, kind: input, shape index: {}]
  %s6 = inlined_call_operand.vmem [shape: f32[32,32], index: 6, kind: input, shape index: {}]
  %s7 = inlined_call_operand.vmem [shape: f32[1,32], index: 7, kind: input, shape index: {}]
  %s8 = inlined_call_operand.vmem [shape: f32[1,32], index: 8, kind: input, shape index: {}]
  %s9 = inlined_call_operand.<no memory space> [shape: f32[1,1], index: 9, kind: input, shape index: {}]
  %s10 = inlined_call_operand.vmem [shape: f32[32,32], index: 10, kind: input, shape index: {}]
  %s11 = inlined_call_operand.vmem [shape: f32[1,32], index: 11, kind: input, shape index: {}]
  %s12 = inlined_call_operand.vmem [shape: f32[6,32], index: 12, kind: output, shape index: {}]
  %s13 = sld [smem:[#allocation0]]
  $region58: #{user_model_forward.15} parent=0
    _
  %s15 = ssub.s32 1, %s13
  %s16 = scalar_select 0, %s15, %s13
  %v17 = vstv %s9
  %18 = vst [vmem:[#allocation2] sm:$0x1] %v17
  // Predicated region
  $region2: #{user_model_forward.15} parent=0 // pred_check
    _
  $region3: #{user_model_forward.15} parent=0 // pred_check_branch
    %20 = sbr.rel (0) target = $region5
  $region4: #{user_model_forward.15} parent=0 // pred_region
    _
  $region5: #{user_model_forward.15} parent=0 // pred_fallthru
    _
  // Predicated region
  $region6: #{user_model_forward.15} parent=0 // pred_check
    _
  $region7: #{user_model_forward.15} parent=0 // pred_check_branch
    %22 = sbr.rel (0) target = $region9
  $region8: #{user_model_forward.15} parent=0 // pred_region
    _
  $region9: #{user_model_forward.15} parent=0 // pred_fallthru
    _
  // Predicated region
  $region10: #{user_model_forward.15} parent=0 // pred_check
    _
  $region11: #{user_model_forward.15} parent=0 // pred_check_branch
    %24 = sbr.rel (0) target = $region13
  $region12: #{user_model_forward.15} parent=0 // pred_region
    _
  $region13: #{user_model_forward.15} parent=0 // pred_fallthru
    _
  // Predicated region
  $region14: #{user_model_forward.15} parent=0 // pred_check
    _
  $region15: #{user_model_forward.15} parent=0 // pred_check_branch
    %26 = sbr.rel (0) target = $region17
  $region16: #{user_model_forward.15} parent=0 // pred_region
    _
  $region17: #{user_model_forward.15} parent=0 // pred_fallthru
    _
  // Predicated region
  $region18: #{user_model_forward.15} parent=0 // pred_check
    _
  $region19: #{user_model_forward.15} parent=0 // pred_check_branch
    %28 = sbr.rel (0) target = $region21
  $region20: #{user_model_forward.15} parent=0 // pred_region
    _
  $region21: #{user_model_forward.15} parent=0 // pred_fallthru
    _
  // Predicated region
  $region22: #{user_model_forward.15} parent=0 // pred_check
    _
  $region23: #{user_model_forward.15} parent=0 // pred_check_branch
    %30 = sbr.rel (0) target = $region25
  $region24: #{user_model_forward.15} parent=0 // pred_region
    _
  $region25: #{user_model_forward.15} parent=0 // pred_fallthru
    _
  // Predicated region
  $region26: #{user_model_forward.15} parent=0 // pred_check
    _
  $region27: #{user_model_forward.15} parent=0 // pred_check_branch
    %32 = sbr.rel (0) target = $region29
  $region28: #{user_model_forward.15} parent=0 // pred_region
    _
  $region29: #{user_model_forward.15} parent=0 // pred_fallthru
    _
  // Predicated region
  $region30: #{user_model_forward.15} parent=0 // pred_check
    _
  $region31: #{user_model_forward.15} parent=0 // pred_check_branch
    %34 = sbr.rel (0) target = $region33
  $region32: #{user_model_forward.15} parent=0 // pred_region
    _
  $region33: #{user_model_forward.15} parent=0 // pred_fallthru
    _
  // Predicated region
  $region34: #{user_model_forward.15} parent=0 // pred_check
    _
  $region35: #{user_model_forward.15} parent=0 // pred_check_branch
    %36 = sbr.rel (0) target = $region37
  $region36: #{user_model_forward.15} parent=0 // pred_region
    _
  $region37: #{user_model_forward.15} parent=0 // pred_fallthru
    _
  // Predicated region
  $region38: #{user_model_forward.15} parent=0 // pred_check
    _
  $region39: #{user_model_forward.15} parent=0 // pred_check_branch
    %38 = sbr.rel (0) target = $region41
  $region40: #{user_model_forward.15} parent=0 // pred_region
    _
  $region41: #{user_model_forward.15} parent=0 // pred_fallthru
    _
  // Predicated region
  $region42: #{user_model_forward.15} parent=0 // pred_check
    _
  $region43: #{user_model_forward.15} parent=0 // pred_check_branch
    %40 = sbr.rel (0) target = $region45
  $region44: #{user_model_forward.15} parent=0 // pred_region
    _
  $region45: #{user_model_forward.15} parent=0 // pred_fallthru
    _
  // Predicated region
  $region46: #{user_model_forward.15} parent=0 // pred_check
    _
  $region47: #{user_model_forward.15} parent=0 // pred_check_branch
    %42 = sbr.rel (0) target = $region49
  $region48: #{user_model_forward.15} parent=0 // pred_region
    _
  $region49: #{user_model_forward.15} parent=0 // pred_fallthru
    _
  %v43 = vld [vmem:[%s0] sm:$0xff]
  %v44 = vld [vmem:[%s0 + $0x8] sm:$0xff]
  %v45 = vld [vmem:[%s0 + $0x10] sm:$0xff]
  %v46 = vld [vmem:[%s1] sm:$0xff]
  %v47 = vld [vmem:[%s1 + $0x8] sm:$0xff]
  %v48 = vld [vmem:[%s1 + $0x10] sm:$0xff]
  %v49 = vld [vmem:[%s3] sm:$0xff]
  %v50 = vld [vmem:[%s3 + $0x8] sm:$0xff]
  %v51 = vld [vmem:[%s3 + $0x10] sm:$0xff]
  %v52 = vld [vmem:[%s3 + $0x18] sm:$0xff]
  %v53 = vld [vmem:[%s4] sm:$0x1]
  %v55 = vlaneseq
  %v56 = vshrl.u32 %v55, 7
  %v57 = vsub.s32 0, %v56
  %v58 = vrot.slane %v53, %v57
  %vm60 = vcmask 261120
  %v62 = vsel %vm60, %v43, 0
  %v65 = vsel %vm60, %v44, 0
  %v68 = vsel %vm60, %v45, 0
  %70 = vmatprep.subr.mxu0 0.0
  %71 = vmatpush1.msra.mxu0 %v49
  %72 = vmatprep.subr.mxu0 0.0
  %73 = vmatpush1.msra.mxu0 %v50
  %74 = vmatprep.subr.mxu0 0.0
  %75 = vmatpush1.msra.mxu0 %v51
  %76 = vmatprep.subr.mxu0 0.0
  %77 = vmatpush1.msra.mxu0 %v52
  %78 = vmatprep.subr.mxu0 0.0
  %79 = vmatpush1.msra.mxu0 0.0
  %80 = vmatprep.subr.mxu0 0.0
  %81 = vmatpush1.msra.mxu0 0.0
  %82 = vmatprep.subr.mxu0 0.0
  %83 = vmatpush1.msra.mxu0 0.0
  %84 = vmatprep.subr.mxu0 0.0
  %85 = vmatpush1.msra.mxu0 0.0
  %86 = vmatprep.subr.mxu0 0.0
  %87 = vmatpush1.msra.mxu0 0.0
  %88 = vmatprep.subr.mxu0 0.0
  %89 = vmatpush1.msra.mxu0 0.0
  %90 = vmatprep.subr.mxu0 0.0
  %91 = vmatpush1.msra.mxu0 0.0
  %92 = vmatprep.subr.mxu0 0.0
  %93 = vmatpush1.msra.mxu0 0.0
  %94 = vmatprep.subr.mxu0 0.0
  %95 = vmatpush1.msra.mxu0 0.0
  %96 = vmatprep.subr.mxu0 0.0
  %97 = vmatpush1.msra.mxu0 0.0
  %98 = vmatprep.subr.mxu0 0.0
  %99 = vmatpush1.msra.mxu0 0.0
  %100 = vmatprep.subr.mxu0 0.0
  %101 = vmatpush1.msra.mxu0 0.0
  %102 = vmatprep.subr.mxu0 0.0
  %103 = vmatpush1.msra.mxu0 0.0
  %104 = vmatprep.subr.mxu0 0.0
  %105 = vmatpush1.msra.mxu0 0.0
  %106 = vmatprep.subr.mxu0 0.0
  %107 = vmatpush1.msra.mxu0 0.0
  %108 = vmatprep.subr.mxu0 0.0
  %109 = vmatpush1.msra.mxu0 0.0
  %110 = vmatprep.subr.mxu0 0.0
  %111 = vmatpush1.msra.mxu0 0.0
  %112 = vmatprep.subr.mxu0 0.0
  %113 = vmatpush1.msra.mxu0 0.0
  %114 = vmatprep.subr.mxu0 0.0
  %115 = vmatpush1.msra.mxu0 0.0
  %116 = vmatprep.subr.mxu0 0.0
  %117 = vmatpush1.msra.mxu0 0.0
  %118 = vmatprep.subr.mxu0 0.0
  %119 = vmatpush1.msra.mxu0 0.0
  %120 = vmatprep.subr.mxu0 0.0
  %121 = vmatpush1.msra.mxu0 0.0
  %122 = vmatprep.subr.mxu0 0.0
  %123 = vmatpush1.msra.mxu0 0.0
  %124 = vmatprep.subr.mxu0 0.0
  %125 = vmatpush1.msra.mxu0 0.0
  %126 = vmatprep.subr.mxu0 0.0
  %127 = vmatpush1.msra.mxu0 0.0
  %128 = vmatprep.subr.mxu0 0.0
  %129 = vmatpush1.msra.mxu0 0.0
  %130 = vmatprep.subr.mxu0 0.0
  %131 = vmatpush1.msra.mxu0 0.0
  %132 = vmatprep.subr.mxu0 0.0
  %133 = vmatpush1.msra.mxu0 0.0
  %134 = vmatprep.mubr.f32.mxu0 0.0
  %135 = vmatmul.mubr.f32.gmra.mrb[0].mxu0 %v62
  %v136 = vpop.f32.mrb[0].mxu0
  %v137 = vadd.f32 %v58, %v136
  %v138 = vpop.f32.mrb[0].mxu0
  %139 = vmatprep.mubr.f32.mxu0 0.0
  %140 = vmatmul.mubr.f32.gmra.mrb[0].mxu0 %v65
  %v141 = vpop.f32.mrb[0].mxu0
  %v142 = vadd.f32 %v58, %v141
  %v143 = vpop.f32.mrb[0].mxu0
  %144 = vmatprep.mubr.f32.mxu0 0.0
  %145 = vmatmul.mubr.f32.gmra.mrb[0].mxu0 %v68
  %v146 = vpop.f32.mrb[0].mxu0
  %v147 = vadd.f32 %v58, %v146
  %v148 = vpop.f32.mrb[0].mxu0
  %149 = vdwg.mxu0
  %v151 = vsel %vm60, %v46, 0
  %v154 = vsel %vm60, %v47, 0
  %v157 = vsel %vm60, %v48, 0
  %159 = vmatprep.subr.mxu0 0.0
  %160 = vmatpush1.msra.mxu0 %v49
  %161 = vmatprep.subr.mxu0 0.0
  %162 = vmatpush1.msra.mxu0 %v50
  %163 = vmatprep.subr.mxu0 0.0
  %164 = vmatpush1.msra.mxu0 %v51
  %165 = vmatprep.subr.mxu0 0.0
  %166 = vmatpush1.msra.mxu0 %v52
  %167 = vmatprep.subr.mxu0 0.0
  %168 = vmatpush1.msra.mxu0 0.0
  %169 = vmatprep.subr.mxu0 0.0
  %170 = vmatpush1.msra.mxu0 0.0
  %171 = vmatprep.subr.mxu0 0.0
  %172 = vmatpush1.msra.mxu0 0.0
  %173 = vmatprep.subr.mxu0 0.0
  %174 = vmatpush1.msra.mxu0 0.0
  %175 = vmatprep.subr.mxu0 0.0
  %176 = vmatpush1.msra.mxu0 0.0
  %177 = vmatprep.subr.mxu0 0.0
  %178 = vmatpush1.msra.mxu0 0.0
  %179 = vmatprep.subr.mxu0 0.0
  %180 = vmatpush1.msra.mxu0 0.0
  %181 = vmatprep.subr.mxu0 0.0
  %182 = vmatpush1.msra.mxu0 0.0
  %183 = vmatprep.subr.mxu0 0.0
  %184 = vmatpush1.msra.mxu0 0.0
  %185 = vmatprep.subr.mxu0 0.0
  %186 = vmatpush1.msra.mxu0 0.0
  %187 = vmatprep.subr.mxu0 0.0
  %188 = vmatpush1.msra.mxu0 0.0
  %189 = vmatprep.subr.mxu0 0.0
  %190 = vmatpush1.msra.mxu0 0.0
  %191 = vmatprep.subr.mxu0 0.0
  %192 = vmatpush1.msra.mxu0 0.0
  %193 = vmatprep.subr.mxu0 0.0
  %194 = vmatpush1.msra.mxu0 0.0
  %195 = vmatprep.subr.mxu0 0.0
  %196 = vmatpush1.msra.mxu0 0.0
  %197 = vmatprep.subr.mxu0 0.0
  %198 = vmatpush1.msra.mxu0 0.0
  %199 = vmatprep.subr.mxu0 0.0
  %200 = vmatpush1.msra.mxu0 0.0
  %201 = vmatprep.subr.mxu0 0.0
  %202 = vmatpush1.msra.mxu0 0.0
  %203 = vmatprep.subr.mxu0 0.0
  %204 = vmatpush1.msra.mxu0 0.0
  %205 = vmatprep.subr.mxu0 0.0
  %206 = vmatpush1.msra.mxu0 0.0
  %207 = vmatprep.subr.mxu0 0.0
  %208 = vmatpush1.msra.mxu0 0.0
  %209 = vmatprep.subr.mxu0 0.0
  %210 = vmatpush1.msra.mxu0 0.0
  %211 = vmatprep.subr.mxu0 0.0
  %212 = vmatpush1.msra.mxu0 0.0
  %213 = vmatprep.subr.mxu0 0.0
  %214 = vmatpush1.msra.mxu0 0.0
  %215 = vmatprep.subr.mxu0 0.0
  %216 = vmatpush1.msra.mxu0 0.0
  %217 = vmatprep.subr.mxu0 0.0
  %218 = vmatpush1.msra.mxu0 0.0
  %219 = vmatprep.subr.mxu0 0.0
  %220 = vmatpush1.msra.mxu0 0.0
  %221 = vmatprep.subr.mxu0 0.0
  %222 = vmatpush1.msra.mxu0 0.0
  %223 = vmatprep.mubr.f32.mxu0 0.0
  %224 = vmatmul.mubr.f32.gmra.mrb[0].mxu0 %v151
  %v225 = vpop.f32.mrb[0].mxu0
  %v226 = vadd.f32 %v58, %v225
  %v227 = vpop.f32.mrb[0].mxu0
  %228 = vmatprep.mubr.f32.mxu0 0.0
  %229 = vmatmul.mubr.f32.gmra.mrb[0].mxu0 %v154
  %v230 = vpop.f32.mrb[0].mxu0
  %v231 = vadd.f32 %v58, %v230
  %v232 = vpop.f32.mrb[0].mxu0
  %233 = vmatprep.mubr.f32.mxu0 0.0
  %234 = vmatmul.mubr.f32.gmra.mrb[0].mxu0 %v157
  %v235 = vpop.f32.mrb[0].mxu0
  %v236 = vadd.f32 %v58, %v235
  %v237 = vpop.f32.mrb[0].mxu0
  %238 = vdwg.mxu0
  %v239 = vld [vmem:[%s5] sm:$0xff]
  %v240 = vld [vmem:[%s5 + $0x8] sm:$0xff]
  %v241 = vld [vmem:[%s5 + $0x10] sm:$0xff]
  %v242 = vld [vmem:[%s5 + $0x18] sm:$0xff]
  %v243 = vld [vmem:[%s6] sm:$0xff]
  %v244 = vld [vmem:[%s6 + $0x8] sm:$0xff]
  %v245 = vld [vmem:[%s6 + $0x10] sm:$0xff]
  %v246 = vld [vmem:[%s6 + $0x18] sm:$0xff]
  %v248 = vsel %vm60, %v226, 0
  %v251 = vsel %vm60, %v231, 0
  %v254 = vsel %vm60, %v236, 0
  %256 = vmatprep.subr.mxu0 0.0
  %257 = vmatpush1.msra.mxu0 %v243
  %258 = vmatprep.subr.mxu0 0.0
  %259 = vmatpush1.msra.mxu0 %v244
  %260 = vmatprep.subr.mxu0 0.0
  %261 = vmatpush1.msra.mxu0 %v245
  %262 = vmatprep.subr.mxu0 0.0
  %263 = vmatpush1.msra.mxu0 %v246
  %264 = vmatprep.subr.mxu0 0.0
  %265 = vmatpush1.msra.mxu0 0.0
  %266 = vmatprep.subr.mxu0 0.0
  %267 = vmatpush1.msra.mxu0 0.0
  %268 = vmatprep.subr.mxu0 0.0
  %269 = vmatpush1.msra.mxu0 0.0
  %270 = vmatprep.subr.mxu0 0.0
  %271 = vmatpush1.msra.mxu0 0.0
  %272 = vmatprep.subr.mxu0 0.0
  %273 = vmatpush1.msra.mxu0 0.0
  %274 = vmatprep.subr.mxu0 0.0
  %275 = vmatpush1.msra.mxu0 0.0
  %276 = vmatprep.subr.mxu0 0.0
  %277 = vmatpush1.msra.mxu0 0.0
  %278 = vmatprep.subr.mxu0 0.0
  %279 = vmatpush1.msra.mxu0 0.0
  %280 = vmatprep.subr.mxu0 0.0
  %281 = vmatpush1.msra.mxu0 0.0
  %282 = vmatprep.subr.mxu0 0.0
  %283 = vmatpush1.msra.mxu0 0.0
  %284 = vmatprep.subr.mxu0 0.0
  %285 = vmatpush1.msra.mxu0 0.0
  %286 = vmatprep.subr.mxu0 0.0
  %287 = vmatpush1.msra.mxu0 0.0
  %288 = vmatprep.subr.mxu0 0.0
  %289 = vmatpush1.msra.mxu0 0.0
  %290 = vmatprep.subr.mxu0 0.0
  %291 = vmatpush1.msra.mxu0 0.0
  %292 = vmatprep.subr.mxu0 0.0
  %293 = vmatpush1.msra.mxu0 0.0
  %294 = vmatprep.subr.mxu0 0.0
  %295 = vmatpush1.msra.mxu0 0.0
  %296 = vmatprep.subr.mxu0 0.0
  %297 = vmatpush1.msra.mxu0 0.0
  %298 = vmatprep.subr.mxu0 0.0
  %299 = vmatpush1.msra.mxu0 0.0
  %300 = vmatprep.subr.mxu0 0.0
  %301 = vmatpush1.msra.mxu0 0.0
  %302 = vmatprep.subr.mxu0 0.0
  %303 = vmatpush1.msra.mxu0 0.0
  %304 = vmatprep.subr.mxu0 0.0
  %305 = vmatpush1.msra.mxu0 0.0
  %306 = vmatprep.subr.mxu0 0.0
  %307 = vmatpush1.msra.mxu0 0.0
  %308 = vmatprep.subr.mxu0 0.0
  %309 = vmatpush1.msra.mxu0 0.0
  %310 = vmatprep.subr.mxu0 0.0
  %311 = vmatpush1.msra.mxu0 0.0
  %312 = vmatprep.subr.mxu0 0.0
  %313 = vmatpush1.msra.mxu0 0.0
  %314 = vmatprep.subr.mxu0 0.0
  %315 = vmatpush1.msra.mxu0 0.0
  %316 = vmatprep.subr.mxu0 0.0
  %317 = vmatpush1.msra.mxu0 0.0
  %318 = vmatprep.subr.mxu0 0.0
  %319 = vmatpush1.msra.mxu0 0.0
  %320 = vmatprep.mubr.f32.mxu0 0.0
  %321 = vmatmul.mubr.f32.gmra.mrb[0].mxu0 %v248
  %v322 = vpop.f32.mrb[0].mxu0
  %v323 = vadd.f32 0.0, %v322
  %v324 = vpop.f32.mrb[0].mxu0
  %325 = vmatprep.mubr.f32.mxu0 0.0
  %326 = vmatmul.mubr.f32.gmra.mrb[0].mxu0 %v251
  %v327 = vpop.f32.mrb[0].mxu0
  %v328 = vadd.f32 0.0, %v327
  %v329 = vpop.f32.mrb[0].mxu0
  %330 = vmatprep.mubr.f32.mxu0 0.0
  %331 = vmatmul.mubr.f32.gmra.mrb[0].mxu0 %v254
  %v332 = vpop.f32.mrb[0].mxu0
  %v333 = vadd.f32 0.0, %v332
  %v334 = vpop.f32.mrb[0].mxu0
  %335 = vdwg.mxu0
  %v337 = vsel %vm60, %v137, 0
  %v340 = vsel %vm60, %v142, 0
  %v343 = vsel %vm60, %v147, 0
  %345 = vmatprep.subr.mxu0 0.0
  %346 = vmatpush1.msra.mxu0 %v239
  %347 = vmatprep.subr.mxu0 0.0
  %348 = vmatpush1.msra.mxu0 %v240
  %349 = vmatprep.subr.mxu0 0.0
  %350 = vmatpush1.msra.mxu0 %v241
  %351 = vmatprep.subr.mxu0 0.0
  %352 = vmatpush1.msra.mxu0 %v242
  %353 = vmatprep.subr.mxu0 0.0
  %354 = vmatpush1.msra.mxu0 0.0
  %355 = vmatprep.subr.mxu0 0.0
  %356 = vmatpush1.msra.mxu0 0.0
  %357 = vmatprep.subr.mxu0 0.0
  %358 = vmatpush1.msra.mxu0 0.0
  %359 = vmatprep.subr.mxu0 0.0
  %360 = vmatpush1.msra.mxu0 0.0
  %361 = vmatprep.subr.mxu0 0.0
  %362 = vmatpush1.msra.mxu0 0.0
  %363 = vmatprep.subr.mxu0 0.0
  %364 = vmatpush1.msra.mxu0 0.0
  %365 = vmatprep.subr.mxu0 0.0
  %366 = vmatpush1.msra.mxu0 0.0
  %367 = vmatprep.subr.mxu0 0.0
  %368 = vmatpush1.msra.mxu0 0.0
  %369 = vmatprep.subr.mxu0 0.0
  %370 = vmatpush1.msra.mxu0 0.0
  %371 = vmatprep.subr.mxu0 0.0
  %372 = vmatpush1.msra.mxu0 0.0
  %373 = vmatprep.subr.mxu0 0.0
  %374 = vmatpush1.msra.mxu0 0.0
  %375 = vmatprep.subr.mxu0 0.0
  %376 = vmatpush1.msra.mxu0 0.0
  %377 = vmatprep.subr.mxu0 0.0
  %378 = vmatpush1.msra.mxu0 0.0
  %379 = vmatprep.subr.mxu0 0.0
  %380 = vmatpush1.msra.mxu0 0.0
  %381 = vmatprep.subr.mxu0 0.0
  %382 = vmatpush1.msra.mxu0 0.0
  %383 = vmatprep.subr.mxu0 0.0
  %384 = vmatpush1.msra.mxu0 0.0
  %385 = vmatprep.subr.mxu0 0.0
  %386 = vmatpush1.msra.mxu0 0.0
  %387 = vmatprep.subr.mxu0 0.0
  %388 = vmatpush1.msra.mxu0 0.0
  %389 = vmatprep.subr.mxu0 0.0
  %390 = vmatpush1.msra.mxu0 0.0
  %391 = vmatprep.subr.mxu0 0.0
  %392 = vmatpush1.msra.mxu0 0.0
  %393 = vmatprep.subr.mxu0 0.0
  %394 = vmatpush1.msra.mxu0 0.0
  %395 = vmatprep.subr.mxu0 0.0
  %396 = vmatpush1.msra.mxu0 0.0
  %397 = vmatprep.subr.mxu0 0.0
  %398 = vmatpush1.msra.mxu0 0.0
  %399 = vmatprep.subr.mxu0 0.0
  %400 = vmatpush1.msra.mxu0 0.0
  %401 = vmatprep.subr.mxu0 0.0
  %402 = vmatpush1.msra.mxu0 0.0
  %403 = vmatprep.subr.mxu0 0.0
  %404 = vmatpush1.msra.mxu0 0.0
  %405 = vmatprep.subr.mxu0 0.0
  %406 = vmatpush1.msra.mxu0 0.0
  %407 = vmatprep.subr.mxu0 0.0
  %408 = vmatpush1.msra.mxu0 0.0
  %409 = vmatprep.mubr.f32.mxu0 0.0
  %410 = vmatmul.mubr.f32.gmra.mrb[0].mxu0 %v337
  %v411 = vpop.f32.mrb[0].mxu0
  %v412 = vadd.f32 %v323, %v411
  %v413 = vpop.f32.mrb[0].mxu0
  %414 = vmatprep.mubr.f32.mxu0 0.0
  %415 = vmatmul.mubr.f32.gmra.mrb[0].mxu0 %v340
  %v416 = vpop.f32.mrb[0].mxu0
  %v417 = vadd.f32 %v328, %v416
  %v418 = vpop.f32.mrb[0].mxu0
  %419 = vmatprep.mubr.f32.mxu0 0.0
  %420 = vmatmul.mubr.f32.gmra.mrb[0].mxu0 %v343
  %v421 = vpop.f32.mrb[0].mxu0
  %v422 = vadd.f32 %v333, %v421
  %v423 = vpop.f32.mrb[0].mxu0
  %424 = vdwg.mxu0
  %v425 = vld [vmem:[%s7] sm:$0x1]
  %v427 = vlaneseq
  %v428 = vshrl.u32 %v427, 7
  %v429 = vsub.s32 0, %v428
  %v430 = vrot.slane %v425, %v429
  %v432 = vadd.f32 %v412, %v430
  %v433 = vadd.f32 %v417, %v430
  %v434 = vadd.f32 %v422, %v430
  %vm435 = vcmp.ge.f32.partialorder %v432, 0.0
  %vm436 = vcmp.ge.f32.partialorder %v433, 0.0
  %vm437 = vcmp.ge.f32.partialorder %v434, 0.0
  %v438 = vmul.f32 %v432, 0.2
  %v439 = vmul.f32 %v433, 0.2
  %v440 = vmul.f32 %v434, 0.2
  %v441 = vsel %vm435, %v432, %v438
  %v442 = vsel %vm436, %v433, %v439
  %v443 = vsel %vm437, %v434, %v440
  %v444 = vld [vmem:[%s8] sm:$0x1]
  %v446 = vlaneseq
  %v447 = vshrl.u32 %v446, 7
  %v448 = vsub.s32 0, %v447
  %v449 = vrot.slane %v444, %v448
  %v451 = vmul.f32 %v441, %v449
  %v452 = vmul.f32 %v442, %v449
  %v453 = vmul.f32 %v443, %v449
  %v454 = vsel %vm60, %v451, 0.0
  %455 = vadd.xlane.f32.xlu0 %v454
  %v456 = vpop.xlane.xlu0 %455
  %v457 = vsel %vm60, %v452, 0.0
  %458 = vadd.xlane.f32.xlu0 %v457
  %v459 = vpop.xlane.xlu0 %458
  %v460 = vsel %vm60, %v453, 0.0
  %461 = vadd.xlane.f32.xlu0 %v460
  %v462 = vpop.xlane.xlu0 %461
  %v463 = vld [vmem:[#allocation2] sm:$0x1]
  %v465 = vlaneseq
  %v466 = vshrl.u32 %v465, 7
  %v467 = vsub.s32 0, %v466
  %v468 = vrot.slane %v463, %v467
  %v470 = vadd.f32 %v456, %v468
  %v471 = vadd.f32 %v459, %v468
  %v472 = vadd.f32 %v462, %v468
  %v473 = vld [vmem:[%s2] sm:$0xff]
  %v474 = vld [vmem:[%s2 + $0x8] sm:$0xff]
  %v475 = vld [vmem:[%s2 + $0x10] sm:$0xff]
  %vm476 = vcmp.gt.f32.partialorder %v473, 0.0
  %vm477 = vcmp.gt.f32.partialorder %v474, 0.0
  %vm478 = vcmp.gt.f32.partialorder %v475, 0.0
  %v479 = vsel %vm476, %v470, -1e+30
  %v480 = vsel %vm477, %v471, -1e+30
  %v481 = vsel %vm478, %v472, -1e+30
  %vm482 = vcmask 7168
  %v483 = vsel %vm482, %v479, -inf
  %v484 = vsel %vm482, %v480, -inf
  %v485 = vsel %vm482, %v481, -inf
  %v486 = vmax.f32 %v483, %v484
  %v487 = vmax.f32 %v486, %v485
  %v488 = vrot.slane %v487, 4
  %v489 = vmax.f32 %v487, %v488
  %v490 = vrot.slane %v489, 2
  %v491 = vmax.f32 %v489, %v490
  %v492 = vrot.slane %v491, 1
  %v493 = vmax.f32 %v491, %v492
  %v494 = vmax.f32 %v493, 0.0
  %v495 = vsub.f32 %v479, %v494
  %v496 = vsub.f32 %v480, %v494
  %v497 = vsub.f32 %v481, %v494
  %v498 = vmul.f32 %v495, 1.442695
  %v499 = vpow.pop %v498
  %v500 = vmul.f32 %v496, 1.442695
  %v501 = vpow.pop %v500
  %v502 = vmul.f32 %v497, 1.442695
  %v503 = vpow.pop %v502
  %v504 = vmul.f32 %v499, %v473
  %v505 = vmul.f32 %v501, %v474
  %v506 = vmul.f32 %v503, %v475
  %v507 = vlaneseq
  %v508 = vshrl.u32 %v507, 7
  %v509 = vlaneseq
  %v510 = vand.u32 %v509, 127
  %v511 = vmul.u32 %v508, 4
  %vm512 = vcmp.ge.s32.totalorder %v510, %v511
  %v513 = vadd.s32 %v511, 4
  %vm514 = vcmp.lt.s32.totalorder %v510, %v513
  %vm515 = vmand %vm512, %vm514
  %v516 = vsel %vm515, 1, 0
  %v517 = vcvt.s32.f32 %v516
  %519 = vset.pattern.permute.xlu0 0
  %520 = vperm.xlu0 %519, %v504
  %v521 = vpop.permute.xlu0 %520
  %524 = vset.pattern.permute.xlu0 0
  %525 = vperm.xlu0 %524, %v505
  %v526 = vpop.permute.xlu0 %525
  %529 = vset.pattern.permute.xlu0 0
  %530 = vperm.xlu0 %529, %v506
  %v531 = vpop.permute.xlu0 %530
  %v533 = vmul.f32 %v521, %v137
  %v534 = vmul.f32 %v526, %v142
  %v535 = vmul.f32 %v531, %v147
  %vm536 = vcmask 195584
  %v538 = vsel %vm536, %v517, 0
  %540 = vmatprep.subr.mxu0 0.0
  %541 = vmatpush1.msra.mxu0 %v533
  %542 = vmatprep.subr.mxu0 0.0
  %543 = vmatpush1.msra.mxu0 %v534
  %544 = vmatprep.subr.mxu0 0.0
  %545 = vmatpush1.msra.mxu0 %v535
  %546 = vmatprep.subr.mxu0 0.0
  %547 = vmatpush1.msra.mxu0 0.0
  %548 = vmatprep.subr.mxu0 0.0
  %549 = vmatpush1.msra.mxu0 0.0
  %550 = vmatprep.subr.mxu0 0.0
  %551 = vmatpush1.msra.mxu0 0.0
  %552 = vmatprep.subr.mxu0 0.0
  %553 = vmatpush1.msra.mxu0 0.0
  %554 = vmatprep.subr.mxu0 0.0
  %555 = vmatpush1.msra.mxu0 0.0
  %556 = vmatprep.subr.mxu0 0.0
  %557 = vmatpush1.msra.mxu0 0.0
  %558 = vmatprep.subr.mxu0 0.0
  %559 = vmatpush1.msra.mxu0 0.0
  %560 = vmatprep.subr.mxu0 0.0
  %561 = vmatpush1.msra.mxu0 0.0
  %562 = vmatprep.subr.mxu0 0.0
  %563 = vmatpush1.msra.mxu0 0.0
  %564 = vmatprep.subr.mxu0 0.0
  %565 = vmatpush1.msra.mxu0 0.0
  %566 = vmatprep.subr.mxu0 0.0
  %567 = vmatpush1.msra.mxu0 0.0
  %568 = vmatprep.subr.mxu0 0.0
  %569 = vmatpush1.msra.mxu0 0.0
  %570 = vmatprep.subr.mxu0 0.0
  %571 = vmatpush1.msra.mxu0 0.0
  %572 = vmatprep.subr.mxu0 0.0
  %573 = vmatpush1.msra.mxu0 0.0
  %574 = vmatprep.subr.mxu0 0.0
  %575 = vmatpush1.msra.mxu0 0.0
  %576 = vmatprep.subr.mxu0 0.0
  %577 = vmatpush1.msra.mxu0 0.0
  %578 = vmatprep.subr.mxu0 0.0
  %579 = vmatpush1.msra.mxu0 0.0
  %580 = vmatprep.subr.mxu0 0.0
  %581 = vmatpush1.msra.mxu0 0.0
  %582 = vmatprep.subr.mxu0 0.0
  %583 = vmatpush1.msra.mxu0 0.0
  %584 = vmatprep.subr.mxu0 0.0
  %585 = vmatpush1.msra.mxu0 0.0
  %586 = vmatprep.subr.mxu0 0.0
  %587 = vmatpush1.msra.mxu0 0.0
  %588 = vmatprep.subr.mxu0 0.0
  %589 = vmatpush1.msra.mxu0 0.0
  %590 = vmatprep.subr.mxu0 0.0
  %591 = vmatpush1.msra.mxu0 0.0
  %592 = vmatprep.subr.mxu0 0.0
  %593 = vmatpush1.msra.mxu0 0.0
  %594 = vmatprep.subr.mxu0 0.0
  %595 = vmatpush1.msra.mxu0 0.0
  %596 = vmatprep.subr.mxu0 0.0
  %597 = vmatpush1.msra.mxu0 0.0
  %598 = vmatprep.subr.mxu0 0.0
  %599 = vmatpush1.msra.mxu0 0.0
  %600 = vmatprep.subr.mxu0 0.0
  %601 = vmatpush1.msra.mxu0 0.0
  %602 = vmatprep.subr.mxu0 0.0
  %603 = vmatpush1.msra.mxu0 0.0
  %604 = vmatprep.mubr.f32.mxu0 0.0
  %605 = vmatmul.mubr.f32.gmra.mrb[0].mxu0 %v538
  %v606 = vpop.f32.mrb[0].mxu0
  %v607 = vadd.f32 0.0, %v606
  %v608 = vpop.f32.mrb[0].mxu0
  %609 = vdwg.mxu0
  %610 = vmatprep.subr.mxu0 0.0
  %611 = vmatpush1.msra.mxu0 %v504
  %612 = vmatprep.subr.mxu0 0.0
  %613 = vmatpush1.msra.mxu0 %v505
  %614 = vmatprep.subr.mxu0 0.0
  %615 = vmatpush1.msra.mxu0 %v506
  %616 = vmatprep.subr.mxu0 0.0
  %617 = vmatpush1.msra.mxu0 0.0
  %618 = vmatprep.subr.mxu0 0.0
  %619 = vmatpush1.msra.mxu0 0.0
  %620 = vmatprep.subr.mxu0 0.0
  %621 = vmatpush1.msra.mxu0 0.0
  %622 = vmatprep.subr.mxu0 0.0
  %623 = vmatpush1.msra.mxu0 0.0
  %624 = vmatprep.subr.mxu0 0.0
  %625 = vmatpush1.msra.mxu0 0.0
  %626 = vmatprep.subr.mxu0 0.0
  %627 = vmatpush1.msra.mxu0 0.0
  %628 = vmatprep.subr.mxu0 0.0
  %629 = vmatpush1.msra.mxu0 0.0
  %630 = vmatprep.subr.mxu0 0.0
  %631 = vmatpush1.msra.mxu0 0.0
  %632 = vmatprep.subr.mxu0 0.0
  %633 = vmatpush1.msra.mxu0 0.0
  %634 = vmatprep.subr.mxu0 0.0
  %635 = vmatpush1.msra.mxu0 0.0
  %636 = vmatprep.subr.mxu0 0.0
  %637 = vmatpush1.msra.mxu0 0.0
  %638 = vmatprep.subr.mxu0 0.0
  %639 = vmatpush1.msra.mxu0 0.0
  %640 = vmatprep.subr.mxu0 0.0
  %641 = vmatpush1.msra.mxu0 0.0
  %642 = vmatprep.subr.mxu0 0.0
  %643 = vmatpush1.msra.mxu0 0.0
  %644 = vmatprep.subr.mxu0 0.0
  %645 = vmatpush1.msra.mxu0 0.0
  %646 = vmatprep.subr.mxu0 0.0
  %647 = vmatpush1.msra.mxu0 0.0
  %648 = vmatprep.subr.mxu0 0.0
  %649 = vmatpush1.msra.mxu0 0.0
  %650 = vmatprep.subr.mxu0 0.0
  %651 = vmatpush1.msra.mxu0 0.0
  %652 = vmatprep.subr.mxu0 0.0
  %653 = vmatpush1.msra.mxu0 0.0
  %654 = vmatprep.subr.mxu0 0.0
  %655 = vmatpush1.msra.mxu0 0.0
  %656 = vmatprep.subr.mxu0 0.0
  %657 = vmatpush1.msra.mxu0 0.0
  %658 = vmatprep.subr.mxu0 0.0
  %659 = vmatpush1.msra.mxu0 0.0
  %660 = vmatprep.subr.mxu0 0.0
  %661 = vmatpush1.msra.mxu0 0.0
  %662 = vmatprep.subr.mxu0 0.0
  %663 = vmatpush1.msra.mxu0 0.0
  %664 = vmatprep.subr.mxu0 0.0
  %665 = vmatpush1.msra.mxu0 0.0
  %666 = vmatprep.subr.mxu0 0.0
  %667 = vmatpush1.msra.mxu0 0.0
  %668 = vmatprep.subr.mxu0 0.0
  %669 = vmatpush1.msra.mxu0 0.0
  %670 = vmatprep.subr.mxu0 0.0
  %671 = vmatpush1.msra.mxu0 0.0
  %672 = vmatprep.subr.mxu0 0.0
  %673 = vmatpush1.msra.mxu0 0.0
  %674 = vmatprep.mubr.f32.mxu0 0.0
  %675 = vmatmul.mubr.f32.gmra.mrb[0].mxu0 %v538
  %v676 = vpop.f32.mrb[0].mxu0
  %v677 = vadd.f32 1e-10, %v676
  %v678 = vpop.f32.mrb[0].mxu0
  %679 = vdwg.mxu0
  %v680 = vrcp.pop %v677
  %682 = vset.pattern.permute.xlu0 0
  %683 = vperm.xlu0 %682, %v680
  %v684 = vpop.permute.xlu0 %683
  %v686 = vmul.f32 %v607, %v684
  %v687 = vld [vmem:[%s10] sm:$0xff]
  %v688 = vld [vmem:[%s10 + $0x8] sm:$0xff]
  %v689 = vld [vmem:[%s10 + $0x10] sm:$0xff]
  %v690 = vld [vmem:[%s10 + $0x18] sm:$0xff]
  %v691 = vld [vmem:[%s11] sm:$0x1]
  %v693 = vlaneseq
  %v694 = vshrl.u32 %v693, 7
  %v695 = vsub.s32 0, %v694
  %v696 = vrot.slane %v691, %v695
  %v699 = vsel %vm60, %v686, 0
  %701 = vmatprep.subr.mxu0 0.0
  %702 = vmatpush1.msra.mxu0 %v687
  %703 = vmatprep.subr.mxu0 0.0
  %704 = vmatpush1.msra.mxu0 %v688
  %705 = vmatprep.subr.mxu0 0.0
  %706 = vmatpush1.msra.mxu0 %v689
  %707 = vmatprep.subr.mxu0 0.0
  %708 = vmatpush1.msra.mxu0 %v690
  %709 = vmatprep.subr.mxu0 0.0
  %710 = vmatpush1.msra.mxu0 0.0
  %711 = vmatprep.subr.mxu0 0.0
  %712 = vmatpush1.msra.mxu0 0.0
  %713 = vmatprep.subr.mxu0 0.0
  %714 = vmatpush1.msra.mxu0 0.0
  %715 = vmatprep.subr.mxu0 0.0
  %716 = vmatpush1.msra.mxu0 0.0
  %717 = vmatprep.subr.mxu0 0.0
  %718 = vmatpush1.msra.mxu0 0.0
  %719 = vmatprep.subr.mxu0 0.0
  %720 = vmatpush1.msra.mxu0 0.0
  %721 = vmatprep.subr.mxu0 0.0
  %722 = vmatpush1.msra.mxu0 0.0
  %723 = vmatprep.subr.mxu0 0.0
  %724 = vmatpush1.msra.mxu0 0.0
  %725 = vmatprep.subr.mxu0 0.0
  %726 = vmatpush1.msra.mxu0 0.0
  %727 = vmatprep.subr.mxu0 0.0
  %728 = vmatpush1.msra.mxu0 0.0
  %729 = vmatprep.subr.mxu0 0.0
  %730 = vmatpush1.msra.mxu0 0.0
  %731 = vmatprep.subr.mxu0 0.0
  %732 = vmatpush1.msra.mxu0 0.0
  %733 = vmatprep.subr.mxu0 0.0
  %734 = vmatpush1.msra.mxu0 0.0
  %735 = vmatprep.subr.mxu0 0.0
  %736 = vmatpush1.msra.mxu0 0.0
  %737 = vmatprep.subr.mxu0 0.0
  %738 = vmatpush1.msra.mxu0 0.0
  %739 = vmatprep.subr.mxu0 0.0
  %740 = vmatpush1.msra.mxu0 0.0
  %741 = vmatprep.subr.mxu0 0.0
  %742 = vmatpush1.msra.mxu0 0.0
  %743 = vmatprep.subr.mxu0 0.0
  %744 = vmatpush1.msra.mxu0 0.0
  %745 = vmatprep.subr.mxu0 0.0
  %746 = vmatpush1.msra.mxu0 0.0
  %747 = vmatprep.subr.mxu0 0.0
  %748 = vmatpush1.msra.mxu0 0.0
  %749 = vmatprep.subr.mxu0 0.0
  %750 = vmatpush1.msra.mxu0 0.0
  %751 = vmatprep.subr.mxu0 0.0
  %752 = vmatpush1.msra.mxu0 0.0
  %753 = vmatprep.subr.mxu0 0.0
  %754 = vmatpush1.msra.mxu0 0.0
  %755 = vmatprep.subr.mxu0 0.0
  %756 = vmatpush1.msra.mxu0 0.0
  %757 = vmatprep.subr.mxu0 0.0
  %758 = vmatpush1.msra.mxu0 0.0
  %759 = vmatprep.subr.mxu0 0.0
  %760 = vmatpush1.msra.mxu0 0.0
  %761 = vmatprep.subr.mxu0 0.0
  %762 = vmatpush1.msra.mxu0 0.0
  %763 = vmatprep.subr.mxu0 0.0
  %764 = vmatpush1.msra.mxu0 0.0
  %765 = vmatprep.mubr.f32.mxu0 0.0
  %766 = vmatmul.mubr.f32.gmra.mrb[0].mxu0 %v699
  %v767 = vpop.f32.mrb[0].mxu0
  %v768 = vadd.f32 %v696, %v767
  %v769 = vpop.f32.mrb[0].mxu0
  %770 = vdwg.mxu0
  %v771 = vmax.f32 %v768, 0.0
  %vm772 = vcmask 259072
  %773 = vst.msk [vmem:[%s12] sm:$0x3f] %vm772, %v771
  // Predicated region
  $region50: #{user_model_forward.15} parent=0 // pred_check
    _
  $region51: #{user_model_forward.15} parent=0 // pred_check_branch
    %775 = sbr.rel (0) target = $region53
  $region52: #{user_model_forward.15} parent=0 // pred_region
    _
  $region53: #{user_model_forward.15} parent=0 // pred_fallthru
    _
  // Predicated region
  $region54: #{user_model_forward.15} parent=0 // pred_check
    _
  $region55: #{user_model_forward.15} parent=0 // pred_check_branch
    %777 = sbr.rel (0) target = $region57
  $region56: #{user_model_forward.15} parent=0 // pred_region
    _
  $region57: #{user_model_forward.15} parent=0 // pred_fallthru
    _

// kernel: user_model_forward.11
$region0: #{user_model_forward.11}
  #allocation0 [shape = 'u32[]', space=smem, size = 0x4, offset = 0x4, fixed_abs, tag = 'smem constant byte address 0x4 - core index']
  #allocation1 [shape = 'u32[144,128]{1,0:T(1,128)}', space=vmem, size = 0x12000, scoped, tag = 'internal scratch']
  #allocation2 [shape = 'f32[4,2,32]{2,1,0:T(2,128)}', space=vmem, size = 0x1000, scoped, tag = 'scratch operand']
  #allocation3 [shape = 'f32[4,2,32]{2,1,0:T(2,128)}', space=vmem, size = 0x1000, scoped, tag = 'scratch operand']
  #allocation4 [shape = 'f32[4,6,32]{2,1,0:T(8,128)}', space=vmem, size = 0x4000, scoped, tag = 'scratch operand']
  #allocation5 [shape = 'f32[4,6,32]{2,1,0:T(8,128)}', space=vmem, size = 0x4000, scoped, tag = 'scratch operand']
  #allocation6 [shape = 'f32[4,6,32]{2,1,0:T(8,128)}', space=vmem, size = 0x4000, scoped, tag = 'scratch operand']
  #allocation7 [shape = 'f32[4,6,32]{2,1,0:T(8,128)}', space=vmem, size = 0x4000, scoped, tag = 'scratch operand']
  %s0 = inlined_call_operand.vmem [shape: f32[5,2,128], index: 0, kind: input, shape index: {}]
  %s1 = inlined_call_operand.vmem [shape: f32[4,6,128], index: 1, kind: input, shape index: {}]
  %s2 = inlined_call_operand.vmem [shape: f32[4,6,32], index: 2, kind: input, shape index: {}]
  %s3 = inlined_call_operand.vmem [shape: f32[4,2,32], index: 3, kind: input, shape index: {}]
  %s4 = inlined_call_operand.vmem [shape: f32[4,2,32], index: 4, kind: input, shape index: {}]
  %s5 = inlined_call_operand.vmem [shape: f32[4,32,128], index: 5, kind: input, shape index: {}]
  %s6 = inlined_call_operand.vmem [shape: f32[4,32,128], index: 6, kind: input, shape index: {}]
  %s7 = inlined_call_operand.vmem [shape: f32[4,1,128], index: 7, kind: input, shape index: {}]
  %s8 = inlined_call_operand.vmem [shape: f32[2,32], index: 8, kind: output, shape index: {0}]
  %s9 = inlined_call_operand.vmem [shape: f32[6,32], index: 9, kind: output, shape index: {1}]
  %s10 = inlined_call_operand.vmem [shape: f32[6,32], index: 10, kind: output, shape index: {2}]
  %11 = xla_tuple %s8, %s9, %s10
  %s12 = sld [smem:[#allocation0]]
  $region79: #{user_model_forward.11} parent=0
    _
  %s14 = ssub.s32 1, %s12
  %s15 = scalar_select 0, %s14, %s12
  // Predicated region
  $region2: #{user_model_forward.11} parent=0 // pred_check
    _
  $region3: #{user_model_forward.11} parent=0 // pred_check_branch
    %17 = sbr.rel (0) target = $region5
  $region4: #{user_model_forward.11} parent=0 // pred_region
    _
  $region5: #{user_model_forward.11} parent=0 // pred_fallthru
    _
  // Predicated region
  $region6: #{user_model_forward.11} parent=0 // pred_check
    _
  $region7: #{user_model_forward.11} parent=0 // pred_check_branch
    %19 = sbr.rel (0) target = $region9
  $region8: #{user_model_forward.11} parent=0 // pred_region
    _
  $region9: #{user_model_forward.11} parent=0 // pred_fallthru
    _
  // Predicated region
  $region10: #{user_model_forward.11} parent=0 // pred_check
    _
  $region11: #{user_model_forward.11} parent=0 // pred_check_branch
    %21 = sbr.rel (0) target = $region13
  $region12: #{user_model_forward.11} parent=0 // pred_region
    _
  $region13: #{user_model_forward.11} parent=0 // pred_fallthru
    _
  // Predicated region
  $region14: #{user_model_forward.11} parent=0 // pred_check
    _
  $region15: #{user_model_forward.11} parent=0 // pred_check_branch
    %23 = sbr.rel (0) target = $region17
  $region16: #{user_model_forward.11} parent=0 // pred_region
    _
  $region17: #{user_model_forward.11} parent=0 // pred_fallthru
    _
  // Predicated region
  $region18: #{user_model_forward.11} parent=0 // pred_check
    _
  $region19: #{user_model_forward.11} parent=0 // pred_check_branch
    %25 = sbr.rel (0) target = $region21
  $region20: #{user_model_forward.11} parent=0 // pred_region
    _
  $region21: #{user_model_forward.11} parent=0 // pred_fallthru
    _
  // Predicated region
  $region22: #{user_model_forward.11} parent=0 // pred_check
    _
  $region23: #{user_model_forward.11} parent=0 // pred_check_branch
    %27 = sbr.rel (0) target = $region25
  $region24: #{user_model_forward.11} parent=0 // pred_region
    _
  $region25: #{user_model_forward.11} parent=0 // pred_fallthru
    _
  // Predicated region
  $region26: #{user_model_forward.11} parent=0 // pred_check
    _
  $region27: #{user_model_forward.11} parent=0 // pred_check_branch
    %29 = sbr.rel (0) target = $region29
  $region28: #{user_model_forward.11} parent=0 // pred_region
    _
  $region29: #{user_model_forward.11} parent=0 // pred_fallthru
    _
  // Predicated region
  $region30: #{user_model_forward.11} parent=0 // pred_check
    _
  $region31: #{user_model_forward.11} parent=0 // pred_check_branch
    %31 = sbr.rel (0) target = $region33
  $region32: #{user_model_forward.11} parent=0 // pred_region
    _
  $region33: #{user_model_forward.11} parent=0 // pred_fallthru
    _
  %v32 = vld [vmem:[%s5] sm:$0xff]
  %v33 = vld [vmem:[%s5 + $0x8] sm:$0xff]
  %v34 = vld [vmem:[%s5 + $0x10] sm:$0xff]
  %v35 = vld [vmem:[%s5 + $0x18] sm:$0xff]
  %s36 = scalar_lea.vmem %s5, 32
  %v37 = vld [vmem:[%s36] sm:$0xff]
  %v38 = vld [vmem:[%s36 + $0x8] sm:$0xff]
  %v39 = vld [vmem:[%s36 + $0x10] sm:$0xff]
  %v40 = vld [vmem:[%s36 + $0x18] sm:$0xff]
  %s41 = scalar_lea.vmem %s5, 64
  %v42 = vld [vmem:[%s41] sm:$0xff]
  %v43 = vld [vmem:[%s41 + $0x8] sm:$0xff]
  %v44 = vld [vmem:[%s41 + $0x10] sm:$0xff]
  %v45 = vld [vmem:[%s41 + $0x18] sm:$0xff]
  %s46 = scalar_lea.vmem %s5, 96
  %v47 = vld [vmem:[%s46] sm:$0xff]
  %v48 = vld [vmem:[%s46 + $0x8] sm:$0xff]
  %v49 = vld [vmem:[%s46 + $0x10] sm:$0xff]
  %v50 = vld [vmem:[%s46 + $0x18] sm:$0xff]
  %v51 = vld [vmem:[%s6] sm:$0xff]
  %v52 = vld [vmem:[%s6 + $0x8] sm:$0xff]
  %v53 = vld [vmem:[%s6 + $0x10] sm:$0xff]
  %v54 = vld [vmem:[%s6 + $0x18] sm:$0xff]
  %s55 = scalar_lea.vmem %s6, 32
  %v56 = vld [vmem:[%s55] sm:$0xff]
  %v57 = vld [vmem:[%s55 + $0x8] sm:$0xff]
  %v58 = vld [vmem:[%s55 + $0x10] sm:$0xff]
  %v59 = vld [vmem:[%s55 + $0x18] sm:$0xff]
  %s60 = scalar_lea.vmem %s6, 64
  %v61 = vld [vmem:[%s60] sm:$0xff]
  %v62 = vld [vmem:[%s60 + $0x8] sm:$0xff]
  %v63 = vld [vmem:[%s60 + $0x10] sm:$0xff]
  %v64 = vld [vmem:[%s60 + $0x18] sm:$0xff]
  %s65 = scalar_lea.vmem %s6, 96
  %v66 = vld [vmem:[%s65] sm:$0xff]
  %v67 = vld [vmem:[%s65 + $0x8] sm:$0xff]
  %v68 = vld [vmem:[%s65 + $0x10] sm:$0xff]
  %v69 = vld [vmem:[%s65 + $0x18] sm:$0xff]
  %v70 = vld [vmem:[%s7] sm:$0x1]
  %s71 = scalar_lea.vmem %s7, 1
  %v72 = vld [vmem:[%s71] sm:$0x1]
  %s73 = scalar_lea.vmem %s7, 2
  %v74 = vld [vmem:[%s73] sm:$0x1]
  %s75 = scalar_lea.vmem %s7, 3
  %v76 = vld [vmem:[%s75] sm:$0x1]
  %v77 = vld [vmem:[%s3] sm:$0x3]
  %v78 = vld [vmem:[%s3 + $0x2] sm:$0x3]
  %v79 = vld [vmem:[%s3 + $0x4] sm:$0x3]
  %v80 = vld [vmem:[%s3 + $0x6] sm:$0x3]
  %vm81 = vcmask 254976
  %82 = vst.msk [vmem:[#allocation2] sm:$0x3] %vm81, %v77
  %83 = vst.msk [vmem:[#allocation2 + $0x2] sm:$0x3] %vm81, %v78
  %84 = vst.msk [vmem:[#allocation2 + $0x4] sm:$0x3] %vm81, %v79
  %85 = vst.msk [vmem:[#allocation2 + $0x6] sm:$0x3] %vm81, %v80
  %v86 = vld [vmem:[%s4] sm:$0x3]
  %v87 = vld [vmem:[%s4 + $0x2] sm:$0x3]
  %v88 = vld [vmem:[%s4 + $0x4] sm:$0x3]
  %v89 = vld [vmem:[%s4 + $0x6] sm:$0x3]
  %90 = vst.msk [vmem:[#allocation3] sm:$0x3] %vm81, %v86
  %91 = vst.msk [vmem:[#allocation3 + $0x2] sm:$0x3] %vm81, %v87
  %92 = vst.msk [vmem:[#allocation3 + $0x4] sm:$0x3] %vm81, %v88
  %93 = vst.msk [vmem:[#allocation3 + $0x6] sm:$0x3] %vm81, %v89
  loop: start=0, step=1, limit=5
  $region34: #{user_model_forward.11} parent=0 // loop_pre_header
    _
  $region35: #{user_model_forward.11} parent=0 // loop_header
    %s95 = sphi 0, %s99
    %p96 = scmp.ge.s32.totalorder %s95, 5
  $region36: #{user_model_forward.11} parent=0 // loop_header_branch
    %98 = sbr.rel (%p96) target = $region40
  $region37: #{user_model_forward.11} parent=0 // loop_body
    %s100 = smul.u32 %s95, 2
    %s101 = scalar_lea.vmem %s0, %s100
    %v102 = vld [vmem:[%s101] sm:$0x3]
    %v103 = vld [vmem:[#allocation2] sm:$0x3]
    %vm104 = vcmask 261120
    %v106 = vsel %vm104, %v103, 0
    %108 = vmatprep.subr.mxu0 0.0
    %109 = vmatpush1.msra.mxu0 %v51
    %110 = vmatprep.subr.mxu0 0.0
    %111 = vmatpush1.msra.mxu0 %v52
    %112 = vmatprep.subr.mxu0 0.0
    %113 = vmatpush1.msra.mxu0 %v53
    %114 = vmatprep.subr.mxu0 0.0
    %115 = vmatpush1.msra.mxu0 %v54
    %116 = vmatprep.subr.mxu0 0.0
    %117 = vmatpush1.msra.mxu0 0.0
    %118 = vmatprep.subr.mxu0 0.0
    %119 = vmatpush1.msra.mxu0 0.0
    %120 = vmatprep.subr.mxu0 0.0
    %121 = vmatpush1.msra.mxu0 0.0
    %122 = vmatprep.subr.mxu0 0.0
    %123 = vmatpush1.msra.mxu0 0.0
    %124 = vmatprep.subr.mxu0 0.0
    %125 = vmatpush1.msra.mxu0 0.0
    %126 = vmatprep.subr.mxu0 0.0
    %127 = vmatpush1.msra.mxu0 0.0
    %128 = vmatprep.subr.mxu0 0.0
    %129 = vmatpush1.msra.mxu0 0.0
    %130 = vmatprep.subr.mxu0 0.0
    %131 = vmatpush1.msra.mxu0 0.0
    %132 = vmatprep.subr.mxu0 0.0
    %133 = vmatpush1.msra.mxu0 0.0
    %134 = vmatprep.subr.mxu0 0.0
    %135 = vmatpush1.msra.mxu0 0.0
    %136 = vmatprep.subr.mxu0 0.0
    %137 = vmatpush1.msra.mxu0 0.0
    %138 = vmatprep.subr.mxu0 0.0
    %139 = vmatpush1.msra.mxu0 0.0
    %140 = vmatprep.subr.mxu0 0.0
    %141 = vmatpush1.msra.mxu0 0.0
    %142 = vmatprep.subr.mxu0 0.0
    %143 = vmatpush1.msra.mxu0 0.0
    %144 = vmatprep.subr.mxu0 0.0
    %145 = vmatpush1.msra.mxu0 0.0
    %146 = vmatprep.subr.mxu0 0.0
    %147 = vmatpush1.msra.mxu0 0.0
    %148 = vmatprep.subr.mxu0 0.0
    %149 = vmatpush1.msra.mxu0 0.0
    %150 = vmatprep.subr.mxu0 0.0
    %151 = vmatpush1.msra.mxu0 0.0
    %152 = vmatprep.subr.mxu0 0.0
    %153 = vmatpush1.msra.mxu0 0.0
    %154 = vmatprep.subr.mxu0 0.0
    %155 = vmatpush1.msra.mxu0 0.0
    %156 = vmatprep.subr.mxu0 0.0
    %157 = vmatpush1.msra.mxu0 0.0
    %158 = vmatprep.subr.mxu0 0.0
    %159 = vmatpush1.msra.mxu0 0.0
    %160 = vmatprep.subr.mxu0 0.0
    %161 = vmatpush1.msra.mxu0 0.0
    %162 = vmatprep.subr.mxu0 0.0
    %163 = vmatpush1.msra.mxu0 0.0
    %164 = vmatprep.subr.mxu0 0.0
    %165 = vmatpush1.msra.mxu0 0.0
    %166 = vmatprep.subr.mxu0 0.0
    %167 = vmatpush1.msra.mxu0 0.0
    %168 = vmatprep.subr.mxu0 0.0
    %169 = vmatpush1.msra.mxu0 0.0
    %170 = vmatprep.subr.mxu0 0.0
    %171 = vmatpush1.msra.mxu0 0.0
    %172 = vmatprep.mubr.f32.mxu0 0.0
    %173 = vmatmul.mubr.f32.gmra.mrb[0].mxu0 %v106
    %v174 = vpop.f32.mrb[0].mxu0
    %v175 = vadd.f32 0.0, %v174
    %v176 = vpop.f32.mrb[0].mxu0
    %177 = vdwg.mxu0
    %v178 = vadd.f32 %v102, %v175
    %v179 = vld [vmem:[#allocation3] sm:$0x3]
    %v180 = vxor.u32 %v178, 2147483648
    %v181 = vmul.f32 %v180, 1.442695
    %v182 = vpow.pop %v181
    %v183 = vadd.f32 %v182, 1.0
    %v184 = vrcp.pop %v183
    %v185 = vmul.f32 1.0, %v184
    %v186 = vtanh.pop %v178
    %188 = vrot.lane.b32.xlu0 %v179, 32
    %v189 = vpop.permute.xlu0 %188
    %v191 = vmul.f32 %v185, %v189
    %193 = vrot.lane.b32.xlu0 %v186, 64
    %v194 = vpop.permute.xlu0 %193
    %v196 = vmul.f32 %v185, %v194
    %198 = vrot.lane.b32.xlu0 %v196, 32
    %v199 = vpop.permute.xlu0 %198
    %v201 = vadd.f32 %v191, %v199
    %v202 = vtanh.pop %v201
    %204 = vrot.lane.b32.xlu0 %v202, 64
    %v205 = vpop.permute.xlu0 %204
    %v207 = vmul.f32 %v185, %v205
    %209 = vrot.lane.b32.xlu0 %v207, 32
    %v210 = vpop.permute.xlu0 %209
    %212 = vst.msk [vmem:[#allocation2] sm:$0x3] %vm81, %v210
    %214 = vrot.lane.b32.xlu0 %v201, 96
    %v215 = vpop.permute.xlu0 %214
    %217 = vst.msk [vmem:[#allocation3] sm:$0x3] %vm81, %v215
    %s218 = scalar_lea.vmem [#allocation2], 2
    %v219 = vld [vmem:[%s218] sm:$0x3]
    %v221 = vsel %vm104, %v219, 0
    %223 = vmatprep.subr.mxu0 0.0
    %224 = vmatpush1.msra.mxu0 %v56
    %225 = vmatprep.subr.mxu0 0.0
    %226 = vmatpush1.msra.mxu0 %v57
    %227 = vmatprep.subr.mxu0 0.0
    %228 = vmatpush1.msra.mxu0 %v58
    %229 = vmatprep.subr.mxu0 0.0
    %230 = vmatpush1.msra.mxu0 %v59
    %231 = vmatprep.subr.mxu0 0.0
    %232 = vmatpush1.msra.mxu0 0.0
    %233 = vmatprep.subr.mxu0 0.0
    %234 = vmatpush1.msra.mxu0 0.0
    %235 = vmatprep.subr.mxu0 0.0
    %236 = vmatpush1.msra.mxu0 0.0
    %237 = vmatprep.subr.mxu0 0.0
    %238 = vmatpush1.msra.mxu0 0.0
    %239 = vmatprep.subr.mxu0 0.0
    %240 = vmatpush1.msra.mxu0 0.0
    %241 = vmatprep.subr.mxu0 0.0
    %242 = vmatpush1.msra.mxu0 0.0
    %243 = vmatprep.subr.mxu0 0.0
    %244 = vmatpush1.msra.mxu0 0.0
    %245 = vmatprep.subr.mxu0 0.0
    %246 = vmatpush1.msra.mxu0 0.0
    %247 = vmatprep.subr.mxu0 0.0
    %248 = vmatpush1.msra.mxu0 0.0
    %249 = vmatprep.subr.mxu0 0.0
    %250 = vmatpush1.msra.mxu0 0.0
    %251 = vmatprep.subr.mxu0 0.0
    %252 = vmatpush1.msra.mxu0 0.0
    %253 = vmatprep.subr.mxu0 0.0
    %254 = vmatpush1.msra.mxu0 0.0
    %255 = vmatprep.subr.mxu0 0.0
    %256 = vmatpush1.msra.mxu0 0.0
    %257 = vmatprep.subr.mxu0 0.0
    %258 = vmatpush1.msra.mxu0 0.0
    %259 = vmatprep.subr.mxu0 0.0
    %260 = vmatpush1.msra.mxu0 0.0
    %261 = vmatprep.subr.mxu0 0.0
    %262 = vmatpush1.msra.mxu0 0.0
    %263 = vmatprep.subr.mxu0 0.0
    %264 = vmatpush1.msra.mxu0 0.0
    %265 = vmatprep.subr.mxu0 0.0
    %266 = vmatpush1.msra.mxu0 0.0
    %267 = vmatprep.subr.mxu0 0.0
    %268 = vmatpush1.msra.mxu0 0.0
    %269 = vmatprep.subr.mxu0 0.0
    %270 = vmatpush1.msra.mxu0 0.0
    %271 = vmatprep.subr.mxu0 0.0
    %272 = vmatpush1.msra.mxu0 0.0
    %273 = vmatprep.subr.mxu0 0.0
    %274 = vmatpush1.msra.mxu0 0.0
    %275 = vmatprep.subr.mxu0 0.0
    %276 = vmatpush1.msra.mxu0 0.0
    %277 = vmatprep.subr.mxu0 0.0
    %278 = vmatpush1.msra.mxu0 0.0
    %279 = vmatprep.subr.mxu0 0.0
    %280 = vmatpush1.msra.mxu0 0.0
    %281 = vmatprep.subr.mxu0 0.0
    %282 = vmatpush1.msra.mxu0 0.0
    %283 = vmatprep.subr.mxu0 0.0
    %284 = vmatpush1.msra.mxu0 0.0
    %285 = vmatprep.subr.mxu0 0.0
    %286 = vmatpush1.msra.mxu0 0.0
    %287 = vmatprep.mubr.f32.mxu0 0.0
    %288 = vmatmul.mubr.f32.gmra.mrb[0].mxu0 %v221
    %v289 = vpop.f32.mrb[0].mxu0
    %v290 = vadd.f32 0.0, %v289
    %v291 = vpop.f32.mrb[0].mxu0
    %292 = vdwg.mxu0
    %v293 = vsel %vm104, %v210, 0
    %295 = vmatprep.subr.mxu0 0.0
    %296 = vmatpush1.msra.mxu0 %v37
    %297 = vmatprep.subr.mxu0 0.0
    %298 = vmatpush1.msra.mxu0 %v38
    %299 = vmatprep.subr.mxu0 0.0
    %300 = vmatpush1.msra.mxu0 %v39
    %301 = vmatprep.subr.mxu0 0.0
    %302 = vmatpush1.msra.mxu0 %v40
    %303 = vmatprep.subr.mxu0 0.0
    %304 = vmatpush1.msra.mxu0 0.0
    %305 = vmatprep.subr.mxu0 0.0
    %306 = vmatpush1.msra.mxu0 0.0
    %307 = vmatprep.subr.mxu0 0.0
    %308 = vmatpush1.msra.mxu0 0.0
    %309 = vmatprep.subr.mxu0 0.0
    %310 = vmatpush1.msra.mxu0 0.0
    %311 = vmatprep.subr.mxu0 0.0
    %312 = vmatpush1.msra.mxu0 0.0
    %313 = vmatprep.subr.mxu0 0.0
    %314 = vmatpush1.msra.mxu0 0.0
    %315 = vmatprep.subr.mxu0 0.0
    %316 = vmatpush1.msra.mxu0 0.0
    %317 = vmatprep.subr.mxu0 0.0
    %318 = vmatpush1.msra.mxu0 0.0
    %319 = vmatprep.subr.mxu0 0.0
    %320 = vmatpush1.msra.mxu0 0.0
    %321 = vmatprep.subr.mxu0 0.0
    %322 = vmatpush1.msra.mxu0 0.0
    %323 = vmatprep.subr.mxu0 0.0
    %324 = vmatpush1.msra.mxu0 0.0
    %325 = vmatprep.subr.mxu0 0.0
    %326 = vmatpush1.msra.mxu0 0.0
    %327 = vmatprep.subr.mxu0 0.0
    %328 = vmatpush1.msra.mxu0 0.0
    %329 = vmatprep.subr.mxu0 0.0
    %330 = vmatpush1.msra.mxu0 0.0
    %331 = vmatprep.subr.mxu0 0.0
    %332 = vmatpush1.msra.mxu0 0.0
    %333 = vmatprep.subr.mxu0 0.0
    %334 = vmatpush1.msra.mxu0 0.0
    %335 = vmatprep.subr.mxu0 0.0
    %336 = vmatpush1.msra.mxu0 0.0
    %337 = vmatprep.subr.mxu0 0.0
    %338 = vmatpush1.msra.mxu0 0.0
    %339 = vmatprep.subr.mxu0 0.0
    %340 = vmatpush1.msra.mxu0 0.0
    %341 = vmatprep.subr.mxu0 0.0
    %342 = vmatpush1.msra.mxu0 0.0
    %343 = vmatprep.subr.mxu0 0.0
    %344 = vmatpush1.msra.mxu0 0.0
    %345 = vmatprep.subr.mxu0 0.0
    %346 = vmatpush1.msra.mxu0 0.0
    %347 = vmatprep.subr.mxu0 0.0
    %348 = vmatpush1.msra.mxu0 0.0
    %349 = vmatprep.subr.mxu0 0.0
    %350 = vmatpush1.msra.mxu0 0.0
    %351 = vmatprep.subr.mxu0 0.0
    %352 = vmatpush1.msra.mxu0 0.0
    %353 = vmatprep.subr.mxu0 0.0
    %354 = vmatpush1.msra.mxu0 0.0
    %355 = vmatprep.subr.mxu0 0.0
    %356 = vmatpush1.msra.mxu0 0.0
    %357 = vmatprep.subr.mxu0 0.0
    %358 = vmatpush1.msra.mxu0 0.0
    %359 = vmatprep.mubr.f32.mxu0 0.0
    %360 = vmatmul.mubr.f32.gmra.mrb[0].mxu0 %v293
    %v361 = vpop.f32.mrb[0].mxu0
    %v362 = vadd.f32 %v290, %v361
    %v363 = vpop.f32.mrb[0].mxu0
    %364 = vdwg.mxu0
    %v366 = vlaneseq
    %v367 = vshrl.u32 %v366, 7
    %v368 = vsub.s32 0, %v367
    %v369 = vrot.slane %v72, %v368
    %v371 = vadd.f32 %v362, %v369
    %s372 = scalar_lea.vmem [#allocation3], 2
    %v373 = vld [vmem:[%s372] sm:$0x3]
    %v374 = vxor.u32 %v371, 2147483648
    %v375 = vmul.f32 %v374, 1.442695
    %v376 = vpow.pop %v375
    %v377 = vadd.f32 %v376, 1.0
    %v378 = vrcp.pop %v377
    %v379 = vmul.f32 1.0, %v378
    %v380 = vtanh.pop %v371
    %382 = vrot.lane.b32.xlu0 %v373, 32
    %v383 = vpop.permute.xlu0 %382
    %v385 = vmul.f32 %v379, %v383
    %387 = vrot.lane.b32.xlu0 %v380, 64
    %v388 = vpop.permute.xlu0 %387
    %v390 = vmul.f32 %v379, %v388
    %392 = vrot.lane.b32.xlu0 %v390, 32
    %v393 = vpop.permute.xlu0 %392
    %v395 = vadd.f32 %v385, %v393
    %v396 = vtanh.pop %v395
    %398 = vrot.lane.b32.xlu0 %v396, 64
    %v399 = vpop.permute.xlu0 %398
    %v401 = vmul.f32 %v379, %v399
    %403 = vrot.lane.b32.xlu0 %v401, 32
    %v404 = vpop.permute.xlu0 %403
    %406 = vst.msk [vmem:[%s218] sm:$0x3] %vm81, %v404
    %408 = vrot.lane.b32.xlu0 %v395, 96
    %v409 = vpop.permute.xlu0 %408
    %411 = vst.msk [vmem:[%s372] sm:$0x3] %vm81, %v409
    %s412 = scalar_lea.vmem [#allocation2], 4
    %v413 = vld [vmem:[%s412] sm:$0x3]
    %v415 = vsel %vm104, %v413, 0
    %417 = vmatprep.subr.mxu0 0.0
    %418 = vmatpush1.msra.mxu0 %v61
    %419 = vmatprep.subr.mxu0 0.0
    %420 = vmatpush1.msra.mxu0 %v62
    %421 = vmatprep.subr.mxu0 0.0
    %422 = vmatpush1.msra.mxu0 %v63
    %423 = vmatprep.subr.mxu0 0.0
    %424 = vmatpush1.msra.mxu0 %v64
    %425 = vmatprep.subr.mxu0 0.0
    %426 = vmatpush1.msra.mxu0 0.0
    %427 = vmatprep.subr.mxu0 0.0
    %428 = vmatpush1.msra.mxu0 0.0
    %429 = vmatprep.subr.mxu0 0.0
    %430 = vmatpush1.msra.mxu0 0.0
    %431 = vmatprep.subr.mxu0 0.0
    %432 = vmatpush1.msra.mxu0 0.0
    %433 = vmatprep.subr.mxu0 0.0
    %434 = vmatpush1.msra.mxu0 0.0
    %435 = vmatprep.subr.mxu0 0.0
    %436 = vmatpush1.msra.mxu0 0.0
    %437 = vmatprep.subr.mxu0 0.0
    %438 = vmatpush1.msra.mxu0 0.0
    %439 = vmatprep.subr.mxu0 0.0
    %440 = vmatpush1.msra.mxu0 0.0
    %441 = vmatprep.subr.mxu0 0.0
    %442 = vmatpush1.msra.mxu0 0.0
    %443 = vmatprep.subr.mxu0 0.0
    %444 = vmatpush1.msra.mxu0 0.0
    %445 = vmatprep.subr.mxu0 0.0
    %446 = vmatpush1.msra.mxu0 0.0
    %447 = vmatprep.subr.mxu0 0.0
    %448 = vmatpush1.msra.mxu0 0.0
    %449 = vmatprep.subr.mxu0 0.0
    %450 = vmatpush1.msra.mxu0 0.0
    %451 = vmatprep.subr.mxu0 0.0
    %452 = vmatpush1.msra.mxu0 0.0
    %453 = vmatprep.subr.mxu0 0.0
    %454 = vmatpush1.msra.mxu0 0.0
    %455 = vmatprep.subr.mxu0 0.0
    %456 = vmatpush1.msra.mxu0 0.0
    %457 = vmatprep.subr.mxu0 0.0
    %458 = vmatpush1.msra.mxu0 0.0
    %459 = vmatprep.subr.mxu0 0.0
    %460 = vmatpush1.msra.mxu0 0.0
    %461 = vmatprep.subr.mxu0 0.0
    %462 = vmatpush1.msra.mxu0 0.0
    %463 = vmatprep.subr.mxu0 0.0
    %464 = vmatpush1.msra.mxu0 0.0
    %465 = vmatprep.subr.mxu0 0.0
    %466 = vmatpush1.msra.mxu0 0.0
    %467 = vmatprep.subr.mxu0 0.0
    %468 = vmatpush1.msra.mxu0 0.0
    %469 = vmatprep.subr.mxu0 0.0
    %470 = vmatpush1.msra.mxu0 0.0
    %471 = vmatprep.subr.mxu0 0.0
    %472 = vmatpush1.msra.mxu0 0.0
    %473 = vmatprep.subr.mxu0 0.0
    %474 = vmatpush1.msra.mxu0 0.0
    %475 = vmatprep.subr.mxu0 0.0
    %476 = vmatpush1.msra.mxu0 0.0
    %477 = vmatprep.subr.mxu0 0.0
    %478 = vmatpush1.msra.mxu0 0.0
    %479 = vmatprep.subr.mxu0 0.0
    %480 = vmatpush1.msra.mxu0 0.0
    %481 = vmatprep.mubr.f32.mxu0 0.0
    %482 = vmatmul.mubr.f32.gmra.mrb[0].mxu0 %v415
    %v483 = vpop.f32.mrb[0].mxu0
    %v484 = vadd.f32 0.0, %v483
    %v485 = vpop.f32.mrb[0].mxu0
    %486 = vdwg.mxu0
    %v487 = vsel %vm104, %v404, 0
    %489 = vmatprep.subr.mxu0 0.0
    %490 = vmatpush1.msra.mxu0 %v42
    %491 = vmatprep.subr.mxu0 0.0
    %492 = vmatpush1.msra.mxu0 %v43
    %493 = vmatprep.subr.mxu0 0.0
    %494 = vmatpush1.msra.mxu0 %v44
    %495 = vmatprep.subr.mxu0 0.0
    %496 = vmatpush1.msra.mxu0 %v45
    %497 = vmatprep.subr.mxu0 0.0
    %498 = vmatpush1.msra.mxu0 0.0
    %499 = vmatprep.subr.mxu0 0.0
    %500 = vmatpush1.msra.mxu0 0.0
    %501 = vmatprep.subr.mxu0 0.0
    %502 = vmatpush1.msra.mxu0 0.0
    %503 = vmatprep.subr.mxu0 0.0
    %504 = vmatpush1.msra.mxu0 0.0
    %505 = vmatprep.subr.mxu0 0.0
    %506 = vmatpush1.msra.mxu0 0.0
    %507 = vmatprep.subr.mxu0 0.0
    %508 = vmatpush1.msra.mxu0 0.0
    %509 = vmatprep.subr.mxu0 0.0
    %510 = vmatpush1.msra.mxu0 0.0
    %511 = vmatprep.subr.mxu0 0.0
    %512 = vmatpush1.msra.mxu0 0.0
    %513 = vmatprep.subr.mxu0 0.0
    %514 = vmatpush1.msra.mxu0 0.0
    %515 = vmatprep.subr.mxu0 0.0
    %516 = vmatpush1.msra.mxu0 0.0
    %517 = vmatprep.subr.mxu0 0.0
    %518 = vmatpush1.msra.mxu0 0.0
    %519 = vmatprep.subr.mxu0 0.0
    %520 = vmatpush1.msra.mxu0 0.0
    %521 = vmatprep.subr.mxu0 0.0
    %522 = vmatpush1.msra.mxu0 0.0
    %523 = vmatprep.subr.mxu0 0.0
    %524 = vmatpush1.msra.mxu0 0.0
    %525 = vmatprep.subr.mxu0 0.0
    %526 = vmatpush1.msra.mxu0 0.0
    %527 = vmatprep.subr.mxu0 0.0
    %528 = vmatpush1.msra.mxu0 0.0
    %529 = vmatprep.subr.mxu0 0.0
    %530 = vmatpush1.msra.mxu0 0.0
    %531 = vmatprep.subr.mxu0 0.0
    %532 = vmatpush1.msra.mxu0 0.0
    %533 = vmatprep.subr.mxu0 0.0
    %534 = vmatpush1.msra.mxu0 0.0
    %535 = vmatprep.subr.mxu0 0.0
    %536 = vmatpush1.msra.mxu0 0.0
    %537 = vmatprep.subr.mxu0 0.0
    %538 = vmatpush1.msra.mxu0 0.0
    %539 = vmatprep.subr.mxu0 0.0
    %540 = vmatpush1.msra.mxu0 0.0
    %541 = vmatprep.subr.mxu0 0.0
    %542 = vmatpush1.msra.mxu0 0.0
    %543 = vmatprep.subr.mxu0 0.0
    %544 = vmatpush1.msra.mxu0 0.0
    %545 = vmatprep.subr.mxu0 0.0
    %546 = vmatpush1.msra.mxu0 0.0
    %547 = vmatprep.subr.mxu0 0.0
    %548 = vmatpush1.msra.mxu0 0.0
    %549 = vmatprep.subr.mxu0 0.0
    %550 = vmatpush1.msra.mxu0 0.0
    %551 = vmatprep.subr.mxu0 0.0
    %552 = vmatpush1.msra.mxu0 0.0
    %553 = vmatprep.mubr.f32.mxu0 0.0
    %554 = vmatmul.mubr.f32.gmra.mrb[0].mxu0 %v487
    %v555 = vpop.f32.mrb[0].mxu0
    %v556 = vadd.f32 %v484, %v555
    %v557 = vpop.f32.mrb[0].mxu0
    %558 = vdwg.mxu0
    %v560 = vlaneseq
    %v561 = vshrl.u32 %v560, 7
    %v562 = vsub.s32 0, %v561
    %v563 = vrot.slane %v74, %v562
    %v565 = vadd.f32 %v556, %v563
    %s566 = scalar_lea.vmem [#allocation3], 4
    %v567 = vld [vmem:[%s566] sm:$0x3]
    %v568 = vxor.u32 %v565, 2147483648
    %v569 = vmul.f32 %v568, 1.442695
    %v570 = vpow.pop %v569
    %v571 = vadd.f32 %v570, 1.0
    %v572 = vrcp.pop %v571
    %v573 = vmul.f32 1.0, %v572
    %v574 = vtanh.pop %v565
    %576 = vrot.lane.b32.xlu0 %v567, 32
    %v577 = vpop.permute.xlu0 %576
    %v579 = vmul.f32 %v573, %v577
    %581 = vrot.lane.b32.xlu0 %v574, 64
    %v582 = vpop.permute.xlu0 %581
    %v584 = vmul.f32 %v573, %v582
    %586 = vrot.lane.b32.xlu0 %v584, 32
    %v587 = vpop.permute.xlu0 %586
    %v589 = vadd.f32 %v579, %v587
    %v590 = vtanh.pop %v589
    %592 = vrot.lane.b32.xlu0 %v590, 64
    %v593 = vpop.permute.xlu0 %592
    %v595 = vmul.f32 %v573, %v593
    %597 = vrot.lane.b32.xlu0 %v595, 32
    %v598 = vpop.permute.xlu0 %597
    %600 = vst.msk [vmem:[%s412] sm:$0x3] %vm81, %v598
    %602 = vrot.lane.b32.xlu0 %v589, 96
    %v603 = vpop.permute.xlu0 %602
    %605 = vst.msk [vmem:[%s566] sm:$0x3] %vm81, %v603
    %s606 = scalar_lea.vmem [#allocation2], 6
    %v607 = vld [vmem:[%s606] sm:$0x3]
    %v609 = vsel %vm104, %v607, 0
    %611 = vmatprep.subr.mxu0 0.0
    %612 = vmatpush1.msra.mxu0 %v66
    %613 = vmatprep.subr.mxu0 0.0
    %614 = vmatpush1.msra.mxu0 %v67
    %615 = vmatprep.subr.mxu0 0.0
    %616 = vmatpush1.msra.mxu0 %v68
    %617 = vmatprep.subr.mxu0 0.0
    %618 = vmatpush1.msra.mxu0 %v69
    %619 = vmatprep.subr.mxu0 0.0
    %620 = vmatpush1.msra.mxu0 0.0
    %621 = vmatprep.subr.mxu0 0.0
    %622 = vmatpush1.msra.mxu0 0.0
    %623 = vmatprep.subr.mxu0 0.0
    %624 = vmatpush1.msra.mxu0 0.0
    %625 = vmatprep.subr.mxu0 0.0
    %626 = vmatpush1.msra.mxu0 0.0
    %627 = vmatprep.subr.mxu0 0.0
    %628 = vmatpush1.msra.mxu0 0.0
    %629 = vmatprep.subr.mxu0 0.0
    %630 = vmatpush1.msra.mxu0 0.0
    %631 = vmatprep.subr.mxu0 0.0
    %632 = vmatpush1.msra.mxu0 0.0
    %633 = vmatprep.subr.mxu0 0.0
    %634 = vmatpush1.msra.mxu0 0.0
    %635 = vmatprep.subr.mxu0 0.0
    %636 = vmatpush1.msra.mxu0 0.0
    %637 = vmatprep.subr.mxu0 0.0
    %638 = vmatpush1.msra.mxu0 0.0
    %639 = vmatprep.subr.mxu0 0.0
    %640 = vmatpush1.msra.mxu0 0.0
    %641 = vmatprep.subr.mxu0 0.0
    %642 = vmatpush1.msra.mxu0 0.0
    %643 = vmatprep.subr.mxu0 0.0
    %644 = vmatpush1.msra.mxu0 0.0
    %645 = vmatprep.subr.mxu0 0.0
    %646 = vmatpush1.msra.mxu0 0.0
    %647 = vmatprep.subr.mxu0 0.0
    %648 = vmatpush1.msra.mxu0 0.0
    %649 = vmatprep.subr.mxu0 0.0
    %650 = vmatpush1.msra.mxu0 0.0
    %651 = vmatprep.subr.mxu0 0.0
    %652 = vmatpush1.msra.mxu0 0.0
    %653 = vmatprep.subr.mxu0 0.0
    %654 = vmatpush1.msra.mxu0 0.0
    %655 = vmatprep.subr.mxu0 0.0
    %656 = vmatpush1.msra.mxu0 0.0
    %657 = vmatprep.subr.mxu0 0.0
    %658 = vmatpush1.msra.mxu0 0.0
    %659 = vmatprep.subr.mxu0 0.0
    %660 = vmatpush1.msra.mxu0 0.0
    %661 = vmatprep.subr.mxu0 0.0
    %662 = vmatpush1.msra.mxu0 0.0
    %663 = vmatprep.subr.mxu0 0.0
    %664 = vmatpush1.msra.mxu0 0.0
    %665 = vmatprep.subr.mxu0 0.0
    %666 = vmatpush1.msra.mxu0 0.0
    %667 = vmatprep.subr.mxu0 0.0
    %668 = vmatpush1.msra.mxu0 0.0
    %669 = vmatprep.subr.mxu0 0.0
    %670 = vmatpush1.msra.mxu0 0.0
    %671 = vmatprep.subr.mxu0 0.0
    %672 = vmatpush1.msra.mxu0 0.0
    %673 = vmatprep.subr.mxu0 0.0
    %674 = vmatpush1.msra.mxu0 0.0
    %675 = vmatprep.mubr.f32.mxu0 0.0
    %676 = vmatmul.mubr.f32.gmra.mrb[0].mxu0 %v609
    %v677 = vpop.f32.mrb[0].mxu0
    %v678 = vadd.f32 0.0, %v677
    %v679 = vpop.f32.mrb[0].mxu0
    %680 = vdwg.mxu0
    %v681 = vsel %vm104, %v598, 0
    %683 = vmatprep.subr.mxu0 0.0
    %684 = vmatpush1.msra.mxu0 %v47
    %685 = vmatprep.subr.mxu0 0.0
    %686 = vmatpush1.msra.mxu0 %v48
    %687 = vmatprep.subr.mxu0 0.0
    %688 = vmatpush1.msra.mxu0 %v49
    %689 = vmatprep.subr.mxu0 0.0
    %690 = vmatpush1.msra.mxu0 %v50
    %691 = vmatprep.subr.mxu0 0.0
    %692 = vmatpush1.msra.mxu0 0.0
    %693 = vmatprep.subr.mxu0 0.0
    %694 = vmatpush1.msra.mxu0 0.0
    %695 = vmatprep.subr.mxu0 0.0
    %696 = vmatpush1.msra.mxu0 0.0
    %697 = vmatprep.subr.mxu0 0.0
    %698 = vmatpush1.msra.mxu0 0.0
    %699 = vmatprep.subr.mxu0 0.0
    %700 = vmatpush1.msra.mxu0 0.0
    %701 = vmatprep.subr.mxu0 0.0
    %702 = vmatpush1.msra.mxu0 0.0
    %703 = vmatprep.subr.mxu0 0.0
    %704 = vmatpush1.msra.mxu0 0.0
    %705 = vmatprep.subr.mxu0 0.0
    %706 = vmatpush1.msra.mxu0 0.0
    %707 = vmatprep.subr.mxu0 0.0
    %708 = vmatpush1.msra.mxu0 0.0
    %709 = vmatprep.subr.mxu0 0.0
    %710 = vmatpush1.msra.mxu0 0.0
    %711 = vmatprep.subr.mxu0 0.0
    %712 = vmatpush1.msra.mxu0 0.0
    %713 = vmatprep.subr.mxu0 0.0
    %714 = vmatpush1.msra.mxu0 0.0
    %715 = vmatprep.subr.mxu0 0.0
    %716 = vmatpush1.msra.mxu0 0.0
    %717 = vmatprep.subr.mxu0 0.0
    %718 = vmatpush1.msra.mxu0 0.0
    %719 = vmatprep.subr.mxu0 0.0
    %720 = vmatpush1.msra.mxu0 0.0
    %721 = vmatprep.subr.mxu0 0.0
    %722 = vmatpush1.msra.mxu0 0.0
    %723 = vmatprep.subr.mxu0 0.0
    %724 = vmatpush1.msra.mxu0 0.0
    %725 = vmatprep.subr.mxu0 0.0
    %726 = vmatpush1.msra.mxu0 0.0
    %727 = vmatprep.subr.mxu0 0.0
    %728 = vmatpush1.msra.mxu0 0.0
    %729 = vmatprep.subr.mxu0 0.0
    %730 = vmatpush1.msra.mxu0 0.0
    %731 = vmatprep.subr.mxu0 0.0
    %732 = vmatpush1.msra.mxu0 0.0
    %733 = vmatprep.subr.mxu0 0.0
    %734 = vmatpush1.msra.mxu0 0.0
    %735 = vmatprep.subr.mxu0 0.0
    %736 = vmatpush1.msra.mxu0 0.0
    %737 = vmatprep.subr.mxu0 0.0
    %738 = vmatpush1.msra.mxu0 0.0
    %739 = vmatprep.subr.mxu0 0.0
    %740 = vmatpush1.msra.mxu0 0.0
    %741 = vmatprep.subr.mxu0 0.0
    %742 = vmatpush1.msra.mxu0 0.0
    %743 = vmatprep.subr.mxu0 0.0
    %744 = vmatpush1.msra.mxu0 0.0
    %745 = vmatprep.subr.mxu0 0.0
    %746 = vmatpush1.msra.mxu0 0.0
    %747 = vmatprep.mubr.f32.mxu0 0.0
    %748 = vmatmul.mubr.f32.gmra.mrb[0].mxu0 %v681
    %v749 = vpop.f32.mrb[0].mxu0
    %v750 = vadd.f32 %v678, %v749
    %v751 = vpop.f32.mrb[0].mxu0
    %752 = vdwg.mxu0
    %v754 = vlaneseq
    %v755 = vshrl.u32 %v754, 7
    %v756 = vsub.s32 0, %v755
    %v757 = vrot.slane %v76, %v756
    %v759 = vadd.f32 %v750, %v757
    %s760 = scalar_lea.vmem [#allocation3], 6
    %v761 = vld [vmem:[%s760] sm:$0x3]
    %v762 = vxor.u32 %v759, 2147483648
    %v763 = vmul.f32 %v762, 1.442695
    %v764 = vpow.pop %v763
    %v765 = vadd.f32 %v764, 1.0
    %v766 = vrcp.pop %v765
    %v767 = vmul.f32 1.0, %v766
    %v768 = vtanh.pop %v759
    %770 = vrot.lane.b32.xlu0 %v761, 32
    %v771 = vpop.permute.xlu0 %770
    %v773 = vmul.f32 %v767, %v771
    %775 = vrot.lane.b32.xlu0 %v768, 64
    %v776 = vpop.permute.xlu0 %775
    %v778 = vmul.f32 %v767, %v776
    %780 = vrot.lane.b32.xlu0 %v778, 32
    %v781 = vpop.permute.xlu0 %780
    %v783 = vadd.f32 %v773, %v781
    %v784 = vtanh.pop %v783
    %786 = vrot.lane.b32.xlu0 %v784, 64
    %v787 = vpop.permute.xlu0 %786
    %v789 = vmul.f32 %v767, %v787
    %791 = vrot.lane.b32.xlu0 %v789, 32
    %v792 = vpop.permute.xlu0 %791
    %794 = vst.msk [vmem:[%s606] sm:$0x3] %vm81, %v792
    %796 = vrot.lane.b32.xlu0 %v783, 96
    %v797 = vpop.permute.xlu0 %796
    %799 = vst.msk [vmem:[%s760] sm:$0x3] %vm81, %v797
  $region38: #{user_model_forward.11} parent=0 // loop_footer
    %s99 = sadd.s32 1, %s95
  $region39: #{user_model_forward.11} parent=0 // loop_footer_branch
    %94 = sbr.rel target = $region35
  $region40: #{user_model_forward.11} parent=0 // loop_exit
    _
  %s800 = scalar_lea.vmem [#allocation2], 6
  %v801 = vld [vmem:[%s800] sm:$0x3]
  %802 = vst.msk [vmem:[%s8] sm:$0x3] %vm81, %v801
  %v803 = vld [vmem:[%s3] sm:$0x1]
  %v804 = vlaneseq
  %v805 = vshrl.u32 %v804, 7
  %v806 = vsub.s32 0, %v805
  %v807 = vrot.slane %v803, %v806
  %vm808 = vcmask 256000
  %809 = vst.msk [vmem:[#allocation4] sm:$0x7] %vm808, %v807
  %v810 = vld [vmem:[%s4] sm:$0x1]
  %v811 = vlaneseq
  %v812 = vshrl.u32 %v811, 7
  %v813 = vsub.s32 0, %v812
  %v814 = vrot.slane %v810, %v813
  %815 = vst.msk [vmem:[#allocation5] sm:$0x7] %vm808, %v814
  %v816 = vld [vmem:[%s3 + $0x1] sm:$0x1]
  %v817 = vlaneseq
  %v818 = vshrl.u32 %v817, 7
  %v819 = vsub.s32 0, %v818
  %v820 = vrot.slane %v816, %v819
  %821 = vst.msk [vmem:[#allocation4 + $0x3] sm:$0x7] %vm808, %v820
  %v822 = vld [vmem:[%s4 + $0x1] sm:$0x1]
  %v823 = vlaneseq
  %v824 = vshrl.u32 %v823, 7
  %v825 = vsub.s32 0, %v824
  %v826 = vrot.slane %v822, %v825
  %827 = vst.msk [vmem:[#allocation5 + $0x3] sm:$0x7] %vm808, %v826
  %s828 = scalar_lea.vmem %s3, 2
  %v829 = vld [vmem:[%s828] sm:$0x1]
  %v830 = vlaneseq
  %v831 = vshrl.u32 %v830, 7
  %v832 = vsub.s32 0, %v831
  %v833 = vrot.slane %v829, %v832
  %s834 = scalar_lea.vmem [#allocation4], 8
  %835 = vst.msk [vmem:[%s834] sm:$0x7] %vm808, %v833
  %s836 = scalar_lea.vmem %s4, 2
  %v837 = vld [vmem:[%s836] sm:$0x1]
  %v838 = vlaneseq
  %v839 = vshrl.u32 %v838, 7
  %v840 = vsub.s32 0, %v839
  %v841 = vrot.slane %v837, %v840
  %s842 = scalar_lea.vmem [#allocation5], 8
  %843 = vst.msk [vmem:[%s842] sm:$0x7] %vm808, %v841
  %v844 = vld [vmem:[%s828 + $0x1] sm:$0x1]
  %v845 = vlaneseq
  %v846 = vshrl.u32 %v845, 7
  %v847 = vsub.s32 0, %v846
  %v848 = vrot.slane %v844, %v847
  %849 = vst.msk [vmem:[%s834 + $0x3] sm:$0x7] %vm808, %v848
  %v850 = vld [vmem:[%s836 + $0x1] sm:$0x1]
  %v851 = vlaneseq
  %v852 = vshrl.u32 %v851, 7
  %v853 = vsub.s32 0, %v852
  %v854 = vrot.slane %v850, %v853
  %855 = vst.msk [vmem:[%s842 + $0x3] sm:$0x7] %vm808, %v854
  %s856 = scalar_lea.vmem %s3, 4
  %v857 = vld [vmem:[%s856] sm:$0x1]
  %v858 = vlaneseq
  %v859 = vshrl.u32 %v858, 7
  %v860 = vsub.s32 0, %v859
  %v861 = vrot.slane %v857, %v860
  %s862 = scalar_lea.vmem [#allocation4], 16
  %863 = vst.msk [vmem:[%s862] sm:$0x7] %vm808, %v861
  %s864 = scalar_lea.vmem %s4, 4
  %v865 = vld [vmem:[%s864] sm:$0x1]
  %v866 = vlaneseq
  %v867 = vshrl.u32 %v866, 7
  %v868 = vsub.s32 0, %v867
  %v869 = vrot.slane %v865, %v868
  %s870 = scalar_lea.vmem [#allocation5], 16
  %871 = vst.msk [vmem:[%s870] sm:$0x7] %vm808, %v869
  %v872 = vld [vmem:[%s856 + $0x1] sm:$0x1]
  %v873 = vlaneseq
  %v874 = vshrl.u32 %v873, 7
  %v875 = vsub.s32 0, %v874
  %v876 = vrot.slane %v872, %v875
  %877 = vst.msk [vmem:[%s862 + $0x3] sm:$0x7] %vm808, %v876
  %v878 = vld [vmem:[%s864 + $0x1] sm:$0x1]
  %v879 = vlaneseq
  %v880 = vshrl.u32 %v879, 7
  %v881 = vsub.s32 0, %v880
  %v882 = vrot.slane %v878, %v881
  %883 = vst.msk [vmem:[%s870 + $0x3] sm:$0x7] %vm808, %v882
  %s884 = scalar_lea.vmem %s3, 6
  %v885 = vld [vmem:[%s884] sm:$0x1]
  %v886 = vlaneseq
  %v887 = vshrl.u32 %v886, 7
  %v888 = vsub.s32 0, %v887
  %v889 = vrot.slane %v885, %v888
  %s890 = scalar_lea.vmem [#allocation4], 24
  %891 = vst.msk [vmem:[%s890] sm:$0x7] %vm808, %v889
  %s892 = scalar_lea.vmem %s4, 6
  %v893 = vld [vmem:[%s892] sm:$0x1]
  %v894 = vlaneseq
  %v895 = vshrl.u32 %v894, 7
  %v896 = vsub.s32 0, %v895
  %v897 = vrot.slane %v893, %v896
  %s898 = scalar_lea.vmem [#allocation5], 24
  %899 = vst.msk [vmem:[%s898] sm:$0x7] %vm808, %v897
  %v900 = vld [vmem:[%s884 + $0x1] sm:$0x1]
  %v901 = vlaneseq
  %v902 = vshrl.u32 %v901, 7
  %v903 = vsub.s32 0, %v902
  %v904 = vrot.slane %v900, %v903
  %905 = vst.msk [vmem:[%s890 + $0x3] sm:$0x7] %vm808, %v904
  %v906 = vld [vmem:[%s892 + $0x1] sm:$0x1]
  %v907 = vlaneseq
  %v908 = vshrl.u32 %v907, 7
  %v909 = vsub.s32 0, %v908
  %v910 = vrot.slane %v906, %v909
  %911 = vst.msk [vmem:[%s898 + $0x3] sm:$0x7] %vm808, %v910
  loop: start=0, step=1, limit=4
  $region41: #{user_model_forward.11} parent=0 // loop_pre_header
    _
  $region42: #{user_model_forward.11} parent=0 // loop_header
    %s913 = sphi 0, %s917
    %p914 = scmp.ge.s32.totalorder %s913, 4
  $region43: #{user_model_forward.11} parent=0 // loop_header_branch
    %916 = sbr.rel (%p914) target = $region47
  $region44: #{user_model_forward.11} parent=0 // loop_body
    %s918 = smul.u32 %s913, 8
    %s919 = scalar_lea.vmem %s1, %s918
    %v920 = vld [vmem:[%s919] sm:$0x3f]
    %v921 = vld [vmem:[#allocation4] sm:$0x3f]
    %vm922 = vcmask 261120
    %v924 = vsel %vm922, %v921, 0
    %926 = vmatprep.subr.mxu0 0.0
    %927 = vmatpush1.msra.mxu0 %v51
    %928 = vmatprep.subr.mxu0 0.0
    %929 = vmatpush1.msra.mxu0 %v52
    %930 = vmatprep.subr.mxu0 0.0
    %931 = vmatpush1.msra.mxu0 %v53
    %932 = vmatprep.subr.mxu0 0.0
    %933 = vmatpush1.msra.mxu0 %v54
    %934 = vmatprep.subr.mxu0 0.0
    %935 = vmatpush1.msra.mxu0 0.0
    %936 = vmatprep.subr.mxu0 0.0
    %937 = vmatpush1.msra.mxu0 0.0
    %938 = vmatprep.subr.mxu0 0.0
    %939 = vmatpush1.msra.mxu0 0.0
    %940 = vmatprep.subr.mxu0 0.0
    %941 = vmatpush1.msra.mxu0 0.0
    %942 = vmatprep.subr.mxu0 0.0
    %943 = vmatpush1.msra.mxu0 0.0
    %944 = vmatprep.subr.mxu0 0.0
    %945 = vmatpush1.msra.mxu0 0.0
    %946 = vmatprep.subr.mxu0 0.0
    %947 = vmatpush1.msra.mxu0 0.0
    %948 = vmatprep.subr.mxu0 0.0
    %949 = vmatpush1.msra.mxu0 0.0
    %950 = vmatprep.subr.mxu0 0.0
    %951 = vmatpush1.msra.mxu0 0.0
    %952 = vmatprep.subr.mxu0 0.0
    %953 = vmatpush1.msra.mxu0 0.0
    %954 = vmatprep.subr.mxu0 0.0
    %955 = vmatpush1.msra.mxu0 0.0
    %956 = vmatprep.subr.mxu0 0.0
    %957 = vmatpush1.msra.mxu0 0.0
    %958 = vmatprep.subr.mxu0 0.0
    %959 = vmatpush1.msra.mxu0 0.0
    %960 = vmatprep.subr.mxu0 0.0
    %961 = vmatpush1.msra.mxu0 0.0
    %962 = vmatprep.subr.mxu0 0.0
    %963 = vmatpush1.msra.mxu0 0.0
    %964 = vmatprep.subr.mxu0 0.0
    %965 = vmatpush1.msra.mxu0 0.0
    %966 = vmatprep.subr.mxu0 0.0
    %967 = vmatpush1.msra.mxu0 0.0
    %968 = vmatprep.subr.mxu0 0.0
    %969 = vmatpush1.msra.mxu0 0.0
    %970 = vmatprep.subr.mxu0 0.0
    %971 = vmatpush1.msra.mxu0 0.0
    %972 = vmatprep.subr.mxu0 0.0
    %973 = vmatpush1.msra.mxu0 0.0
    %974 = vmatprep.subr.mxu0 0.0
    %975 = vmatpush1.msra.mxu0 0.0
    %976 = vmatprep.subr.mxu0 0.0
    %977 = vmatpush1.msra.mxu0 0.0
    %978 = vmatprep.subr.mxu0 0.0
    %979 = vmatpush1.msra.mxu0 0.0
    %980 = vmatprep.subr.mxu0 0.0
    %981 = vmatpush1.msra.mxu0 0.0
    %982 = vmatprep.subr.mxu0 0.0
    %983 = vmatpush1.msra.mxu0 0.0
    %984 = vmatprep.subr.mxu0 0.0
    %985 = vmatpush1.msra.mxu0 0.0
    %986 = vmatprep.subr.mxu0 0.0
    %987 = vmatpush1.msra.mxu0 0.0
    %988 = vmatprep.subr.mxu0 0.0
    %989 = vmatpush1.msra.mxu0 0.0
    %990 = vmatprep.mubr.f32.mxu0 0.0
    %991 = vmatmul.mubr.f32.gmra.mrb[0].mxu0 %v924
    %v992 = vpop.f32.mrb[0].mxu0
    %v993 = vadd.f32 0.0, %v992
    %v994 = vpop.f32.mrb[0].mxu0
    %995 = vdwg.mxu0
    %v996 = vadd.f32 %v920, %v993
    %v997 = vld [vmem:[#allocation5] sm:$0x3f]
    %v998 = vxor.u32 %v996, 2147483648
    %v999 = vmul.f32 %v998, 1.442695
    %v1000 = vpow.pop %v999
    %v1001 = vadd.f32 %v1000, 1.0
    %v1002 = vrcp.pop %v1001
    %v1003 = vmul.f32 1.0, %v1002
    %v1004 = vtanh.pop %v996
    %1006 = vrot.lane.b32.xlu0 %v997, 32
    %v1007 = vpop.permute.xlu0 %1006
    %v1009 = vmul.f32 %v1003, %v1007
    %1011 = vrot.lane.b32.xlu0 %v1004, 64
    %v1012 = vpop.permute.xlu0 %1011
    %v1014 = vmul.f32 %v1003, %v1012
    %1016 = vrot.lane.b32.xlu0 %v1014, 32
    %v1017 = vpop.permute.xlu0 %1016
    %v1019 = vadd.f32 %v1009, %v1017
    %v1020 = vtanh.pop %v1019
    %1022 = vrot.lane.b32.xlu0 %v1020, 64
    %v1023 = vpop.permute.xlu0 %1022
    %v1025 = vmul.f32 %v1003, %v1023
    %1027 = vrot.lane.b32.xlu0 %v1025, 32
    %v1028 = vpop.permute.xlu0 %1027
    %vm1030 = vcmask 259072
    %1031 = vst.msk [vmem:[#allocation4] sm:$0x3f] %vm1030, %v1028
    %1033 = vrot.lane.b32.xlu0 %v1019, 96
    %v1034 = vpop.permute.xlu0 %1033
    %1036 = vst.msk [vmem:[#allocation5] sm:$0x3f] %vm1030, %v1034
    %v1037 = vld [vmem:[%s834] sm:$0x3f]
    %v1039 = vsel %vm922, %v1037, 0
    %1041 = vmatprep.subr.mxu0 0.0
    %1042 = vmatpush1.msra.mxu0 %v56
    %1043 = vmatprep.subr.mxu0 0.0
    %1044 = vmatpush1.msra.mxu0 %v57
    %1045 = vmatprep.subr.mxu0 0.0
    %1046 = vmatpush1.msra.mxu0 %v58
    %1047 = vmatprep.subr.mxu0 0.0
    %1048 = vmatpush1.msra.mxu0 %v59
    %1049 = vmatprep.subr.mxu0 0.0
    %1050 = vmatpush1.msra.mxu0 0.0
    %1051 = vmatprep.subr.mxu0 0.0
    %1052 = vmatpush1.msra.mxu0 0.0
    %1053 = vmatprep.subr.mxu0 0.0
    %1054 = vmatpush1.msra.mxu0 0.0
    %1055 = vmatprep.subr.mxu0 0.0
    %1056 = vmatpush1.msra.mxu0 0.0
    %1057 = vmatprep.subr.mxu0 0.0
    %1058 = vmatpush1.msra.mxu0 0.0
    %1059 = vmatprep.subr.mxu0 0.0
    %1060 = vmatpush1.msra.mxu0 0.0
    %1061 = vmatprep.subr.mxu0 0.0
    %1062 = vmatpush1.msra.mxu0 0.0
    %1063 = vmatprep.subr.mxu0 0.0
    %1064 = vmatpush1.msra.mxu0 0.0
    %1065 = vmatprep.subr.mxu0 0.0
    %1066 = vmatpush1.msra.mxu0 0.0
    %1067 = vmatprep.subr.mxu0 0.0
    %1068 = vmatpush1.msra.mxu0 0.0
    %1069 = vmatprep.subr.mxu0 0.0
    %1070 = vmatpush1.msra.mxu0 0.0
    %1071 = vmatprep.subr.mxu0 0.0
    %1072 = vmatpush1.msra.mxu0 0.0
    %1073 = vmatprep.subr.mxu0 0.0
    %1074 = vmatpush1.msra.mxu0 0.0
    %1075 = vmatprep.subr.mxu0 0.0
    %1076 = vmatpush1.msra.mxu0 0.0
    %1077 = vmatprep.subr.mxu0 0.0
    %1078 = vmatpush1.msra.mxu0 0.0
    %1079 = vmatprep.subr.mxu0 0.0
    %1080 = vmatpush1.msra.mxu0 0.0
    %1081 = vmatprep.subr.mxu0 0.0
    %1082 = vmatpush1.msra.mxu0 0.0
    %1083 = vmatprep.subr.mxu0 0.0
    %1084 = vmatpush1.msra.mxu0 0.0
    %1085 = vmatprep.subr.mxu0 0.0
    %1086 = vmatpush1.msra.mxu0 0.0
    %1087 = vmatprep.subr.mxu0 0.0
    %1088 = vmatpush1.msra.mxu0 0.0
    %1089 = vmatprep.subr.mxu0 0.0
    %1090 = vmatpush1.msra.mxu0 0.0
    %1091 = vmatprep.subr.mxu0 0.0
    %1092 = vmatpush1.msra.mxu0 0.0
    %1093 = vmatprep.subr.mxu0 0.0
    %1094 = vmatpush1.msra.mxu0 0.0
    %1095 = vmatprep.subr.mxu0 0.0
    %1096 = vmatpush1.msra.mxu0 0.0
    %1097 = vmatprep.subr.mxu0 0.0
    %1098 = vmatpush1.msra.mxu0 0.0
    %1099 = vmatprep.subr.mxu0 0.0
    %1100 = vmatpush1.msra.mxu0 0.0
    %1101 = vmatprep.subr.mxu0 0.0
    %1102 = vmatpush1.msra.mxu0 0.0
    %1103 = vmatprep.subr.mxu0 0.0
    %1104 = vmatpush1.msra.mxu0 0.0
    %1105 = vmatprep.mubr.f32.mxu0 0.0
    %1106 = vmatmul.mubr.f32.gmra.mrb[0].mxu0 %v1039
    %v1107 = vpop.f32.mrb[0].mxu0
    %v1108 = vadd.f32 0.0, %v1107
    %v1109 = vpop.f32.mrb[0].mxu0
    %1110 = vdwg.mxu0
    %v1111 = vsel %vm922, %v1028, 0
    %1113 = vmatprep.subr.mxu0 0.0
    %1114 = vmatpush1.msra.mxu0 %v37
    %1115 = vmatprep.subr.mxu0 0.0
    %1116 = vmatpush1.msra.mxu0 %v38
    %1117 = vmatprep.subr.mxu0 0.0
    %1118 = vmatpush1.msra.mxu0 %v39
    %1119 = vmatprep.subr.mxu0 0.0
    %1120 = vmatpush1.msra.mxu0 %v40
    %1121 = vmatprep.subr.mxu0 0.0
    %1122 = vmatpush1.msra.mxu0 0.0
    %1123 = vmatprep.subr.mxu0 0.0
    %1124 = vmatpush1.msra.mxu0 0.0
    %1125 = vmatprep.subr.mxu0 0.0
    %1126 = vmatpush1.msra.mxu0 0.0
    %1127 = vmatprep.subr.mxu0 0.0
    %1128 = vmatpush1.msra.mxu0 0.0
    %1129 = vmatprep.subr.mxu0 0.0
    %1130 = vmatpush1.msra.mxu0 0.0
    %1131 = vmatprep.subr.mxu0 0.0
    %1132 = vmatpush1.msra.mxu0 0.0
    %1133 = vmatprep.subr.mxu0 0.0
    %1134 = vmatpush1.msra.mxu0 0.0
    %1135 = vmatprep.subr.mxu0 0.0
    %1136 = vmatpush1.msra.mxu0 0.0
    %1137 = vmatprep.subr.mxu0 0.0
    %1138 = vmatpush1.msra.mxu0 0.0
    %1139 = vmatprep.subr.mxu0 0.0
    %1140 = vmatpush1.msra.mxu0 0.0
    %1141 = vmatprep.subr.mxu0 0.0
    %1142 = vmatpush1.msra.mxu0 0.0
    %1143 = vmatprep.subr.mxu0 0.0
    %1144 = vmatpush1.msra.mxu0 0.0
    %1145 = vmatprep.subr.mxu0 0.0
    %1146 = vmatpush1.msra.mxu0 0.0
    %1147 = vmatprep.subr.mxu0 0.0
    %1148 = vmatpush1.msra.mxu0 0.0
    %1149 = vmatprep.subr.mxu0 0.0
    %1150 = vmatpush1.msra.mxu0 0.0
    %1151 = vmatprep.subr.mxu0 0.0
    %1152 = vmatpush1.msra.mxu0 0.0
    %1153 = vmatprep.subr.mxu0 0.0
    %1154 = vmatpush1.msra.mxu0 0.0
    %1155 = vmatprep.subr.mxu0 0.0
    %1156 = vmatpush1.msra.mxu0 0.0
    %1157 = vmatprep.subr.mxu0 0.0
    %1158 = vmatpush1.msra.mxu0 0.0
    %1159 = vmatprep.subr.mxu0 0.0
    %1160 = vmatpush1.msra.mxu0 0.0
    %1161 = vmatprep.subr.mxu0 0.0
    %1162 = vmatpush1.msra.mxu0 0.0
    %1163 = vmatprep.subr.mxu0 0.0
    %1164 = vmatpush1.msra.mxu0 0.0
    %1165 = vmatprep.subr.mxu0 0.0
    %1166 = vmatpush1.msra.mxu0 0.0
    %1167 = vmatprep.subr.mxu0 0.0
    %1168 = vmatpush1.msra.mxu0 0.0
    %1169 = vmatprep.subr.mxu0 0.0
    %1170 = vmatpush1.msra.mxu0 0.0
    %1171 = vmatprep.subr.mxu0 0.0
    %1172 = vmatpush1.msra.mxu0 0.0
    %1173 = vmatprep.subr.mxu0 0.0
    %1174 = vmatpush1.msra.mxu0 0.0
    %1175 = vmatprep.subr.mxu0 0.0
    %1176 = vmatpush1.msra.mxu0 0.0
    %1177 = vmatprep.mubr.f32.mxu0 0.0
    %1178 = vmatmul.mubr.f32.gmra.mrb[0].mxu0 %v1111
    %v1179 = vpop.f32.mrb[0].mxu0
    %v1180 = vadd.f32 %v1108, %v1179
    %v1181 = vpop.f32.mrb[0].mxu0
    %1182 = vdwg.mxu0
    %v1184 = vlaneseq
    %v1185 = vshrl.u32 %v1184, 7
    %v1186 = vsub.s32 0, %v1185
    %v1187 = vrot.slane %v72, %v1186
    %v1189 = vadd.f32 %v1180, %v1187
    %v1190 = vld [vmem:[%s842] sm:$0x3f]
    %v1191 = vxor.u32 %v1189, 2147483648
    %v1192 = vmul.f32 %v1191, 1.442695
    %v1193 = vpow.pop %v1192
    %v1194 = vadd.f32 %v1193, 1.0
    %v1195 = vrcp.pop %v1194
    %v1196 = vmul.f32 1.0, %v1195
    %v1197 = vtanh.pop %v1189
    %1199 = vrot.lane.b32.xlu0 %v1190, 32
    %v1200 = vpop.permute.xlu0 %1199
    %v1202 = vmul.f32 %v1196, %v1200
    %1204 = vrot.lane.b32.xlu0 %v1197, 64
    %v1205 = vpop.permute.xlu0 %1204
    %v1207 = vmul.f32 %v1196, %v1205
    %1209 = vrot.lane.b32.xlu0 %v1207, 32
    %v1210 = vpop.permute.xlu0 %1209
    %v1212 = vadd.f32 %v1202, %v1210
    %v1213 = vtanh.pop %v1212
    %1215 = vrot.lane.b32.xlu0 %v1213, 64
    %v1216 = vpop.permute.xlu0 %1215
    %v1218 = vmul.f32 %v1196, %v1216
    %1220 = vrot.lane.b32.xlu0 %v1218, 32
    %v1221 = vpop.permute.xlu0 %1220
    %1223 = vst.msk [vmem:[%s834] sm:$0x3f] %vm1030, %v1221
    %1225 = vrot.lane.b32.xlu0 %v1212, 96
    %v1226 = vpop.permute.xlu0 %1225
    %1228 = vst.msk [vmem:[%s842] sm:$0x3f] %vm1030, %v1226
    %v1229 = vld [vmem:[%s862] sm:$0x3f]
    %v1231 = vsel %vm922, %v1229, 0
    %1233 = vmatprep.subr.mxu0 0.0
    %1234 = vmatpush1.msra.mxu0 %v61
    %1235 = vmatprep.subr.mxu0 0.0
    %1236 = vmatpush1.msra.mxu0 %v62
    %1237 = vmatprep.subr.mxu0 0.0
    %1238 = vmatpush1.msra.mxu0 %v63
    %1239 = vmatprep.subr.mxu0 0.0
    %1240 = vmatpush1.msra.mxu0 %v64
    %1241 = vmatprep.subr.mxu0 0.0
    %1242 = vmatpush1.msra.mxu0 0.0
    %1243 = vmatprep.subr.mxu0 0.0
    %1244 = vmatpush1.msra.mxu0 0.0
    %1245 = vmatprep.subr.mxu0 0.0
    %1246 = vmatpush1.msra.mxu0 0.0
    %1247 = vmatprep.subr.mxu0 0.0
    %1248 = vmatpush1.msra.mxu0 0.0
    %1249 = vmatprep.subr.mxu0 0.0
    %1250 = vmatpush1.msra.mxu0 0.0
    %1251 = vmatprep.subr.mxu0 0.0
    %1252 = vmatpush1.msra.mxu0 0.0
    %1253 = vmatprep.subr.mxu0 0.0
    %1254 = vmatpush1.msra.mxu0 0.0
    %1255 = vmatprep.subr.mxu0 0.0
    %1256 = vmatpush1.msra.mxu0 0.0
    %1257 = vmatprep.subr.mxu0 0.0
    %1258 = vmatpush1.msra.mxu0 0.0
    %1259 = vmatprep.subr.mxu0 0.0
    %1260 = vmatpush1.msra.mxu0 0.0
    %1261 = vmatprep.subr.mxu0 0.0
    %1262 = vmatpush1.msra.mxu0 0.0
    %1263 = vmatprep.subr.mxu0 0.0
    %1264 = vmatpush1.msra.mxu0 0.0
    %1265 = vmatprep.subr.mxu0 0.0
    %1266 = vmatpush1.msra.mxu0 0.0
    %1267 = vmatprep.subr.mxu0 0.0
    %1268 = vmatpush1.msra.mxu0 0.0
    %1269 = vmatprep.subr.mxu0 0.0
    %1270 = vmatpush1.msra.mxu0 0.0
    %1271 = vmatprep.subr.mxu0 0.0
    %1272 = vmatpush1.msra.mxu0 0.0
    %1273 = vmatprep.subr.mxu0 0.0
    %1274 = vmatpush1.msra.mxu0 0.0
    %1275 = vmatprep.subr.mxu0 0.0
    %1276 = vmatpush1.msra.mxu0 0.0
    %1277 = vmatprep.subr.mxu0 0.0
    %1278 = vmatpush1.msra.mxu0 0.0
    %1279 = vmatprep.subr.mxu0 0.0
    %1280 = vmatpush1.msra.mxu0 0.0
    %1281 = vmatprep.subr.mxu0 0.0
    %1282 = vmatpush1.msra.mxu0 0.0
    %1283 = vmatprep.subr.mxu0 0.0
    %1284 = vmatpush1.msra.mxu0 0.0
    %1285 = vmatprep.subr.mxu0 0.0
    %1286 = vmatpush1.msra.mxu0 0.0
    %1287 = vmatprep.subr.mxu0 0.0
    %1288 = vmatpush1.msra.mxu0 0.0
    %1289 = vmatprep.subr.mxu0 0.0
    %1290 = vmatpush1.msra.mxu0 0.0
    %1291 = vmatprep.subr.mxu0 0.0
    %1292 = vmatpush1.msra.mxu0 0.0
    %1293 = vmatprep.subr.mxu0 0.0
    %1294 = vmatpush1.msra.mxu0 0.0
    %1295 = vmatprep.subr.mxu0 0.0
    %1296 = vmatpush1.msra.mxu0 0.0
    %1297 = vmatprep.mubr.f32.mxu0 0.0
    %1298 = vmatmul.mubr.f32.gmra.mrb[0].mxu0 %v1231
    %v1299 = vpop.f32.mrb[0].mxu0
    %v1300 = vadd.f32 0.0, %v1299
    %v1301 = vpop.f32.mrb[0].mxu0
    %1302 = vdwg.mxu0
    %v1303 = vsel %vm922, %v1221, 0
    %1305 = vmatprep.subr.mxu0 0.0
    %1306 = vmatpush1.msra.mxu0 %v42
    %1307 = vmatprep.subr.mxu0 0.0
    %1308 = vmatpush1.msra.mxu0 %v43
    %1309 = vmatprep.subr.mxu0 0.0
    %1310 = vmatpush1.msra.mxu0 %v44
    %1311 = vmatprep.subr.mxu0 0.0
    %1312 = vmatpush1.msra.mxu0 %v45
    %1313 = vmatprep.subr.mxu0 0.0
    %1314 = vmatpush1.msra.mxu0 0.0
    %1315 = vmatprep.subr.mxu0 0.0
    %1316 = vmatpush1.msra.mxu0 0.0
    %1317 = vmatprep.subr.mxu0 0.0
    %1318 = vmatpush1.msra.mxu0 0.0
    %1319 = vmatprep.subr.mxu0 0.0
    %1320 = vmatpush1.msra.mxu0 0.0
    %1321 = vmatprep.subr.mxu0 0.0
    %1322 = vmatpush1.msra.mxu0 0.0
    %1323 = vmatprep.subr.mxu0 0.0
    %1324 = vmatpush1.msra.mxu0 0.0
    %1325 = vmatprep.subr.mxu0 0.0
    %1326 = vmatpush1.msra.mxu0 0.0
    %1327 = vmatprep.subr.mxu0 0.0
    %1328 = vmatpush1.msra.mxu0 0.0
    %1329 = vmatprep.subr.mxu0 0.0
    %1330 = vmatpush1.msra.mxu0 0.0
    %1331 = vmatprep.subr.mxu0 0.0
    %1332 = vmatpush1.msra.mxu0 0.0
    %1333 = vmatprep.subr.mxu0 0.0
    %1334 = vmatpush1.msra.mxu0 0.0
    %1335 = vmatprep.subr.mxu0 0.0
    %1336 = vmatpush1.msra.mxu0 0.0
    %1337 = vmatprep.subr.mxu0 0.0
    %1338 = vmatpush1.msra.mxu0 0.0
    %1339 = vmatprep.subr.mxu0 0.0
    %1340 = vmatpush1.msra.mxu0 0.0
    %1341 = vmatprep.subr.mxu0 0.0
    %1342 = vmatpush1.msra.mxu0 0.0
    %1343 = vmatprep.subr.mxu0 0.0
    %1344 = vmatpush1.msra.mxu0 0.0
    %1345 = vmatprep.subr.mxu0 0.0
    %1346 = vmatpush1.msra.mxu0 0.0
    %1347 = vmatprep.subr.mxu0 0.0
    %1348 = vmatpush1.msra.mxu0 0.0
    %1349 = vmatprep.subr.mxu0 0.0
    %1350 = vmatpush1.msra.mxu0 0.0
    %1351 = vmatprep.subr.mxu0 0.0
    %1352 = vmatpush1.msra.mxu0 0.0
    %1353 = vmatprep.subr.mxu0 0.0
    %1354 = vmatpush1.msra.mxu0 0.0
    %1355 = vmatprep.subr.mxu0 0.0
    %1356 = vmatpush1.msra.mxu0 0.0
    %1357 = vmatprep.subr.mxu0 0.0
    %1358 = vmatpush1.msra.mxu0 0.0
    %1359 = vmatprep.subr.mxu0 0.0
    %1360 = vmatpush1.msra.mxu0 0.0
    %1361 = vmatprep.subr.mxu0 0.0
    %1362 = vmatpush1.msra.mxu0 0.0
    %1363 = vmatprep.subr.mxu0 0.0
    %1364 = vmatpush1.msra.mxu0 0.0
    %1365 = vmatprep.subr.mxu0 0.0
    %1366 = vmatpush1.msra.mxu0 0.0
    %1367 = vmatprep.subr.mxu0 0.0
    %1368 = vmatpush1.msra.mxu0 0.0
    %1369 = vmatprep.mubr.f32.mxu0 0.0
    %1370 = vmatmul.mubr.f32.gmra.mrb[0].mxu0 %v1303
    %v1371 = vpop.f32.mrb[0].mxu0
    %v1372 = vadd.f32 %v1300, %v1371
    %v1373 = vpop.f32.mrb[0].mxu0
    %1374 = vdwg.mxu0
    %v1376 = vlaneseq
    %v1377 = vshrl.u32 %v1376, 7
    %v1378 = vsub.s32 0, %v1377
    %v1379 = vrot.slane %v74, %v1378
    %v1381 = vadd.f32 %v1372, %v1379
    %v1382 = vld [vmem:[%s870] sm:$0x3f]
    %v1383 = vxor.u32 %v1381, 2147483648
    %v1384 = vmul.f32 %v1383, 1.442695
    %v1385 = vpow.pop %v1384
    %v1386 = vadd.f32 %v1385, 1.0
    %v1387 = vrcp.pop %v1386
    %v1388 = vmul.f32 1.0, %v1387
    %v1389 = vtanh.pop %v1381
    %1391 = vrot.lane.b32.xlu0 %v1382, 32
    %v1392 = vpop.permute.xlu0 %1391
    %v1394 = vmul.f32 %v1388, %v1392
    %1396 = vrot.lane.b32.xlu0 %v1389, 64
    %v1397 = vpop.permute.xlu0 %1396
    %v1399 = vmul.f32 %v1388, %v1397
    %1401 = vrot.lane.b32.xlu0 %v1399, 32
    %v1402 = vpop.permute.xlu0 %1401
    %v1404 = vadd.f32 %v1394, %v1402
    %v1405 = vtanh.pop %v1404
    %1407 = vrot.lane.b32.xlu0 %v1405, 64
    %v1408 = vpop.permute.xlu0 %1407
    %v1410 = vmul.f32 %v1388, %v1408
    %1412 = vrot.lane.b32.xlu0 %v1410, 32
    %v1413 = vpop.permute.xlu0 %1412
    %1415 = vst.msk [vmem:[%s862] sm:$0x3f] %vm1030, %v1413
    %1417 = vrot.lane.b32.xlu0 %v1404, 96
    %v1418 = vpop.permute.xlu0 %1417
    %1420 = vst.msk [vmem:[%s870] sm:$0x3f] %vm1030, %v1418
    %v1421 = vld [vmem:[%s890] sm:$0x3f]
    %v1423 = vsel %vm922, %v1421, 0
    %1425 = vmatprep.subr.mxu0 0.0
    %1426 = vmatpush1.msra.mxu0 %v66
    %1427 = vmatprep.subr.mxu0 0.0
    %1428 = vmatpush1.msra.mxu0 %v67
    %1429 = vmatprep.subr.mxu0 0.0
    %1430 = vmatpush1.msra.mxu0 %v68
    %1431 = vmatprep.subr.mxu0 0.0
    %1432 = vmatpush1.msra.mxu0 %v69
    %1433 = vmatprep.subr.mxu0 0.0
    %1434 = vmatpush1.msra.mxu0 0.0
    %1435 = vmatprep.subr.mxu0 0.0
    %1436 = vmatpush1.msra.mxu0 0.0
    %1437 = vmatprep.subr.mxu0 0.0
    %1438 = vmatpush1.msra.mxu0 0.0
    %1439 = vmatprep.subr.mxu0 0.0
    %1440 = vmatpush1.msra.mxu0 0.0
    %1441 = vmatprep.subr.mxu0 0.0
    %1442 = vmatpush1.msra.mxu0 0.0
    %1443 = vmatprep.subr.mxu0 0.0
    %1444 = vmatpush1.msra.mxu0 0.0
    %1445 = vmatprep.subr.mxu0 0.0
    %1446 = vmatpush1.msra.mxu0 0.0
    %1447 = vmatprep.subr.mxu0 0.0
    %1448 = vmatpush1.msra.mxu0 0.0
    %1449 = vmatprep.subr.mxu0 0.0
    %1450 = vmatpush1.msra.mxu0 0.0
    %1451 = vmatprep.subr.mxu0 0.0
    %1452 = vmatpush1.msra.mxu0 0.0
    %1453 = vmatprep.subr.mxu0 0.0
    %1454 = vmatpush1.msra.mxu0 0.0
    %1455 = vmatprep.subr.mxu0 0.0
    %1456 = vmatpush1.msra.mxu0 0.0
    %1457 = vmatprep.subr.mxu0 0.0
    %1458 = vmatpush1.msra.mxu0 0.0
    %1459 = vmatprep.subr.mxu0 0.0
    %1460 = vmatpush1.msra.mxu0 0.0
    %1461 = vmatprep.subr.mxu0 0.0
    %1462 = vmatpush1.msra.mxu0 0.0
    %1463 = vmatprep.subr.mxu0 0.0
    %1464 = vmatpush1.msra.mxu0 0.0
    %1465 = vmatprep.subr.mxu0 0.0
    %1466 = vmatpush1.msra.mxu0 0.0
    %1467 = vmatprep.subr.mxu0 0.0
    %1468 = vmatpush1.msra.mxu0 0.0
    %1469 = vmatprep.subr.mxu0 0.0
    %1470 = vmatpush1.msra.mxu0 0.0
    %1471 = vmatprep.subr.mxu0 0.0
    %1472 = vmatpush1.msra.mxu0 0.0
    %1473 = vmatprep.subr.mxu0 0.0
    %1474 = vmatpush1.msra.mxu0 0.0
    %1475 = vmatprep.subr.mxu0 0.0
    %1476 = vmatpush1.msra.mxu0 0.0
    %1477 = vmatprep.subr.mxu0 0.0
    %1478 = vmatpush1.msra.mxu0 0.0
    %1479 = vmatprep.subr.mxu0 0.0
    %1480 = vmatpush1.msra.mxu0 0.0
    %1481 = vmatprep.subr.mxu0 0.0
    %1482 = vmatpush1.msra.mxu0 0.0
    %1483 = vmatprep.subr.mxu0 0.0
    %1484 = vmatpush1.msra.mxu0 0.0
    %1485 = vmatprep.subr.mxu0 0.0
    %1486 = vmatpush1.msra.mxu0 0.0
    %1487 = vmatprep.subr.mxu0 0.0
    %1488 = vmatpush1.msra.mxu0 0.0
    %1489 = vmatprep.mubr.f32.mxu0 0.0
    %1490 = vmatmul.mubr.f32.gmra.mrb[0].mxu0 %v1423
    %v1491 = vpop.f32.mrb[0].mxu0
    %v1492 = vadd.f32 0.0, %v1491
    %v1493 = vpop.f32.mrb[0].mxu0
    %1494 = vdwg.mxu0
    %v1495 = vsel %vm922, %v1413, 0
    %1497 = vmatprep.subr.mxu0 0.0
    %1498 = vmatpush1.msra.mxu0 %v47
    %1499 = vmatprep.subr.mxu0 0.0
    %1500 = vmatpush1.msra.mxu0 %v48
    %1501 = vmatprep.subr.mxu0 0.0
    %1502 = vmatpush1.msra.mxu0 %v49
    %1503 = vmatprep.subr.mxu0 0.0
    %1504 = vmatpush1.msra.mxu0 %v50
    %1505 = vmatprep.subr.mxu0 0.0
    %1506 = vmatpush1.msra.mxu0 0.0
    %1507 = vmatprep.subr.mxu0 0.0
    %1508 = vmatpush1.msra.mxu0 0.0
    %1509 = vmatprep.subr.mxu0 0.0
    %1510 = vmatpush1.msra.mxu0 0.0
    %1511 = vmatprep.subr.mxu0 0.0
    %1512 = vmatpush1.msra.mxu0 0.0
    %1513 = vmatprep.subr.mxu0 0.0
    %1514 = vmatpush1.msra.mxu0 0.0
    %1515 = vmatprep.subr.mxu0 0.0
    %1516 = vmatpush1.msra.mxu0 0.0
    %1517 = vmatprep.subr.mxu0 0.0
    %1518 = vmatpush1.msra.mxu0 0.0
    %1519 = vmatprep.subr.mxu0 0.0
    %1520 = vmatpush1.msra.mxu0 0.0
    %1521 = vmatprep.subr.mxu0 0.0
    %1522 = vmatpush1.msra.mxu0 0.0
    %1523 = vmatprep.subr.mxu0 0.0
    %1524 = vmatpush1.msra.mxu0 0.0
    %1525 = vmatprep.subr.mxu0 0.0
    %1526 = vmatpush1.msra.mxu0 0.0
    %1527 = vmatprep.subr.mxu0 0.0
    %1528 = vmatpush1.msra.mxu0 0.0
    %1529 = vmatprep.subr.mxu0 0.0
    %1530 = vmatpush1.msra.mxu0 0.0
    %1531 = vmatprep.subr.mxu0 0.0
    %1532 = vmatpush1.msra.mxu0 0.0
    %1533 = vmatprep.subr.mxu0 0.0
    %1534 = vmatpush1.msra.mxu0 0.0
    %1535 = vmatprep.subr.mxu0 0.0
    %1536 = vmatpush1.msra.mxu0 0.0
    %1537 = vmatprep.subr.mxu0 0.0
    %1538 = vmatpush1.msra.mxu0 0.0
    %1539 = vmatprep.subr.mxu0 0.0
    %1540 = vmatpush1.msra.mxu0 0.0
    %1541 = vmatprep.subr.mxu0 0.0
    %1542 = vmatpush1.msra.mxu0 0.0
    %1543 = vmatprep.subr.mxu0 0.0
    %1544 = vmatpush1.msra.mxu0 0.0
    %1545 = vmatprep.subr.mxu0 0.0
    %1546 = vmatpush1.msra.mxu0 0.0
    %1547 = vmatprep.subr.mxu0 0.0
    %1548 = vmatpush1.msra.mxu0 0.0
    %1549 = vmatprep.subr.mxu0 0.0
    %1550 = vmatpush1.msra.mxu0 0.0
    %1551 = vmatprep.subr.mxu0 0.0
    %1552 = vmatpush1.msra.mxu0 0.0
    %1553 = vmatprep.subr.mxu0 0.0
    %1554 = vmatpush1.msra.mxu0 0.0
    %1555 = vmatprep.subr.mxu0 0.0
    %1556 = vmatpush1.msra.mxu0 0.0
    %1557 = vmatprep.subr.mxu0 0.0
    %1558 = vmatpush1.msra.mxu0 0.0
    %1559 = vmatprep.subr.mxu0 0.0
    %1560 = vmatpush1.msra.mxu0 0.0
    %1561 = vmatprep.mubr.f32.mxu0 0.0
    %1562 = vmatmul.mubr.f32.gmra.mrb[0].mxu0 %v1495
    %v1563 = vpop.f32.mrb[0].mxu0
    %v1564 = vadd.f32 %v1492, %v1563
    %v1565 = vpop.f32.mrb[0].mxu0
    %1566 = vdwg.mxu0
    %v1568 = vlaneseq
    %v1569 = vshrl.u32 %v1568, 7
    %v1570 = vsub.s32 0, %v1569
    %v1571 = vrot.slane %v76, %v1570
    %v1573 = vadd.f32 %v1564, %v1571
    %v1574 = vld [vmem:[%s898] sm:$0x3f]
    %v1575 = vxor.u32 %v1573, 2147483648
    %v1576 = vmul.f32 %v1575, 1.442695
    %v1577 = vpow.pop %v1576
    %v1578 = vadd.f32 %v1577, 1.0
    %v1579 = vrcp.pop %v1578
    %v1580 = vmul.f32 1.0, %v1579
    %v1581 = vtanh.pop %v1573
    %1583 = vrot.lane.b32.xlu0 %v1574, 32
    %v1584 = vpop.permute.xlu0 %1583
    %v1586 = vmul.f32 %v1580, %v1584
    %1588 = vrot.lane.b32.xlu0 %v1581, 64
    %v1589 = vpop.permute.xlu0 %1588
    %v1591 = vmul.f32 %v1580, %v1589
    %1593 = vrot.lane.b32.xlu0 %v1591, 32
    %v1594 = vpop.permute.xlu0 %1593
    %v1596 = vadd.f32 %v1586, %v1594
    %v1597 = vtanh.pop %v1596
    %1599 = vrot.lane.b32.xlu0 %v1597, 64
    %v1600 = vpop.permute.xlu0 %1599
    %v1602 = vmul.f32 %v1580, %v1600
    %1604 = vrot.lane.b32.xlu0 %v1602, 32
    %v1605 = vpop.permute.xlu0 %1604
    %1607 = vst.msk [vmem:[%s890] sm:$0x3f] %vm1030, %v1605
    %1609 = vrot.lane.b32.xlu0 %v1596, 96
    %v1610 = vpop.permute.xlu0 %1609
    %1612 = vst.msk [vmem:[%s898] sm:$0x3f] %vm1030, %v1610
  $region45: #{user_model_forward.11} parent=0 // loop_footer
    %s917 = sadd.s32 1, %s913
  $region46: #{user_model_forward.11} parent=0 // loop_footer_branch
    %912 = sbr.rel target = $region42
  $region47: #{user_model_forward.11} parent=0 // loop_exit
    _
  %v1613 = vld [vmem:[%s890] sm:$0x3f]
  %vm1614 = vcmask 259072
  %1615 = vst.msk [vmem:[%s9] sm:$0x3f] %vm1614, %v1613
  %v1616 = vld [vmem:[%s3] sm:$0x1]
  %v1617 = vlaneseq
  %v1618 = vshrl.u32 %v1617, 7
  %v1619 = vsub.s32 0, %v1618
  %v1620 = vrot.slane %v1616, %v1619
  %1621 = vst.msk [vmem:[#allocation6] sm:$0x7] %vm808, %v1620
  %v1622 = vld [vmem:[%s4] sm:$0x1]
  %v1623 = vlaneseq
  %v1624 = vshrl.u32 %v1623, 7
  %v1625 = vsub.s32 0, %v1624
  %v1626 = vrot.slane %v1622, %v1625
  %1627 = vst.msk [vmem:[#allocation7] sm:$0x7] %vm808, %v1626
  %v1628 = vld [vmem:[%s3 + $0x1] sm:$0x1]
  %v1629 = vlaneseq
  %v1630 = vshrl.u32 %v1629, 7
  %v1631 = vsub.s32 0, %v1630
  %v1632 = vrot.slane %v1628, %v1631
  %1633 = vst.msk [vmem:[#allocation6 + $0x3] sm:$0x7] %vm808, %v1632
  %v1634 = vld [vmem:[%s4 + $0x1] sm:$0x1]
  %v1635 = vlaneseq
  %v1636 = vshrl.u32 %v1635, 7
  %v1637 = vsub.s32 0, %v1636
  %v1638 = vrot.slane %v1634, %v1637
  %1639 = vst.msk [vmem:[#allocation7 + $0x3] sm:$0x7] %vm808, %v1638
  %v1640 = vld [vmem:[%s828] sm:$0x1]
  %v1641 = vlaneseq
  %v1642 = vshrl.u32 %v1641, 7
  %v1643 = vsub.s32 0, %v1642
  %v1644 = vrot.slane %v1640, %v1643
  %s1645 = scalar_lea.vmem [#allocation6], 8
  %1646 = vst.msk [vmem:[%s1645] sm:$0x7] %vm808, %v1644
  %v1647 = vld [vmem:[%s836] sm:$0x1]
  %v1648 = vlaneseq
  %v1649 = vshrl.u32 %v1648, 7
  %v1650 = vsub.s32 0, %v1649
  %v1651 = vrot.slane %v1647, %v1650
  %s1652 = scalar_lea.vmem [#allocation7], 8
  %1653 = vst.msk [vmem:[%s1652] sm:$0x7] %vm808, %v1651
  %v1654 = vld [vmem:[%s828 + $0x1] sm:$0x1]
  %v1655 = vlaneseq
  %v1656 = vshrl.u32 %v1655, 7
  %v1657 = vsub.s32 0, %v1656
  %v1658 = vrot.slane %v1654, %v1657
  %1659 = vst.msk [vmem:[%s1645 + $0x3] sm:$0x7] %vm808, %v1658
  %v1660 = vld [vmem:[%s836 + $0x1] sm:$0x1]
  %v1661 = vlaneseq
  %v1662 = vshrl.u32 %v1661, 7
  %v1663 = vsub.s32 0, %v1662
  %v1664 = vrot.slane %v1660, %v1663
  %1665 = vst.msk [vmem:[%s1652 + $0x3] sm:$0x7] %vm808, %v1664
  %v1666 = vld [vmem:[%s856] sm:$0x1]
  %v1667 = vlaneseq
  %v1668 = vshrl.u32 %v1667, 7
  %v1669 = vsub.s32 0, %v1668
  %v1670 = vrot.slane %v1666, %v1669
  %s1671 = scalar_lea.vmem [#allocation6], 16
  %1672 = vst.msk [vmem:[%s1671] sm:$0x7] %vm808, %v1670
  %v1673 = vld [vmem:[%s864] sm:$0x1]
  %v1674 = vlaneseq
  %v1675 = vshrl.u32 %v1674, 7
  %v1676 = vsub.s32 0, %v1675
  %v1677 = vrot.slane %v1673, %v1676
  %s1678 = scalar_lea.vmem [#allocation7], 16
  %1679 = vst.msk [vmem:[%s1678] sm:$0x7] %vm808, %v1677
  %v1680 = vld [vmem:[%s856 + $0x1] sm:$0x1]
  %v1681 = vlaneseq
  %v1682 = vshrl.u32 %v1681, 7
  %v1683 = vsub.s32 0, %v1682
  %v1684 = vrot.slane %v1680, %v1683
  %1685 = vst.msk [vmem:[%s1671 + $0x3] sm:$0x7] %vm808, %v1684
  %v1686 = vld [vmem:[%s864 + $0x1] sm:$0x1]
  %v1687 = vlaneseq
  %v1688 = vshrl.u32 %v1687, 7
  %v1689 = vsub.s32 0, %v1688
  %v1690 = vrot.slane %v1686, %v1689
  %1691 = vst.msk [vmem:[%s1678 + $0x3] sm:$0x7] %vm808, %v1690
  %v1692 = vld [vmem:[%s884] sm:$0x1]
  %v1693 = vlaneseq
  %v1694 = vshrl.u32 %v1693, 7
  %v1695 = vsub.s32 0, %v1694
  %v1696 = vrot.slane %v1692, %v1695
  %s1697 = scalar_lea.vmem [#allocation6], 24
  %1698 = vst.msk [vmem:[%s1697] sm:$0x7] %vm808, %v1696
  %v1699 = vld [vmem:[%s892] sm:$0x1]
  %v1700 = vlaneseq
  %v1701 = vshrl.u32 %v1700, 7
  %v1702 = vsub.s32 0, %v1701
  %v1703 = vrot.slane %v1699, %v1702
  %s1704 = scalar_lea.vmem [#allocation7], 24
  %1705 = vst.msk [vmem:[%s1704] sm:$0x7] %vm808, %v1703
  %v1706 = vld [vmem:[%s884 + $0x1] sm:$0x1]
  %v1707 = vlaneseq
  %v1708 = vshrl.u32 %v1707, 7
  %v1709 = vsub.s32 0, %v1708
  %v1710 = vrot.slane %v1706, %v1709
  %1711 = vst.msk [vmem:[%s1697 + $0x3] sm:$0x7] %vm808, %v1710
  %v1712 = vld [vmem:[%s892 + $0x1] sm:$0x1]
  %v1713 = vlaneseq
  %v1714 = vshrl.u32 %v1713, 7
  %v1715 = vsub.s32 0, %v1714
  %v1716 = vrot.slane %v1712, %v1715
  %1717 = vst.msk [vmem:[%s1704 + $0x3] sm:$0x7] %vm808, %v1716
  loop: start=0, step=1, limit=4
  $region48: #{user_model_forward.11} parent=0 // loop_pre_header
    _
  $region49: #{user_model_forward.11} parent=0 // loop_header
    %s1719 = sphi 0, %s1723
    %p1720 = scmp.ge.s32.totalorder %s1719, 4
  $region50: #{user_model_forward.11} parent=0 // loop_header_branch
    %1722 = sbr.rel (%p1720) target = $region54
  $region51: #{user_model_forward.11} parent=0 // loop_body
    %s1724 = smul.u32 %s1719, 8
    %s1725 = scalar_lea.vmem %s2, %s1724
    %v1726 = vld [vmem:[%s1725] sm:$0x3f]
    %v1728 = vlaneseq
    %v1729 = vshrl.u32 %v1728, 7
    %v1730 = vsub.s32 0, %v1729
    %v1731 = vrot.slane %v70, %v1730
    %vm1733 = vcmask 261120
    %v1735 = vsel %vm1733, %v1726, 0
    %1737 = vmatprep.subr.mxu0 0.0
    %1738 = vmatpush1.msra.mxu0 %v32
    %1739 = vmatprep.subr.mxu0 0.0
    %1740 = vmatpush1.msra.mxu0 %v33
    %1741 = vmatprep.subr.mxu0 0.0
    %1742 = vmatpush1.msra.mxu0 %v34
    %1743 = vmatprep.subr.mxu0 0.0
    %1744 = vmatpush1.msra.mxu0 %v35
    %1745 = vmatprep.subr.mxu0 0.0
    %1746 = vmatpush1.msra.mxu0 0.0
    %1747 = vmatprep.subr.mxu0 0.0
    %1748 = vmatpush1.msra.mxu0 0.0
    %1749 = vmatprep.subr.mxu0 0.0
    %1750 = vmatpush1.msra.mxu0 0.0
    %1751 = vmatprep.subr.mxu0 0.0
    %1752 = vmatpush1.msra.mxu0 0.0
    %1753 = vmatprep.subr.mxu0 0.0
    %1754 = vmatpush1.msra.mxu0 0.0
    %1755 = vmatprep.subr.mxu0 0.0
    %1756 = vmatpush1.msra.mxu0 0.0
    %1757 = vmatprep.subr.mxu0 0.0
    %1758 = vmatpush1.msra.mxu0 0.0
    %1759 = vmatprep.subr.mxu0 0.0
    %1760 = vmatpush1.msra.mxu0 0.0
    %1761 = vmatprep.subr.mxu0 0.0
    %1762 = vmatpush1.msra.mxu0 0.0
    %1763 = vmatprep.subr.mxu0 0.0
    %1764 = vmatpush1.msra.mxu0 0.0
    %1765 = vmatprep.subr.mxu0 0.0
    %1766 = vmatpush1.msra.mxu0 0.0
    %1767 = vmatprep.subr.mxu0 0.0
    %1768 = vmatpush1.msra.mxu0 0.0
    %1769 = vmatprep.subr.mxu0 0.0
    %1770 = vmatpush1.msra.mxu0 0.0
    %1771 = vmatprep.subr.mxu0 0.0
    %1772 = vmatpush1.msra.mxu0 0.0
    %1773 = vmatprep.subr.mxu0 0.0
    %1774 = vmatpush1.msra.mxu0 0.0
    %1775 = vmatprep.subr.mxu0 0.0
    %1776 = vmatpush1.msra.mxu0 0.0
    %1777 = vmatprep.subr.mxu0 0.0
    %1778 = vmatpush1.msra.mxu0 0.0
    %1779 = vmatprep.subr.mxu0 0.0
    %1780 = vmatpush1.msra.mxu0 0.0
    %1781 = vmatprep.subr.mxu0 0.0
    %1782 = vmatpush1.msra.mxu0 0.0
    %1783 = vmatprep.subr.mxu0 0.0
    %1784 = vmatpush1.msra.mxu0 0.0
    %1785 = vmatprep.subr.mxu0 0.0
    %1786 = vmatpush1.msra.mxu0 0.0
    %1787 = vmatprep.subr.mxu0 0.0
    %1788 = vmatpush1.msra.mxu0 0.0
    %1789 = vmatprep.subr.mxu0 0.0
    %1790 = vmatpush1.msra.mxu0 0.0
    %1791 = vmatprep.subr.mxu0 0.0
    %1792 = vmatpush1.msra.mxu0 0.0
    %1793 = vmatprep.subr.mxu0 0.0
    %1794 = vmatpush1.msra.mxu0 0.0
    %1795 = vmatprep.subr.mxu0 0.0
    %1796 = vmatpush1.msra.mxu0 0.0
    %1797 = vmatprep.subr.mxu0 0.0
    %1798 = vmatpush1.msra.mxu0 0.0
    %1799 = vmatprep.subr.mxu0 0.0
    %1800 = vmatpush1.msra.mxu0 0.0
    %1801 = vmatprep.mubr.f32.mxu0 0.0
    %1802 = vmatmul.mubr.f32.gmra.mrb[0].mxu0 %v1735
    %v1803 = vpop.f32.mrb[0].mxu0
    %v1804 = vadd.f32 %v1731, %v1803
    %v1805 = vpop.f32.mrb[0].mxu0
    %1806 = vdwg.mxu0
    %v1807 = vld [vmem:[#allocation6] sm:$0x3f]
    %v1809 = vsel %vm1733, %v1807, 0
    %1811 = vmatprep.subr.mxu0 0.0
    %1812 = vmatpush1.msra.mxu0 %v51
    %1813 = vmatprep.subr.mxu0 0.0
    %1814 = vmatpush1.msra.mxu0 %v52
    %1815 = vmatprep.subr.mxu0 0.0
    %1816 = vmatpush1.msra.mxu0 %v53
    %1817 = vmatprep.subr.mxu0 0.0
    %1818 = vmatpush1.msra.mxu0 %v54
    %1819 = vmatprep.subr.mxu0 0.0
    %1820 = vmatpush1.msra.mxu0 0.0
    %1821 = vmatprep.subr.mxu0 0.0
    %1822 = vmatpush1.msra.mxu0 0.0
    %1823 = vmatprep.subr.mxu0 0.0
    %1824 = vmatpush1.msra.mxu0 0.0
    %1825 = vmatprep.subr.mxu0 0.0
    %1826 = vmatpush1.msra.mxu0 0.0
    %1827 = vmatprep.subr.mxu0 0.0
    %1828 = vmatpush1.msra.mxu0 0.0
    %1829 = vmatprep.subr.mxu0 0.0
    %1830 = vmatpush1.msra.mxu0 0.0
    %1831 = vmatprep.subr.mxu0 0.0
    %1832 = vmatpush1.msra.mxu0 0.0
    %1833 = vmatprep.subr.mxu0 0.0
    %1834 = vmatpush1.msra.mxu0 0.0
    %1835 = vmatprep.subr.mxu0 0.0
    %1836 = vmatpush1.msra.mxu0 0.0
    %1837 = vmatprep.subr.mxu0 0.0
    %1838 = vmatpush1.msra.mxu0 0.0
    %1839 = vmatprep.subr.mxu0 0.0
    %1840 = vmatpush1.msra.mxu0 0.0
    %1841 = vmatprep.subr.mxu0 0.0
    %1842 = vmatpush1.msra.mxu0 0.0
    %1843 = vmatprep.subr.mxu0 0.0
    %1844 = vmatpush1.msra.mxu0 0.0
    %1845 = vmatprep.subr.mxu0 0.0
    %1846 = vmatpush1.msra.mxu0 0.0
    %1847 = vmatprep.subr.mxu0 0.0
    %1848 = vmatpush1.msra.mxu0 0.0
    %1849 = vmatprep.subr.mxu0 0.0
    %1850 = vmatpush1.msra.mxu0 0.0
    %1851 = vmatprep.subr.mxu0 0.0
    %1852 = vmatpush1.msra.mxu0 0.0
    %1853 = vmatprep.subr.mxu0 0.0
    %1854 = vmatpush1.msra.mxu0 0.0
    %1855 = vmatprep.subr.mxu0 0.0
    %1856 = vmatpush1.msra.mxu0 0.0
    %1857 = vmatprep.subr.mxu0 0.0
    %1858 = vmatpush1.msra.mxu0 0.0
    %1859 = vmatprep.subr.mxu0 0.0
    %1860 = vmatpush1.msra.mxu0 0.0
    %1861 = vmatprep.subr.mxu0 0.0
    %1862 = vmatpush1.msra.mxu0 0.0
    %1863 = vmatprep.subr.mxu0 0.0
    %1864 = vmatpush1.msra.mxu0 0.0
    %1865 = vmatprep.subr.mxu0 0.0
    %1866 = vmatpush1.msra.mxu0 0.0
    %1867 = vmatprep.subr.mxu0 0.0
    %1868 = vmatpush1.msra.mxu0 0.0
    %1869 = vmatprep.subr.mxu0 0.0
    %1870 = vmatpush1.msra.mxu0 0.0
    %1871 = vmatprep.subr.mxu0 0.0
    %1872 = vmatpush1.msra.mxu0 0.0
    %1873 = vmatprep.subr.mxu0 0.0
    %1874 = vmatpush1.msra.mxu0 0.0
    %1875 = vmatprep.mubr.f32.mxu0 0.0
    %1876 = vmatmul.mubr.f32.gmra.mrb[0].mxu0 %v1809
    %v1877 = vpop.f32.mrb[0].mxu0
    %v1878 = vadd.f32 0.0, %v1877
    %v1879 = vpop.f32.mrb[0].mxu0
    %1880 = vdwg.mxu0
    %v1881 = vadd.f32 %v1804, %v1878
    %v1882 = vld [vmem:[#allocation7] sm:$0x3f]
    %v1883 = vxor.u32 %v1881, 2147483648
    %v1884 = vmul.f32 %v1883, 1.442695
    %v1885 = vpow.pop %v1884
    %v1886 = vadd.f32 %v1885, 1.0
    %v1887 = vrcp.pop %v1886
    %v1888 = vmul.f32 1.0, %v1887
    %v1889 = vtanh.pop %v1881
    %1891 = vrot.lane.b32.xlu0 %v1882, 32
    %v1892 = vpop.permute.xlu0 %1891
    %v1894 = vmul.f32 %v1888, %v1892
    %1896 = vrot.lane.b32.xlu0 %v1889, 64
    %v1897 = vpop.permute.xlu0 %1896
    %v1899 = vmul.f32 %v1888, %v1897
    %1901 = vrot.lane.b32.xlu0 %v1899, 32
    %v1902 = vpop.permute.xlu0 %1901
    %v1904 = vadd.f32 %v1894, %v1902
    %v1905 = vtanh.pop %v1904
    %1907 = vrot.lane.b32.xlu0 %v1905, 64
    %v1908 = vpop.permute.xlu0 %1907
    %v1910 = vmul.f32 %v1888, %v1908
    %1912 = vrot.lane.b32.xlu0 %v1910, 32
    %v1913 = vpop.permute.xlu0 %1912
    %1915 = vst.msk [vmem:[#allocation6] sm:$0x3f] %vm1614, %v1913
    %1917 = vrot.lane.b32.xlu0 %v1904, 96
    %v1918 = vpop.permute.xlu0 %1917
    %1920 = vst.msk [vmem:[#allocation7] sm:$0x3f] %vm1614, %v1918
    %v1921 = vld [vmem:[%s1645] sm:$0x3f]
    %v1923 = vsel %vm1733, %v1921, 0
    %1925 = vmatprep.subr.mxu0 0.0
    %1926 = vmatpush1.msra.mxu0 %v56
    %1927 = vmatprep.subr.mxu0 0.0
    %1928 = vmatpush1.msra.mxu0 %v57
    %1929 = vmatprep.subr.mxu0 0.0
    %1930 = vmatpush1.msra.mxu0 %v58
    %1931 = vmatprep.subr.mxu0 0.0
    %1932 = vmatpush1.msra.mxu0 %v59
    %1933 = vmatprep.subr.mxu0 0.0
    %1934 = vmatpush1.msra.mxu0 0.0
    %1935 = vmatprep.subr.mxu0 0.0
    %1936 = vmatpush1.msra.mxu0 0.0
    %1937 = vmatprep.subr.mxu0 0.0
    %1938 = vmatpush1.msra.mxu0 0.0
    %1939 = vmatprep.subr.mxu0 0.0
    %1940 = vmatpush1.msra.mxu0 0.0
    %1941 = vmatprep.subr.mxu0 0.0
    %1942 = vmatpush1.msra.mxu0 0.0
    %1943 = vmatprep.subr.mxu0 0.0
    %1944 = vmatpush1.msra.mxu0 0.0
    %1945 = vmatprep.subr.mxu0 0.0
    %1946 = vmatpush1.msra.mxu0 0.0
    %1947 = vmatprep.subr.mxu0 0.0
    %1948 = vmatpush1.msra.mxu0 0.0
    %1949 = vmatprep.subr.mxu0 0.0
    %1950 = vmatpush1.msra.mxu0 0.0
    %1951 = vmatprep.subr.mxu0 0.0
    %1952 = vmatpush1.msra.mxu0 0.0
    %1953 = vmatprep.subr.mxu0 0.0
    %1954 = vmatpush1.msra.mxu0 0.0
    %1955 = vmatprep.subr.mxu0 0.0
    %1956 = vmatpush1.msra.mxu0 0.0
    %1957 = vmatprep.subr.mxu0 0.0
    %1958 = vmatpush1.msra.mxu0 0.0
    %1959 = vmatprep.subr.mxu0 0.0
    %1960 = vmatpush1.msra.mxu0 0.0
    %1961 = vmatprep.subr.mxu0 0.0
    %1962 = vmatpush1.msra.mxu0 0.0
    %1963 = vmatprep.subr.mxu0 0.0
    %1964 = vmatpush1.msra.mxu0 0.0
    %1965 = vmatprep.subr.mxu0 0.0
    %1966 = vmatpush1.msra.mxu0 0.0
    %1967 = vmatprep.subr.mxu0 0.0
    %1968 = vmatpush1.msra.mxu0 0.0
    %1969 = vmatprep.subr.mxu0 0.0
    %1970 = vmatpush1.msra.mxu0 0.0
    %1971 = vmatprep.subr.mxu0 0.0
    %1972 = vmatpush1.msra.mxu0 0.0
    %1973 = vmatprep.subr.mxu0 0.0
    %1974 = vmatpush1.msra.mxu0 0.0
    %1975 = vmatprep.subr.mxu0 0.0
    %1976 = vmatpush1.msra.mxu0 0.0
    %1977 = vmatprep.subr.mxu0 0.0
    %1978 = vmatpush1.msra.mxu0 0.0
    %1979 = vmatprep.subr.mxu0 0.0
    %1980 = vmatpush1.msra.mxu0 0.0
    %1981 = vmatprep.subr.mxu0 0.0
    %1982 = vmatpush1.msra.mxu0 0.0
    %1983 = vmatprep.subr.mxu0 0.0
    %1984 = vmatpush1.msra.mxu0 0.0
    %1985 = vmatprep.subr.mxu0 0.0
    %1986 = vmatpush1.msra.mxu0 0.0
    %1987 = vmatprep.subr.mxu0 0.0
    %1988 = vmatpush1.msra.mxu0 0.0
    %1989 = vmatprep.mubr.f32.mxu0 0.0
    %1990 = vmatmul.mubr.f32.gmra.mrb[0].mxu0 %v1923
    %v1991 = vpop.f32.mrb[0].mxu0
    %v1992 = vadd.f32 0.0, %v1991
    %v1993 = vpop.f32.mrb[0].mxu0
    %1994 = vdwg.mxu0
    %v1995 = vsel %vm1733, %v1913, 0
    %1997 = vmatprep.subr.mxu0 0.0
    %1998 = vmatpush1.msra.mxu0 %v37
    %1999 = vmatprep.subr.mxu0 0.0
    %2000 = vmatpush1.msra.mxu0 %v38
    %2001 = vmatprep.subr.mxu0 0.0
    %2002 = vmatpush1.msra.mxu0 %v39
    %2003 = vmatprep.subr.mxu0 0.0
    %2004 = vmatpush1.msra.mxu0 %v40
    %2005 = vmatprep.subr.mxu0 0.0
    %2006 = vmatpush1.msra.mxu0 0.0
    %2007 = vmatprep.subr.mxu0 0.0
    %2008 = vmatpush1.msra.mxu0 0.0
    %2009 = vmatprep.subr.mxu0 0.0
    %2010 = vmatpush1.msra.mxu0 0.0
    %2011 = vmatprep.subr.mxu0 0.0
    %2012 = vmatpush1.msra.mxu0 0.0
    %2013 = vmatprep.subr.mxu0 0.0
    %2014 = vmatpush1.msra.mxu0 0.0
    %2015 = vmatprep.subr.mxu0 0.0
    %2016 = vmatpush1.msra.mxu0 0.0
    %2017 = vmatprep.subr.mxu0 0.0
    %2018 = vmatpush1.msra.mxu0 0.0
    %2019 = vmatprep.subr.mxu0 0.0
    %2020 = vmatpush1.msra.mxu0 0.0
    %2021 = vmatprep.subr.mxu0 0.0
    %2022 = vmatpush1.msra.mxu0 0.0
    %2023 = vmatprep.subr.mxu0 0.0
    %2024 = vmatpush1.msra.mxu0 0.0
    %2025 = vmatprep.subr.mxu0 0.0
    %2026 = vmatpush1.msra.mxu0 0.0
    %2027 = vmatprep.subr.mxu0 0.0
    %2028 = vmatpush1.msra.mxu0 0.0
    %2029 = vmatprep.subr.mxu0 0.0
    %2030 = vmatpush1.msra.mxu0 0.0
    %2031 = vmatprep.subr.mxu0 0.0
    %2032 = vmatpush1.msra.mxu0 0.0
    %2033 = vmatprep.subr.mxu0 0.0
    %2034 = vmatpush1.msra.mxu0 0.0
    %2035 = vmatprep.subr.mxu0 0.0
    %2036 = vmatpush1.msra.mxu0 0.0
    %2037 = vmatprep.subr.mxu0 0.0
    %2038 = vmatpush1.msra.mxu0 0.0
    %2039 = vmatprep.subr.mxu0 0.0
    %2040 = vmatpush1.msra.mxu0 0.0
    %2041 = vmatprep.subr.mxu0 0.0
    %2042 = vmatpush1.msra.mxu0 0.0
    %2043 = vmatprep.subr.mxu0 0.0
    %2044 = vmatpush1.msra.mxu0 0.0
    %2045 = vmatprep.subr.mxu0 0.0
    %2046 = vmatpush1.msra.mxu0 0.0
    %2047 = vmatprep.subr.mxu0 0.0
    %2048 = vmatpush1.msra.mxu0 0.0
    %2049 = vmatprep.subr.mxu0 0.0
    %2050 = vmatpush1.msra.mxu0 0.0
    %2051 = vmatprep.subr.mxu0 0.0
    %2052 = vmatpush1.msra.mxu0 0.0
    %2053 = vmatprep.subr.mxu0 0.0
    %2054 = vmatpush1.msra.mxu0 0.0
    %2055 = vmatprep.subr.mxu0 0.0
    %2056 = vmatpush1.msra.mxu0 0.0
    %2057 = vmatprep.subr.mxu0 0.0
    %2058 = vmatpush1.msra.mxu0 0.0
    %2059 = vmatprep.subr.mxu0 0.0
    %2060 = vmatpush1.msra.mxu0 0.0
    %2061 = vmatprep.mubr.f32.mxu0 0.0
    %2062 = vmatmul.mubr.f32.gmra.mrb[0].mxu0 %v1995
    %v2063 = vpop.f32.mrb[0].mxu0
    %v2064 = vadd.f32 %v1992, %v2063
    %v2065 = vpop.f32.mrb[0].mxu0
    %2066 = vdwg.mxu0
    %v2068 = vlaneseq
    %v2069 = vshrl.u32 %v2068, 7
    %v2070 = vsub.s32 0, %v2069
    %v2071 = vrot.slane %v72, %v2070
    %v2073 = vadd.f32 %v2064, %v2071
    %v2074 = vld [vmem:[%s1652] sm:$0x3f]
    %v2075 = vxor.u32 %v2073, 2147483648
    %v2076 = vmul.f32 %v2075, 1.442695
    %v2077 = vpow.pop %v2076
    %v2078 = vadd.f32 %v2077, 1.0
    %v2079 = vrcp.pop %v2078
    %v2080 = vmul.f32 1.0, %v2079
    %v2081 = vtanh.pop %v2073
    %2083 = vrot.lane.b32.xlu0 %v2074, 32
    %v2084 = vpop.permute.xlu0 %2083
    %v2086 = vmul.f32 %v2080, %v2084
    %2088 = vrot.lane.b32.xlu0 %v2081, 64
    %v2089 = vpop.permute.xlu0 %2088
    %v2091 = vmul.f32 %v2080, %v2089
    %2093 = vrot.lane.b32.xlu0 %v2091, 32
    %v2094 = vpop.permute.xlu0 %2093
    %v2096 = vadd.f32 %v2086, %v2094
    %v2097 = vtanh.pop %v2096
    %2099 = vrot.lane.b32.xlu0 %v2097, 64
    %v2100 = vpop.permute.xlu0 %2099
    %v2102 = vmul.f32 %v2080, %v2100
    %2104 = vrot.lane.b32.xlu0 %v2102, 32
    %v2105 = vpop.permute.xlu0 %2104
    %2107 = vst.msk [vmem:[%s1645] sm:$0x3f] %vm1614, %v2105
    %2109 = vrot.lane.b32.xlu0 %v2096, 96
    %v2110 = vpop.permute.xlu0 %2109
    %2112 = vst.msk [vmem:[%s1652] sm:$0x3f] %vm1614, %v2110
    %v2113 = vld [vmem:[%s1671] sm:$0x3f]
    %v2115 = vsel %vm1733, %v2113, 0
    %2117 = vmatprep.subr.mxu0 0.0
    %2118 = vmatpush1.msra.mxu0 %v61
    %2119 = vmatprep.subr.mxu0 0.0
    %2120 = vmatpush1.msra.mxu0 %v62
    %2121 = vmatprep.subr.mxu0 0.0
    %2122 = vmatpush1.msra.mxu0 %v63
    %2123 = vmatprep.subr.mxu0 0.0
    %2124 = vmatpush1.msra.mxu0 %v64
    %2125 = vmatprep.subr.mxu0 0.0
    %2126 = vmatpush1.msra.mxu0 0.0
    %2127 = vmatprep.subr.mxu0 0.0
    %2128 = vmatpush1.msra.mxu0 0.0
    %2129 = vmatprep.subr.mxu0 0.0
    %2130 = vmatpush1.msra.mxu0 0.0
    %2131 = vmatprep.subr.mxu0 0.0
    %2132 = vmatpush1.msra.mxu0 0.0
    %2133 = vmatprep.subr.mxu0 0.0
    %2134 = vmatpush1.msra.mxu0 0.0
    %2135 = vmatprep.subr.mxu0 0.0
    %2136 = vmatpush1.msra.mxu0 0.0
    %2137 = vmatprep.subr.mxu0 0.0
    %2138 = vmatpush1.msra.mxu0 0.0
    %2139 = vmatprep.subr.mxu0 0.0
    %2140 = vmatpush1.msra.mxu0 0.0
    %2141 = vmatprep.subr.mxu0 0.0
    %2142 = vmatpush1.msra.mxu0 0.0
    %2143 = vmatprep.subr.mxu0 0.0
    %2144 = vmatpush1.msra.mxu0 0.0
    %2145 = vmatprep.subr.mxu0 0.0
    %2146 = vmatpush1.msra.mxu0 0.0
    %2147 = vmatprep.subr.mxu0 0.0
    %2148 = vmatpush1.msra.mxu0 0.0
    %2149 = vmatprep.subr.mxu0 0.0
    %2150 = vmatpush1.msra.mxu0 0.0
    %2151 = vmatprep.subr.mxu0 0.0
    %2152 = vmatpush1.msra.mxu0 0.0
    %2153 = vmatprep.subr.mxu0 0.0
    %2154 = vmatpush1.msra.mxu0 0.0
    %2155 = vmatprep.subr.mxu0 0.0
    %2156 = vmatpush1.msra.mxu0 0.0
    %2157 = vmatprep.subr.mxu0 0.0
    %2158 = vmatpush1.msra.mxu0 0.0
    %2159 = vmatprep.subr.mxu0 0.0
    %2160 = vmatpush1.msra.mxu0 0.0
    %2161 = vmatprep.subr.mxu0 0.0
    %2162 = vmatpush1.msra.mxu0 0.0
    %2163 = vmatprep.subr.mxu0 0.0
    %2164 = vmatpush1.msra.mxu0 0.0
    %2165 = vmatprep.subr.mxu0 0.0
    %2166 = vmatpush1.msra.mxu0 0.0
    %2167 = vmatprep.subr.mxu0 0.0
    %2168 = vmatpush1.msra.mxu0 0.0
    %2169 = vmatprep.subr.mxu0 0.0
    %2170 = vmatpush1.msra.mxu0 0.0
    %2171 = vmatprep.subr.mxu0 0.0
    %2172 = vmatpush1.msra.mxu0 0.0
    %2173 = vmatprep.subr.mxu0 0.0
    %2174 = vmatpush1.msra.mxu0 0.0
    %2175 = vmatprep.subr.mxu0 0.0
    %2176 = vmatpush1.msra.mxu0 0.0
    %2177 = vmatprep.subr.mxu0 0.0
    %2178 = vmatpush1.msra.mxu0 0.0
    %2179 = vmatprep.subr.mxu0 0.0
    %2180 = vmatpush1.msra.mxu0 0.0
    %2181 = vmatprep.mubr.f32.mxu0 0.0
    %2182 = vmatmul.mubr.f32.gmra.mrb[0].mxu0 %v2115
    %v2183 = vpop.f32.mrb[0].mxu0
    %v2184 = vadd.f32 0.0, %v2183
    %v2185 = vpop.f32.mrb[0].mxu0
    %2186 = vdwg.mxu0
    %v2187 = vsel %vm1733, %v2105, 0
    %2189 = vmatprep.subr.mxu0 0.0
    %2190 = vmatpush1.msra.mxu0 %v42
    %2191 = vmatprep.subr.mxu0 0.0
    %2192 = vmatpush1.msra.mxu0 %v43
    %2193 = vmatprep.subr.mxu0 0.0
    %2194 = vmatpush1.msra.mxu0 %v44
    %2195 = vmatprep.subr.mxu0 0.0
    %2196 = vmatpush1.msra.mxu0 %v45
    %2197 = vmatprep.subr.mxu0 0.0
    %2198 = vmatpush1.msra.mxu0 0.0
    %2199 = vmatprep.subr.mxu0 0.0
    %2200 = vmatpush1.msra.mxu0 0.0
    %2201 = vmatprep.subr.mxu0 0.0
    %2202 = vmatpush1.msra.mxu0 0.0
    %2203 = vmatprep.subr.mxu0 0.0
    %2204 = vmatpush1.msra.mxu0 0.0
    %2205 = vmatprep.subr.mxu0 0.0
    %2206 = vmatpush1.msra.mxu0 0.0
    %2207 = vmatprep.subr.mxu0 0.0
    %2208 = vmatpush1.msra.mxu0 0.0
    %2209 = vmatprep.subr.mxu0 0.0
    %2210 = vmatpush1.msra.mxu0 0.0
    %2211 = vmatprep.subr.mxu0 0.0
    %2212 = vmatpush1.msra.mxu0 0.0
    %2213 = vmatprep.subr.mxu0 0.0
    %2214 = vmatpush1.msra.mxu0 0.0
    %2215 = vmatprep.subr.mxu0 0.0
    %2216 = vmatpush1.msra.mxu0 0.0
    %2217 = vmatprep.subr.mxu0 0.0
    %2218 = vmatpush1.msra.mxu0 0.0
    %2219 = vmatprep.subr.mxu0 0.0
    %2220 = vmatpush1.msra.mxu0 0.0
    %2221 = vmatprep.subr.mxu0 0.0
    %2222 = vmatpush1.msra.mxu0 0.0
    %2223 = vmatprep.subr.mxu0 0.0
    %2224 = vmatpush1.msra.mxu0 0.0
    %2225 = vmatprep.subr.mxu0 0.0
    %2226 = vmatpush1.msra.mxu0 0.0
    %2227 = vmatprep.subr.mxu0 0.0
    %2228 = vmatpush1.msra.mxu0 0.0
    %2229 = vmatprep.subr.mxu0 0.0
    %2230 = vmatpush1.msra.mxu0 0.0
    %2231 = vmatprep.subr.mxu0 0.0
    %2232 = vmatpush1.msra.mxu0 0.0
    %2233 = vmatprep.subr.mxu0 0.0
    %2234 = vmatpush1.msra.mxu0 0.0
    %2235 = vmatprep.subr.mxu0 0.0
    %2236 = vmatpush1.msra.mxu0 0.0
    %2237 = vmatprep.subr.mxu0 0.0
    %2238 = vmatpush1.msra.mxu0 0.0
    %2239 = vmatprep.subr.mxu0 0.0
    %2240 = vmatpush1.msra.mxu0 0.0
    %2241 = vmatprep.subr.mxu0 0.0
    %2242 = vmatpush1.msra.mxu0 0.0
    %2243 = vmatprep.subr.mxu0 0.0
    %2244 = vmatpush1.msra.mxu0 0.0
    %2245 = vmatprep.subr.mxu0 0.0
    %2246 = vmatpush1.msra.mxu0 0.0
    %2247 = vmatprep.subr.mxu0 0.0
    %2248 = vmatpush1.msra.mxu0 0.0
    %2249 = vmatprep.subr.mxu0 0.0
    %2250 = vmatpush1.msra.mxu0 0.0
    %2251 = vmatprep.subr.mxu0 0.0
    %2252 = vmatpush1.msra.mxu0 0.0
    %2253 = vmatprep.mubr.f32.mxu0 0.0
    %2254 = vmatmul.mubr.f32.gmra.mrb[0].mxu0 %v2187
    %v2255 = vpop.f32.mrb[0].mxu0
    %v2256 = vadd.f32 %v2184, %v2255
    %v2257 = vpop.f32.mrb[0].mxu0
    %2258 = vdwg.mxu0
    %v2260 = vlaneseq
    %v2261 = vshrl.u32 %v2260, 7
    %v2262 = vsub.s32 0, %v2261
    %v2263 = vrot.slane %v74, %v2262
    %v2265 = vadd.f32 %v2256, %v2263
    %v2266 = vld [vmem:[%s1678] sm:$0x3f]
    %v2267 = vxor.u32 %v2265, 2147483648
    %v2268 = vmul.f32 %v2267, 1.442695
    %v2269 = vpow.pop %v2268
    %v2270 = vadd.f32 %v2269, 1.0
    %v2271 = vrcp.pop %v2270
    %v2272 = vmul.f32 1.0, %v2271
    %v2273 = vtanh.pop %v2265
    %2275 = vrot.lane.b32.xlu0 %v2266, 32
    %v2276 = vpop.permute.xlu0 %2275
    %v2278 = vmul.f32 %v2272, %v2276
    %2280 = vrot.lane.b32.xlu0 %v2273, 64
    %v2281 = vpop.permute.xlu0 %2280
    %v2283 = vmul.f32 %v2272, %v2281
    %2285 = vrot.lane.b32.xlu0 %v2283, 32
    %v2286 = vpop.permute.xlu0 %2285
    %v2288 = vadd.f32 %v2278, %v2286
    %v2289 = vtanh.pop %v2288
    %2291 = vrot.lane.b32.xlu0 %v2289, 64
    %v2292 = vpop.permute.xlu0 %2291
    %v2294 = vmul.f32 %v2272, %v2292
    %2296 = vrot.lane.b32.xlu0 %v2294, 32
    %v2297 = vpop.permute.xlu0 %2296
    %2299 = vst.msk [vmem:[%s1671] sm:$0x3f] %vm1614, %v2297
    %2301 = vrot.lane.b32.xlu0 %v2288, 96
    %v2302 = vpop.permute.xlu0 %2301
    %2304 = vst.msk [vmem:[%s1678] sm:$0x3f] %vm1614, %v2302
    %v2305 = vld [vmem:[%s1697] sm:$0x3f]
    %v2307 = vsel %vm1733, %v2305, 0
    %2309 = vmatprep.subr.mxu0 0.0
    %2310 = vmatpush1.msra.mxu0 %v66
    %2311 = vmatprep.subr.mxu0 0.0
    %2312 = vmatpush1.msra.mxu0 %v67
    %2313 = vmatprep.subr.mxu0 0.0
    %2314 = vmatpush1.msra.mxu0 %v68
    %2315 = vmatprep.subr.mxu0 0.0
    %2316 = vmatpush1.msra.mxu0 %v69
    %2317 = vmatprep.subr.mxu0 0.0
    %2318 = vmatpush1.msra.mxu0 0.0
    %2319 = vmatprep.subr.mxu0 0.0
    %2320 = vmatpush1.msra.mxu0 0.0
    %2321 = vmatprep.subr.mxu0 0.0
    %2322 = vmatpush1.msra.mxu0 0.0
    %2323 = vmatprep.subr.mxu0 0.0
    %2324 = vmatpush1.msra.mxu0 0.0
    %2325 = vmatprep.subr.mxu0 0.0
    %2326 = vmatpush1.msra.mxu0 0.0
    %2327 = vmatprep.subr.mxu0 0.0
    %2328 = vmatpush1.msra.mxu0 0.0
    %2329 = vmatprep.subr.mxu0 0.0
    %2330 = vmatpush1.msra.mxu0 0.0
    %2331 = vmatprep.subr.mxu0 0.0
    %2332 = vmatpush1.msra.mxu0 0.0
    %2333 = vmatprep.subr.mxu0 0.0
    %2334 = vmatpush1.msra.mxu0 0.0
    %2335 = vmatprep.subr.mxu0 0.0
    %2336 = vmatpush1.msra.mxu0 0.0
    %2337 = vmatprep.subr.mxu0 0.0
    %2338 = vmatpush1.msra.mxu0 0.0
    %2339 = vmatprep.subr.mxu0 0.0
    %2340 = vmatpush1.msra.mxu0 0.0
    %2341 = vmatprep.subr.mxu0 0.0
    %2342 = vmatpush1.msra.mxu0 0.0
    %2343 = vmatprep.subr.mxu0 0.0
    %2344 = vmatpush1.msra.mxu0 0.0
    %2345 = vmatprep.subr.mxu0 0.0
    %2346 = vmatpush1.msra.mxu0 0.0
    %2347 = vmatprep.subr.mxu0 0.0
    %2348 = vmatpush1.msra.mxu0 0.0
    %2349 = vmatprep.subr.mxu0 0.0
    %2350 = vmatpush1.msra.mxu0 0.0
    %2351 = vmatprep.subr.mxu0 0.0
    %2352 = vmatpush1.msra.mxu0 0.0
    %2353 = vmatprep.subr.mxu0 0.0
    %2354 = vmatpush1.msra.mxu0 0.0
    %2355 = vmatprep.subr.mxu0 0.0
    %2356 = vmatpush1.msra.mxu0 0.0
    %2357 = vmatprep.subr.mxu0 0.0
    %2358 = vmatpush1.msra.mxu0 0.0
    %2359 = vmatprep.subr.mxu0 0.0
    %2360 = vmatpush1.msra.mxu0 0.0
    %2361 = vmatprep.subr.mxu0 0.0
    %2362 = vmatpush1.msra.mxu0 0.0
    %2363 = vmatprep.subr.mxu0 0.0
    %2364 = vmatpush1.msra.mxu0 0.0
    %2365 = vmatprep.subr.mxu0 0.0
    %2366 = vmatpush1.msra.mxu0 0.0
    %2367 = vmatprep.subr.mxu0 0.0
    %2368 = vmatpush1.msra.mxu0 0.0
    %2369 = vmatprep.subr.mxu0 0.0
    %2370 = vmatpush1.msra.mxu0 0.0
    %2371 = vmatprep.subr.mxu0 0.0
    %2372 = vmatpush1.msra.mxu0 0.0
    %2373 = vmatprep.mubr.f32.mxu0 0.0
    %2374 = vmatmul.mubr.f32.gmra.mrb[0].mxu0 %v2307
    %v2375 = vpop.f32.mrb[0].mxu0
    %v2376 = vadd.f32 0.0, %v2375
    %v2377 = vpop.f32.mrb[0].mxu0
    %2378 = vdwg.mxu0
    %v2379 = vsel %vm1733, %v2297, 0
    %2381 = vmatprep.subr.mxu0 0.0
    %2382 = vmatpush1.msra.mxu0 %v47
    %2383 = vmatprep.subr.mxu0 0.0
    %2384 = vmatpush1.msra.mxu0 %v48
    %2385 = vmatprep.subr.mxu0 0.0
    %2386 = vmatpush1.msra.mxu0 %v49
    %2387 = vmatprep.subr.mxu0 0.0
    %2388 = vmatpush1.msra.mxu0 %v50
    %2389 = vmatprep.subr.mxu0 0.0
    %2390 = vmatpush1.msra.mxu0 0.0
    %2391 = vmatprep.subr.mxu0 0.0
    %2392 = vmatpush1.msra.mxu0 0.0
    %2393 = vmatprep.subr.mxu0 0.0
    %2394 = vmatpush1.msra.mxu0 0.0
    %2395 = vmatprep.subr.mxu0 0.0
    %2396 = vmatpush1.msra.mxu0 0.0
    %2397 = vmatprep.subr.mxu0 0.0
    %2398 = vmatpush1.msra.mxu0 0.0
    %2399 = vmatprep.subr.mxu0 0.0
    %2400 = vmatpush1.msra.mxu0 0.0
    %2401 = vmatprep.subr.mxu0 0.0
    %2402 = vmatpush1.msra.mxu0 0.0
    %2403 = vmatprep.subr.mxu0 0.0
    %2404 = vmatpush1.msra.mxu0 0.0
    %2405 = vmatprep.subr.mxu0 0.0
    %2406 = vmatpush1.msra.mxu0 0.0
    %2407 = vmatprep.subr.mxu0 0.0
    %2408 = vmatpush1.msra.mxu0 0.0
    %2409 = vmatprep.subr.mxu0 0.0
    %2410 = vmatpush1.msra.mxu0 0.0
    %2411 = vmatprep.subr.mxu0 0.0
    %2412 = vmatpush1.msra.mxu0 0.0
    %2413 = vmatprep.subr.mxu0 0.0
    %2414 = vmatpush1.msra.mxu0 0.0
    %2415 = vmatprep.subr.mxu0 0.0
    %2416 = vmatpush1.msra.mxu0 0.0
    %2417 = vmatprep.subr.mxu0 0.0
    %2418 = vmatpush1.msra.mxu0 0.0
    %2419 = vmatprep.subr.mxu0 0.0
    %2420 = vmatpush1.msra.mxu0 0.0
    %2421 = vmatprep.subr.mxu0 0.0
    %2422 = vmatpush1.msra.mxu0 0.0
    %2423 = vmatprep.subr.mxu0 0.0
    %2424 = vmatpush1.msra.mxu0 0.0
    %2425 = vmatprep.subr.mxu0 0.0
    %2426 = vmatpush1.msra.mxu0 0.0
    %2427 = vmatprep.subr.mxu0 0.0
    %2428 = vmatpush1.msra.mxu0 0.0
    %2429 = vmatprep.subr.mxu0 0.0
    %2430 = vmatpush1.msra.mxu0 0.0
    %2431 = vmatprep.subr.mxu0 0.0
    %2432 = vmatpush1.msra.mxu0 0.0
    %2433 = vmatprep.subr.mxu0 0.0
    %2434 = vmatpush1.msra.mxu0 0.0
    %2435 = vmatprep.subr.mxu0 0.0
    %2436 = vmatpush1.msra.mxu0 0.0
    %2437 = vmatprep.subr.mxu0 0.0
    %2438 = vmatpush1.msra.mxu0 0.0
    %2439 = vmatprep.subr.mxu0 0.0
    %2440 = vmatpush1.msra.mxu0 0.0
    %2441 = vmatprep.subr.mxu0 0.0
    %2442 = vmatpush1.msra.mxu0 0.0
    %2443 = vmatprep.subr.mxu0 0.0
    %2444 = vmatpush1.msra.mxu0 0.0
    %2445 = vmatprep.mubr.f32.mxu0 0.0
    %2446 = vmatmul.mubr.f32.gmra.mrb[0].mxu0 %v2379
    %v2447 = vpop.f32.mrb[0].mxu0
    %v2448 = vadd.f32 %v2376, %v2447
    %v2449 = vpop.f32.mrb[0].mxu0
    %2450 = vdwg.mxu0
    %v2452 = vlaneseq
    %v2453 = vshrl.u32 %v2452, 7
    %v2454 = vsub.s32 0, %v2453
    %v2455 = vrot.slane %v76, %v2454
    %v2457 = vadd.f32 %v2448, %v2455
    %v2458 = vld [vmem:[%s1704] sm:$0x3f]
    %v2459 = vxor.u32 %v2457, 2147483648
    %v2460 = vmul.f32 %v2459, 1.442695
    %v2461 = vpow.pop %v2460
    %v2462 = vadd.f32 %v2461, 1.0
    %v2463 = vrcp.pop %v2462
    %v2464 = vmul.f32 1.0, %v2463
    %v2465 = vtanh.pop %v2457
    %2467 = vrot.lane.b32.xlu0 %v2458, 32
    %v2468 = vpop.permute.xlu0 %2467
    %v2470 = vmul.f32 %v2464, %v2468
    %2472 = vrot.lane.b32.xlu0 %v2465, 64
    %v2473 = vpop.permute.xlu0 %2472
    %v2475 = vmul.f32 %v2464, %v2473
    %2477 = vrot.lane.b32.xlu0 %v2475, 32
    %v2478 = vpop.permute.xlu0 %2477
    %v2480 = vadd.f32 %v2470, %v2478
    %v2481 = vtanh.pop %v2480
    %2483 = vrot.lane.b32.xlu0 %v2481, 64
    %v2484 = vpop.permute.xlu0 %2483
    %v2486 = vmul.f32 %v2464, %v2484
    %2488 = vrot.lane.b32.xlu0 %v2486, 32
    %v2489 = vpop.permute.xlu0 %2488
    %2491 = vst.msk [vmem:[%s1697] sm:$0x3f] %vm1614, %v2489
    %2493 = vrot.lane.b32.xlu0 %v2480, 96
    %v2494 = vpop.permute.xlu0 %2493
    %2496 = vst.msk [vmem:[%s1704] sm:$0x3f] %vm1614, %v2494
  $region52: #{user_model_forward.11} parent=0 // loop_footer
    %s1723 = sadd.s32 1, %s1719
  $region53: #{user_model_forward.11} parent=0 // loop_footer_branch
    %1718 = sbr.rel target = $region49
  $region54: #{user_model_forward.11} parent=0 // loop_exit
    _
  %v2497 = vld [vmem:[%s1697] sm:$0x3f]
  %2498 = vst.msk [vmem:[%s10] sm:$0x3f] %vm1614, %v2497
  // Predicated region
  $region55: #{user_model_forward.11} parent=0 // pred_check
    _
  $region56: #{user_model_forward.11} parent=0 // pred_check_branch
    %2500 = sbr.rel (0) target = $region58
  $region57: #{user_model_forward.11} parent=0 // pred_region
    _
  $region58: #{user_model_forward.11} parent=0 // pred_fallthru
    _
  // Predicated region
  $region59: #{user_model_forward.11} parent=0 // pred_check
    _
  $region60: #{user_model_forward.11} parent=0 // pred_check_branch
    %2502 = sbr.rel (0) target = $region62
  $region61: #{user_model_forward.11} parent=0 // pred_region
    _
  $region62: #{user_model_forward.11} parent=0 // pred_fallthru
    _
  // Predicated region
  $region63: #{user_model_forward.11} parent=0 // pred_check
    _
  $region64: #{user_model_forward.11} parent=0 // pred_check_branch
    %2504 = sbr.rel (0) target = $region66
  $region65: #{user_model_forward.11} parent=0 // pred_region
    _
  $region66: #{user_model_forward.11} parent=0 // pred_fallthru
    _
  // Predicated region
  $region67: #{user_model_forward.11} parent=0 // pred_check
    _
  $region68: #{user_model_forward.11} parent=0 // pred_check_branch
    %2506 = sbr.rel (0) target = $region70
  $region69: #{user_model_forward.11} parent=0 // pred_region
    _
  $region70: #{user_model_forward.11} parent=0 // pred_fallthru
    _
  // Predicated region
  $region71: #{user_model_forward.11} parent=0 // pred_check
    _
  $region72: #{user_model_forward.11} parent=0 // pred_check_branch
    %2508 = sbr.rel (0) target = $region74
  $region73: #{user_model_forward.11} parent=0 // pred_region
    _
  $region74: #{user_model_forward.11} parent=0 // pred_fallthru
    _
  // Predicated region
  $region75: #{user_model_forward.11} parent=0 // pred_check
    _
  $region76: #{user_model_forward.11} parent=0 // pred_check_branch
    %2510 = sbr.rel (0) target = $region78
  $region77: #{user_model_forward.11} parent=0 // pred_region
    _
  $region78: #{user_model_forward.11} parent=0 // pred_fallthru
    _

// kernel: user_model_forward.19
$region0: #{user_model_forward.19}
  #allocation0 [shape = 'u32[]', space=smem, size = 0x4, offset = 0x4, fixed_abs, tag = 'smem constant byte address 0x4 - core index']
  #allocation1 [shape = 'u32[144,128]{1,0:T(1,128)}', space=vmem, size = 0x12000, scoped, tag = 'internal scratch']
  %s0 = inlined_call_operand.vmem [shape: f32[2,160], index: 0, kind: input, shape index: {}]
  %s1 = inlined_call_operand.vmem [shape: f32[160,96], index: 1, kind: input, shape index: {}]
  %s2 = inlined_call_operand.vmem [shape: f32[1,96], index: 2, kind: input, shape index: {}]
  %s3 = inlined_call_operand.vmem [shape: f32[96,32], index: 3, kind: input, shape index: {}]
  %s4 = inlined_call_operand.vmem [shape: f32[1,32], index: 4, kind: input, shape index: {}]
  %s5 = inlined_call_operand.hbm [shape: f32[2,32], index: 5, kind: output, shape index: {}]
  %s6 = sld [smem:[#allocation0]]
  $region30: #{user_model_forward.19} parent=0
    _
  %s8 = ssub.s32 1, %s6
  %s9 = scalar_select 0, %s8, %s6
  $region1: #{user_model_forward.19} parent=0
    #allocation2 [shape = 'u8[1024]{0}', space=vmem, size = 0x400, scoped, tag = 'output window, operand 0, single buffered']
    #allocation3 [shape = 's32[1]{0}', space=sflag, size = 0x4, scoped, tag = 'scoped memory for user_model_forward.19']
    %10 = vsyncpa [#allocation3], 0
    // Predicated region
    $region2: #{user_model_forward.19} parent=1 // pred_check
      _
    $region3: #{user_model_forward.19} parent=1 // pred_check_branch
      %12 = sbr.rel (0) target = $region5
    $region4: #{user_model_forward.19} parent=1 // pred_region
      _
    $region5: #{user_model_forward.19} parent=1 // pred_fallthru
      _
    // Predicated region
    $region6: #{user_model_forward.19} parent=1 // pred_check
      _
    $region7: #{user_model_forward.19} parent=1 // pred_check_branch
      %14 = sbr.rel (0) target = $region9
    $region8: #{user_model_forward.19} parent=1 // pred_region
      _
    $region9: #{user_model_forward.19} parent=1 // pred_fallthru
      _
    // Predicated region
    $region10: #{user_model_forward.19} parent=1 // pred_check
      _
    $region11: #{user_model_forward.19} parent=1 // pred_check_branch
      %16 = sbr.rel (0) target = $region13
    $region12: #{user_model_forward.19} parent=1 // pred_region
      _
    $region13: #{user_model_forward.19} parent=1 // pred_fallthru
      _
    // Predicated region
    $region14: #{user_model_forward.19} parent=1 // pred_check
      _
    $region15: #{user_model_forward.19} parent=1 // pred_check_branch
      %18 = sbr.rel (0) target = $region17
    $region16: #{user_model_forward.19} parent=1 // pred_region
      _
    $region17: #{user_model_forward.19} parent=1 // pred_fallthru
      _
    // Predicated region
    $region18: #{user_model_forward.19} parent=1 // pred_check
      _
    $region19: #{user_model_forward.19} parent=1 // pred_check_branch
      %20 = sbr.rel (0) target = $region21
    $region20: #{user_model_forward.19} parent=1 // pred_region
      _
    $region21: #{user_model_forward.19} parent=1 // pred_fallthru
      _
    %v21 = vld [vmem:[%s0] sm:$0xf]
    %v22 = vld [vmem:[%s1] sm:$0xff]
    %v23 = vld [vmem:[%s1 + $0x8] sm:$0xff]
    %v24 = vld [vmem:[%s1 + $0x10] sm:$0xff]
    %v25 = vld [vmem:[%s1 + $0x18] sm:$0xff]
    %v26 = vld [vmem:[%s1 + $0x20] sm:$0xff]
    %v27 = vld [vmem:[%s1 + $0x28] sm:$0xff]
    %v28 = vld [vmem:[%s1 + $0x30] sm:$0xff]
    %v29 = vld [vmem:[%s1 + $0x38] sm:$0xff]
    %v30 = vld [vmem:[%s1 + $0x40] sm:$0xff]
    %v31 = vld [vmem:[%s1 + $0x48] sm:$0xff]
    %v32 = vld [vmem:[%s1 + $0x50] sm:$0xff]
    %v33 = vld [vmem:[%s1 + $0x58] sm:$0xff]
    %v34 = vld [vmem:[%s1 + $0x60] sm:$0xff]
    %v35 = vld [vmem:[%s1 + $0x68] sm:$0xff]
    %v36 = vld [vmem:[%s1 + $0x70] sm:$0xff]
    %v37 = vld [vmem:[%s1 + $0x78] sm:$0xff]
    %v38 = vld [vmem:[%s1 + $0x80] sm:$0xff]
    %v39 = vld [vmem:[%s1 + $0x88] sm:$0xff]
    %v40 = vld [vmem:[%s1 + $0x90] sm:$0xff]
    %v41 = vld [vmem:[%s1 + $0x98] sm:$0xff]
    %v42 = vld [vmem:[%s2] sm:$0x1]
    %v44 = vlaneseq
    %v45 = vshrl.u32 %v44, 7
    %v46 = vsub.s32 0, %v45
    %v47 = vrot.slane %v42, %v46
    %v51 = vunpack.c.l.s4 1983009808
    %v52 = vunpack.c.0.s8 %v51
    %v53 = vlaneseq
    %v54 = vshrl.u32 %v53, 7
    %v55 = vsub.s32 %v52, %v54
    %v56 = vrot.slane %v21, %v55
    %v57 = vcombine.high %v56, %v56
    %vm59 = vcmask 261120
    %v60 = vsel %vm59, %v57, 0
    %62 = vmatprep.subr.mxu0 0.0
    %63 = vmatpush1.msra.mxu0 %v22
    %64 = vmatprep.subr.mxu0 0.0
    %65 = vmatpush1.msra.mxu0 %v23
    %66 = vmatprep.subr.mxu0 0.0
    %67 = vmatpush1.msra.mxu0 %v24
    %68 = vmatprep.subr.mxu0 0.0
    %69 = vmatpush1.msra.mxu0 %v25
    %70 = vmatprep.subr.mxu0 0.0
    %71 = vmatpush1.msra.mxu0 %v26
    %72 = vmatprep.subr.mxu0 0.0
    %73 = vmatpush1.msra.mxu0 %v27
    %74 = vmatprep.subr.mxu0 0.0
    %75 = vmatpush1.msra.mxu0 %v28
    %76 = vmatprep.subr.mxu0 0.0
    %77 = vmatpush1.msra.mxu0 %v29
    %78 = vmatprep.subr.mxu0 0.0
    %79 = vmatpush1.msra.mxu0 %v30
    %80 = vmatprep.subr.mxu0 0.0
    %81 = vmatpush1.msra.mxu0 %v31
    %82 = vmatprep.subr.mxu0 0.0
    %83 = vmatpush1.msra.mxu0 %v32
    %84 = vmatprep.subr.mxu0 0.0
    %85 = vmatpush1.msra.mxu0 %v33
    %86 = vmatprep.subr.mxu0 0.0
    %87 = vmatpush1.msra.mxu0 %v34
    %88 = vmatprep.subr.mxu0 0.0
    %89 = vmatpush1.msra.mxu0 %v35
    %90 = vmatprep.subr.mxu0 0.0
    %91 = vmatpush1.msra.mxu0 %v36
    %92 = vmatprep.subr.mxu0 0.0
    %93 = vmatpush1.msra.mxu0 %v37
    %94 = vmatprep.subr.mxu0 0.0
    %95 = vmatpush1.msra.mxu0 %v38
    %96 = vmatprep.subr.mxu0 0.0
    %97 = vmatpush1.msra.mxu0 %v39
    %98 = vmatprep.subr.mxu0 0.0
    %99 = vmatpush1.msra.mxu0 %v40
    %100 = vmatprep.subr.mxu0 0.0
    %101 = vmatpush1.msra.mxu0 %v41
    %102 = vmatprep.subr.mxu0 0.0
    %103 = vmatpush1.msra.mxu0 0.0
    %104 = vmatprep.subr.mxu0 0.0
    %105 = vmatpush1.msra.mxu0 0.0
    %106 = vmatprep.subr.mxu0 0.0
    %107 = vmatpush1.msra.mxu0 0.0
    %108 = vmatprep.subr.mxu0 0.0
    %109 = vmatpush1.msra.mxu0 0.0
    %110 = vmatprep.subr.mxu0 0.0
    %111 = vmatpush1.msra.mxu0 0.0
    %112 = vmatprep.subr.mxu0 0.0
    %113 = vmatpush1.msra.mxu0 0.0
    %114 = vmatprep.subr.mxu0 0.0
    %115 = vmatpush1.msra.mxu0 0.0
    %116 = vmatprep.subr.mxu0 0.0
    %117 = vmatpush1.msra.mxu0 0.0
    %118 = vmatprep.subr.mxu0 0.0
    %119 = vmatpush1.msra.mxu0 0.0
    %120 = vmatprep.subr.mxu0 0.0
    %121 = vmatpush1.msra.mxu0 0.0
    %122 = vmatprep.subr.mxu0 0.0
    %123 = vmatpush1.msra.mxu0 0.0
    %124 = vmatprep.subr.mxu0 0.0
    %125 = vmatpush1.msra.mxu0 0.0
    %126 = vmatprep.mubr.f32.mxu0 %v60
    %127 = vmatmul.mubr.f32.gmra.mrb[0].mxu0 %v56
    %v128 = vpop.f32.mrb[0].mxu0
    %v129 = vadd.f32 %v47, %v128
    %v130 = vpop.f32.mrb[0].mxu0
    %131 = vdwg.mxu0
    %v132 = vmax.f32 %v129, 0.0
    %v133 = vld [vmem:[%s3] sm:$0xff]
    %v134 = vld [vmem:[%s3 + $0x8] sm:$0xff]
    %v135 = vld [vmem:[%s3 + $0x10] sm:$0xff]
    %v136 = vld [vmem:[%s3 + $0x18] sm:$0xff]
    %v137 = vld [vmem:[%s3 + $0x20] sm:$0xff]
    %v138 = vld [vmem:[%s3 + $0x28] sm:$0xff]
    %v139 = vld [vmem:[%s3 + $0x30] sm:$0xff]
    %v140 = vld [vmem:[%s3 + $0x38] sm:$0xff]
    %v141 = vld [vmem:[%s3 + $0x40] sm:$0xff]
    %v142 = vld [vmem:[%s3 + $0x48] sm:$0xff]
    %v143 = vld [vmem:[%s3 + $0x50] sm:$0xff]
    %v144 = vld [vmem:[%s3 + $0x58] sm:$0xff]
    %v145 = vld [vmem:[%s4] sm:$0x1]
    %v147 = vlaneseq
    %v148 = vshrl.u32 %v147, 7
    %v149 = vsub.s32 0, %v148
    %v150 = vrot.slane %v145, %v149
    %vm152 = vcmask 785408
    %v154 = vsel %vm152, %v132, 0
    %156 = vmatprep.subr.mxu0 0.0
    %157 = vmatpush1.msra.mxu0 %v133
    %158 = vmatprep.subr.mxu0 0.0
    %159 = vmatpush1.msra.mxu0 %v134
    %160 = vmatprep.subr.mxu0 0.0
    %161 = vmatpush1.msra.mxu0 %v135
    %162 = vmatprep.subr.mxu0 0.0
    %163 = vmatpush1.msra.mxu0 %v136
    %164 = vmatprep.subr.mxu0 0.0
    %165 = vmatpush1.msra.mxu0 %v137
    %166 = vmatprep.subr.mxu0 0.0
    %167 = vmatpush1.msra.mxu0 %v138
    %168 = vmatprep.subr.mxu0 0.0
    %169 = vmatpush1.msra.mxu0 %v139
    %170 = vmatprep.subr.mxu0 0.0
    %171 = vmatpush1.msra.mxu0 %v140
    %172 = vmatprep.subr.mxu0 0.0
    %173 = vmatpush1.msra.mxu0 %v141
    %174 = vmatprep.subr.mxu0 0.0
    %175 = vmatpush1.msra.mxu0 %v142
    %176 = vmatprep.subr.mxu0 0.0
    %177 = vmatpush1.msra.mxu0 %v143
    %178 = vmatprep.subr.mxu0 0.0
    %179 = vmatpush1.msra.mxu0 %v144
    %180 = vmatprep.subr.mxu0 0.0
    %181 = vmatpush1.msra.mxu0 0.0
    %182 = vmatprep.subr.mxu0 0.0
    %183 = vmatpush1.msra.mxu0 0.0
    %184 = vmatprep.subr.mxu0 0.0
    %185 = vmatpush1.msra.mxu0 0.0
    %186 = vmatprep.subr.mxu0 0.0
    %187 = vmatpush1.msra.mxu0 0.0
    %188 = vmatprep.subr.mxu0 0.0
    %189 = vmatpush1.msra.mxu0 0.0
    %190 = vmatprep.subr.mxu0 0.0
    %191 = vmatpush1.msra.mxu0 0.0
    %192 = vmatprep.subr.mxu0 0.0
    %193 = vmatpush1.msra.mxu0 0.0
    %194 = vmatprep.subr.mxu0 0.0
    %195 = vmatpush1.msra.mxu0 0.0
    %196 = vmatprep.subr.mxu0 0.0
    %197 = vmatpush1.msra.mxu0 0.0
    %198 = vmatprep.subr.mxu0 0.0
    %199 = vmatpush1.msra.mxu0 0.0
    %200 = vmatprep.subr.mxu0 0.0
    %201 = vmatpush1.msra.mxu0 0.0
    %202 = vmatprep.subr.mxu0 0.0
    %203 = vmatpush1.msra.mxu0 0.0
    %204 = vmatprep.subr.mxu0 0.0
    %205 = vmatpush1.msra.mxu0 0.0
    %206 = vmatprep.subr.mxu0 0.0
    %207 = vmatpush1.msra.mxu0 0.0
    %208 = vmatprep.subr.mxu0 0.0
    %209 = vmatpush1.msra.mxu0 0.0
    %210 = vmatprep.subr.mxu0 0.0
    %211 = vmatpush1.msra.mxu0 0.0
    %212 = vmatprep.subr.mxu0 0.0
    %213 = vmatpush1.msra.mxu0 0.0
    %214 = vmatprep.subr.mxu0 0.0
    %215 = vmatpush1.msra.mxu0 0.0
    %216 = vmatprep.subr.mxu0 0.0
    %217 = vmatpush1.msra.mxu0 0.0
    %218 = vmatprep.subr.mxu0 0.0
    %219 = vmatpush1.msra.mxu0 0.0
    %220 = vmatprep.mubr.f32.mxu0 0.0
    %221 = vmatmul.mubr.f32.gmra.mrb[0].mxu0 %v154
    %v222 = vpop.f32.mrb[0].mxu0
    %v223 = vadd.f32 %v150, %v222
    %v224 = vpop.f32.mrb[0].mxu0
    %225 = vdwg.mxu0
    %v226 = vmax.f32 %v223, 0.0
    %vm227 = vcmask 254976
    %228 = vst.msk [vmem:[#allocation2] sm:$0x3] %vm227, %v226
    // Predicated region
    $region22: #{user_model_forward.19} parent=1 // pred_check
      _
    $region23: #{user_model_forward.19} parent=1 // pred_check_branch
      %230 = sbr.rel (0) target = $region25
    $region24: #{user_model_forward.19} parent=1 // pred_region
      %s232 = ssub.s32 32, 32
      %233 = vsyncadd [#allocation3], %s232
      %s235 = sshll.u32 [#allocation2], 4
      %s236 = int_to_ptr.vmem [resolvable:$true] %s235
      %238 = dma.vmem_to_hbm [thread:$0]  %s236, 32, %s5, [#allocation3]
    $region25: #{user_model_forward.19} parent=1 // pred_fallthru
      _
    // Predicated region
    $region26: #{user_model_forward.19} parent=1 // pred_check
      _
    $region27: #{user_model_forward.19} parent=1 // pred_check_branch
      %240 = sbr.rel (0) target = $region29
    $region28: #{user_model_forward.19} parent=1 // pred_region
      %241 = dma.done [#allocation3], 32
    $region29: #{user_model_forward.19} parent=1 // pred_fallthru
      _
    %242 = vsyncpa [#allocation3], 1

// kernel: user_model_forward.16
$region0: #{user_model_forward.16}
  #allocation0 [shape = 'u32[]', space=smem, size = 0x4, offset = 0x4, fixed_abs, tag = 'smem constant byte address 0x4 - core index']
  #allocation1 [shape = 'u32[144,128]{1,0:T(1,128)}', space=vmem, size = 0x12000, scoped, tag = 'internal scratch']
  #allocation2 [shape = 'f32[1,1]{1,0:T(1,128)S(1)}', space=vmem, size = 0x200, scoped, tag = 'scoped memory for user_model_forward.16']
  %s0 = inlined_call_operand.vmem [shape: f32[6,32], index: 0, kind: input, shape index: {}]
  %s1 = inlined_call_operand.vmem [shape: f32[6,32], index: 1, kind: input, shape index: {}]
  %s2 = inlined_call_operand.vmem [shape: f32[6,1], index: 2, kind: input, shape index: {}]
  %s3 = inlined_call_operand.vmem [shape: f32[32,32], index: 3, kind: input, shape index: {}]
  %s4 = inlined_call_operand.vmem [shape: f32[1,32], index: 4, kind: input, shape index: {}]
  %s5 = inlined_call_operand.vmem [shape: f32[32,32], index: 5, kind: input, shape index: {}]
  %s6 = inlined_call_operand.vmem [shape: f32[32,32], index: 6, kind: input, shape index: {}]
  %s7 = inlined_call_operand.vmem [shape: f32[1,32], index: 7, kind: input, shape index: {}]
  %s8 = inlined_call_operand.vmem [shape: f32[1,32], index: 8, kind: input, shape index: {}]
  %s9 = inlined_call_operand.<no memory space> [shape: f32[1,1], index: 9, kind: input, shape index: {}]
  %s10 = inlined_call_operand.vmem [shape: f32[32,32], index: 10, kind: input, shape index: {}]
  %s11 = inlined_call_operand.vmem [shape: f32[1,32], index: 11, kind: input, shape index: {}]
  %s12 = inlined_call_operand.vmem [shape: f32[2,32], index: 12, kind: output, shape index: {}]
  %s13 = sld [smem:[#allocation0]]
  $region58: #{user_model_forward.16} parent=0
    _
  %s15 = ssub.s32 1, %s13
  %s16 = scalar_select 0, %s15, %s13
  %v17 = vstv %s9
  %18 = vst [vmem:[#allocation2] sm:$0x1] %v17
  // Predicated region
  $region2: #{user_model_forward.16} parent=0 // pred_check
    _
  $region3: #{user_model_forward.16} parent=0 // pred_check_branch
    %20 = sbr.rel (0) target = $region5
  $region4: #{user_model_forward.16} parent=0 // pred_region
    _
  $region5: #{user_model_forward.16} parent=0 // pred_fallthru
    _
  // Predicated region
  $region6: #{user_model_forward.16} parent=0 // pred_check
    _
  $region7: #{user_model_forward.16} parent=0 // pred_check_branch
    %22 = sbr.rel (0) target = $region9
  $region8: #{user_model_forward.16} parent=0 // pred_region
    _
  $region9: #{user_model_forward.16} parent=0 // pred_fallthru
    _
  // Predicated region
  $region10: #{user_model_forward.16} parent=0 // pred_check
    _
  $region11: #{user_model_forward.16} parent=0 // pred_check_branch
    %24 = sbr.rel (0) target = $region13
  $region12: #{user_model_forward.16} parent=0 // pred_region
    _
  $region13: #{user_model_forward.16} parent=0 // pred_fallthru
    _
  // Predicated region
  $region14: #{user_model_forward.16} parent=0 // pred_check
    _
  $region15: #{user_model_forward.16} parent=0 // pred_check_branch
    %26 = sbr.rel (0) target = $region17
  $region16: #{user_model_forward.16} parent=0 // pred_region
    _
  $region17: #{user_model_forward.16} parent=0 // pred_fallthru
    _
  // Predicated region
  $region18: #{user_model_forward.16} parent=0 // pred_check
    _
  $region19: #{user_model_forward.16} parent=0 // pred_check_branch
    %28 = sbr.rel (0) target = $region21
  $region20: #{user_model_forward.16} parent=0 // pred_region
    _
  $region21: #{user_model_forward.16} parent=0 // pred_fallthru
    _
  // Predicated region
  $region22: #{user_model_forward.16} parent=0 // pred_check
    _
  $region23: #{user_model_forward.16} parent=0 // pred_check_branch
    %30 = sbr.rel (0) target = $region25
  $region24: #{user_model_forward.16} parent=0 // pred_region
    _
  $region25: #{user_model_forward.16} parent=0 // pred_fallthru
    _
  // Predicated region
  $region26: #{user_model_forward.16} parent=0 // pred_check
    _
  $region27: #{user_model_forward.16} parent=0 // pred_check_branch
    %32 = sbr.rel (0) target = $region29
  $region28: #{user_model_forward.16} parent=0 // pred_region
    _
  $region29: #{user_model_forward.16} parent=0 // pred_fallthru
    _
  // Predicated region
  $region30: #{user_model_forward.16} parent=0 // pred_check
    _
  $region31: #{user_model_forward.16} parent=0 // pred_check_branch
    %34 = sbr.rel (0) target = $region33
  $region32: #{user_model_forward.16} parent=0 // pred_region
    _
  $region33: #{user_model_forward.16} parent=0 // pred_fallthru
    _
  // Predicated region
  $region34: #{user_model_forward.16} parent=0 // pred_check
    _
  $region35: #{user_model_forward.16} parent=0 // pred_check_branch
    %36 = sbr.rel (0) target = $region37
  $region36: #{user_model_forward.16} parent=0 // pred_region
    _
  $region37: #{user_model_forward.16} parent=0 // pred_fallthru
    _
  // Predicated region
  $region38: #{user_model_forward.16} parent=0 // pred_check
    _
  $region39: #{user_model_forward.16} parent=0 // pred_check_branch
    %38 = sbr.rel (0) target = $region41
  $region40: #{user_model_forward.16} parent=0 // pred_region
    _
  $region41: #{user_model_forward.16} parent=0 // pred_fallthru
    _
  // Predicated region
  $region42: #{user_model_forward.16} parent=0 // pred_check
    _
  $region43: #{user_model_forward.16} parent=0 // pred_check_branch
    %40 = sbr.rel (0) target = $region45
  $region44: #{user_model_forward.16} parent=0 // pred_region
    _
  $region45: #{user_model_forward.16} parent=0 // pred_fallthru
    _
  // Predicated region
  $region46: #{user_model_forward.16} parent=0 // pred_check
    _
  $region47: #{user_model_forward.16} parent=0 // pred_check_branch
    %42 = sbr.rel (0) target = $region49
  $region48: #{user_model_forward.16} parent=0 // pred_region
    _
  $region49: #{user_model_forward.16} parent=0 // pred_fallthru
    _
  %v43 = vld [vmem:[%s0] sm:$0x3f]
  %v44 = vld [vmem:[%s1] sm:$0x3f]
  %v45 = vld [vmem:[%s3] sm:$0xff]
  %v46 = vld [vmem:[%s3 + $0x8] sm:$0xff]
  %v47 = vld [vmem:[%s3 + $0x10] sm:$0xff]
  %v48 = vld [vmem:[%s3 + $0x18] sm:$0xff]
  %v49 = vld [vmem:[%s4] sm:$0x1]
  %v51 = vlaneseq
  %v52 = vshrl.u32 %v51, 7
  %v53 = vsub.s32 0, %v52
  %v54 = vrot.slane %v49, %v53
  %vm56 = vcmask 261120
  %v58 = vsel %vm56, %v43, 0
  %60 = vmatprep.subr.mxu0 0.0
  %61 = vmatpush1.msra.mxu0 %v45
  %62 = vmatprep.subr.mxu0 0.0
  %63 = vmatpush1.msra.mxu0 %v46
  %64 = vmatprep.subr.mxu0 0.0
  %65 = vmatpush1.msra.mxu0 %v47
  %66 = vmatprep.subr.mxu0 0.0
  %67 = vmatpush1.msra.mxu0 %v48
  %68 = vmatprep.subr.mxu0 0.0
  %69 = vmatpush1.msra.mxu0 0.0
  %70 = vmatprep.subr.mxu0 0.0
  %71 = vmatpush1.msra.mxu0 0.0
  %72 = vmatprep.subr.mxu0 0.0
  %73 = vmatpush1.msra.mxu0 0.0
  %74 = vmatprep.subr.mxu0 0.0
  %75 = vmatpush1.msra.mxu0 0.0
  %76 = vmatprep.subr.mxu0 0.0
  %77 = vmatpush1.msra.mxu0 0.0
  %78 = vmatprep.subr.mxu0 0.0
  %79 = vmatpush1.msra.mxu0 0.0
  %80 = vmatprep.subr.mxu0 0.0
  %81 = vmatpush1.msra.mxu0 0.0
  %82 = vmatprep.subr.mxu0 0.0
  %83 = vmatpush1.msra.mxu0 0.0
  %84 = vmatprep.subr.mxu0 0.0
  %85 = vmatpush1.msra.mxu0 0.0
  %86 = vmatprep.subr.mxu0 0.0
  %87 = vmatpush1.msra.mxu0 0.0
  %88 = vmatprep.subr.mxu0 0.0
  %89 = vmatpush1.msra.mxu0 0.0
  %90 = vmatprep.subr.mxu0 0.0
  %91 = vmatpush1.msra.mxu0 0.0
  %92 = vmatprep.subr.mxu0 0.0
  %93 = vmatpush1.msra.mxu0 0.0
  %94 = vmatprep.subr.mxu0 0.0
  %95 = vmatpush1.msra.mxu0 0.0
  %96 = vmatprep.subr.mxu0 0.0
  %97 = vmatpush1.msra.mxu0 0.0
  %98 = vmatprep.subr.mxu0 0.0
  %99 = vmatpush1.msra.mxu0 0.0
  %100 = vmatprep.subr.mxu0 0.0
  %101 = vmatpush1.msra.mxu0 0.0
  %102 = vmatprep.subr.mxu0 0.0
  %103 = vmatpush1.msra.mxu0 0.0
  %104 = vmatprep.subr.mxu0 0.0
  %105 = vmatpush1.msra.mxu0 0.0
  %106 = vmatprep.subr.mxu0 0.0
  %107 = vmatpush1.msra.mxu0 0.0
  %108 = vmatprep.subr.mxu0 0.0
  %109 = vmatpush1.msra.mxu0 0.0
  %110 = vmatprep.subr.mxu0 0.0
  %111 = vmatpush1.msra.mxu0 0.0
  %112 = vmatprep.subr.mxu0 0.0
  %113 = vmatpush1.msra.mxu0 0.0
  %114 = vmatprep.subr.mxu0 0.0
  %115 = vmatpush1.msra.mxu0 0.0
  %116 = vmatprep.subr.mxu0 0.0
  %117 = vmatpush1.msra.mxu0 0.0
  %118 = vmatprep.subr.mxu0 0.0
  %119 = vmatpush1.msra.mxu0 0.0
  %120 = vmatprep.subr.mxu0 0.0
  %121 = vmatpush1.msra.mxu0 0.0
  %122 = vmatprep.subr.mxu0 0.0
  %123 = vmatpush1.msra.mxu0 0.0
  %124 = vmatprep.mubr.f32.mxu0 0.0
  %125 = vmatmul.mubr.f32.gmra.mrb[0].mxu0 %v58
  %v126 = vpop.f32.mrb[0].mxu0
  %v127 = vadd.f32 %v54, %v126
  %v128 = vpop.f32.mrb[0].mxu0
  %129 = vdwg.mxu0
  %v131 = vsel %vm56, %v44, 0
  %133 = vmatprep.subr.mxu0 0.0
  %134 = vmatpush1.msra.mxu0 %v45
  %135 = vmatprep.subr.mxu0 0.0
  %136 = vmatpush1.msra.mxu0 %v46
  %137 = vmatprep.subr.mxu0 0.0
  %138 = vmatpush1.msra.mxu0 %v47
  %139 = vmatprep.subr.mxu0 0.0
  %140 = vmatpush1.msra.mxu0 %v48
  %141 = vmatprep.subr.mxu0 0.0
  %142 = vmatpush1.msra.mxu0 0.0
  %143 = vmatprep.subr.mxu0 0.0
  %144 = vmatpush1.msra.mxu0 0.0
  %145 = vmatprep.subr.mxu0 0.0
  %146 = vmatpush1.msra.mxu0 0.0
  %147 = vmatprep.subr.mxu0 0.0
  %148 = vmatpush1.msra.mxu0 0.0
  %149 = vmatprep.subr.mxu0 0.0
  %150 = vmatpush1.msra.mxu0 0.0
  %151 = vmatprep.subr.mxu0 0.0
  %152 = vmatpush1.msra.mxu0 0.0
  %153 = vmatprep.subr.mxu0 0.0
  %154 = vmatpush1.msra.mxu0 0.0
  %155 = vmatprep.subr.mxu0 0.0
  %156 = vmatpush1.msra.mxu0 0.0
  %157 = vmatprep.subr.mxu0 0.0
  %158 = vmatpush1.msra.mxu0 0.0
  %159 = vmatprep.subr.mxu0 0.0
  %160 = vmatpush1.msra.mxu0 0.0
  %161 = vmatprep.subr.mxu0 0.0
  %162 = vmatpush1.msra.mxu0 0.0
  %163 = vmatprep.subr.mxu0 0.0
  %164 = vmatpush1.msra.mxu0 0.0
  %165 = vmatprep.subr.mxu0 0.0
  %166 = vmatpush1.msra.mxu0 0.0
  %167 = vmatprep.subr.mxu0 0.0
  %168 = vmatpush1.msra.mxu0 0.0
  %169 = vmatprep.subr.mxu0 0.0
  %170 = vmatpush1.msra.mxu0 0.0
  %171 = vmatprep.subr.mxu0 0.0
  %172 = vmatpush1.msra.mxu0 0.0
  %173 = vmatprep.subr.mxu0 0.0
  %174 = vmatpush1.msra.mxu0 0.0
  %175 = vmatprep.subr.mxu0 0.0
  %176 = vmatpush1.msra.mxu0 0.0
  %177 = vmatprep.subr.mxu0 0.0
  %178 = vmatpush1.msra.mxu0 0.0
  %179 = vmatprep.subr.mxu0 0.0
  %180 = vmatpush1.msra.mxu0 0.0
  %181 = vmatprep.subr.mxu0 0.0
  %182 = vmatpush1.msra.mxu0 0.0
  %183 = vmatprep.subr.mxu0 0.0
  %184 = vmatpush1.msra.mxu0 0.0
  %185 = vmatprep.subr.mxu0 0.0
  %186 = vmatpush1.msra.mxu0 0.0
  %187 = vmatprep.subr.mxu0 0.0
  %188 = vmatpush1.msra.mxu0 0.0
  %189 = vmatprep.subr.mxu0 0.0
  %190 = vmatpush1.msra.mxu0 0.0
  %191 = vmatprep.subr.mxu0 0.0
  %192 = vmatpush1.msra.mxu0 0.0
  %193 = vmatprep.subr.mxu0 0.0
  %194 = vmatpush1.msra.mxu0 0.0
  %195 = vmatprep.subr.mxu0 0.0
  %196 = vmatpush1.msra.mxu0 0.0
  %197 = vmatprep.mubr.f32.mxu0 0.0
  %198 = vmatmul.mubr.f32.gmra.mrb[0].mxu0 %v131
  %v199 = vpop.f32.mrb[0].mxu0
  %v200 = vadd.f32 %v54, %v199
  %v201 = vpop.f32.mrb[0].mxu0
  %202 = vdwg.mxu0
  %v203 = vld [vmem:[%s5] sm:$0xff]
  %v204 = vld [vmem:[%s5 + $0x8] sm:$0xff]
  %v205 = vld [vmem:[%s5 + $0x10] sm:$0xff]
  %v206 = vld [vmem:[%s5 + $0x18] sm:$0xff]
  %v207 = vld [vmem:[%s6] sm:$0xff]
  %v208 = vld [vmem:[%s6 + $0x8] sm:$0xff]
  %v209 = vld [vmem:[%s6 + $0x10] sm:$0xff]
  %v210 = vld [vmem:[%s6 + $0x18] sm:$0xff]
  %v212 = vsel %vm56, %v200, 0
  %214 = vmatprep.subr.mxu0 0.0
  %215 = vmatpush1.msra.mxu0 %v207
  %216 = vmatprep.subr.mxu0 0.0
  %217 = vmatpush1.msra.mxu0 %v208
  %218 = vmatprep.subr.mxu0 0.0
  %219 = vmatpush1.msra.mxu0 %v209
  %220 = vmatprep.subr.mxu0 0.0
  %221 = vmatpush1.msra.mxu0 %v210
  %222 = vmatprep.subr.mxu0 0.0
  %223 = vmatpush1.msra.mxu0 0.0
  %224 = vmatprep.subr.mxu0 0.0
  %225 = vmatpush1.msra.mxu0 0.0
  %226 = vmatprep.subr.mxu0 0.0
  %227 = vmatpush1.msra.mxu0 0.0
  %228 = vmatprep.subr.mxu0 0.0
  %229 = vmatpush1.msra.mxu0 0.0
  %230 = vmatprep.subr.mxu0 0.0
  %231 = vmatpush1.msra.mxu0 0.0
  %232 = vmatprep.subr.mxu0 0.0
  %233 = vmatpush1.msra.mxu0 0.0
  %234 = vmatprep.subr.mxu0 0.0
  %235 = vmatpush1.msra.mxu0 0.0
  %236 = vmatprep.subr.mxu0 0.0
  %237 = vmatpush1.msra.mxu0 0.0
  %238 = vmatprep.subr.mxu0 0.0
  %239 = vmatpush1.msra.mxu0 0.0
  %240 = vmatprep.subr.mxu0 0.0
  %241 = vmatpush1.msra.mxu0 0.0
  %242 = vmatprep.subr.mxu0 0.0
  %243 = vmatpush1.msra.mxu0 0.0
  %244 = vmatprep.subr.mxu0 0.0
  %245 = vmatpush1.msra.mxu0 0.0
  %246 = vmatprep.subr.mxu0 0.0
  %247 = vmatpush1.msra.mxu0 0.0
  %248 = vmatprep.subr.mxu0 0.0
  %249 = vmatpush1.msra.mxu0 0.0
  %250 = vmatprep.subr.mxu0 0.0
  %251 = vmatpush1.msra.mxu0 0.0
  %252 = vmatprep.subr.mxu0 0.0
  %253 = vmatpush1.msra.mxu0 0.0
  %254 = vmatprep.subr.mxu0 0.0
  %255 = vmatpush1.msra.mxu0 0.0
  %256 = vmatprep.subr.mxu0 0.0
  %257 = vmatpush1.msra.mxu0 0.0
  %258 = vmatprep.subr.mxu0 0.0
  %259 = vmatpush1.msra.mxu0 0.0
  %260 = vmatprep.subr.mxu0 0.0
  %261 = vmatpush1.msra.mxu0 0.0
  %262 = vmatprep.subr.mxu0 0.0
  %263 = vmatpush1.msra.mxu0 0.0
  %264 = vmatprep.subr.mxu0 0.0
  %265 = vmatpush1.msra.mxu0 0.0
  %266 = vmatprep.subr.mxu0 0.0
  %267 = vmatpush1.msra.mxu0 0.0
  %268 = vmatprep.subr.mxu0 0.0
  %269 = vmatpush1.msra.mxu0 0.0
  %270 = vmatprep.subr.mxu0 0.0
  %271 = vmatpush1.msra.mxu0 0.0
  %272 = vmatprep.subr.mxu0 0.0
  %273 = vmatpush1.msra.mxu0 0.0
  %274 = vmatprep.subr.mxu0 0.0
  %275 = vmatpush1.msra.mxu0 0.0
  %276 = vmatprep.subr.mxu0 0.0
  %277 = vmatpush1.msra.mxu0 0.0
  %278 = vmatprep.mubr.f32.mxu0 0.0
  %279 = vmatmul.mubr.f32.gmra.mrb[0].mxu0 %v212
  %v280 = vpop.f32.mrb[0].mxu0
  %v281 = vadd.f32 0.0, %v280
  %v282 = vpop.f32.mrb[0].mxu0
  %283 = vdwg.mxu0
  %v285 = vsel %vm56, %v127, 0
  %287 = vmatprep.subr.mxu0 0.0
  %288 = vmatpush1.msra.mxu0 %v203
  %289 = vmatprep.subr.mxu0 0.0
  %290 = vmatpush1.msra.mxu0 %v204
  %291 = vmatprep.subr.mxu0 0.0
  %292 = vmatpush1.msra.mxu0 %v205
  %293 = vmatprep.subr.mxu0 0.0
  %294 = vmatpush1.msra.mxu0 %v206
  %295 = vmatprep.subr.mxu0 0.0
  %296 = vmatpush1.msra.mxu0 0.0
  %297 = vmatprep.subr.mxu0 0.0
  %298 = vmatpush1.msra.mxu0 0.0
  %299 = vmatprep.subr.mxu0 0.0
  %300 = vmatpush1.msra.mxu0 0.0
  %301 = vmatprep.subr.mxu0 0.0
  %302 = vmatpush1.msra.mxu0 0.0
  %303 = vmatprep.subr.mxu0 0.0
  %304 = vmatpush1.msra.mxu0 0.0
  %305 = vmatprep.subr.mxu0 0.0
  %306 = vmatpush1.msra.mxu0 0.0
  %307 = vmatprep.subr.mxu0 0.0
  %308 = vmatpush1.msra.mxu0 0.0
  %309 = vmatprep.subr.mxu0 0.0
  %310 = vmatpush1.msra.mxu0 0.0
  %311 = vmatprep.subr.mxu0 0.0
  %312 = vmatpush1.msra.mxu0 0.0
  %313 = vmatprep.subr.mxu0 0.0
  %314 = vmatpush1.msra.mxu0 0.0
  %315 = vmatprep.subr.mxu0 0.0
  %316 = vmatpush1.msra.mxu0 0.0
  %317 = vmatprep.subr.mxu0 0.0
  %318 = vmatpush1.msra.mxu0 0.0
  %319 = vmatprep.subr.mxu0 0.0
  %320 = vmatpush1.msra.mxu0 0.0
  %321 = vmatprep.subr.mxu0 0.0
  %322 = vmatpush1.msra.mxu0 0.0
  %323 = vmatprep.subr.mxu0 0.0
  %324 = vmatpush1.msra.mxu0 0.0
  %325 = vmatprep.subr.mxu0 0.0
  %326 = vmatpush1.msra.mxu0 0.0
  %327 = vmatprep.subr.mxu0 0.0
  %328 = vmatpush1.msra.mxu0 0.0
  %329 = vmatprep.subr.mxu0 0.0
  %330 = vmatpush1.msra.mxu0 0.0
  %331 = vmatprep.subr.mxu0 0.0
  %332 = vmatpush1.msra.mxu0 0.0
  %333 = vmatprep.subr.mxu0 0.0
  %334 = vmatpush1.msra.mxu0 0.0
  %335 = vmatprep.subr.mxu0 0.0
  %336 = vmatpush1.msra.mxu0 0.0
  %337 = vmatprep.subr.mxu0 0.0
  %338 = vmatpush1.msra.mxu0 0.0
  %339 = vmatprep.subr.mxu0 0.0
  %340 = vmatpush1.msra.mxu0 0.0
  %341 = vmatprep.subr.mxu0 0.0
  %342 = vmatpush1.msra.mxu0 0.0
  %343 = vmatprep.subr.mxu0 0.0
  %344 = vmatpush1.msra.mxu0 0.0
  %345 = vmatprep.subr.mxu0 0.0
  %346 = vmatpush1.msra.mxu0 0.0
  %347 = vmatprep.subr.mxu0 0.0
  %348 = vmatpush1.msra.mxu0 0.0
  %349 = vmatprep.subr.mxu0 0.0
  %350 = vmatpush1.msra.mxu0 0.0
  %351 = vmatprep.mubr.f32.mxu0 0.0
  %352 = vmatmul.mubr.f32.gmra.mrb[0].mxu0 %v285
  %v353 = vpop.f32.mrb[0].mxu0
  %v354 = vadd.f32 %v281, %v353
  %v355 = vpop.f32.mrb[0].mxu0
  %356 = vdwg.mxu0
  %v357 = vld [vmem:[%s7] sm:$0x1]
  %v359 = vlaneseq
  %v360 = vshrl.u32 %v359, 7
  %v361 = vsub.s32 0, %v360
  %v362 = vrot.slane %v357, %v361
  %v364 = vadd.f32 %v354, %v362
  %vm365 = vcmp.ge.f32.partialorder %v364, 0.0
  %v366 = vmul.f32 %v364, 0.2
  %v367 = vsel %vm365, %v364, %v366
  %v368 = vld [vmem:[%s8] sm:$0x1]
  %v370 = vlaneseq
  %v371 = vshrl.u32 %v370, 7
  %v372 = vsub.s32 0, %v371
  %v373 = vrot.slane %v368, %v372
  %v375 = vmul.f32 %v367, %v373
  %vm376 = vcmask 259072
  %v377 = vsel %vm376, %v375, 0.0
  %378 = vadd.xlane.f32.xlu0 %v377
  %v379 = vpop.xlane.xlu0 %378
  %v380 = vld [vmem:[#allocation2] sm:$0x1]
  %v382 = vlaneseq
  %v383 = vshrl.u32 %v382, 7
  %v384 = vsub.s32 0, %v383
  %v385 = vrot.slane %v380, %v384
  %v387 = vadd.f32 %v379, %v385
  %v388 = vld [vmem:[%s2] sm:$0x3f]
  %vm389 = vcmp.gt.f32.partialorder %v388, 0.0
  %v390 = vsel %vm389, %v387, -1e+30
  %vm391 = vcmask 5120
  %v392 = vsel %vm391, %v390, -inf
  %v393 = vrot.slane %v392, 4
  %v394 = vmax.f32 %v392, %v393
  %v395 = vrot.slane %v394, 2
  %v396 = vmax.f32 %v394, %v395
  %v397 = vrot.slane %v396, 1
  %v398 = vmax.f32 %v396, %v397
  %v399 = vmax.f32 %v398, 0.0
  %v400 = vsub.f32 %v390, %v399
  %v401 = vmul.f32 %v400, 1.442695
  %v402 = vpow.pop %v401
  %v403 = vmul.f32 %v402, %v388
  %v404 = vlaneseq
  %v405 = vshrl.u32 %v404, 7
  %v406 = vlaneseq
  %v407 = vand.u32 %v406, 127
  %v408 = vmul.u32 %v405, 3
  %vm409 = vcmp.ge.s32.totalorder %v407, %v408
  %v410 = vadd.s32 %v408, 3
  %vm411 = vcmp.lt.s32.totalorder %v407, %v410
  %vm412 = vmand %vm409, %vm411
  %v413 = vsel %vm412, 1, 0
  %v414 = vcvt.s32.f32 %v413
  %416 = vset.pattern.permute.xlu0 0
  %417 = vperm.xlu0 %416, %v403
  %v418 = vpop.permute.xlu0 %417
  %v420 = vmul.f32 %v418, %v127
  %vm421 = vcmask 48128
  %v423 = vsel %vm421, %v414, 0
  %vm425 = vcmask 1045504
  %v427 = vsel %vm425, %v420, 0
  %429 = vmatprep.subr.mxu0 0.0
  %430 = vmatpush1.msra.mxu0 %v427
  %431 = vmatprep.subr.mxu0 0.0
  %432 = vmatpush1.msra.mxu0 0.0
  %433 = vmatprep.subr.mxu0 0.0
  %434 = vmatpush1.msra.mxu0 0.0
  %435 = vmatprep.subr.mxu0 0.0
  %436 = vmatpush1.msra.mxu0 0.0
  %437 = vmatprep.subr.mxu0 0.0
  %438 = vmatpush1.msra.mxu0 0.0
  %439 = vmatprep.subr.mxu0 0.0
  %440 = vmatpush1.msra.mxu0 0.0
  %441 = vmatprep.subr.mxu0 0.0
  %442 = vmatpush1.msra.mxu0 0.0
  %443 = vmatprep.subr.mxu0 0.0
  %444 = vmatpush1.msra.mxu0 0.0
  %445 = vmatprep.subr.mxu0 0.0
  %446 = vmatpush1.msra.mxu0 0.0
  %447 = vmatprep.subr.mxu0 0.0
  %448 = vmatpush1.msra.mxu0 0.0
  %449 = vmatprep.subr.mxu0 0.0
  %450 = vmatpush1.msra.mxu0 0.0
  %451 = vmatprep.subr.mxu0 0.0
  %452 = vmatpush1.msra.mxu0 0.0
  %453 = vmatprep.subr.mxu0 0.0
  %454 = vmatpush1.msra.mxu0 0.0
  %455 = vmatprep.subr.mxu0 0.0
  %456 = vmatpush1.msra.mxu0 0.0
  %457 = vmatprep.subr.mxu0 0.0
  %458 = vmatpush1.msra.mxu0 0.0
  %459 = vmatprep.subr.mxu0 0.0
  %460 = vmatpush1.msra.mxu0 0.0
  %461 = vmatprep.subr.mxu0 0.0
  %462 = vmatpush1.msra.mxu0 0.0
  %463 = vmatprep.subr.mxu0 0.0
  %464 = vmatpush1.msra.mxu0 0.0
  %465 = vmatprep.subr.mxu0 0.0
  %466 = vmatpush1.msra.mxu0 0.0
  %467 = vmatprep.subr.mxu0 0.0
  %468 = vmatpush1.msra.mxu0 0.0
  %469 = vmatprep.subr.mxu0 0.0
  %470 = vmatpush1.msra.mxu0 0.0
  %471 = vmatprep.subr.mxu0 0.0
  %472 = vmatpush1.msra.mxu0 0.0
  %473 = vmatprep.subr.mxu0 0.0
  %474 = vmatpush1.msra.mxu0 0.0
  %475 = vmatprep.subr.mxu0 0.0
  %476 = vmatpush1.msra.mxu0 0.0
  %477 = vmatprep.subr.mxu0 0.0
  %478 = vmatpush1.msra.mxu0 0.0
  %479 = vmatprep.subr.mxu0 0.0
  %480 = vmatpush1.msra.mxu0 0.0
  %481 = vmatprep.subr.mxu0 0.0
  %482 = vmatpush1.msra.mxu0 0.0
  %483 = vmatprep.subr.mxu0 0.0
  %484 = vmatpush1.msra.mxu0 0.0
  %485 = vmatprep.subr.mxu0 0.0
  %486 = vmatpush1.msra.mxu0 0.0
  %487 = vmatprep.subr.mxu0 0.0
  %488 = vmatpush1.msra.mxu0 0.0
  %489 = vmatprep.subr.mxu0 0.0
  %490 = vmatpush1.msra.mxu0 0.0
  %491 = vmatprep.subr.mxu0 0.0
  %492 = vmatpush1.msra.mxu0 0.0
  %493 = vmatprep.mubr.f32.mxu0 0.0
  %494 = vmatmul.mubr.f32.gmra.mrb[0].mxu0 %v423
  %v495 = vpop.f32.mrb[0].mxu0
  %v496 = vadd.f32 0.0, %v495
  %v497 = vpop.f32.mrb[0].mxu0
  %498 = vdwg.mxu0
  %v499 = vsel %vm425, %v403, 0
  %501 = vmatprep.subr.mxu0 0.0
  %502 = vmatpush1.msra.mxu0 %v499
  %503 = vmatprep.subr.mxu0 0.0
  %504 = vmatpush1.msra.mxu0 0.0
  %505 = vmatprep.subr.mxu0 0.0
  %506 = vmatpush1.msra.mxu0 0.0
  %507 = vmatprep.subr.mxu0 0.0
  %508 = vmatpush1.msra.mxu0 0.0
  %509 = vmatprep.subr.mxu0 0.0
  %510 = vmatpush1.msra.mxu0 0.0
  %511 = vmatprep.subr.mxu0 0.0
  %512 = vmatpush1.msra.mxu0 0.0
  %513 = vmatprep.subr.mxu0 0.0
  %514 = vmatpush1.msra.mxu0 0.0
  %515 = vmatprep.subr.mxu0 0.0
  %516 = vmatpush1.msra.mxu0 0.0
  %517 = vmatprep.subr.mxu0 0.0
  %518 = vmatpush1.msra.mxu0 0.0
  %519 = vmatprep.subr.mxu0 0.0
  %520 = vmatpush1.msra.mxu0 0.0
  %521 = vmatprep.subr.mxu0 0.0
  %522 = vmatpush1.msra.mxu0 0.0
  %523 = vmatprep.subr.mxu0 0.0
  %524 = vmatpush1.msra.mxu0 0.0
  %525 = vmatprep.subr.mxu0 0.0
  %526 = vmatpush1.msra.mxu0 0.0
  %527 = vmatprep.subr.mxu0 0.0
  %528 = vmatpush1.msra.mxu0 0.0
  %529 = vmatprep.subr.mxu0 0.0
  %530 = vmatpush1.msra.mxu0 0.0
  %531 = vmatprep.subr.mxu0 0.0
  %532 = vmatpush1.msra.mxu0 0.0
  %533 = vmatprep.subr.mxu0 0.0
  %534 = vmatpush1.msra.mxu0 0.0
  %535 = vmatprep.subr.mxu0 0.0
  %536 = vmatpush1.msra.mxu0 0.0
  %537 = vmatprep.subr.mxu0 0.0
  %538 = vmatpush1.msra.mxu0 0.0
  %539 = vmatprep.subr.mxu0 0.0
  %540 = vmatpush1.msra.mxu0 0.0
  %541 = vmatprep.subr.mxu0 0.0
  %542 = vmatpush1.msra.mxu0 0.0
  %543 = vmatprep.subr.mxu0 0.0
  %544 = vmatpush1.msra.mxu0 0.0
  %545 = vmatprep.subr.mxu0 0.0
  %546 = vmatpush1.msra.mxu0 0.0
  %547 = vmatprep.subr.mxu0 0.0
  %548 = vmatpush1.msra.mxu0 0.0
  %549 = vmatprep.subr.mxu0 0.0
  %550 = vmatpush1.msra.mxu0 0.0
  %551 = vmatprep.subr.mxu0 0.0
  %552 = vmatpush1.msra.mxu0 0.0
  %553 = vmatprep.subr.mxu0 0.0
  %554 = vmatpush1.msra.mxu0 0.0
  %555 = vmatprep.subr.mxu0 0.0
  %556 = vmatpush1.msra.mxu0 0.0
  %557 = vmatprep.subr.mxu0 0.0
  %558 = vmatpush1.msra.mxu0 0.0
  %559 = vmatprep.subr.mxu0 0.0
  %560 = vmatpush1.msra.mxu0 0.0
  %561 = vmatprep.subr.mxu0 0.0
  %562 = vmatpush1.msra.mxu0 0.0
  %563 = vmatprep.subr.mxu0 0.0
  %564 = vmatpush1.msra.mxu0 0.0
  %565 = vmatprep.mubr.f32.mxu0 0.0
  %566 = vmatmul.mubr.f32.gmra.mrb[0].mxu0 %v423
  %v567 = vpop.f32.mrb[0].mxu0
  %v568 = vadd.f32 1e-10, %v567
  %v569 = vpop.f32.mrb[0].mxu0
  %570 = vdwg.mxu0
  %v571 = vrcp.pop %v568
  %573 = vset.pattern.permute.xlu0 0
  %574 = vperm.xlu0 %573, %v571
  %v575 = vpop.permute.xlu0 %574
  %v577 = vmul.f32 %v496, %v575
  %v578 = vld [vmem:[%s10] sm:$0xff]
  %v579 = vld [vmem:[%s10 + $0x8] sm:$0xff]
  %v580 = vld [vmem:[%s10 + $0x10] sm:$0xff]
  %v581 = vld [vmem:[%s10 + $0x18] sm:$0xff]
  %v582 = vld [vmem:[%s11] sm:$0x1]
  %v584 = vlaneseq
  %v585 = vshrl.u32 %v584, 7
  %v586 = vsub.s32 0, %v585
  %v587 = vrot.slane %v582, %v586
  %v590 = vsel %vm56, %v577, 0
  %592 = vmatprep.subr.mxu0 0.0
  %593 = vmatpush1.msra.mxu0 %v578
  %594 = vmatprep.subr.mxu0 0.0
  %595 = vmatpush1.msra.mxu0 %v579
  %596 = vmatprep.subr.mxu0 0.0
  %597 = vmatpush1.msra.mxu0 %v580
  %598 = vmatprep.subr.mxu0 0.0
  %599 = vmatpush1.msra.mxu0 %v581
  %600 = vmatprep.subr.mxu0 0.0
  %601 = vmatpush1.msra.mxu0 0.0
  %602 = vmatprep.subr.mxu0 0.0
  %603 = vmatpush1.msra.mxu0 0.0
  %604 = vmatprep.subr.mxu0 0.0
  %605 = vmatpush1.msra.mxu0 0.0
  %606 = vmatprep.subr.mxu0 0.0
  %607 = vmatpush1.msra.mxu0 0.0
  %608 = vmatprep.subr.mxu0 0.0
  %609 = vmatpush1.msra.mxu0 0.0
  %610 = vmatprep.subr.mxu0 0.0
  %611 = vmatpush1.msra.mxu0 0.0
  %612 = vmatprep.subr.mxu0 0.0
  %613 = vmatpush1.msra.mxu0 0.0
  %614 = vmatprep.subr.mxu0 0.0
  %615 = vmatpush1.msra.mxu0 0.0
  %616 = vmatprep.subr.mxu0 0.0
  %617 = vmatpush1.msra.mxu0 0.0
  %618 = vmatprep.subr.mxu0 0.0
  %619 = vmatpush1.msra.mxu0 0.0
  %620 = vmatprep.subr.mxu0 0.0
  %621 = vmatpush1.msra.mxu0 0.0
  %622 = vmatprep.subr.mxu0 0.0
  %623 = vmatpush1.msra.mxu0 0.0
  %624 = vmatprep.subr.mxu0 0.0
  %625 = vmatpush1.msra.mxu0 0.0
  %626 = vmatprep.subr.mxu0 0.0
  %627 = vmatpush1.msra.mxu0 0.0
  %628 = vmatprep.subr.mxu0 0.0
  %629 = vmatpush1.msra.mxu0 0.0
  %630 = vmatprep.subr.mxu0 0.0
  %631 = vmatpush1.msra.mxu0 0.0
  %632 = vmatprep.subr.mxu0 0.0
  %633 = vmatpush1.msra.mxu0 0.0
  %634 = vmatprep.subr.mxu0 0.0
  %635 = vmatpush1.msra.mxu0 0.0
  %636 = vmatprep.subr.mxu0 0.0
  %637 = vmatpush1.msra.mxu0 0.0
  %638 = vmatprep.subr.mxu0 0.0
  %639 = vmatpush1.msra.mxu0 0.0
  %640 = vmatprep.subr.mxu0 0.0
  %641 = vmatpush1.msra.mxu0 0.0
  %642 = vmatprep.subr.mxu0 0.0
  %643 = vmatpush1.msra.mxu0 0.0
  %644 = vmatprep.subr.mxu0 0.0
  %645 = vmatpush1.msra.mxu0 0.0
  %646 = vmatprep.subr.mxu0 0.0
  %647 = vmatpush1.msra.mxu0 0.0
  %648 = vmatprep.subr.mxu0 0.0
  %649 = vmatpush1.msra.mxu0 0.0
  %650 = vmatprep.subr.mxu0 0.0
  %651 = vmatpush1.msra.mxu0 0.0
  %652 = vmatprep.subr.mxu0 0.0
  %653 = vmatpush1.msra.mxu0 0.0
  %654 = vmatprep.subr.mxu0 0.0
  %655 = vmatpush1.msra.mxu0 0.0
  %656 = vmatprep.mubr.f32.mxu0 0.0
  %657 = vmatmul.mubr.f32.gmra.mrb[0].mxu0 %v590
  %v658 = vpop.f32.mrb[0].mxu0
  %v659 = vadd.f32 %v587, %v658
  %v660 = vpop.f32.mrb[0].mxu0
  %661 = vdwg.mxu0
  %v662 = vmax.f32 %v659, 0.0
  %vm663 = vcmask 254976
  %664 = vst.msk [vmem:[%s12] sm:$0x3] %vm663, %v662
  // Predicated region
  $region50: #{user_model_forward.16} parent=0 // pred_check
    _
  $region51: #{user_model_forward.16} parent=0 // pred_check_branch
    %666 = sbr.rel (0) target = $region53
  $region52: #{user_model_forward.16} parent=0 // pred_region
    _
  $region53: #{user_model_forward.16} parent=0 // pred_fallthru
    _
  // Predicated region
  $region54: #{user_model_forward.16} parent=0 // pred_check
    _
  $region55: #{user_model_forward.16} parent=0 // pred_check_branch
    %668 = sbr.rel (0) target = $region57
  $region56: #{user_model_forward.16} parent=0 // pred_region
    _
  $region57: #{user_model_forward.16} parent=0 // pred_fallthru
    _

</llo_original>
